<compile_context>
chip_gen: v7x
topology: tpu7x:2x2x1
jax: 0.10.0
libtpu: 0.0.40
codegen_flags: <defaults>
</compile_context>

<pallas_src>
import functools

import jax
import jax.numpy as jnp
from jax import lax
from jax.experimental import pallas as pl
from jax.experimental.pallas import tpu as pltpu

# ----------------------------- configuration -------------------------------
B = 2            # batch
C = 3            # image channels
IMG = 16         # image H = W
PATCH_LG = 8     # large patch size  -> 4  patches, patch_dim 192
PATCH_SM = 4     # small patch size  -> 16 patches, patch_dim 48
ENC_DIM = 32     # lg-embedder dim
ENC_DIM_SM = 32  # sm-embedder dim
ENC_HEADS = 4
ENC_DIM_HEAD = 8
DEC_DIM = 64     # decoder_dim (!= ENC_DIM_SM so enc_to_dec is a real Linear)
DEC_DEPTH = 2
DEC_HEADS = 4
DEC_DIM_HEAD = 16
DEC_MLP = DEC_DIM  # mlp_dim = decoder_dim in the module

N_LG = (IMG // PATCH_LG) ** 2          # 4
N_SM = (IMG // PATCH_SM) ** 2          # 16
PD_LG = PATCH_LG * PATCH_LG * C        # 192
PD_SM = PATCH_SM * PATCH_SM * C        # 48


# --------------------------- in-kernel math helpers --------------------------
def _layernorm_f32(x, g, b, eps=1e-5):
    """x: (N, D) f32, g/b: (1, D)."""
    mu = jnp.mean(x, axis=-1, keepdims=True)
    var = jnp.mean(jnp.square(x - mu), axis=-1, keepdims=True)
    return (x - mu) * lax.rsqrt(var + eps) * g + b


def _mha_f32(q_all, k_all, v_all, heads, dim_head):
    """Multi-head softmax attention on packed (rows, heads*dim_head) tensors.

    Head split is done with static lane slices inside the kernel (no transposes
    or wrapper-side reshapes).  Softmax uses the exact divide for parity with
    the PyTorch reference.
    """
    scale = dim_head ** -0.5
    outs = []
    for h in range(heads):
        sl = slice(h * dim_head, (h + 1) * dim_head)
        q = q_all[:, sl]
        k = k_all[:, sl]
        v = v_all[:, sl]
        # q @ k^T without an explicit transpose (contract last dims).
        s = lax.dot_general(q, k, (((1,), (1,)), ((), ())),
                            preferred_element_type=jnp.float32) * scale
        m = jnp.max(s, axis=-1, keepdims=True)
        p = jnp.exp(s - m)
        p = p / jnp.sum(p, axis=-1, keepdims=True)
        outs.append(jnp.dot(p, v, preferred_element_type=jnp.float32))
    return jnp.concatenate(outs, axis=-1)   # (rows, heads*dim_head)


# ------------------------------ fused kernels --------------------------------
def _embed_pos_kernel(p_ref, w_ref, b_ref, pos_ref, o_ref):
    """patch_to_emb Linear fused with the positional-embedding add."""
    x = p_ref[0].astype(jnp.float32)                               # (N, PD)
    y = jnp.dot(x, w_ref[...], preferred_element_type=jnp.float32) + b_ref[...]
    o_ref[0, :, :] = (y + pos_ref[0]).astype(o_ref.dtype)


def _sa_block_kernel(x_ref, ln1g_ref, ln1b_ref, wqkv_ref, wo_ref, bo_ref,
                     ln2g_ref, ln2b_ref, w1_ref, b1_ref, w2_ref, b2_ref,
                     o_ref, *, heads, dim_head):
    """Whole pre-norm transformer block (self-attention + MLP) in one kernel."""
    inner = heads * dim_head
    x = x_ref[0].astype(jnp.float32)                               # (N, D)

    # --- attention sub-layer (pre-norm, fused QKV) ---
    h = _layernorm_f32(x, ln1g_ref[...], ln1b_ref[...])
    qkv = jnp.dot(h, wqkv_ref[...], preferred_element_type=jnp.float32)  # (N, 3*inner)
    attn = _mha_f32(qkv[:, :inner], qkv[:, inner:2 * inner], qkv[:, 2 * inner:],
                    heads, dim_head)
    x = x + jnp.dot(attn, wo_ref[...], preferred_element_type=jnp.float32) + bo_ref[...]

    # --- feed-forward sub-layer (pre-norm) ---
    h = _layernorm_f32(x, ln2g_ref[...], ln2b_ref[...])
    ff = jnp.dot(h, w1_ref[...], preferred_element_type=jnp.float32) + b1_ref[...]
    # TODO(synk): PyTorch nn.GELU default is exact erf; tanh approximation is
    # used here for a Mosaic-safe transcendental (EUP) lowering.
    ff = jax.nn.gelu(ff, approximate=True)
    ff = jnp.dot(ff, w2_ref[...], preferred_element_type=jnp.float32) + b2_ref[...]

    o_ref[0, :, :] = (x + ff).astype(o_ref.dtype)


def _cross_block_kernel(xq_ref, xkv_ref, lnqg_ref, lnqb_ref, lnkg_ref, lnkb_ref,
                        wq_ref, wkv_ref, wo_ref, bo_ref, o_ref,
                        *, heads, dim_head):
    """Pre-norm cross-attention block (sm queries attend to lg keys/values)."""
    inner = heads * dim_head
    xq = xq_ref[0].astype(jnp.float32)                             # (Nq, Dq)
    xkv = xkv_ref[0].astype(jnp.float32)                           # (Nk, Dk)
    hq = _layernorm_f32(xq, lnqg_ref[...], lnqb_ref[...])
    hk = _layernorm_f32(xkv, lnkg_ref[...], lnkb_ref[...])
    q = jnp.dot(hq, wq_ref[...], preferred_element_type=jnp.float32)     # (Nq, inner)
    kv = jnp.dot(hk, wkv_ref[...], preferred_element_type=jnp.float32)   # (Nk, 2*inner)
    attn = _mha_f32(q, kv[:, :inner], kv[:, inner:], heads, dim_head)
    out = jnp.dot(attn, wo_ref[...], preferred_element_type=jnp.float32) + bo_ref[...]
    o_ref[0, :, :] = (xq + out).astype(o_ref.dtype)


def _linear_kernel(x_ref, w_ref, b_ref, o_ref):
    """Plain per-batch Linear (used only for enc_to_dec)."""
    y = jnp.dot(x_ref[0].astype(jnp.float32), w_ref[...],
                preferred_element_type=jnp.float32) + b_ref[...]
    o_ref[0, :, :] = y.astype(o_ref.dtype)


def _pixels_loss_kernel(x_ref, w_ref, b_ref, gt_ref, pred_ref, loss_ref):
    """to_pixels Linear fused with the MSE reduction (sum of squared error)."""
    b = pl.program_id(0)
    pred = jnp.dot(x_ref[0].astype(jnp.float32), w_ref[...],
                   preferred_element_type=jnp.float32) + b_ref[...]
    pred_ref[0, :, :] = pred.astype(pred_ref.dtype)
    d = pred - gt_ref[0].astype(jnp.float32)

    @pl.when(b == 0)
    def _():
        loss_ref[...] = jnp.zeros_like(loss_ref)

    loss_ref[...] += jnp.sum(d * d, keepdims=True)


# ------------------------------ kernel wrappers -----------------------------
def pallas_embed_pos(patches, w, b, pos):
    Bt, N, PD = patches.shape
    D = w.shape[1]
    return pl.pallas_call(
        _embed_pos_kernel,
        out_shape=jax.ShapeDtypeStruct((Bt, N, D), jnp.float32),
        grid=(Bt,),
        in_specs=[
            pl.BlockSpec((1, N, PD), lambda i: (i, 0, 0)),
            pl.BlockSpec((PD, D), lambda i: (0, 0)),
            pl.BlockSpec((1, D), lambda i: (0, 0)),
            pl.BlockSpec((1, N, D), lambda i: (0, 0, 0)),
        ],
        out_specs=pl.BlockSpec((1, N, D), lambda i: (i, 0, 0)),
        compiler_params=pltpu.CompilerParams(dimension_semantics=("parallel",)),
    )(patches, w, b.reshape(1, D), pos)


def transformer_block(x, p, heads, dim_head):
    Bt, N, D = x.shape
    inner = heads * dim_head
    mlp = p["ff1"]["w"].shape[1]
    kern = functools.partial(_sa_block_kernel, heads=heads, dim_head=dim_head)
    full2 = lambda i: (0, 0)
    return pl.pallas_call(
        kern,
        out_shape=jax.ShapeDtypeStruct((Bt, N, D), jnp.float32),
        grid=(Bt,),
        in_specs=[
            pl.BlockSpec((1, N, D), lambda i: (i, 0, 0)),
            pl.BlockSpec((1, D), full2), pl.BlockSpec((1, D), full2),
            pl.BlockSpec((D, 3 * inner), full2),
            pl.BlockSpec((inner, D), full2), pl.BlockSpec((1, D), full2),
            pl.BlockSpec((1, D), full2), pl.BlockSpec((1, D), full2),
            pl.BlockSpec((D, mlp), full2), pl.BlockSpec((1, mlp), full2),
            pl.BlockSpec((mlp, D), full2), pl.BlockSpec((1, D), full2),
        ],
        out_specs=pl.BlockSpec((1, N, D), lambda i: (i, 0, 0)),
        compiler_params=pltpu.CompilerParams(dimension_semantics=("parallel",)),
    )(x,
      p["ln1"]["g"].reshape(1, D), p["ln1"]["b"].reshape(1, D),
      p["attn"]["wqkv"], p["attn"]["wo"], p["attn"]["bo"].reshape(1, D),
      p["ln2"]["g"].reshape(1, D), p["ln2"]["b"].reshape(1, D),
      p["ff1"]["w"], p["ff1"]["b"].reshape(1, mlp),
      p["ff2"]["w"], p["ff2"]["b"].reshape(1, D))


def cross_block(x_q, x_kv, p, heads, dim_head):
    Bt, Nq, Dq = x_q.shape
    _, Nk, Dk = x_kv.shape
    inner = heads * dim_head
    kern = functools.partial(_cross_block_kernel, heads=heads, dim_head=dim_head)
    full2 = lambda i: (0, 0)
    return pl.pallas_call(
        kern,
        out_shape=jax.ShapeDtypeStruct((Bt, Nq, Dq), jnp.float32),
        grid=(Bt,),
        in_specs=[
            pl.BlockSpec((1, Nq, Dq), lambda i: (i, 0, 0)),
            pl.BlockSpec((1, Nk, Dk), lambda i: (i, 0, 0)),
            pl.BlockSpec((1, Dq), full2), pl.BlockSpec((1, Dq), full2),
            pl.BlockSpec((1, Dk), full2), pl.BlockSpec((1, Dk), full2),
            pl.BlockSpec((Dq, inner), full2),
            pl.BlockSpec((Dk, 2 * inner), full2),
            pl.BlockSpec((inner, Dq), full2), pl.BlockSpec((1, Dq), full2),
        ],
        out_specs=pl.BlockSpec((1, Nq, Dq), lambda i: (i, 0, 0)),
        compiler_params=pltpu.CompilerParams(dimension_semantics=("parallel",)),
    )(x_q, x_kv,
      p["ln_q"]["g"].reshape(1, Dq), p["ln_q"]["b"].reshape(1, Dq),
      p["ln_kv"]["g"].reshape(1, Dk), p["ln_kv"]["b"].reshape(1, Dk),
      p["attn"]["wq"], p["attn"]["wkv"], p["attn"]["wo"],
      p["attn"]["bo"].reshape(1, Dq))


def pallas_linear3d(x, w, b):
    Bt, N, K = x.shape
    Dout = w.shape[1]
    return pl.pallas_call(
        _linear_kernel,
        out_shape=jax.ShapeDtypeStruct((Bt, N, Dout), jnp.float32),
        grid=(Bt,),
        in_specs=[
            pl.BlockSpec((1, N, K), lambda i: (i, 0, 0)),
            pl.BlockSpec((K, Dout), lambda i: (0, 0)),
            pl.BlockSpec((1, Dout), lambda i: (0, 0)),
        ],
        out_specs=pl.BlockSpec((1, N, Dout), lambda i: (i, 0, 0)),
        compiler_params=pltpu.CompilerParams(dimension_semantics=("parallel",)),
    )(x, w, b.reshape(1, Dout))


def pallas_to_pixels_and_loss(x, w, b, gt):
    Bt, N, K = x.shape
    P = w.shape[1]
    pred, loss_sum = pl.pallas_call(
        _pixels_loss_kernel,
        out_shape=(jax.ShapeDtypeStruct((Bt, N, P), jnp.float32),
                   jax.ShapeDtypeStruct((1, 1), jnp.float32)),
        grid=(Bt,),
        in_specs=[
            pl.BlockSpec((1, N, K), lambda i: (i, 0, 0)),
            pl.BlockSpec((K, P), lambda i: (0, 0)),
            pl.BlockSpec((1, P), lambda i: (0, 0)),
            pl.BlockSpec((1, N, P), lambda i: (i, 0, 0)),
        ],
        out_specs=[pl.BlockSpec((1, N, P), lambda i: (i, 0, 0)),
                   pl.BlockSpec((1, 1), lambda i: (0, 0))],
        # loss accumulates into the same block across the grid -> "arbitrary"
        compiler_params=pltpu.CompilerParams(dimension_semantics=("arbitrary",)),
    )(x, w, b.reshape(1, P), gt)
    loss = loss_sum[0, 0] / (Bt * N * P)
    return loss, pred


# --------------------------- model building blocks --------------------------
def to_patch(img, p):
    # einops: 'b c (h p1) (w p2) -> b (h w) (p1 p2 c)'
    b, c, H, W = img.shape
    h, w = H // p, W // p
    x = img.reshape(b, c, h, p, w, p)
    x = x.transpose(0, 2, 4, 3, 5, 1)      # b h w p1 p2 c
    return x.reshape(b, h * w, p * p * c)


# ------------------------------ parameter init ------------------------------
def init_params(key):
    keys = jax.random.split(key, 64)
    it = iter(keys)

    def nk():
        return next(it)

    def lin(d_in, d_out):
        return {"w": jax.random.normal(nk(), (d_in, d_out), jnp.float32) * 0.02,
                "b": jnp.zeros((d_out,), jnp.float32)}

    def lnorm(d):
        return {"g": jnp.ones((d,), jnp.float32), "b": jnp.zeros((d,), jnp.float32)}

    def attn_self(dim, heads, dim_head):
        inner = heads * dim_head
        # fused QKV weight (dim, 3*inner); qkv projections have no bias
        return {"wqkv": jax.random.normal(nk(), (dim, 3 * inner), jnp.float32) * 0.02,
                "wo": jax.random.normal(nk(), (inner, dim), jnp.float32) * 0.02,
                "bo": jnp.zeros((dim,), jnp.float32)}

    def attn_cross(d_q, d_kv, heads, dim_head):
        inner = heads * dim_head
        return {"wq": jax.random.normal(nk(), (d_q, inner), jnp.float32) * 0.02,
                "wkv": jax.random.normal(nk(), (d_kv, 2 * inner), jnp.float32) * 0.02,
                "wo": jax.random.normal(nk(), (inner, d_q), jnp.float32) * 0.02,
                "bo": jnp.zeros((d_q,), jnp.float32)}

    def block(dim, heads, dim_head, mlp):
        return {"ln1": lnorm(dim),
                "attn": attn_self(dim, heads, dim_head),
                "ln2": lnorm(dim),
                "ff1": lin(dim, mlp),
                "ff2": lin(mlp, dim)}

    params = {
        # image embedders (Rearrange handled in to_patch; Linear below)
        "patch_to_emb": lin(PD_LG, ENC_DIM),
        "patch_to_emb_sm": lin(PD_SM, ENC_DIM_SM),
        "pos_lg": jax.random.normal(nk(), (1, N_LG + 1, ENC_DIM), jnp.float32) * 0.02,
        "pos_sm": jax.random.normal(nk(), (1, N_SM + 1, ENC_DIM_SM), jnp.float32) * 0.02,
        # multi-scale encoder (CrossViT-style, depth 1)
        "enc_sm_block": block(ENC_DIM_SM, ENC_HEADS, ENC_DIM_HEAD, ENC_DIM_SM),
        "enc_lg_block": block(ENC_DIM, ENC_HEADS, ENC_DIM_HEAD, ENC_DIM),
        "enc_cross": {"ln_q": lnorm(ENC_DIM_SM), "ln_kv": lnorm(ENC_DIM),
                      "attn": attn_cross(ENC_DIM_SM, ENC_DIM, ENC_HEADS, ENC_DIM_HEAD)},
        # BinModel-owned layers
        "enc_to_dec": lin(ENC_DIM_SM, DEC_DIM),
        "decoder_blocks": [block(DEC_DIM, DEC_HEADS, DEC_DIM_HEAD, DEC_MLP)
                           for _ in range(DEC_DEPTH)],
        "to_pixels": lin(DEC_DIM, PD_SM),
        # present in __init__ but unused in forward()
        "mask_token": jax.random.normal(nk(), (DEC_DIM,), jnp.float32),
        "decoder_pos_emb": jax.random.normal(nk(), (N_LG + 1, DEC_DIM), jnp.float32) * 0.02,
    }
    return params


# -------------------------------- forward -----------------------------------
def bin_model_forward(params, img, gt_img):
    # patchify (plain-JAX glue)
    patches = to_patch(img, PATCH_LG)        # (B, N_LG, PD_LG)
    patches_sm = to_patch(img, PATCH_SM)     # (B, N_SM, PD_SM)
    num_patches = patches.shape[1]

    # patch -> embedding Linear fused with pos_embedding[:, 1:n+1] add
    lg_tokens = pallas_embed_pos(patches,
                                 params["patch_to_emb"]["w"],
                                 params["patch_to_emb"]["b"],
                                 params["pos_lg"][:, 1:num_patches + 1])
    sm_tokens = pallas_embed_pos(patches_sm,
                                 params["patch_to_emb_sm"]["w"],
                                 params["patch_to_emb_sm"]["b"],
                                 params["pos_sm"][:, 1:N_SM + 1])

    # multi-scale encoder: sm_tokens, encoded_tokens = encoder(sm, lg)
    sm_tokens = transformer_block(sm_tokens, params["enc_sm_block"], ENC_HEADS, ENC_DIM_HEAD)
    lg_tokens = transformer_block(lg_tokens, params["enc_lg_block"], ENC_HEADS, ENC_DIM_HEAD)
    sm_tokens = cross_block(sm_tokens, lg_tokens, params["enc_cross"], ENC_HEADS, ENC_DIM_HEAD)
    encoded_tokens = lg_tokens  # noqa: F841  (returned by the encoder, unused downstream)

    # enc_to_dec Linear
    decoder_tokens = pallas_linear3d(sm_tokens,
                                     params["enc_to_dec"]["w"],
                                     params["enc_to_dec"]["b"])

    # decoder Transformer (one fused kernel per block)
    x = decoder_tokens
    for blk in params["decoder_blocks"]:
        x = transformer_block(x, blk, DEC_HEADS, DEC_DIM_HEAD)

    # to_pixels Linear fused with mse(pred, to_patch_sm(gt_img))
    gt_patches = to_patch(gt_img, PATCH_SM)
    loss, pred_pixel_values = pallas_to_pixels_and_loss(x,
                                                        params["to_pixels"]["w"],
                                                        params["to_pixels"]["b"],
                                                        gt_patches)

    return loss, patches, pred_pixel_values


# ---------------------------------- main -------------------------------------
if __name__ == "__main__":
    key = jax.random.PRNGKey(0)
    k_img, k_gt, k_params = jax.random.split(key, 3)
    img = jax.random.normal(k_img, (B, C, IMG, IMG), jnp.float32)
    gt_img = jax.random.normal(k_gt, (B, C, IMG, IMG), jnp.float32)
    params = init_params(k_params)

    fwd = jax.jit(bin_model_forward)
    loss, patches, pred = fwd(params, img, gt_img)
    jax.block_until_ready((loss, patches, pred))

    assert patches.shape == (B, N_LG, PD_LG)
    assert pred.shape == (B, N_SM, PD_SM)
    assert loss.shape == ()
    print("KERNEL_OK")
</pallas_src>

<mosaic_0001>
module attributes {stable_mosaic.version = 11 : i64} {
  func.func @_embed_pos_kernel(%arg0: i32, %arg1: memref<1x4x192xf32, #tpu.memory_space<vmem>>, %arg2: memref<192x32xf32, #tpu.memory_space<vmem>>, %arg3: memref<1x32xf32, #tpu.memory_space<vmem>>, %arg4: memref<1x4x32xf32, #tpu.memory_space<vmem>>, %arg5: memref<1x4x32xf32, #tpu.memory_space<vmem>>) attributes {dimension_semantics = [#tpu.dimension_semantics<parallel>], iteration_bounds = array<i64: 2>, scalar_prefetch = 0 : i64, scratch_operands = 0 : i64, tpu.core_type = #tpu.core_type<tc>, window_params = [{transform_indices = @transform_0, window_bounds = array<i64: 1, 4, 192>}, {pipeline_mode = #tpu.pipeline_mode<synchronous>, transform_indices = @transform_1, window_bounds = array<i64: 192, 32>}, {pipeline_mode = #tpu.pipeline_mode<synchronous>, transform_indices = @transform_2, window_bounds = array<i64: 1, 32>}, {pipeline_mode = #tpu.pipeline_mode<synchronous>, transform_indices = @transform_3, window_bounds = array<i64: 1, 4, 32>}, {transform_indices = @transform_4, window_bounds = array<i64: 1, 4, 32>}]} {
    %c0 = arith.constant 0 : index
    %c0_0 = arith.constant 0 : index
    %c0_1 = arith.constant 0 : index
    %0 = vector.load %arg1[%c0, %c0_0, %c0_1] : memref<1x4x192xf32, #tpu.memory_space<vmem>>, vector<1x4x192xf32>
    %1 = vector.shape_cast %0 : vector<1x4x192xf32> to vector<4x192xf32>
    %c0_2 = arith.constant 0 : index
    %c0_3 = arith.constant 0 : index
    %2 = vector.load %arg2[%c0_2, %c0_3] : memref<192x32xf32, #tpu.memory_space<vmem>>, vector<192x32xf32>
    %cst = arith.constant dense<0.000000e+00> : vector<4x32xf32>
    %3 = tpu.matmul %1, %2, %cst {dimension_numbers = #tpu.dot_dimension_numbers<[1], [0], [0], [1], [0, 0, 1, 1], [], []>} : vector<4x192xf32>, vector<192x32xf32>, vector<4x32xf32> -> vector<4x32xf32>
    %c0_4 = arith.constant 0 : index
    %c0_5 = arith.constant 0 : index
    %4 = vector.load %arg3[%c0_4, %c0_5] : memref<1x32xf32, #tpu.memory_space<vmem>>, vector<1x32xf32>
    %5 = vector.broadcast %4 : vector<1x32xf32> to vector<4x32xf32>
    %6 = arith.addf %3, %5 : vector<4x32xf32>
    %c0_6 = arith.constant 0 : index
    %c0_7 = arith.constant 0 : index
    %c0_8 = arith.constant 0 : index
    %7 = vector.load %arg4[%c0_6, %c0_7, %c0_8] : memref<1x4x32xf32, #tpu.memory_space<vmem>>, vector<1x4x32xf32>
    %8 = vector.shape_cast %7 : vector<1x4x32xf32> to vector<4x32xf32>
    %9 = arith.addf %6, %8 : vector<4x32xf32>
    %c0_9 = arith.constant 0 : index
    %c0_10 = arith.constant 0 : index
    %c0_11 = arith.constant 0 : index
    %10 = vector.load %arg5[%c0_9, %c0_10, %c0_11] : memref<1x4x32xf32, #tpu.memory_space<vmem>>, vector<1x4x32xf32>
    %11 = vector.shape_cast %10 : vector<1x4x32xf32> to vector<4x32xf32>
    %12 = vector.shape_cast %9 : vector<4x32xf32> to vector<1x4x32xf32>
    tpu.vector_store %arg5[%c0_9, %c0_10, %c0_11], %12 {strides = array<i32>} : memref<1x4x32xf32, #tpu.memory_space<vmem>>, vector<1x4x32xf32>,
    return
  }
  func.func @transform_0(%arg0: i32) -> (i32, i32, i32) {
    %c0_i32 = arith.constant 0 : i32
    %c0_i32_0 = arith.constant 0 : i32
    %c0_i32_1 = arith.constant 0 : i32
    return %arg0, %c0_i32, %c0_i32_0 : i32, i32, i32
  }
  func.func @transform_1(%arg0: i32) -> (i32, i32) {
    %c0_i32 = arith.constant 0 : i32
    %c0_i32_0 = arith.constant 0 : i32
    %c0_i32_1 = arith.constant 0 : i32
    return %c0_i32, %c0_i32_0 : i32, i32
  }
  func.func @transform_2(%arg0: i32) -> (i32, i32) {
    %c0_i32 = arith.constant 0 : i32
    %c0_i32_0 = arith.constant 0 : i32
    %c0_i32_1 = arith.constant 0 : i32
    return %c0_i32, %c0_i32_0 : i32, i32
  }
  func.func @transform_3(%arg0: i32) -> (i32, i32, i32) {
    %c0_i32 = arith.constant 0 : i32
    %c0_i32_0 = arith.constant 0 : i32
    %c0_i32_1 = arith.constant 0 : i32
    %c0_i32_2 = arith.constant 0 : i32
    return %c0_i32, %c0_i32_0, %c0_i32_1 : i32, i32, i32
  }
  func.func @transform_4(%arg0: i32) -> (i32, i32, i32) {
    %c0_i32 = arith.constant 0 : i32
    %c0_i32_0 = arith.constant 0 : i32
    %c0_i32_1 = arith.constant 0 : i32
    return %arg0, %c0_i32, %c0_i32_0 : i32, i32, i32
  }
}

module attributes {stable_mosaic.version = 11 : i64} {
  func.func @_sa_block_kernel(%arg0: i32, %arg1: memref<1x4x32xf32, #tpu.memory_space<vmem>>, %arg2: memref<1x32xf32, #tpu.memory_space<vmem>>, %arg3: memref<1x32xf32, #tpu.memory_space<vmem>>, %arg4: memref<32x96xf32, #tpu.memory_space<vmem>>, %arg5: memref<32x32xf32, #tpu.memory_space<vmem>>, %arg6: memref<1x32xf32, #tpu.memory_space<vmem>>, %arg7: memref<1x32xf32, #tpu.memory_space<vmem>>, %arg8: memref<1x32xf32, #tpu.memory_space<vmem>>, %arg9: memref<32x32xf32, #tpu.memory_space<vmem>>, %arg10: memref<1x32xf32, #tpu.memory_space<vmem>>, %arg11: memref<32x32xf32, #tpu.memory_space<vmem>>, %arg12: memref<1x32xf32, #tpu.memory_space<vmem>>, %arg13: memref<1x4x32xf32, #tpu.memory_space<vmem>>) attributes {dimension_semantics = [#tpu.dimension_semantics<parallel>], iteration_bounds = array<i64: 2>, scalar_prefetch = 0 : i64, scratch_operands = 0 : i64, tpu.core_type = #tpu.core_type<tc>, window_params = [{transform_indices = @transform_0, window_bounds = array<i64: 1, 4, 32>}, {pipeline_mode = #tpu.pipeline_mode<synchronous>, transform_indices = @transform_1, window_bounds = array<i64: 1, 32>}, {pipeline_mode = #tpu.pipeline_mode<synchronous>, transform_indices = @transform_2, window_bounds = array<i64: 1, 32>}, {pipeline_mode = #tpu.pipeline_mode<synchronous>, transform_indices = @transform_3, window_bounds = array<i64: 32, 96>}, {pipeline_mode = #tpu.pipeline_mode<synchronous>, transform_indices = @transform_4, window_bounds = array<i64: 32, 32>}, {pipeline_mode = #tpu.pipeline_mode<synchronous>, transform_indices = @transform_5, window_bounds = array<i64: 1, 32>}, {pipeline_mode = #tpu.pipeline_mode<synchronous>, transform_indices = @transform_6, window_bounds = array<i64: 1, 32>}, {pipeline_mode = #tpu.pipeline_mode<synchronous>, transform_indices = @transform_7, window_bounds = array<i64: 1, 32>}, {pipeline_mode = #tpu.pipeline_mode<synchronous>, transform_indices = @transform_8, window_bounds = array<i64: 32, 32>}, {pipeline_mode = #tpu.pipeline_mode<synchronous>, transform_indices = @transform_9, window_bounds = array<i64: 1, 32>}, {pipeline_mode = #tpu.pipeline_mode<synchronous>, transform_indices = @transform_10, window_bounds = array<i64: 32, 32>}, {pipeline_mode = #tpu.pipeline_mode<synchronous>, transform_indices = @transform_11, window_bounds = array<i64: 1, 32>}, {transform_indices = @transform_12, window_bounds = array<i64: 1, 4, 32>}]} {
    %c0 = arith.constant 0 : index
    %c0_0 = arith.constant 0 : index
    %c0_1 = arith.constant 0 : index
    %0 = vector.load %arg1[%c0, %c0_0, %c0_1] : memref<1x4x32xf32, #tpu.memory_space<vmem>>, vector<1x4x32xf32>
    %1 = vector.shape_cast %0 : vector<1x4x32xf32> to vector<4x32xf32>
    %c0_2 = arith.constant 0 : index
    %c0_3 = arith.constant 0 : index
    %2 = vector.load %arg2[%c0_2, %c0_3] : memref<1x32xf32, #tpu.memory_space<vmem>>, vector<1x32xf32>
    %c0_4 = arith.constant 0 : index
    %c0_5 = arith.constant 0 : index
    %3 = vector.load %arg3[%c0_4, %c0_5] : memref<1x32xf32, #tpu.memory_space<vmem>>, vector<1x32xf32>
    %cst = arith.constant dense<0.000000e+00> : vector<4xf32>
    %4 = vector.multi_reduction <add>, %1, %cst [1] : vector<4x32xf32> to vector<4xf32>
    %5 = vector.shape_cast %4 : vector<4xf32> to vector<4x1xf32>
    %cst_6 = arith.constant 3.200000e+01 : f32
    %6 = vector.broadcast %cst_6 : f32 to vector<4x1xf32>
    %7 = arith.divf %5, %6 : vector<4x1xf32>
    %8 = vector.broadcast %7 : vector<4x1xf32> to vector<4x32xf32>
    %9 = arith.subf %1, %8 : vector<4x32xf32>
    %10 = arith.mulf %9, %9 : vector<4x32xf32>
    %cst_7 = arith.constant dense<0.000000e+00> : vector<4xf32>
    %11 = vector.multi_reduction <add>, %10, %cst_7 [1] : vector<4x32xf32> to vector<4xf32>
    %12 = vector.shape_cast %11 : vector<4xf32> to vector<4x1xf32>
    %cst_8 = arith.constant 3.200000e+01 : f32
    %13 = vector.broadcast %cst_8 : f32 to vector<4x1xf32>
    %14 = arith.divf %12, %13 : vector<4x1xf32>
    %15 = vector.broadcast %7 : vector<4x1xf32> to vector<4x32xf32>
    %16 = arith.subf %1, %15 : vector<4x32xf32>
    %cst_9 = arith.constant 9.99999974E-6 : f32
    %17 = vector.broadcast %cst_9 : f32 to vector<4x1xf32>
    %18 = arith.addf %14, %17 : vector<4x1xf32>
    %19 = math.rsqrt %18 : vector<4x1xf32>
    %20 = vector.broadcast %19 : vector<4x1xf32> to vector<4x32xf32>
    %21 = arith.mulf %16, %20 : vector<4x32xf32>
    %22 = vector.broadcast %2 : vector<1x32xf32> to vector<4x32xf32>
    %23 = arith.mulf %21, %22 : vector<4x32xf32>
    %24 = vector.broadcast %3 : vector<1x32xf32> to vector<4x32xf32>
    %25 = arith.addf %23, %24 : vector<4x32xf32>
    %c0_10 = arith.constant 0 : index
    %c0_11 = arith.constant 0 : index
    %26 = vector.load %arg4[%c0_10, %c0_11] : memref<32x96xf32, #tpu.memory_space<vmem>>, vector<32x96xf32>
    %cst_12 = arith.constant dense<0.000000e+00> : vector<4x96xf32>
    %27 = tpu.matmul %25, %26, %cst_12 {dimension_numbers = #tpu.dot_dimension_numbers<[1], [0], [0], [1], [0, 0, 1, 1], [], []>} : vector<4x32xf32>, vector<32x96xf32>, vector<4x96xf32> -> vector<4x96xf32>
    %28 = vector.extract_strided_slice %27 {offsets = [0, 0], sizes = [4, 32], strides = [1, 1]} : vector<4x96xf32> to vector<4x32xf32>
    %29 = vector.extract_strided_slice %27 {offsets = [0, 32], sizes = [4, 32], strides = [1, 1]} : vector<4x96xf32> to vector<4x32xf32>
    %30 = vector.extract_strided_slice %27 {offsets = [0, 64], sizes = [4, 32], strides = [1, 1]} : vector<4x96xf32> to vector<4x32xf32>
    %31 = vector.extract_strided_slice %28 {offsets = [0, 0], sizes = [4, 8], strides = [1, 1]} : vector<4x32xf32> to vector<4x8xf32>
    %32 = vector.extract_strided_slice %29 {offsets = [0, 0], sizes = [4, 8], strides = [1, 1]} : vector<4x32xf32> to vector<4x8xf32>
    %33 = vector.extract_strided_slice %30 {offsets = [0, 0], sizes = [4, 8], strides = [1, 1]} : vector<4x32xf32> to vector<4x8xf32>
    %cst_13 = arith.constant dense<0.000000e+00> : vector<4x4xf32>
    %34 = tpu.matmul %31, %32, %cst_13 {dimension_numbers = #tpu.dot_dimension_numbers<[1], [1], [0], [0], [0, 0, 1, 0], [], []>} : vector<4x8xf32>, vector<4x8xf32>, vector<4x4xf32> -> vector<4x4xf32>
    %cst_14 = arith.constant 0.353553385 : f32
    %35 = vector.broadcast %cst_14 : f32 to vector<4x4xf32>
    %36 = arith.mulf %34, %35 : vector<4x4xf32>
    %cst_15 = arith.constant dense<0xFF800000> : vector<4xf32>
    %37 = vector.multi_reduction <maximumf>, %36, %cst_15 [1] : vector<4x4xf32> to vector<4xf32>
    %38 = vector.shape_cast %37 : vector<4xf32> to vector<4x1xf32>
    %39 = vector.broadcast %38 : vector<4x1xf32> to vector<4x4xf32>
    %40 = arith.subf %36, %39 : vector<4x4xf32>
    %41 = math.exp %40 : vector<4x4xf32>
    %cst_16 = arith.constant dense<0.000000e+00> : vector<4xf32>
    %42 = vector.multi_reduction <add>, %41, %cst_16 [1] : vector<4x4xf32> to vector<4xf32>
    %43 = vector.shape_cast %42 : vector<4xf32> to vector<4x1xf32>
    %44 = vector.broadcast %43 : vector<4x1xf32> to vector<4x4xf32>
    %45 = arith.divf %41, %44 : vector<4x4xf32>
    %cst_17 = arith.constant dense<0.000000e+00> : vector<4x8xf32>
    %46 = tpu.matmul %45, %33, %cst_17 {dimension_numbers = #tpu.dot_dimension_numbers<[1], [0], [0], [1], [0, 0, 1, 1], [], []>} : vector<4x4xf32>, vector<4x8xf32>, vector<4x8xf32> -> vector<4x8xf32>
    %47 = vector.extract_strided_slice %28 {offsets = [0, 8], sizes = [4, 8], strides = [1, 1]} : vector<4x32xf32> to vector<4x8xf32>
    %48 = vector.extract_strided_slice %29 {offsets = [0, 8], sizes = [4, 8], strides = [1, 1]} : vector<4x32xf32> to vector<4x8xf32>
    %49 = vector.extract_strided_slice %30 {offsets = [0, 8], sizes = [4, 8], strides = [1, 1]} : vector<4x32xf32> to vector<4x8xf32>
    %cst_18 = arith.constant dense<0.000000e+00> : vector<4x4xf32>
    %50 = tpu.matmul %47, %48, %cst_18 {dimension_numbers = #tpu.dot_dimension_numbers<[1], [1], [0], [0], [0, 0, 1, 0], [], []>} : vector<4x8xf32>, vector<4x8xf32>, vector<4x4xf32> -> vector<4x4xf32>
    %cst_19 = arith.constant 0.353553385 : f32
    %51 = vector.broadcast %cst_19 : f32 to vector<4x4xf32>
    %52 = arith.mulf %50, %51 : vector<4x4xf32>
    %cst_20 = arith.constant dense<0xFF800000> : vector<4xf32>
    %53 = vector.multi_reduction <maximumf>, %52, %cst_20 [1] : vector<4x4xf32> to vector<4xf32>
    %54 = vector.shape_cast %53 : vector<4xf32> to vector<4x1xf32>
    %55 = vector.broadcast %54 : vector<4x1xf32> to vector<4x4xf32>
    %56 = arith.subf %52, %55 : vector<4x4xf32>
    %57 = math.exp %56 : vector<4x4xf32>
    %cst_21 = arith.constant dense<0.000000e+00> : vector<4xf32>
    %58 = vector.multi_reduction <add>, %57, %cst_21 [1] : vector<4x4xf32> to vector<4xf32>
    %59 = vector.shape_cast %58 : vector<4xf32> to vector<4x1xf32>
    %60 = vector.broadcast %59 : vector<4x1xf32> to vector<4x4xf32>
    %61 = arith.divf %57, %60 : vector<4x4xf32>
    %cst_22 = arith.constant dense<0.000000e+00> : vector<4x8xf32>
    %62 = tpu.matmul %61, %49, %cst_22 {dimension_numbers = #tpu.dot_dimension_numbers<[1], [0], [0], [1], [0, 0, 1, 1], [], []>} : vector<4x4xf32>, vector<4x8xf32>, vector<4x8xf32> -> vector<4x8xf32>
    %63 = vector.extract_strided_slice %28 {offsets = [0, 16], sizes = [4, 8], strides = [1, 1]} : vector<4x32xf32> to vector<4x8xf32>
    %64 = vector.extract_strided_slice %29 {offsets = [0, 16], sizes = [4, 8], strides = [1, 1]} : vector<4x32xf32> to vector<4x8xf32>
    %65 = vector.extract_strided_slice %30 {offsets = [0, 16], sizes = [4, 8], strides = [1, 1]} : vector<4x32xf32> to vector<4x8xf32>
    %cst_23 = arith.constant dense<0.000000e+00> : vector<4x4xf32>
    %66 = tpu.matmul %63, %64, %cst_23 {dimension_numbers = #tpu.dot_dimension_numbers<[1], [1], [0], [0], [0, 0, 1, 0], [], []>} : vector<4x8xf32>, vector<4x8xf32>, vector<4x4xf32> -> vector<4x4xf32>
    %cst_24 = arith.constant 0.353553385 : f32
    %67 = vector.broadcast %cst_24 : f32 to vector<4x4xf32>
    %68 = arith.mulf %66, %67 : vector<4x4xf32>
    %cst_25 = arith.constant dense<0xFF800000> : vector<4xf32>
    %69 = vector.multi_reduction <maximumf>, %68, %cst_25 [1] : vector<4x4xf32> to vector<4xf32>
    %70 = vector.shape_cast %69 : vector<4xf32> to vector<4x1xf32>
    %71 = vector.broadcast %70 : vector<4x1xf32> to vector<4x4xf32>
    %72 = arith.subf %68, %71 : vector<4x4xf32>
    %73 = math.exp %72 : vector<4x4xf32>
    %cst_26 = arith.constant dense<0.000000e+00> : vector<4xf32>
    %74 = vector.multi_reduction <add>, %73, %cst_26 [1] : vector<4x4xf32> to vector<4xf32>
    %75 = vector.shape_cast %74 : vector<4xf32> to vector<4x1xf32>
    %76 = vector.broadcast %75 : vector<4x1xf32> to vector<4x4xf32>
    %77 = arith.divf %73, %76 : vector<4x4xf32>
    %cst_27 = arith.constant dense<0.000000e+00> : vector<4x8xf32>
    %78 = tpu.matmul %77, %65, %cst_27 {dimension_numbers = #tpu.dot_dimension_numbers<[1], [0], [0], [1], [0, 0, 1, 1], [], []>} : vector<4x4xf32>, vector<4x8xf32>, vector<4x8xf32> -> vector<4x8xf32>
    %79 = vector.extract_strided_slice %28 {offsets = [0, 24], sizes = [4, 8], strides = [1, 1]} : vector<4x32xf32> to vector<4x8xf32>
    %80 = vector.extract_strided_slice %29 {offsets = [0, 24], sizes = [4, 8], strides = [1, 1]} : vector<4x32xf32> to vector<4x8xf32>
    %81 = vector.extract_strided_slice %30 {offsets = [0, 24], sizes = [4, 8], strides = [1, 1]} : vector<4x32xf32> to vector<4x8xf32>
    %cst_28 = arith.constant dense<0.000000e+00> : vector<4x4xf32>
    %82 = tpu.matmul %79, %80, %cst_28 {dimension_numbers = #tpu.dot_dimension_numbers<[1], [1], [0], [0], [0, 0, 1, 0], [], []>} : vector<4x8xf32>, vector<4x8xf32>, vector<4x4xf32> -> vector<4x4xf32>
    %cst_29 = arith.constant 0.353553385 : f32
    %83 = vector.broadcast %cst_29 : f32 to vector<4x4xf32>
    %84 = arith.mulf %82, %83 : vector<4x4xf32>
    %cst_30 = arith.constant dense<0xFF800000> : vector<4xf32>
    %85 = vector.multi_reduction <maximumf>, %84, %cst_30 [1] : vector<4x4xf32> to vector<4xf32>
    %86 = vector.shape_cast %85 : vector<4xf32> to vector<4x1xf32>
    %87 = vector.broadcast %86 : vector<4x1xf32> to vector<4x4xf32>
    %88 = arith.subf %84, %87 : vector<4x4xf32>
    %89 = math.exp %88 : vector<4x4xf32>
    %cst_31 = arith.constant dense<0.000000e+00> : vector<4xf32>
    %90 = vector.multi_reduction <add>, %89, %cst_31 [1] : vector<4x4xf32> to vector<4xf32>
    %91 = vector.shape_cast %90 : vector<4xf32> to vector<4x1xf32>
    %92 = vector.broadcast %91 : vector<4x1xf32> to vector<4x4xf32>
    %93 = arith.divf %89, %92 : vector<4x4xf32>
    %cst_32 = arith.constant dense<0.000000e+00> : vector<4x8xf32>
    %94 = tpu.matmul %93, %81, %cst_32 {dimension_numbers = #tpu.dot_dimension_numbers<[1], [0], [0], [1], [0, 0, 1, 1], [], []>} : vector<4x4xf32>, vector<4x8xf32>, vector<4x8xf32> -> vector<4x8xf32>
    %95 = tpu.concatenate %46, %62, %78, %94 in 1 : vector<4x8xf32>, vector<4x8xf32>, vector<4x8xf32>, vector<4x8xf32> -> vector<4x32xf32>
    %c0_33 = arith.constant 0 : index
    %c0_34 = arith.constant 0 : index
    %96 = vector.load %arg5[%c0_33, %c0_34] : memref<32x32xf32, #tpu.memory_space<vmem>>, vector<32x32xf32>
    %cst_35 = arith.constant dense<0.000000e+00> : vector<4x32xf32>
    %97 = tpu.matmul %95, %96, %cst_35 {dimension_numbers = #tpu.dot_dimension_numbers<[1], [0], [0], [1], [0, 0, 1, 1], [], []>} : vector<4x32xf32>, vector<32x32xf32>, vector<4x32xf32> -> vector<4x32xf32>
    %98 = arith.addf %1, %97 : vector<4x32xf32>
    %c0_36 = arith.constant 0 : index
    %c0_37 = arith.constant 0 : index
    %99 = vector.load %arg6[%c0_36, %c0_37] : memref<1x32xf32, #tpu.memory_space<vmem>>, vector<1x32xf32>
    %100 = vector.broadcast %99 : vector<1x32xf32> to vector<4x32xf32>
    %101 = arith.addf %98, %100 : vector<4x32xf32>
    %c0_38 = arith.constant 0 : index
    %c0_39 = arith.constant 0 : index
    %102 = vector.load %arg7[%c0_38, %c0_39] : memref<1x32xf32, #tpu.memory_space<vmem>>, vector<1x32xf32>
    %c0_40 = arith.constant 0 : index
    %c0_41 = arith.constant 0 : index
    %103 = vector.load %arg8[%c0_40, %c0_41] : memref<1x32xf32, #tpu.memory_space<vmem>>, vector<1x32xf32>
    %cst_42 = arith.constant dense<0.000000e+00> : vector<4xf32>
    %104 = vector.multi_reduction <add>, %101, %cst_42 [1] : vector<4x32xf32> to vector<4xf32>
    %105 = vector.shape_cast %104 : vector<4xf32> to vector<4x1xf32>
    %cst_43 = arith.constant 3.200000e+01 : f32
    %106 = vector.broadcast %cst_43 : f32 to vector<4x1xf32>
    %107 = arith.divf %105, %106 : vector<4x1xf32>
    %108 = vector.broadcast %107 : vector<4x1xf32> to vector<4x32xf32>
    %109 = arith.subf %101, %108 : vector<4x32xf32>
    %110 = arith.mulf %109, %109 : vector<4x32xf32>
    %cst_44 = arith.constant dense<0.000000e+00> : vector<4xf32>
    %111 = vector.multi_reduction <add>, %110, %cst_44 [1] : vector<4x32xf32> to vector<4xf32>
    %112 = vector.shape_cast %111 : vector<4xf32> to vector<4x1xf32>
    %cst_45 = arith.constant 3.200000e+01 : f32
    %113 = vector.broadcast %cst_45 : f32 to vector<4x1xf32>
    %114 = arith.divf %112, %113 : vector<4x1xf32>
    %115 = vector.broadcast %107 : vector<4x1xf32> to vector<4x32xf32>
    %116 = arith.subf %101, %115 : vector<4x32xf32>
    %cst_46 = arith.constant 9.99999974E-6 : f32
    %117 = vector.broadcast %cst_46 : f32 to vector<4x1xf32>
    %118 = arith.addf %114, %117 : vector<4x1xf32>
    %119 = math.rsqrt %118 : vector<4x1xf32>
    %120 = vector.broadcast %119 : vector<4x1xf32> to vector<4x32xf32>
    %121 = arith.mulf %116, %120 : vector<4x32xf32>
    %122 = vector.broadcast %102 : vector<1x32xf32> to vector<4x32xf32>
    %123 = arith.mulf %121, %122 : vector<4x32xf32>
    %124 = vector.broadcast %103 : vector<1x32xf32> to vector<4x32xf32>
    %125 = arith.addf %123, %124 : vector<4x32xf32>
    %c0_47 = arith.constant 0 : index
    %c0_48 = arith.constant 0 : index
    %126 = vector.load %arg9[%c0_47, %c0_48] : memref<32x32xf32, #tpu.memory_space<vmem>>, vector<32x32xf32>
    %cst_49 = arith.constant dense<0.000000e+00> : vector<4x32xf32>
    %127 = tpu.matmul %125, %126, %cst_49 {dimension_numbers = #tpu.dot_dimension_numbers<[1], [0], [0], [1], [0, 0, 1, 1], [], []>} : vector<4x32xf32>, vector<32x32xf32>, vector<4x32xf32> -> vector<4x32xf32>
    %c0_50 = arith.constant 0 : index
    %c0_51 = arith.constant 0 : index
    %128 = vector.load %arg10[%c0_50, %c0_51] : memref<1x32xf32, #tpu.memory_space<vmem>>, vector<1x32xf32>
    %129 = vector.broadcast %128 : vector<1x32xf32> to vector<4x32xf32>
    %130 = arith.addf %127, %129 : vector<4x32xf32>
    %131 = arith.mulf %130, %130 : vector<4x32xf32>
    %132 = arith.mulf %130, %131 : vector<4x32xf32>
    %cst_52 = arith.constant 4.471500e-02 : f32
    %133 = vector.broadcast %cst_52 : f32 to vector<4x32xf32>
    %134 = arith.mulf %133, %132 : vector<4x32xf32>
    %135 = arith.addf %130, %134 : vector<4x32xf32>
    %cst_53 = arith.constant 0.797884583 : f32
    %136 = vector.broadcast %cst_53 : f32 to vector<4x32xf32>
    %137 = arith.mulf %136, %135 : vector<4x32xf32>
    %138 = math.tanh %137 : vector<4x32xf32>
    %cst_54 = arith.constant 1.000000e+00 : f32
    %139 = vector.broadcast %cst_54 : f32 to vector<4x32xf32>
    %140 = arith.addf %139, %138 : vector<4x32xf32>
    %cst_55 = arith.constant 5.000000e-01 : f32
    %141 = vector.broadcast %cst_55 : f32 to vector<4x32xf32>
    %142 = arith.mulf %141, %140 : vector<4x32xf32>
    %143 = arith.mulf %130, %142 : vector<4x32xf32>
    %c0_56 = arith.constant 0 : index
    %c0_57 = arith.constant 0 : index
    %144 = vector.load %arg11[%c0_56, %c0_57] : memref<32x32xf32, #tpu.memory_space<vmem>>, vector<32x32xf32>
    %cst_58 = arith.constant dense<0.000000e+00> : vector<4x32xf32>
    %145 = tpu.matmul %143, %144, %cst_58 {dimension_numbers = #tpu.dot_dimension_numbers<[1], [0], [0], [1], [0, 0, 1, 1], [], []>} : vector<4x32xf32>, vector<32x32xf32>, vector<4x32xf32> -> vector<4x32xf32>
    %c0_59 = arith.constant 0 : index
    %c0_60 = arith.constant 0 : index
    %146 = vector.load %arg12[%c0_59, %c0_60] : memref<1x32xf32, #tpu.memory_space<vmem>>, vector<1x32xf32>
    %147 = vector.broadcast %146 : vector<1x32xf32> to vector<4x32xf32>
    %148 = arith.addf %145, %147 : vector<4x32xf32>
    %149 = arith.addf %101, %148 : vector<4x32xf32>
    %c0_61 = arith.constant 0 : index
    %c0_62 = arith.constant 0 : index
    %c0_63 = arith.constant 0 : index
    %150 = vector.load %arg13[%c0_61, %c0_62, %c0_63] : memref<1x4x32xf32, #tpu.memory_space<vmem>>, vector<1x4x32xf32>
    %151 = vector.shape_cast %150 : vector<1x4x32xf32> to vector<4x32xf32>
    %152 = vector.shape_cast %149 : vector<4x32xf32> to vector<1x4x32xf32>
    tpu.vector_store %arg13[%c0_61, %c0_62, %c0_63], %152 {strides = array<i32>} : memref<1x4x32xf32, #tpu.memory_space<vmem>>, vector<1x4x32xf32>,
    return
  }
  func.func @transform_0(%arg0: i32) -> (i32, i32, i32) {
    %c0_i32 = arith.constant 0 : i32
    %c0_i32_0 = arith.constant 0 : i32
    %c0_i32_1 = arith.constant 0 : i32
    return %arg0, %c0_i32, %c0_i32_0 : i32, i32, i32
  }
  func.func @transform_1(%arg0: i32) -> (i32, i32) {
    %c0_i32 = arith.constant 0 : i32
    %c0_i32_0 = arith.constant 0 : i32
    %c0_i32_1 = arith.constant 0 : i32
    return %c0_i32, %c0_i32_0 : i32, i32
  }
  func.func @transform_2(%arg0: i32) -> (i32, i32) {
    %c0_i32 = arith.constant 0 : i32
    %c0_i32_0 = arith.constant 0 : i32
    %c0_i32_1 = arith.constant 0 : i32
    return %c0_i32, %c0_i32_0 : i32, i32
  }
  func.func @transform_3(%arg0: i32) -> (i32, i32) {
    %c0_i32 = arith.constant 0 : i32
    %c0_i32_0 = arith.constant 0 : i32
    %c0_i32_1 = arith.constant 0 : i32
    return %c0_i32, %c0_i32_0 : i32, i32
  }
  func.func @transform_4(%arg0: i32) -> (i32, i32) {
    %c0_i32 = arith.constant 0 : i32
    %c0_i32_0 = arith.constant 0 : i32
    %c0_i32_1 = arith.constant 0 : i32
    return %c0_i32, %c0_i32_0 : i32, i32
  }
  func.func @transform_5(%arg0: i32) -> (i32, i32) {
    %c0_i32 = arith.constant 0 : i32
    %c0_i32_0 = arith.constant 0 : i32
    %c0_i32_1 = arith.constant 0 : i32
    return %c0_i32, %c0_i32_0 : i32, i32
  }
  func.func @transform_6(%arg0: i32) -> (i32, i32) {
    %c0_i32 = arith.constant 0 : i32
    %c0_i32_0 = arith.constant 0 : i32
    %c0_i32_1 = arith.constant 0 : i32
    return %c0_i32, %c0_i32_0 : i32, i32
  }
  func.func @transform_7(%arg0: i32) -> (i32, i32) {
    %c0_i32 = arith.constant 0 : i32
    %c0_i32_0 = arith.constant 0 : i32
    %c0_i32_1 = arith.constant 0 : i32
    return %c0_i32, %c0_i32_0 : i32, i32
  }
  func.func @transform_8(%arg0: i32) -> (i32, i32) {
    %c0_i32 = arith.constant 0 : i32
    %c0_i32_0 = arith.constant 0 : i32
    %c0_i32_1 = arith.constant 0 : i32
    return %c0_i32, %c0_i32_0 : i32, i32
  }
  func.func @transform_9(%arg0: i32) -> (i32, i32) {
    %c0_i32 = arith.constant 0 : i32
    %c0_i32_0 = arith.constant 0 : i32
    %c0_i32_1 = arith.constant 0 : i32
    return %c0_i32, %c0_i32_0 : i32, i32
  }
  func.func @transform_10(%arg0: i32) -> (i32, i32) {
    %c0_i32 = arith.constant 0 : i32
    %c0_i32_0 = arith.constant 0 : i32
    %c0_i32_1 = arith.constant 0 : i32
    return %c0_i32, %c0_i32_0 : i32, i32
  }
  func.func @transform_11(%arg0: i32) -> (i32, i32) {
    %c0_i32 = arith.constant 0 : i32
    %c0_i32_0 = arith.constant 0 : i32
    %c0_i32_1 = arith.constant 0 : i32
    return %c0_i32, %c0_i32_0 : i32, i32
  }
  func.func @transform_12(%arg0: i32) -> (i32, i32, i32) {
    %c0_i32 = arith.constant 0 : i32
    %c0_i32_0 = arith.constant 0 : i32
    %c0_i32_1 = arith.constant 0 : i32
    return %arg0, %c0_i32, %c0_i32_0 : i32, i32, i32
  }
}

module attributes {stable_mosaic.version = 11 : i64} {
  func.func @_sa_block_kernel(%arg0: i32, %arg1: memref<1x16x32xf32, #tpu.memory_space<vmem>>, %arg2: memref<1x32xf32, #tpu.memory_space<vmem>>, %arg3: memref<1x32xf32, #tpu.memory_space<vmem>>, %arg4: memref<32x96xf32, #tpu.memory_space<vmem>>, %arg5: memref<32x32xf32, #tpu.memory_space<vmem>>, %arg6: memref<1x32xf32, #tpu.memory_space<vmem>>, %arg7: memref<1x32xf32, #tpu.memory_space<vmem>>, %arg8: memref<1x32xf32, #tpu.memory_space<vmem>>, %arg9: memref<32x32xf32, #tpu.memory_space<vmem>>, %arg10: memref<1x32xf32, #tpu.memory_space<vmem>>, %arg11: memref<32x32xf32, #tpu.memory_space<vmem>>, %arg12: memref<1x32xf32, #tpu.memory_space<vmem>>, %arg13: memref<1x16x32xf32, #tpu.memory_space<vmem>>) attributes {dimension_semantics = [#tpu.dimension_semantics<parallel>], iteration_bounds = array<i64: 2>, scalar_prefetch = 0 : i64, scratch_operands = 0 : i64, tpu.core_type = #tpu.core_type<tc>, window_params = [{transform_indices = @transform_0, window_bounds = array<i64: 1, 16, 32>}, {pipeline_mode = #tpu.pipeline_mode<synchronous>, transform_indices = @transform_1, window_bounds = array<i64: 1, 32>}, {pipeline_mode = #tpu.pipeline_mode<synchronous>, transform_indices = @transform_2, window_bounds = array<i64: 1, 32>}, {pipeline_mode = #tpu.pipeline_mode<synchronous>, transform_indices = @transform_3, window_bounds = array<i64: 32, 96>}, {pipeline_mode = #tpu.pipeline_mode<synchronous>, transform_indices = @transform_4, window_bounds = array<i64: 32, 32>}, {pipeline_mode = #tpu.pipeline_mode<synchronous>, transform_indices = @transform_5, window_bounds = array<i64: 1, 32>}, {pipeline_mode = #tpu.pipeline_mode<synchronous>, transform_indices = @transform_6, window_bounds = array<i64: 1, 32>}, {pipeline_mode = #tpu.pipeline_mode<synchronous>, transform_indices = @transform_7, window_bounds = array<i64: 1, 32>}, {pipeline_mode = #tpu.pipeline_mode<synchronous>, transform_indices = @transform_8, window_bounds = array<i64: 32, 32>}, {pipeline_mode = #tpu.pipeline_mode<synchronous>, transform_indices = @transform_9, window_bounds = array<i64: 1, 32>}, {pipeline_mode = #tpu.pipeline_mode<synchronous>, transform_indices = @transform_10, window_bounds = array<i64: 32, 32>}, {pipeline_mode = #tpu.pipeline_mode<synchronous>, transform_indices = @transform_11, window_bounds = array<i64: 1, 32>}, {transform_indices = @transform_12, window_bounds = array<i64: 1, 16, 32>}]} {
    %c0 = arith.constant 0 : index
    %c0_0 = arith.constant 0 : index
    %c0_1 = arith.constant 0 : index
    %0 = vector.load %arg1[%c0, %c0_0, %c0_1] : memref<1x16x32xf32, #tpu.memory_space<vmem>>, vector<1x16x32xf32>
    %1 = vector.shape_cast %0 : vector<1x16x32xf32> to vector<16x32xf32>
    %c0_2 = arith.constant 0 : index
    %c0_3 = arith.constant 0 : index
    %2 = vector.load %arg2[%c0_2, %c0_3] : memref<1x32xf32, #tpu.memory_space<vmem>>, vector<1x32xf32>
    %c0_4 = arith.constant 0 : index
    %c0_5 = arith.constant 0 : index
    %3 = vector.load %arg3[%c0_4, %c0_5] : memref<1x32xf32, #tpu.memory_space<vmem>>, vector<1x32xf32>
    %cst = arith.constant dense<0.000000e+00> : vector<16xf32>
    %4 = vector.multi_reduction <add>, %1, %cst [1] : vector<16x32xf32> to vector<16xf32>
    %5 = vector.shape_cast %4 : vector<16xf32> to vector<16x1xf32>
    %cst_6 = arith.constant 3.200000e+01 : f32
    %6 = vector.broadcast %cst_6 : f32 to vector<16x1xf32>
    %7 = arith.divf %5, %6 : vector<16x1xf32>
    %8 = vector.broadcast %7 : vector<16x1xf32> to vector<16x32xf32>
    %9 = arith.subf %1, %8 : vector<16x32xf32>
    %10 = arith.mulf %9, %9 : vector<16x32xf32>
    %cst_7 = arith.constant dense<0.000000e+00> : vector<16xf32>
    %11 = vector.multi_reduction <add>, %10, %cst_7 [1] : vector<16x32xf32> to vector<16xf32>
    %12 = vector.shape_cast %11 : vector<16xf32> to vector<16x1xf32>
    %cst_8 = arith.constant 3.200000e+01 : f32
    %13 = vector.broadcast %cst_8 : f32 to vector<16x1xf32>
    %14 = arith.divf %12, %13 : vector<16x1xf32>
    %15 = vector.broadcast %7 : vector<16x1xf32> to vector<16x32xf32>
    %16 = arith.subf %1, %15 : vector<16x32xf32>
    %cst_9 = arith.constant 9.99999974E-6 : f32
    %17 = vector.broadcast %cst_9 : f32 to vector<16x1xf32>
    %18 = arith.addf %14, %17 : vector<16x1xf32>
    %19 = math.rsqrt %18 : vector<16x1xf32>
    %20 = vector.broadcast %19 : vector<16x1xf32> to vector<16x32xf32>
    %21 = arith.mulf %16, %20 : vector<16x32xf32>
    %22 = vector.broadcast %2 : vector<1x32xf32> to vector<16x32xf32>
    %23 = arith.mulf %21, %22 : vector<16x32xf32>
    %24 = vector.broadcast %3 : vector<1x32xf32> to vector<16x32xf32>
    %25 = arith.addf %23, %24 : vector<16x32xf32>
    %c0_10 = arith.constant 0 : index
    %c0_11 = arith.constant 0 : index
    %26 = vector.load %arg4[%c0_10, %c0_11] : memref<32x96xf32, #tpu.memory_space<vmem>>, vector<32x96xf32>
    %cst_12 = arith.constant dense<0.000000e+00> : vector<16x96xf32>
    %27 = tpu.matmul %25, %26, %cst_12 {dimension_numbers = #tpu.dot_dimension_numbers<[1], [0], [0], [1], [0, 0, 1, 1], [], []>} : vector<16x32xf32>, vector<32x96xf32>, vector<16x96xf32> -> vector<16x96xf32>
    %28 = vector.extract_strided_slice %27 {offsets = [0, 0], sizes = [16, 32], strides = [1, 1]} : vector<16x96xf32> to vector<16x32xf32>
    %29 = vector.extract_strided_slice %27 {offsets = [0, 32], sizes = [16, 32], strides = [1, 1]} : vector<16x96xf32> to vector<16x32xf32>
    %30 = vector.extract_strided_slice %27 {offsets = [0, 64], sizes = [16, 32], strides = [1, 1]} : vector<16x96xf32> to vector<16x32xf32>
    %31 = vector.extract_strided_slice %28 {offsets = [0, 0], sizes = [16, 8], strides = [1, 1]} : vector<16x32xf32> to vector<16x8xf32>
    %32 = vector.extract_strided_slice %29 {offsets = [0, 0], sizes = [16, 8], strides = [1, 1]} : vector<16x32xf32> to vector<16x8xf32>
    %33 = vector.extract_strided_slice %30 {offsets = [0, 0], sizes = [16, 8], strides = [1, 1]} : vector<16x32xf32> to vector<16x8xf32>
    %cst_13 = arith.constant dense<0.000000e+00> : vector<16x16xf32>
    %34 = tpu.matmul %31, %32, %cst_13 {dimension_numbers = #tpu.dot_dimension_numbers<[1], [1], [0], [0], [0, 0, 1, 0], [], []>} : vector<16x8xf32>, vector<16x8xf32>, vector<16x16xf32> -> vector<16x16xf32>
    %cst_14 = arith.constant 0.353553385 : f32
    %35 = vector.broadcast %cst_14 : f32 to vector<16x16xf32>
    %36 = arith.mulf %34, %35 : vector<16x16xf32>
    %cst_15 = arith.constant dense<0xFF800000> : vector<16xf32>
    %37 = vector.multi_reduction <maximumf>, %36, %cst_15 [1] : vector<16x16xf32> to vector<16xf32>
    %38 = vector.shape_cast %37 : vector<16xf32> to vector<16x1xf32>
    %39 = vector.broadcast %38 : vector<16x1xf32> to vector<16x16xf32>
    %40 = arith.subf %36, %39 : vector<16x16xf32>
    %41 = math.exp %40 : vector<16x16xf32>
    %cst_16 = arith.constant dense<0.000000e+00> : vector<16xf32>
    %42 = vector.multi_reduction <add>, %41, %cst_16 [1] : vector<16x16xf32> to vector<16xf32>
    %43 = vector.shape_cast %42 : vector<16xf32> to vector<16x1xf32>
    %44 = vector.broadcast %43 : vector<16x1xf32> to vector<16x16xf32>
    %45 = arith.divf %41, %44 : vector<16x16xf32>
    %cst_17 = arith.constant dense<0.000000e+00> : vector<16x8xf32>
    %46 = tpu.matmul %45, %33, %cst_17 {dimension_numbers = #tpu.dot_dimension_numbers<[1], [0], [0], [1], [0, 0, 1, 1], [], []>} : vector<16x16xf32>, vector<16x8xf32>, vector<16x8xf32> -> vector<16x8xf32>
    %47 = vector.extract_strided_slice %28 {offsets = [0, 8], sizes = [16, 8], strides = [1, 1]} : vector<16x32xf32> to vector<16x8xf32>
    %48 = vector.extract_strided_slice %29 {offsets = [0, 8], sizes = [16, 8], strides = [1, 1]} : vector<16x32xf32> to vector<16x8xf32>
    %49 = vector.extract_strided_slice %30 {offsets = [0, 8], sizes = [16, 8], strides = [1, 1]} : vector<16x32xf32> to vector<16x8xf32>
    %cst_18 = arith.constant dense<0.000000e+00> : vector<16x16xf32>
    %50 = tpu.matmul %47, %48, %cst_18 {dimension_numbers = #tpu.dot_dimension_numbers<[1], [1], [0], [0], [0, 0, 1, 0], [], []>} : vector<16x8xf32>, vector<16x8xf32>, vector<16x16xf32> -> vector<16x16xf32>
    %cst_19 = arith.constant 0.353553385 : f32
    %51 = vector.broadcast %cst_19 : f32 to vector<16x16xf32>
    %52 = arith.mulf %50, %51 : vector<16x16xf32>
    %cst_20 = arith.constant dense<0xFF800000> : vector<16xf32>
    %53 = vector.multi_reduction <maximumf>, %52, %cst_20 [1] : vector<16x16xf32> to vector<16xf32>
    %54 = vector.shape_cast %53 : vector<16xf32> to vector<16x1xf32>
    %55 = vector.broadcast %54 : vector<16x1xf32> to vector<16x16xf32>
    %56 = arith.subf %52, %55 : vector<16x16xf32>
    %57 = math.exp %56 : vector<16x16xf32>
    %cst_21 = arith.constant dense<0.000000e+00> : vector<16xf32>
    %58 = vector.multi_reduction <add>, %57, %cst_21 [1] : vector<16x16xf32> to vector<16xf32>
    %59 = vector.shape_cast %58 : vector<16xf32> to vector<16x1xf32>
    %60 = vector.broadcast %59 : vector<16x1xf32> to vector<16x16xf32>
    %61 = arith.divf %57, %60 : vector<16x16xf32>
    %cst_22 = arith.constant dense<0.000000e+00> : vector<16x8xf32>
    %62 = tpu.matmul %61, %49, %cst_22 {dimension_numbers = #tpu.dot_dimension_numbers<[1], [0], [0], [1], [0, 0, 1, 1], [], []>} : vector<16x16xf32>, vector<16x8xf32>, vector<16x8xf32> -> vector<16x8xf32>
    %63 = vector.extract_strided_slice %28 {offsets = [0, 16], sizes = [16, 8], strides = [1, 1]} : vector<16x32xf32> to vector<16x8xf32>
    %64 = vector.extract_strided_slice %29 {offsets = [0, 16], sizes = [16, 8], strides = [1, 1]} : vector<16x32xf32> to vector<16x8xf32>
    %65 = vector.extract_strided_slice %30 {offsets = [0, 16], sizes = [16, 8], strides = [1, 1]} : vector<16x32xf32> to vector<16x8xf32>
    %cst_23 = arith.constant dense<0.000000e+00> : vector<16x16xf32>
    %66 = tpu.matmul %63, %64, %cst_23 {dimension_numbers = #tpu.dot_dimension_numbers<[1], [1], [0], [0], [0, 0, 1, 0], [], []>} : vector<16x8xf32>, vector<16x8xf32>, vector<16x16xf32> -> vector<16x16xf32>
    %cst_24 = arith.constant 0.353553385 : f32
    %67 = vector.broadcast %cst_24 : f32 to vector<16x16xf32>
    %68 = arith.mulf %66, %67 : vector<16x16xf32>
    %cst_25 = arith.constant dense<0xFF800000> : vector<16xf32>
    %69 = vector.multi_reduction <maximumf>, %68, %cst_25 [1] : vector<16x16xf32> to vector<16xf32>
    %70 = vector.shape_cast %69 : vector<16xf32> to vector<16x1xf32>
    %71 = vector.broadcast %70 : vector<16x1xf32> to vector<16x16xf32>
    %72 = arith.subf %68, %71 : vector<16x16xf32>
    %73 = math.exp %72 : vector<16x16xf32>
    %cst_26 = arith.constant dense<0.000000e+00> : vector<16xf32>
    %74 = vector.multi_reduction <add>, %73, %cst_26 [1] : vector<16x16xf32> to vector<16xf32>
    %75 = vector.shape_cast %74 : vector<16xf32> to vector<16x1xf32>
    %76 = vector.broadcast %75 : vector<16x1xf32> to vector<16x16xf32>
    %77 = arith.divf %73, %76 : vector<16x16xf32>
    %cst_27 = arith.constant dense<0.000000e+00> : vector<16x8xf32>
    %78 = tpu.matmul %77, %65, %cst_27 {dimension_numbers = #tpu.dot_dimension_numbers<[1], [0], [0], [1], [0, 0, 1, 1], [], []>} : vector<16x16xf32>, vector<16x8xf32>, vector<16x8xf32> -> vector<16x8xf32>
    %79 = vector.extract_strided_slice %28 {offsets = [0, 24], sizes = [16, 8], strides = [1, 1]} : vector<16x32xf32> to vector<16x8xf32>
    %80 = vector.extract_strided_slice %29 {offsets = [0, 24], sizes = [16, 8], strides = [1, 1]} : vector<16x32xf32> to vector<16x8xf32>
    %81 = vector.extract_strided_slice %30 {offsets = [0, 24], sizes = [16, 8], strides = [1, 1]} : vector<16x32xf32> to vector<16x8xf32>
    %cst_28 = arith.constant dense<0.000000e+00> : vector<16x16xf32>
    %82 = tpu.matmul %79, %80, %cst_28 {dimension_numbers = #tpu.dot_dimension_numbers<[1], [1], [0], [0], [0, 0, 1, 0], [], []>} : vector<16x8xf32>, vector<16x8xf32>, vector<16x16xf32> -> vector<16x16xf32>
    %cst_29 = arith.constant 0.353553385 : f32
    %83 = vector.broadcast %cst_29 : f32 to vector<16x16xf32>
    %84 = arith.mulf %82, %83 : vector<16x16xf32>
    %cst_30 = arith.constant dense<0xFF800000> : vector<16xf32>
    %85 = vector.multi_reduction <maximumf>, %84, %cst_30 [1] : vector<16x16xf32> to vector<16xf32>
    %86 = vector.shape_cast %85 : vector<16xf32> to vector<16x1xf32>
    %87 = vector.broadcast %86 : vector<16x1xf32> to vector<16x16xf32>
    %88 = arith.subf %84, %87 : vector<16x16xf32>
    %89 = math.exp %88 : vector<16x16xf32>
    %cst_31 = arith.constant dense<0.000000e+00> : vector<16xf32>
    %90 = vector.multi_reduction <add>, %89, %cst_31 [1] : vector<16x16xf32> to vector<16xf32>
    %91 = vector.shape_cast %90 : vector<16xf32> to vector<16x1xf32>
    %92 = vector.broadcast %91 : vector<16x1xf32> to vector<16x16xf32>
    %93 = arith.divf %89, %92 : vector<16x16xf32>
    %cst_32 = arith.constant dense<0.000000e+00> : vector<16x8xf32>
    %94 = tpu.matmul %93, %81, %cst_32 {dimension_numbers = #tpu.dot_dimension_numbers<[1], [0], [0], [1], [0, 0, 1, 1], [], []>} : vector<16x16xf32>, vector<16x8xf32>, vector<16x8xf32> -> vector<16x8xf32>
    %95 = tpu.concatenate %46, %62, %78, %94 in 1 : vector<16x8xf32>, vector<16x8xf32>, vector<16x8xf32>, vector<16x8xf32> -> vector<16x32xf32>
    %c0_33 = arith.constant 0 : index
    %c0_34 = arith.constant 0 : index
    %96 = vector.load %arg5[%c0_33, %c0_34] : memref<32x32xf32, #tpu.memory_space<vmem>>, vector<32x32xf32>
    %cst_35 = arith.constant dense<0.000000e+00> : vector<16x32xf32>
    %97 = tpu.matmul %95, %96, %cst_35 {dimension_numbers = #tpu.dot_dimension_numbers<[1], [0], [0], [1], [0, 0, 1, 1], [], []>} : vector<16x32xf32>, vector<32x32xf32>, vector<16x32xf32> -> vector<16x32xf32>
    %98 = arith.addf %1, %97 : vector<16x32xf32>
    %c0_36 = arith.constant 0 : index
    %c0_37 = arith.constant 0 : index
    %99 = vector.load %arg6[%c0_36, %c0_37] : memref<1x32xf32, #tpu.memory_space<vmem>>, vector<1x32xf32>
    %100 = vector.broadcast %99 : vector<1x32xf32> to vector<16x32xf32>
    %101 = arith.addf %98, %100 : vector<16x32xf32>
    %c0_38 = arith.constant 0 : index
    %c0_39 = arith.constant 0 : index
    %102 = vector.load %arg7[%c0_38, %c0_39] : memref<1x32xf32, #tpu.memory_space<vmem>>, vector<1x32xf32>
    %c0_40 = arith.constant 0 : index
    %c0_41 = arith.constant 0 : index
    %103 = vector.load %arg8[%c0_40, %c0_41] : memref<1x32xf32, #tpu.memory_space<vmem>>, vector<1x32xf32>
    %cst_42 = arith.constant dense<0.000000e+00> : vector<16xf32>
    %104 = vector.multi_reduction <add>, %101, %cst_42 [1] : vector<16x32xf32> to vector<16xf32>
    %105 = vector.shape_cast %104 : vector<16xf32> to vector<16x1xf32>
    %cst_43 = arith.constant 3.200000e+01 : f32
    %106 = vector.broadcast %cst_43 : f32 to vector<16x1xf32>
    %107 = arith.divf %105, %106 : vector<16x1xf32>
    %108 = vector.broadcast %107 : vector<16x1xf32> to vector<16x32xf32>
    %109 = arith.subf %101, %108 : vector<16x32xf32>
    %110 = arith.mulf %109, %109 : vector<16x32xf32>
    %cst_44 = arith.constant dense<0.000000e+00> : vector<16xf32>
    %111 = vector.multi_reduction <add>, %110, %cst_44 [1] : vector<16x32xf32> to vector<16xf32>
    %112 = vector.shape_cast %111 : vector<16xf32> to vector<16x1xf32>
    %cst_45 = arith.constant 3.200000e+01 : f32
    %113 = vector.broadcast %cst_45 : f32 to vector<16x1xf32>
    %114 = arith.divf %112, %113 : vector<16x1xf32>
    %115 = vector.broadcast %107 : vector<16x1xf32> to vector<16x32xf32>
    %116 = arith.subf %101, %115 : vector<16x32xf32>
    %cst_46 = arith.constant 9.99999974E-6 : f32
    %117 = vector.broadcast %cst_46 : f32 to vector<16x1xf32>
    %118 = arith.addf %114, %117 : vector<16x1xf32>
    %119 = math.rsqrt %118 : vector<16x1xf32>
    %120 = vector.broadcast %119 : vector<16x1xf32> to vector<16x32xf32>
    %121 = arith.mulf %116, %120 : vector<16x32xf32>
    %122 = vector.broadcast %102 : vector<1x32xf32> to vector<16x32xf32>
    %123 = arith.mulf %121, %122 : vector<16x32xf32>
    %124 = vector.broadcast %103 : vector<1x32xf32> to vector<16x32xf32>
    %125 = arith.addf %123, %124 : vector<16x32xf32>
    %c0_47 = arith.constant 0 : index
    %c0_48 = arith.constant 0 : index
    %126 = vector.load %arg9[%c0_47, %c0_48] : memref<32x32xf32, #tpu.memory_space<vmem>>, vector<32x32xf32>
    %cst_49 = arith.constant dense<0.000000e+00> : vector<16x32xf32>
    %127 = tpu.matmul %125, %126, %cst_49 {dimension_numbers = #tpu.dot_dimension_numbers<[1], [0], [0], [1], [0, 0, 1, 1], [], []>} : vector<16x32xf32>, vector<32x32xf32>, vector<16x32xf32> -> vector<16x32xf32>
    %c0_50 = arith.constant 0 : index
    %c0_51 = arith.constant 0 : index
    %128 = vector.load %arg10[%c0_50, %c0_51] : memref<1x32xf32, #tpu.memory_space<vmem>>, vector<1x32xf32>
    %129 = vector.broadcast %128 : vector<1x32xf32> to vector<16x32xf32>
    %130 = arith.addf %127, %129 : vector<16x32xf32>
    %131 = arith.mulf %130, %130 : vector<16x32xf32>
    %132 = arith.mulf %130, %131 : vector<16x32xf32>
    %cst_52 = arith.constant 4.471500e-02 : f32
    %133 = vector.broadcast %cst_52 : f32 to vector<16x32xf32>
    %134 = arith.mulf %133, %132 : vector<16x32xf32>
    %135 = arith.addf %130, %134 : vector<16x32xf32>
    %cst_53 = arith.constant 0.797884583 : f32
    %136 = vector.broadcast %cst_53 : f32 to vector<16x32xf32>
    %137 = arith.mulf %136, %135 : vector<16x32xf32>
    %138 = math.tanh %137 : vector<16x32xf32>
    %cst_54 = arith.constant 1.000000e+00 : f32
    %139 = vector.broadcast %cst_54 : f32 to vector<16x32xf32>
    %140 = arith.addf %139, %138 : vector<16x32xf32>
    %cst_55 = arith.constant 5.000000e-01 : f32
    %141 = vector.broadcast %cst_55 : f32 to vector<16x32xf32>
    %142 = arith.mulf %141, %140 : vector<16x32xf32>
    %143 = arith.mulf %130, %142 : vector<16x32xf32>
    %c0_56 = arith.constant 0 : index
    %c0_57 = arith.constant 0 : index
    %144 = vector.load %arg11[%c0_56, %c0_57] : memref<32x32xf32, #tpu.memory_space<vmem>>, vector<32x32xf32>
    %cst_58 = arith.constant dense<0.000000e+00> : vector<16x32xf32>
    %145 = tpu.matmul %143, %144, %cst_58 {dimension_numbers = #tpu.dot_dimension_numbers<[1], [0], [0], [1], [0, 0, 1, 1], [], []>} : vector<16x32xf32>, vector<32x32xf32>, vector<16x32xf32> -> vector<16x32xf32>
    %c0_59 = arith.constant 0 : index
    %c0_60 = arith.constant 0 : index
    %146 = vector.load %arg12[%c0_59, %c0_60] : memref<1x32xf32, #tpu.memory_space<vmem>>, vector<1x32xf32>
    %147 = vector.broadcast %146 : vector<1x32xf32> to vector<16x32xf32>
    %148 = arith.addf %145, %147 : vector<16x32xf32>
    %149 = arith.addf %101, %148 : vector<16x32xf32>
    %c0_61 = arith.constant 0 : index
    %c0_62 = arith.constant 0 : index
    %c0_63 = arith.constant 0 : index
    %150 = vector.load %arg13[%c0_61, %c0_62, %c0_63] : memref<1x16x32xf32, #tpu.memory_space<vmem>>, vector<1x16x32xf32>
    %151 = vector.shape_cast %150 : vector<1x16x32xf32> to vector<16x32xf32>
    %152 = vector.shape_cast %149 : vector<16x32xf32> to vector<1x16x32xf32>
    tpu.vector_store %arg13[%c0_61, %c0_62, %c0_63], %152 {strides = array<i32>} : memref<1x16x32xf32, #tpu.memory_space<vmem>>, vector<1x16x32xf32>,
    return
  }
  func.func @transform_0(%arg0: i32) -> (i32, i32, i32) {
    %c0_i32 = arith.constant 0 : i32
    %c0_i32_0 = arith.constant 0 : i32
    %c0_i32_1 = arith.constant 0 : i32
    return %arg0, %c0_i32, %c0_i32_0 : i32, i32, i32
  }
  func.func @transform_1(%arg0: i32) -> (i32, i32) {
    %c0_i32 = arith.constant 0 : i32
    %c0_i32_0 = arith.constant 0 : i32
    %c0_i32_1 = arith.constant 0 : i32
    return %c0_i32, %c0_i32_0 : i32, i32
  }
  func.func @transform_2(%arg0: i32) -> (i32, i32) {
    %c0_i32 = arith.constant 0 : i32
    %c0_i32_0 = arith.constant 0 : i32
    %c0_i32_1 = arith.constant 0 : i32
    return %c0_i32, %c0_i32_0 : i32, i32
  }
  func.func @transform_3(%arg0: i32) -> (i32, i32) {
    %c0_i32 = arith.constant 0 : i32
    %c0_i32_0 = arith.constant 0 : i32
    %c0_i32_1 = arith.constant 0 : i32
    return %c0_i32, %c0_i32_0 : i32, i32
  }
  func.func @transform_4(%arg0: i32) -> (i32, i32) {
    %c0_i32 = arith.constant 0 : i32
    %c0_i32_0 = arith.constant 0 : i32
    %c0_i32_1 = arith.constant 0 : i32
    return %c0_i32, %c0_i32_0 : i32, i32
  }
  func.func @transform_5(%arg0: i32) -> (i32, i32) {
    %c0_i32 = arith.constant 0 : i32
    %c0_i32_0 = arith.constant 0 : i32
    %c0_i32_1 = arith.constant 0 : i32
    return %c0_i32, %c0_i32_0 : i32, i32
  }
  func.func @transform_6(%arg0: i32) -> (i32, i32) {
    %c0_i32 = arith.constant 0 : i32
    %c0_i32_0 = arith.constant 0 : i32
    %c0_i32_1 = arith.constant 0 : i32
    return %c0_i32, %c0_i32_0 : i32, i32
  }
  func.func @transform_7(%arg0: i32) -> (i32, i32) {
    %c0_i32 = arith.constant 0 : i32
    %c0_i32_0 = arith.constant 0 : i32
    %c0_i32_1 = arith.constant 0 : i32
    return %c0_i32, %c0_i32_0 : i32, i32
  }
  func.func @transform_8(%arg0: i32) -> (i32, i32) {
    %c0_i32 = arith.constant 0 : i32
    %c0_i32_0 = arith.constant 0 : i32
    %c0_i32_1 = arith.constant 0 : i32
    return %c0_i32, %c0_i32_0 : i32, i32
  }
  func.func @transform_9(%arg0: i32) -> (i32, i32) {
    %c0_i32 = arith.constant 0 : i32
    %c0_i32_0 = arith.constant 0 : i32
    %c0_i32_1 = arith.constant 0 : i32
    return %c0_i32, %c0_i32_0 : i32, i32
  }
  func.func @transform_10(%arg0: i32) -> (i32, i32) {
    %c0_i32 = arith.constant 0 : i32
    %c0_i32_0 = arith.constant 0 : i32
    %c0_i32_1 = arith.constant 0 : i32
    return %c0_i32, %c0_i32_0 : i32, i32
  }
  func.func @transform_11(%arg0: i32) -> (i32, i32) {
    %c0_i32 = arith.constant 0 : i32
    %c0_i32_0 = arith.constant 0 : i32
    %c0_i32_1 = arith.constant 0 : i32
    return %c0_i32, %c0_i32_0 : i32, i32
  }
  func.func @transform_12(%arg0: i32) -> (i32, i32, i32) {
    %c0_i32 = arith.constant 0 : i32
    %c0_i32_0 = arith.constant 0 : i32
    %c0_i32_1 = arith.constant 0 : i32
    return %arg0, %c0_i32, %c0_i32_0 : i32, i32, i32
  }
}

module attributes {stable_mosaic.version = 11 : i64} {
  func.func @_embed_pos_kernel(%arg0: i32, %arg1: memref<1x16x48xf32, #tpu.memory_space<vmem>>, %arg2: memref<48x32xf32, #tpu.memory_space<vmem>>, %arg3: memref<1x32xf32, #tpu.memory_space<vmem>>, %arg4: memref<1x16x32xf32, #tpu.memory_space<vmem>>, %arg5: memref<1x16x32xf32, #tpu.memory_space<vmem>>) attributes {dimension_semantics = [#tpu.dimension_semantics<parallel>], iteration_bounds = array<i64: 2>, scalar_prefetch = 0 : i64, scratch_operands = 0 : i64, tpu.core_type = #tpu.core_type<tc>, window_params = [{transform_indices = @transform_0, window_bounds = array<i64: 1, 16, 48>}, {pipeline_mode = #tpu.pipeline_mode<synchronous>, transform_indices = @transform_1, window_bounds = array<i64: 48, 32>}, {pipeline_mode = #tpu.pipeline_mode<synchronous>, transform_indices = @transform_2, window_bounds = array<i64: 1, 32>}, {pipeline_mode = #tpu.pipeline_mode<synchronous>, transform_indices = @transform_3, window_bounds = array<i64: 1, 16, 32>}, {transform_indices = @transform_4, window_bounds = array<i64: 1, 16, 32>}]} {
    %c0 = arith.constant 0 : index
    %c0_0 = arith.constant 0 : index
    %c0_1 = arith.constant 0 : index
    %0 = vector.load %arg1[%c0, %c0_0, %c0_1] : memref<1x16x48xf32, #tpu.memory_space<vmem>>, vector<1x16x48xf32>
    %1 = vector.shape_cast %0 : vector<1x16x48xf32> to vector<16x48xf32>
    %c0_2 = arith.constant 0 : index
    %c0_3 = arith.constant 0 : index
    %2 = vector.load %arg2[%c0_2, %c0_3] : memref<48x32xf32, #tpu.memory_space<vmem>>, vector<48x32xf32>
    %cst = arith.constant dense<0.000000e+00> : vector<16x32xf32>
    %3 = tpu.matmul %1, %2, %cst {dimension_numbers = #tpu.dot_dimension_numbers<[1], [0], [0], [1], [0, 0, 1, 1], [], []>} : vector<16x48xf32>, vector<48x32xf32>, vector<16x32xf32> -> vector<16x32xf32>
    %c0_4 = arith.constant 0 : index
    %c0_5 = arith.constant 0 : index
    %4 = vector.load %arg3[%c0_4, %c0_5] : memref<1x32xf32, #tpu.memory_space<vmem>>, vector<1x32xf32>
    %5 = vector.broadcast %4 : vector<1x32xf32> to vector<16x32xf32>
    %6 = arith.addf %3, %5 : vector<16x32xf32>
    %c0_6 = arith.constant 0 : index
    %c0_7 = arith.constant 0 : index
    %c0_8 = arith.constant 0 : index
    %7 = vector.load %arg4[%c0_6, %c0_7, %c0_8] : memref<1x16x32xf32, #tpu.memory_space<vmem>>, vector<1x16x32xf32>
    %8 = vector.shape_cast %7 : vector<1x16x32xf32> to vector<16x32xf32>
    %9 = arith.addf %6, %8 : vector<16x32xf32>
    %c0_9 = arith.constant 0 : index
    %c0_10 = arith.constant 0 : index
    %c0_11 = arith.constant 0 : index
    %10 = vector.load %arg5[%c0_9, %c0_10, %c0_11] : memref<1x16x32xf32, #tpu.memory_space<vmem>>, vector<1x16x32xf32>
    %11 = vector.shape_cast %10 : vector<1x16x32xf32> to vector<16x32xf32>
    %12 = vector.shape_cast %9 : vector<16x32xf32> to vector<1x16x32xf32>
    tpu.vector_store %arg5[%c0_9, %c0_10, %c0_11], %12 {strides = array<i32>} : memref<1x16x32xf32, #tpu.memory_space<vmem>>, vector<1x16x32xf32>,
    return
  }
  func.func @transform_0(%arg0: i32) -> (i32, i32, i32) {
    %c0_i32 = arith.constant 0 : i32
    %c0_i32_0 = arith.constant 0 : i32
    %c0_i32_1 = arith.constant 0 : i32
    return %arg0, %c0_i32, %c0_i32_0 : i32, i32, i32
  }
  func.func @transform_1(%arg0: i32) -> (i32, i32) {
    %c0_i32 = arith.constant 0 : i32
    %c0_i32_0 = arith.constant 0 : i32
    %c0_i32_1 = arith.constant 0 : i32
    return %c0_i32, %c0_i32_0 : i32, i32
  }
  func.func @transform_2(%arg0: i32) -> (i32, i32) {
    %c0_i32 = arith.constant 0 : i32
    %c0_i32_0 = arith.constant 0 : i32
    %c0_i32_1 = arith.constant 0 : i32
    return %c0_i32, %c0_i32_0 : i32, i32
  }
  func.func @transform_3(%arg0: i32) -> (i32, i32, i32) {
    %c0_i32 = arith.constant 0 : i32
    %c0_i32_0 = arith.constant 0 : i32
    %c0_i32_1 = arith.constant 0 : i32
    %c0_i32_2 = arith.constant 0 : i32
    return %c0_i32, %c0_i32_0, %c0_i32_1 : i32, i32, i32
  }
  func.func @transform_4(%arg0: i32) -> (i32, i32, i32) {
    %c0_i32 = arith.constant 0 : i32
    %c0_i32_0 = arith.constant 0 : i32
    %c0_i32_1 = arith.constant 0 : i32
    return %arg0, %c0_i32, %c0_i32_0 : i32, i32, i32
  }
}

module attributes {stable_mosaic.version = 11 : i64} {
  func.func @_cross_block_kernel(%arg0: i32, %arg1: memref<1x16x32xf32, #tpu.memory_space<vmem>>, %arg2: memref<1x4x32xf32, #tpu.memory_space<vmem>>, %arg3: memref<1x32xf32, #tpu.memory_space<vmem>>, %arg4: memref<1x32xf32, #tpu.memory_space<vmem>>, %arg5: memref<1x32xf32, #tpu.memory_space<vmem>>, %arg6: memref<1x32xf32, #tpu.memory_space<vmem>>, %arg7: memref<32x32xf32, #tpu.memory_space<vmem>>, %arg8: memref<32x64xf32, #tpu.memory_space<vmem>>, %arg9: memref<32x32xf32, #tpu.memory_space<vmem>>, %arg10: memref<1x32xf32, #tpu.memory_space<vmem>>, %arg11: memref<1x16x32xf32, #tpu.memory_space<vmem>>) attributes {dimension_semantics = [#tpu.dimension_semantics<parallel>], iteration_bounds = array<i64: 2>, scalar_prefetch = 0 : i64, scratch_operands = 0 : i64, tpu.core_type = #tpu.core_type<tc>, window_params = [{transform_indices = @transform_0, window_bounds = array<i64: 1, 16, 32>}, {transform_indices = @transform_1, window_bounds = array<i64: 1, 4, 32>}, {pipeline_mode = #tpu.pipeline_mode<synchronous>, transform_indices = @transform_2, window_bounds = array<i64: 1, 32>}, {pipeline_mode = #tpu.pipeline_mode<synchronous>, transform_indices = @transform_3, window_bounds = array<i64: 1, 32>}, {pipeline_mode = #tpu.pipeline_mode<synchronous>, transform_indices = @transform_4, window_bounds = array<i64: 1, 32>}, {pipeline_mode = #tpu.pipeline_mode<synchronous>, transform_indices = @transform_5, window_bounds = array<i64: 1, 32>}, {pipeline_mode = #tpu.pipeline_mode<synchronous>, transform_indices = @transform_6, window_bounds = array<i64: 32, 32>}, {pipeline_mode = #tpu.pipeline_mode<synchronous>, transform_indices = @transform_7, window_bounds = array<i64: 32, 64>}, {pipeline_mode = #tpu.pipeline_mode<synchronous>, transform_indices = @transform_8, window_bounds = array<i64: 32, 32>}, {pipeline_mode = #tpu.pipeline_mode<synchronous>, transform_indices = @transform_9, window_bounds = array<i64: 1, 32>}, {transform_indices = @transform_10, window_bounds = array<i64: 1, 16, 32>}]} {
    %c0 = arith.constant 0 : index
    %c0_0 = arith.constant 0 : index
    %c0_1 = arith.constant 0 : index
    %0 = vector.load %arg1[%c0, %c0_0, %c0_1] : memref<1x16x32xf32, #tpu.memory_space<vmem>>, vector<1x16x32xf32>
    %1 = vector.shape_cast %0 : vector<1x16x32xf32> to vector<16x32xf32>
    %c0_2 = arith.constant 0 : index
    %c0_3 = arith.constant 0 : index
    %c0_4 = arith.constant 0 : index
    %2 = vector.load %arg2[%c0_2, %c0_3, %c0_4] : memref<1x4x32xf32, #tpu.memory_space<vmem>>, vector<1x4x32xf32>
    %3 = vector.shape_cast %2 : vector<1x4x32xf32> to vector<4x32xf32>
    %c0_5 = arith.constant 0 : index
    %c0_6 = arith.constant 0 : index
    %4 = vector.load %arg3[%c0_5, %c0_6] : memref<1x32xf32, #tpu.memory_space<vmem>>, vector<1x32xf32>
    %c0_7 = arith.constant 0 : index
    %c0_8 = arith.constant 0 : index
    %5 = vector.load %arg4[%c0_7, %c0_8] : memref<1x32xf32, #tpu.memory_space<vmem>>, vector<1x32xf32>
    %cst = arith.constant dense<0.000000e+00> : vector<16xf32>
    %6 = vector.multi_reduction <add>, %1, %cst [1] : vector<16x32xf32> to vector<16xf32>
    %7 = vector.shape_cast %6 : vector<16xf32> to vector<16x1xf32>
    %cst_9 = arith.constant 3.200000e+01 : f32
    %8 = vector.broadcast %cst_9 : f32 to vector<16x1xf32>
    %9 = arith.divf %7, %8 : vector<16x1xf32>
    %10 = vector.broadcast %9 : vector<16x1xf32> to vector<16x32xf32>
    %11 = arith.subf %1, %10 : vector<16x32xf32>
    %12 = arith.mulf %11, %11 : vector<16x32xf32>
    %cst_10 = arith.constant dense<0.000000e+00> : vector<16xf32>
    %13 = vector.multi_reduction <add>, %12, %cst_10 [1] : vector<16x32xf32> to vector<16xf32>
    %14 = vector.shape_cast %13 : vector<16xf32> to vector<16x1xf32>
    %cst_11 = arith.constant 3.200000e+01 : f32
    %15 = vector.broadcast %cst_11 : f32 to vector<16x1xf32>
    %16 = arith.divf %14, %15 : vector<16x1xf32>
    %17 = vector.broadcast %9 : vector<16x1xf32> to vector<16x32xf32>
    %18 = arith.subf %1, %17 : vector<16x32xf32>
    %cst_12 = arith.constant 9.99999974E-6 : f32
    %19 = vector.broadcast %cst_12 : f32 to vector<16x1xf32>
    %20 = arith.addf %16, %19 : vector<16x1xf32>
    %21 = math.rsqrt %20 : vector<16x1xf32>
    %22 = vector.broadcast %21 : vector<16x1xf32> to vector<16x32xf32>
    %23 = arith.mulf %18, %22 : vector<16x32xf32>
    %24 = vector.broadcast %4 : vector<1x32xf32> to vector<16x32xf32>
    %25 = arith.mulf %23, %24 : vector<16x32xf32>
    %26 = vector.broadcast %5 : vector<1x32xf32> to vector<16x32xf32>
    %27 = arith.addf %25, %26 : vector<16x32xf32>
    %c0_13 = arith.constant 0 : index
    %c0_14 = arith.constant 0 : index
    %28 = vector.load %arg5[%c0_13, %c0_14] : memref<1x32xf32, #tpu.memory_space<vmem>>, vector<1x32xf32>
    %c0_15 = arith.constant 0 : index
    %c0_16 = arith.constant 0 : index
    %29 = vector.load %arg6[%c0_15, %c0_16] : memref<1x32xf32, #tpu.memory_space<vmem>>, vector<1x32xf32>
    %cst_17 = arith.constant dense<0.000000e+00> : vector<4xf32>
    %30 = vector.multi_reduction <add>, %3, %cst_17 [1] : vector<4x32xf32> to vector<4xf32>
    %31 = vector.shape_cast %30 : vector<4xf32> to vector<4x1xf32>
    %cst_18 = arith.constant 3.200000e+01 : f32
    %32 = vector.broadcast %cst_18 : f32 to vector<4x1xf32>
    %33 = arith.divf %31, %32 : vector<4x1xf32>
    %34 = vector.broadcast %33 : vector<4x1xf32> to vector<4x32xf32>
    %35 = arith.subf %3, %34 : vector<4x32xf32>
    %36 = arith.mulf %35, %35 : vector<4x32xf32>
    %cst_19 = arith.constant dense<0.000000e+00> : vector<4xf32>
    %37 = vector.multi_reduction <add>, %36, %cst_19 [1] : vector<4x32xf32> to vector<4xf32>
    %38 = vector.shape_cast %37 : vector<4xf32> to vector<4x1xf32>
    %cst_20 = arith.constant 3.200000e+01 : f32
    %39 = vector.broadcast %cst_20 : f32 to vector<4x1xf32>
    %40 = arith.divf %38, %39 : vector<4x1xf32>
    %41 = vector.broadcast %33 : vector<4x1xf32> to vector<4x32xf32>
    %42 = arith.subf %3, %41 : vector<4x32xf32>
    %cst_21 = arith.constant 9.99999974E-6 : f32
    %43 = vector.broadcast %cst_21 : f32 to vector<4x1xf32>
    %44 = arith.addf %40, %43 : vector<4x1xf32>
    %45 = math.rsqrt %44 : vector<4x1xf32>
    %46 = vector.broadcast %45 : vector<4x1xf32> to vector<4x32xf32>
    %47 = arith.mulf %42, %46 : vector<4x32xf32>
    %48 = vector.broadcast %28 : vector<1x32xf32> to vector<4x32xf32>
    %49 = arith.mulf %47, %48 : vector<4x32xf32>
    %50 = vector.broadcast %29 : vector<1x32xf32> to vector<4x32xf32>
    %51 = arith.addf %49, %50 : vector<4x32xf32>
    %c0_22 = arith.constant 0 : index
    %c0_23 = arith.constant 0 : index
    %52 = vector.load %arg7[%c0_22, %c0_23] : memref<32x32xf32, #tpu.memory_space<vmem>>, vector<32x32xf32>
    %cst_24 = arith.constant dense<0.000000e+00> : vector<16x32xf32>
    %53 = tpu.matmul %27, %52, %cst_24 {dimension_numbers = #tpu.dot_dimension_numbers<[1], [0], [0], [1], [0, 0, 1, 1], [], []>} : vector<16x32xf32>, vector<32x32xf32>, vector<16x32xf32> -> vector<16x32xf32>
    %c0_25 = arith.constant 0 : index
    %c0_26 = arith.constant 0 : index
    %54 = vector.load %arg8[%c0_25, %c0_26] : memref<32x64xf32, #tpu.memory_space<vmem>>, vector<32x64xf32>
    %cst_27 = arith.constant dense<0.000000e+00> : vector<4x64xf32>
    %55 = tpu.matmul %51, %54, %cst_27 {dimension_numbers = #tpu.dot_dimension_numbers<[1], [0], [0], [1], [0, 0, 1, 1], [], []>} : vector<4x32xf32>, vector<32x64xf32>, vector<4x64xf32> -> vector<4x64xf32>
    %56 = vector.extract_strided_slice %55 {offsets = [0, 0], sizes = [4, 32], strides = [1, 1]} : vector<4x64xf32> to vector<4x32xf32>
    %57 = vector.extract_strided_slice %55 {offsets = [0, 32], sizes = [4, 32], strides = [1, 1]} : vector<4x64xf32> to vector<4x32xf32>
    %58 = vector.extract_strided_slice %53 {offsets = [0, 0], sizes = [16, 8], strides = [1, 1]} : vector<16x32xf32> to vector<16x8xf32>
    %59 = vector.extract_strided_slice %56 {offsets = [0, 0], sizes = [4, 8], strides = [1, 1]} : vector<4x32xf32> to vector<4x8xf32>
    %60 = vector.extract_strided_slice %57 {offsets = [0, 0], sizes = [4, 8], strides = [1, 1]} : vector<4x32xf32> to vector<4x8xf32>
    %cst_28 = arith.constant dense<0.000000e+00> : vector<16x4xf32>
    %61 = tpu.matmul %58, %59, %cst_28 {dimension_numbers = #tpu.dot_dimension_numbers<[1], [1], [0], [0], [0, 0, 1, 0], [], []>} : vector<16x8xf32>, vector<4x8xf32>, vector<16x4xf32> -> vector<16x4xf32>
    %cst_29 = arith.constant 0.353553385 : f32
    %62 = vector.broadcast %cst_29 : f32 to vector<16x4xf32>
    %63 = arith.mulf %61, %62 : vector<16x4xf32>
    %cst_30 = arith.constant dense<0xFF800000> : vector<16xf32>
    %64 = vector.multi_reduction <maximumf>, %63, %cst_30 [1] : vector<16x4xf32> to vector<16xf32>
    %65 = vector.shape_cast %64 : vector<16xf32> to vector<16x1xf32>
    %66 = vector.broadcast %65 : vector<16x1xf32> to vector<16x4xf32>
    %67 = arith.subf %63, %66 : vector<16x4xf32>
    %68 = math.exp %67 : vector<16x4xf32>
    %cst_31 = arith.constant dense<0.000000e+00> : vector<16xf32>
    %69 = vector.multi_reduction <add>, %68, %cst_31 [1] : vector<16x4xf32> to vector<16xf32>
    %70 = vector.shape_cast %69 : vector<16xf32> to vector<16x1xf32>
    %71 = vector.broadcast %70 : vector<16x1xf32> to vector<16x4xf32>
    %72 = arith.divf %68, %71 : vector<16x4xf32>
    %cst_32 = arith.constant dense<0.000000e+00> : vector<16x8xf32>
    %73 = tpu.matmul %72, %60, %cst_32 {dimension_numbers = #tpu.dot_dimension_numbers<[1], [0], [0], [1], [0, 0, 1, 1], [], []>} : vector<16x4xf32>, vector<4x8xf32>, vector<16x8xf32> -> vector<16x8xf32>
    %74 = vector.extract_strided_slice %53 {offsets = [0, 8], sizes = [16, 8], strides = [1, 1]} : vector<16x32xf32> to vector<16x8xf32>
    %75 = vector.extract_strided_slice %56 {offsets = [0, 8], sizes = [4, 8], strides = [1, 1]} : vector<4x32xf32> to vector<4x8xf32>
    %76 = vector.extract_strided_slice %57 {offsets = [0, 8], sizes = [4, 8], strides = [1, 1]} : vector<4x32xf32> to vector<4x8xf32>
    %cst_33 = arith.constant dense<0.000000e+00> : vector<16x4xf32>
    %77 = tpu.matmul %74, %75, %cst_33 {dimension_numbers = #tpu.dot_dimension_numbers<[1], [1], [0], [0], [0, 0, 1, 0], [], []>} : vector<16x8xf32>, vector<4x8xf32>, vector<16x4xf32> -> vector<16x4xf32>
    %cst_34 = arith.constant 0.353553385 : f32
    %78 = vector.broadcast %cst_34 : f32 to vector<16x4xf32>
    %79 = arith.mulf %77, %78 : vector<16x4xf32>
    %cst_35 = arith.constant dense<0xFF800000> : vector<16xf32>
    %80 = vector.multi_reduction <maximumf>, %79, %cst_35 [1] : vector<16x4xf32> to vector<16xf32>
    %81 = vector.shape_cast %80 : vector<16xf32> to vector<16x1xf32>
    %82 = vector.broadcast %81 : vector<16x1xf32> to vector<16x4xf32>
    %83 = arith.subf %79, %82 : vector<16x4xf32>
    %84 = math.exp %83 : vector<16x4xf32>
    %cst_36 = arith.constant dense<0.000000e+00> : vector<16xf32>
    %85 = vector.multi_reduction <add>, %84, %cst_36 [1] : vector<16x4xf32> to vector<16xf32>
    %86 = vector.shape_cast %85 : vector<16xf32> to vector<16x1xf32>
    %87 = vector.broadcast %86 : vector<16x1xf32> to vector<16x4xf32>
    %88 = arith.divf %84, %87 : vector<16x4xf32>
    %cst_37 = arith.constant dense<0.000000e+00> : vector<16x8xf32>
    %89 = tpu.matmul %88, %76, %cst_37 {dimension_numbers = #tpu.dot_dimension_numbers<[1], [0], [0], [1], [0, 0, 1, 1], [], []>} : vector<16x4xf32>, vector<4x8xf32>, vector<16x8xf32> -> vector<16x8xf32>
    %90 = vector.extract_strided_slice %53 {offsets = [0, 16], sizes = [16, 8], strides = [1, 1]} : vector<16x32xf32> to vector<16x8xf32>
    %91 = vector.extract_strided_slice %56 {offsets = [0, 16], sizes = [4, 8], strides = [1, 1]} : vector<4x32xf32> to vector<4x8xf32>
    %92 = vector.extract_strided_slice %57 {offsets = [0, 16], sizes = [4, 8], strides = [1, 1]} : vector<4x32xf32> to vector<4x8xf32>
    %cst_38 = arith.constant dense<0.000000e+00> : vector<16x4xf32>
    %93 = tpu.matmul %90, %91, %cst_38 {dimension_numbers = #tpu.dot_dimension_numbers<[1], [1], [0], [0], [0, 0, 1, 0], [], []>} : vector<16x8xf32>, vector<4x8xf32>, vector<16x4xf32> -> vector<16x4xf32>
    %cst_39 = arith.constant 0.353553385 : f32
    %94 = vector.broadcast %cst_39 : f32 to vector<16x4xf32>
    %95 = arith.mulf %93, %94 : vector<16x4xf32>
    %cst_40 = arith.constant dense<0xFF800000> : vector<16xf32>
    %96 = vector.multi_reduction <maximumf>, %95, %cst_40 [1] : vector<16x4xf32> to vector<16xf32>
    %97 = vector.shape_cast %96 : vector<16xf32> to vector<16x1xf32>
    %98 = vector.broadcast %97 : vector<16x1xf32> to vector<16x4xf32>
    %99 = arith.subf %95, %98 : vector<16x4xf32>
    %100 = math.exp %99 : vector<16x4xf32>
    %cst_41 = arith.constant dense<0.000000e+00> : vector<16xf32>
    %101 = vector.multi_reduction <add>, %100, %cst_41 [1] : vector<16x4xf32> to vector<16xf32>
    %102 = vector.shape_cast %101 : vector<16xf32> to vector<16x1xf32>
    %103 = vector.broadcast %102 : vector<16x1xf32> to vector<16x4xf32>
    %104 = arith.divf %100, %103 : vector<16x4xf32>
    %cst_42 = arith.constant dense<0.000000e+00> : vector<16x8xf32>
    %105 = tpu.matmul %104, %92, %cst_42 {dimension_numbers = #tpu.dot_dimension_numbers<[1], [0], [0], [1], [0, 0, 1, 1], [], []>} : vector<16x4xf32>, vector<4x8xf32>, vector<16x8xf32> -> vector<16x8xf32>
    %106 = vector.extract_strided_slice %53 {offsets = [0, 24], sizes = [16, 8], strides = [1, 1]} : vector<16x32xf32> to vector<16x8xf32>
    %107 = vector.extract_strided_slice %56 {offsets = [0, 24], sizes = [4, 8], strides = [1, 1]} : vector<4x32xf32> to vector<4x8xf32>
    %108 = vector.extract_strided_slice %57 {offsets = [0, 24], sizes = [4, 8], strides = [1, 1]} : vector<4x32xf32> to vector<4x8xf32>
    %cst_43 = arith.constant dense<0.000000e+00> : vector<16x4xf32>
    %109 = tpu.matmul %106, %107, %cst_43 {dimension_numbers = #tpu.dot_dimension_numbers<[1], [1], [0], [0], [0, 0, 1, 0], [], []>} : vector<16x8xf32>, vector<4x8xf32>, vector<16x4xf32> -> vector<16x4xf32>
    %cst_44 = arith.constant 0.353553385 : f32
    %110 = vector.broadcast %cst_44 : f32 to vector<16x4xf32>
    %111 = arith.mulf %109, %110 : vector<16x4xf32>
    %cst_45 = arith.constant dense<0xFF800000> : vector<16xf32>
    %112 = vector.multi_reduction <maximumf>, %111, %cst_45 [1] : vector<16x4xf32> to vector<16xf32>
    %113 = vector.shape_cast %112 : vector<16xf32> to vector<16x1xf32>
    %114 = vector.broadcast %113 : vector<16x1xf32> to vector<16x4xf32>
    %115 = arith.subf %111, %114 : vector<16x4xf32>
    %116 = math.exp %115 : vector<16x4xf32>
    %cst_46 = arith.constant dense<0.000000e+00> : vector<16xf32>
    %117 = vector.multi_reduction <add>, %116, %cst_46 [1] : vector<16x4xf32> to vector<16xf32>
    %118 = vector.shape_cast %117 : vector<16xf32> to vector<16x1xf32>
    %119 = vector.broadcast %118 : vector<16x1xf32> to vector<16x4xf32>
    %120 = arith.divf %116, %119 : vector<16x4xf32>
    %cst_47 = arith.constant dense<0.000000e+00> : vector<16x8xf32>
    %121 = tpu.matmul %120, %108, %cst_47 {dimension_numbers = #tpu.dot_dimension_numbers<[1], [0], [0], [1], [0, 0, 1, 1], [], []>} : vector<16x4xf32>, vector<4x8xf32>, vector<16x8xf32> -> vector<16x8xf32>
    %122 = tpu.concatenate %73, %89, %105, %121 in 1 : vector<16x8xf32>, vector<16x8xf32>, vector<16x8xf32>, vector<16x8xf32> -> vector<16x32xf32>
    %c0_48 = arith.constant 0 : index
    %c0_49 = arith.constant 0 : index
    %123 = vector.load %arg9[%c0_48, %c0_49] : memref<32x32xf32, #tpu.memory_space<vmem>>, vector<32x32xf32>
    %cst_50 = arith.constant dense<0.000000e+00> : vector<16x32xf32>
    %124 = tpu.matmul %122, %123, %cst_50 {dimension_numbers = #tpu.dot_dimension_numbers<[1], [0], [0], [1], [0, 0, 1, 1], [], []>} : vector<16x32xf32>, vector<32x32xf32>, vector<16x32xf32> -> vector<16x32xf32>
    %c0_51 = arith.constant 0 : index
    %c0_52 = arith.constant 0 : index
    %125 = vector.load %arg10[%c0_51, %c0_52] : memref<1x32xf32, #tpu.memory_space<vmem>>, vector<1x32xf32>
    %126 = vector.broadcast %125 : vector<1x32xf32> to vector<16x32xf32>
    %127 = arith.addf %124, %126 : vector<16x32xf32>
    %128 = arith.addf %1, %127 : vector<16x32xf32>
    %c0_53 = arith.constant 0 : index
    %c0_54 = arith.constant 0 : index
    %c0_55 = arith.constant 0 : index
    %129 = vector.load %arg11[%c0_53, %c0_54, %c0_55] : memref<1x16x32xf32, #tpu.memory_space<vmem>>, vector<1x16x32xf32>
    %130 = vector.shape_cast %129 : vector<1x16x32xf32> to vector<16x32xf32>
    %131 = vector.shape_cast %128 : vector<16x32xf32> to vector<1x16x32xf32>
    tpu.vector_store %arg11[%c0_53, %c0_54, %c0_55], %131 {strides = array<i32>} : memref<1x16x32xf32, #tpu.memory_space<vmem>>, vector<1x16x32xf32>,
    return
  }
  func.func @transform_0(%arg0: i32) -> (i32, i32, i32) {
    %c0_i32 = arith.constant 0 : i32
    %c0_i32_0 = arith.constant 0 : i32
    %c0_i32_1 = arith.constant 0 : i32
    return %arg0, %c0_i32, %c0_i32_0 : i32, i32, i32
  }
  func.func @transform_1(%arg0: i32) -> (i32, i32, i32) {
    %c0_i32 = arith.constant 0 : i32
    %c0_i32_0 = arith.constant 0 : i32
    %c0_i32_1 = arith.constant 0 : i32
    return %arg0, %c0_i32, %c0_i32_0 : i32, i32, i32
  }
  func.func @transform_2(%arg0: i32) -> (i32, i32) {
    %c0_i32 = arith.constant 0 : i32
    %c0_i32_0 = arith.constant 0 : i32
    %c0_i32_1 = arith.constant 0 : i32
    return %c0_i32, %c0_i32_0 : i32, i32
  }
  func.func @transform_3(%arg0: i32) -> (i32, i32) {
    %c0_i32 = arith.constant 0 : i32
    %c0_i32_0 = arith.constant 0 : i32
    %c0_i32_1 = arith.constant 0 : i32
    return %c0_i32, %c0_i32_0 : i32, i32
  }
  func.func @transform_4(%arg0: i32) -> (i32, i32) {
    %c0_i32 = arith.constant 0 : i32
    %c0_i32_0 = arith.constant 0 : i32
    %c0_i32_1 = arith.constant 0 : i32
    return %c0_i32, %c0_i32_0 : i32, i32
  }
  func.func @transform_5(%arg0: i32) -> (i32, i32) {
    %c0_i32 = arith.constant 0 : i32
    %c0_i32_0 = arith.constant 0 : i32
    %c0_i32_1 = arith.constant 0 : i32
    return %c0_i32, %c0_i32_0 : i32, i32
  }
  func.func @transform_6(%arg0: i32) -> (i32, i32) {
    %c0_i32 = arith.constant 0 : i32
    %c0_i32_0 = arith.constant 0 : i32
    %c0_i32_1 = arith.constant 0 : i32
    return %c0_i32, %c0_i32_0 : i32, i32
  }
  func.func @transform_7(%arg0: i32) -> (i32, i32) {
    %c0_i32 = arith.constant 0 : i32
    %c0_i32_0 = arith.constant 0 : i32
    %c0_i32_1 = arith.constant 0 : i32
    return %c0_i32, %c0_i32_0 : i32, i32
  }
  func.func @transform_8(%arg0: i32) -> (i32, i32) {
    %c0_i32 = arith.constant 0 : i32
    %c0_i32_0 = arith.constant 0 : i32
    %c0_i32_1 = arith.constant 0 : i32
    return %c0_i32, %c0_i32_0 : i32, i32
  }
  func.func @transform_9(%arg0: i32) -> (i32, i32) {
    %c0_i32 = arith.constant 0 : i32
    %c0_i32_0 = arith.constant 0 : i32
    %c0_i32_1 = arith.constant 0 : i32
    return %c0_i32, %c0_i32_0 : i32, i32
  }
  func.func @transform_10(%arg0: i32) -> (i32, i32, i32) {
    %c0_i32 = arith.constant 0 : i32
    %c0_i32_0 = arith.constant 0 : i32
    %c0_i32_1 = arith.constant 0 : i32
    return %arg0, %c0_i32, %c0_i32_0 : i32, i32, i32
  }
}

module attributes {stable_mosaic.version = 11 : i64} {
  func.func @_linear_kernel(%arg0: i32, %arg1: memref<1x16x32xf32, #tpu.memory_space<vmem>>, %arg2: memref<32x64xf32, #tpu.memory_space<vmem>>, %arg3: memref<1x64xf32, #tpu.memory_space<vmem>>, %arg4: memref<1x16x64xf32, #tpu.memory_space<vmem>>) attributes {dimension_semantics = [#tpu.dimension_semantics<parallel>], iteration_bounds = array<i64: 2>, scalar_prefetch = 0 : i64, scratch_operands = 0 : i64, tpu.core_type = #tpu.core_type<tc>, window_params = [{transform_indices = @transform_0, window_bounds = array<i64: 1, 16, 32>}, {pipeline_mode = #tpu.pipeline_mode<synchronous>, transform_indices = @transform_1, window_bounds = array<i64: 32, 64>}, {pipeline_mode = #tpu.pipeline_mode<synchronous>, transform_indices = @transform_2, window_bounds = array<i64: 1, 64>}, {transform_indices = @transform_3, window_bounds = array<i64: 1, 16, 64>}]} {
    %c0 = arith.constant 0 : index
    %c0_0 = arith.constant 0 : index
    %c0_1 = arith.constant 0 : index
    %0 = vector.load %arg1[%c0, %c0_0, %c0_1] : memref<1x16x32xf32, #tpu.memory_space<vmem>>, vector<1x16x32xf32>
    %1 = vector.shape_cast %0 : vector<1x16x32xf32> to vector<16x32xf32>
    %c0_2 = arith.constant 0 : index
    %c0_3 = arith.constant 0 : index
    %2 = vector.load %arg2[%c0_2, %c0_3] : memref<32x64xf32, #tpu.memory_space<vmem>>, vector<32x64xf32>
    %cst = arith.constant dense<0.000000e+00> : vector<16x64xf32>
    %3 = tpu.matmul %1, %2, %cst {dimension_numbers = #tpu.dot_dimension_numbers<[1], [0], [0], [1], [0, 0, 1, 1], [], []>} : vector<16x32xf32>, vector<32x64xf32>, vector<16x64xf32> -> vector<16x64xf32>
    %c0_4 = arith.constant 0 : index
    %c0_5 = arith.constant 0 : index
    %4 = vector.load %arg3[%c0_4, %c0_5] : memref<1x64xf32, #tpu.memory_space<vmem>>, vector<1x64xf32>
    %5 = vector.broadcast %4 : vector<1x64xf32> to vector<16x64xf32>
    %6 = arith.addf %3, %5 : vector<16x64xf32>
    %c0_6 = arith.constant 0 : index
    %c0_7 = arith.constant 0 : index
    %c0_8 = arith.constant 0 : index
    %7 = vector.load %arg4[%c0_6, %c0_7, %c0_8] : memref<1x16x64xf32, #tpu.memory_space<vmem>>, vector<1x16x64xf32>
    %8 = vector.shape_cast %7 : vector<1x16x64xf32> to vector<16x64xf32>
    %9 = vector.shape_cast %6 : vector<16x64xf32> to vector<1x16x64xf32>
    tpu.vector_store %arg4[%c0_6, %c0_7, %c0_8], %9 {strides = array<i32>} : memref<1x16x64xf32, #tpu.memory_space<vmem>>, vector<1x16x64xf32>,
    return
  }
  func.func @transform_0(%arg0: i32) -> (i32, i32, i32) {
    %c0_i32 = arith.constant 0 : i32
    %c0_i32_0 = arith.constant 0 : i32
    %c0_i32_1 = arith.constant 0 : i32
    return %arg0, %c0_i32, %c0_i32_0 : i32, i32, i32
  }
  func.func @transform_1(%arg0: i32) -> (i32, i32) {
    %c0_i32 = arith.constant 0 : i32
    %c0_i32_0 = arith.constant 0 : i32
    %c0_i32_1 = arith.constant 0 : i32
    return %c0_i32, %c0_i32_0 : i32, i32
  }
  func.func @transform_2(%arg0: i32) -> (i32, i32) {
    %c0_i32 = arith.constant 0 : i32
    %c0_i32_0 = arith.constant 0 : i32
    %c0_i32_1 = arith.constant 0 : i32
    return %c0_i32, %c0_i32_0 : i32, i32
  }
  func.func @transform_3(%arg0: i32) -> (i32, i32, i32) {
    %c0_i32 = arith.constant 0 : i32
    %c0_i32_0 = arith.constant 0 : i32
    %c0_i32_1 = arith.constant 0 : i32
    return %arg0, %c0_i32, %c0_i32_0 : i32, i32, i32
  }
}

module attributes {stable_mosaic.version = 11 : i64} {
  func.func @_sa_block_kernel(%arg0: i32, %arg1: memref<1x16x64xf32, #tpu.memory_space<vmem>>, %arg2: memref<1x64xf32, #tpu.memory_space<vmem>>, %arg3: memref<1x64xf32, #tpu.memory_space<vmem>>, %arg4: memref<64x192xf32, #tpu.memory_space<vmem>>, %arg5: memref<64x64xf32, #tpu.memory_space<vmem>>, %arg6: memref<1x64xf32, #tpu.memory_space<vmem>>, %arg7: memref<1x64xf32, #tpu.memory_space<vmem>>, %arg8: memref<1x64xf32, #tpu.memory_space<vmem>>, %arg9: memref<64x64xf32, #tpu.memory_space<vmem>>, %arg10: memref<1x64xf32, #tpu.memory_space<vmem>>, %arg11: memref<64x64xf32, #tpu.memory_space<vmem>>, %arg12: memref<1x64xf32, #tpu.memory_space<vmem>>, %arg13: memref<1x16x64xf32, #tpu.memory_space<vmem>>) attributes {dimension_semantics = [#tpu.dimension_semantics<parallel>], iteration_bounds = array<i64: 2>, scalar_prefetch = 0 : i64, scratch_operands = 0 : i64, tpu.core_type = #tpu.core_type<tc>, window_params = [{transform_indices = @transform_0, window_bounds = array<i64: 1, 16, 64>}, {pipeline_mode = #tpu.pipeline_mode<synchronous>, transform_indices = @transform_1, window_bounds = array<i64: 1, 64>}, {pipeline_mode = #tpu.pipeline_mode<synchronous>, transform_indices = @transform_2, window_bounds = array<i64: 1, 64>}, {pipeline_mode = #tpu.pipeline_mode<synchronous>, transform_indices = @transform_3, window_bounds = array<i64: 64, 192>}, {pipeline_mode = #tpu.pipeline_mode<synchronous>, transform_indices = @transform_4, window_bounds = array<i64: 64, 64>}, {pipeline_mode = #tpu.pipeline_mode<synchronous>, transform_indices = @transform_5, window_bounds = array<i64: 1, 64>}, {pipeline_mode = #tpu.pipeline_mode<synchronous>, transform_indices = @transform_6, window_bounds = array<i64: 1, 64>}, {pipeline_mode = #tpu.pipeline_mode<synchronous>, transform_indices = @transform_7, window_bounds = array<i64: 1, 64>}, {pipeline_mode = #tpu.pipeline_mode<synchronous>, transform_indices = @transform_8, window_bounds = array<i64: 64, 64>}, {pipeline_mode = #tpu.pipeline_mode<synchronous>, transform_indices = @transform_9, window_bounds = array<i64: 1, 64>}, {pipeline_mode = #tpu.pipeline_mode<synchronous>, transform_indices = @transform_10, window_bounds = array<i64: 64, 64>}, {pipeline_mode = #tpu.pipeline_mode<synchronous>, transform_indices = @transform_11, window_bounds = array<i64: 1, 64>}, {transform_indices = @transform_12, window_bounds = array<i64: 1, 16, 64>}]} {
    %c0 = arith.constant 0 : index
    %c0_0 = arith.constant 0 : index
    %c0_1 = arith.constant 0 : index
    %0 = vector.load %arg1[%c0, %c0_0, %c0_1] : memref<1x16x64xf32, #tpu.memory_space<vmem>>, vector<1x16x64xf32>
    %1 = vector.shape_cast %0 : vector<1x16x64xf32> to vector<16x64xf32>
    %c0_2 = arith.constant 0 : index
    %c0_3 = arith.constant 0 : index
    %2 = vector.load %arg2[%c0_2, %c0_3] : memref<1x64xf32, #tpu.memory_space<vmem>>, vector<1x64xf32>
    %c0_4 = arith.constant 0 : index
    %c0_5 = arith.constant 0 : index
    %3 = vector.load %arg3[%c0_4, %c0_5] : memref<1x64xf32, #tpu.memory_space<vmem>>, vector<1x64xf32>
    %cst = arith.constant dense<0.000000e+00> : vector<16xf32>
    %4 = vector.multi_reduction <add>, %1, %cst [1] : vector<16x64xf32> to vector<16xf32>
    %5 = vector.shape_cast %4 : vector<16xf32> to vector<16x1xf32>
    %cst_6 = arith.constant 6.400000e+01 : f32
    %6 = vector.broadcast %cst_6 : f32 to vector<16x1xf32>
    %7 = arith.divf %5, %6 : vector<16x1xf32>
    %8 = vector.broadcast %7 : vector<16x1xf32> to vector<16x64xf32>
    %9 = arith.subf %1, %8 : vector<16x64xf32>
    %10 = arith.mulf %9, %9 : vector<16x64xf32>
    %cst_7 = arith.constant dense<0.000000e+00> : vector<16xf32>
    %11 = vector.multi_reduction <add>, %10, %cst_7 [1] : vector<16x64xf32> to vector<16xf32>
    %12 = vector.shape_cast %11 : vector<16xf32> to vector<16x1xf32>
    %cst_8 = arith.constant 6.400000e+01 : f32
    %13 = vector.broadcast %cst_8 : f32 to vector<16x1xf32>
    %14 = arith.divf %12, %13 : vector<16x1xf32>
    %15 = vector.broadcast %7 : vector<16x1xf32> to vector<16x64xf32>
    %16 = arith.subf %1, %15 : vector<16x64xf32>
    %cst_9 = arith.constant 9.99999974E-6 : f32
    %17 = vector.broadcast %cst_9 : f32 to vector<16x1xf32>
    %18 = arith.addf %14, %17 : vector<16x1xf32>
    %19 = math.rsqrt %18 : vector<16x1xf32>
    %20 = vector.broadcast %19 : vector<16x1xf32> to vector<16x64xf32>
    %21 = arith.mulf %16, %20 : vector<16x64xf32>
    %22 = vector.broadcast %2 : vector<1x64xf32> to vector<16x64xf32>
    %23 = arith.mulf %21, %22 : vector<16x64xf32>
    %24 = vector.broadcast %3 : vector<1x64xf32> to vector<16x64xf32>
    %25 = arith.addf %23, %24 : vector<16x64xf32>
    %c0_10 = arith.constant 0 : index
    %c0_11 = arith.constant 0 : index
    %26 = vector.load %arg4[%c0_10, %c0_11] : memref<64x192xf32, #tpu.memory_space<vmem>>, vector<64x192xf32>
    %cst_12 = arith.constant dense<0.000000e+00> : vector<16x192xf32>
    %27 = tpu.matmul %25, %26, %cst_12 {dimension_numbers = #tpu.dot_dimension_numbers<[1], [0], [0], [1], [0, 0, 1, 1], [], []>} : vector<16x64xf32>, vector<64x192xf32>, vector<16x192xf32> -> vector<16x192xf32>
    %28 = vector.extract_strided_slice %27 {offsets = [0, 0], sizes = [16, 64], strides = [1, 1]} : vector<16x192xf32> to vector<16x64xf32>
    %29 = vector.extract_strided_slice %27 {offsets = [0, 64], sizes = [16, 64], strides = [1, 1]} : vector<16x192xf32> to vector<16x64xf32>
    %30 = vector.extract_strided_slice %27 {offsets = [0, 128], sizes = [16, 64], strides = [1, 1]} : vector<16x192xf32> to vector<16x64xf32>
    %31 = vector.extract_strided_slice %28 {offsets = [0, 0], sizes = [16, 16], strides = [1, 1]} : vector<16x64xf32> to vector<16x16xf32>
    %32 = vector.extract_strided_slice %29 {offsets = [0, 0], sizes = [16, 16], strides = [1, 1]} : vector<16x64xf32> to vector<16x16xf32>
    %33 = vector.extract_strided_slice %30 {offsets = [0, 0], sizes = [16, 16], strides = [1, 1]} : vector<16x64xf32> to vector<16x16xf32>
    %cst_13 = arith.constant dense<0.000000e+00> : vector<16x16xf32>
    %34 = tpu.matmul %31, %32, %cst_13 {dimension_numbers = #tpu.dot_dimension_numbers<[1], [1], [0], [0], [0, 0, 1, 0], [], []>} : vector<16x16xf32>, vector<16x16xf32>, vector<16x16xf32> -> vector<16x16xf32>
    %cst_14 = arith.constant 2.500000e-01 : f32
    %35 = vector.broadcast %cst_14 : f32 to vector<16x16xf32>
    %36 = arith.mulf %34, %35 : vector<16x16xf32>
    %cst_15 = arith.constant dense<0xFF800000> : vector<16xf32>
    %37 = vector.multi_reduction <maximumf>, %36, %cst_15 [1] : vector<16x16xf32> to vector<16xf32>
    %38 = vector.shape_cast %37 : vector<16xf32> to vector<16x1xf32>
    %39 = vector.broadcast %38 : vector<16x1xf32> to vector<16x16xf32>
    %40 = arith.subf %36, %39 : vector<16x16xf32>
    %41 = math.exp %40 : vector<16x16xf32>
    %cst_16 = arith.constant dense<0.000000e+00> : vector<16xf32>
    %42 = vector.multi_reduction <add>, %41, %cst_16 [1] : vector<16x16xf32> to vector<16xf32>
    %43 = vector.shape_cast %42 : vector<16xf32> to vector<16x1xf32>
    %44 = vector.broadcast %43 : vector<16x1xf32> to vector<16x16xf32>
    %45 = arith.divf %41, %44 : vector<16x16xf32>
    %cst_17 = arith.constant dense<0.000000e+00> : vector<16x16xf32>
    %46 = tpu.matmul %45, %33, %cst_17 {dimension_numbers = #tpu.dot_dimension_numbers<[1], [0], [0], [1], [0, 0, 1, 1], [], []>} : vector<16x16xf32>, vector<16x16xf32>, vector<16x16xf32> -> vector<16x16xf32>
    %47 = vector.extract_strided_slice %28 {offsets = [0, 16], sizes = [16, 16], strides = [1, 1]} : vector<16x64xf32> to vector<16x16xf32>
    %48 = vector.extract_strided_slice %29 {offsets = [0, 16], sizes = [16, 16], strides = [1, 1]} : vector<16x64xf32> to vector<16x16xf32>
    %49 = vector.extract_strided_slice %30 {offsets = [0, 16], sizes = [16, 16], strides = [1, 1]} : vector<16x64xf32> to vector<16x16xf32>
    %cst_18 = arith.constant dense<0.000000e+00> : vector<16x16xf32>
    %50 = tpu.matmul %47, %48, %cst_18 {dimension_numbers = #tpu.dot_dimension_numbers<[1], [1], [0], [0], [0, 0, 1, 0], [], []>} : vector<16x16xf32>, vector<16x16xf32>, vector<16x16xf32> -> vector<16x16xf32>
    %cst_19 = arith.constant 2.500000e-01 : f32
    %51 = vector.broadcast %cst_19 : f32 to vector<16x16xf32>
    %52 = arith.mulf %50, %51 : vector<16x16xf32>
    %cst_20 = arith.constant dense<0xFF800000> : vector<16xf32>
    %53 = vector.multi_reduction <maximumf>, %52, %cst_20 [1] : vector<16x16xf32> to vector<16xf32>
    %54 = vector.shape_cast %53 : vector<16xf32> to vector<16x1xf32>
    %55 = vector.broadcast %54 : vector<16x1xf32> to vector<16x16xf32>
    %56 = arith.subf %52, %55 : vector<16x16xf32>
    %57 = math.exp %56 : vector<16x16xf32>
    %cst_21 = arith.constant dense<0.000000e+00> : vector<16xf32>
    %58 = vector.multi_reduction <add>, %57, %cst_21 [1] : vector<16x16xf32> to vector<16xf32>
    %59 = vector.shape_cast %58 : vector<16xf32> to vector<16x1xf32>
    %60 = vector.broadcast %59 : vector<16x1xf32> to vector<16x16xf32>
    %61 = arith.divf %57, %60 : vector<16x16xf32>
    %cst_22 = arith.constant dense<0.000000e+00> : vector<16x16xf32>
    %62 = tpu.matmul %61, %49, %cst_22 {dimension_numbers = #tpu.dot_dimension_numbers<[1], [0], [0], [1], [0, 0, 1, 1], [], []>} : vector<16x16xf32>, vector<16x16xf32>, vector<16x16xf32> -> vector<16x16xf32>
    %63 = vector.extract_strided_slice %28 {offsets = [0, 32], sizes = [16, 16], strides = [1, 1]} : vector<16x64xf32> to vector<16x16xf32>
    %64 = vector.extract_strided_slice %29 {offsets = [0, 32], sizes = [16, 16], strides = [1, 1]} : vector<16x64xf32> to vector<16x16xf32>
    %65 = vector.extract_strided_slice %30 {offsets = [0, 32], sizes = [16, 16], strides = [1, 1]} : vector<16x64xf32> to vector<16x16xf32>
    %cst_23 = arith.constant dense<0.000000e+00> : vector<16x16xf32>
    %66 = tpu.matmul %63, %64, %cst_23 {dimension_numbers = #tpu.dot_dimension_numbers<[1], [1], [0], [0], [0, 0, 1, 0], [], []>} : vector<16x16xf32>, vector<16x16xf32>, vector<16x16xf32> -> vector<16x16xf32>
    %cst_24 = arith.constant 2.500000e-01 : f32
    %67 = vector.broadcast %cst_24 : f32 to vector<16x16xf32>
    %68 = arith.mulf %66, %67 : vector<16x16xf32>
    %cst_25 = arith.constant dense<0xFF800000> : vector<16xf32>
    %69 = vector.multi_reduction <maximumf>, %68, %cst_25 [1] : vector<16x16xf32> to vector<16xf32>
    %70 = vector.shape_cast %69 : vector<16xf32> to vector<16x1xf32>
    %71 = vector.broadcast %70 : vector<16x1xf32> to vector<16x16xf32>
    %72 = arith.subf %68, %71 : vector<16x16xf32>
    %73 = math.exp %72 : vector<16x16xf32>
    %cst_26 = arith.constant dense<0.000000e+00> : vector<16xf32>
    %74 = vector.multi_reduction <add>, %73, %cst_26 [1] : vector<16x16xf32> to vector<16xf32>
    %75 = vector.shape_cast %74 : vector<16xf32> to vector<16x1xf32>
    %76 = vector.broadcast %75 : vector<16x1xf32> to vector<16x16xf32>
    %77 = arith.divf %73, %76 : vector<16x16xf32>
    %cst_27 = arith.constant dense<0.000000e+00> : vector<16x16xf32>
    %78 = tpu.matmul %77, %65, %cst_27 {dimension_numbers = #tpu.dot_dimension_numbers<[1], [0], [0], [1], [0, 0, 1, 1], [], []>} : vector<16x16xf32>, vector<16x16xf32>, vector<16x16xf32> -> vector<16x16xf32>
    %79 = vector.extract_strided_slice %28 {offsets = [0, 48], sizes = [16, 16], strides = [1, 1]} : vector<16x64xf32> to vector<16x16xf32>
    %80 = vector.extract_strided_slice %29 {offsets = [0, 48], sizes = [16, 16], strides = [1, 1]} : vector<16x64xf32> to vector<16x16xf32>
    %81 = vector.extract_strided_slice %30 {offsets = [0, 48], sizes = [16, 16], strides = [1, 1]} : vector<16x64xf32> to vector<16x16xf32>
    %cst_28 = arith.constant dense<0.000000e+00> : vector<16x16xf32>
    %82 = tpu.matmul %79, %80, %cst_28 {dimension_numbers = #tpu.dot_dimension_numbers<[1], [1], [0], [0], [0, 0, 1, 0], [], []>} : vector<16x16xf32>, vector<16x16xf32>, vector<16x16xf32> -> vector<16x16xf32>
    %cst_29 = arith.constant 2.500000e-01 : f32
    %83 = vector.broadcast %cst_29 : f32 to vector<16x16xf32>
    %84 = arith.mulf %82, %83 : vector<16x16xf32>
    %cst_30 = arith.constant dense<0xFF800000> : vector<16xf32>
    %85 = vector.multi_reduction <maximumf>, %84, %cst_30 [1] : vector<16x16xf32> to vector<16xf32>
    %86 = vector.shape_cast %85 : vector<16xf32> to vector<16x1xf32>
    %87 = vector.broadcast %86 : vector<16x1xf32> to vector<16x16xf32>
    %88 = arith.subf %84, %87 : vector<16x16xf32>
    %89 = math.exp %88 : vector<16x16xf32>
    %cst_31 = arith.constant dense<0.000000e+00> : vector<16xf32>
    %90 = vector.multi_reduction <add>, %89, %cst_31 [1] : vector<16x16xf32> to vector<16xf32>
    %91 = vector.shape_cast %90 : vector<16xf32> to vector<16x1xf32>
    %92 = vector.broadcast %91 : vector<16x1xf32> to vector<16x16xf32>
    %93 = arith.divf %89, %92 : vector<16x16xf32>
    %cst_32 = arith.constant dense<0.000000e+00> : vector<16x16xf32>
    %94 = tpu.matmul %93, %81, %cst_32 {dimension_numbers = #tpu.dot_dimension_numbers<[1], [0], [0], [1], [0, 0, 1, 1], [], []>} : vector<16x16xf32>, vector<16x16xf32>, vector<16x16xf32> -> vector<16x16xf32>
    %95 = tpu.concatenate %46, %62, %78, %94 in 1 : vector<16x16xf32>, vector<16x16xf32>, vector<16x16xf32>, vector<16x16xf32> -> vector<16x64xf32>
    %c0_33 = arith.constant 0 : index
    %c0_34 = arith.constant 0 : index
    %96 = vector.load %arg5[%c0_33, %c0_34] : memref<64x64xf32, #tpu.memory_space<vmem>>, vector<64x64xf32>
    %cst_35 = arith.constant dense<0.000000e+00> : vector<16x64xf32>
    %97 = tpu.matmul %95, %96, %cst_35 {dimension_numbers = #tpu.dot_dimension_numbers<[1], [0], [0], [1], [0, 0, 1, 1], [], []>} : vector<16x64xf32>, vector<64x64xf32>, vector<16x64xf32> -> vector<16x64xf32>
    %98 = arith.addf %1, %97 : vector<16x64xf32>
    %c0_36 = arith.constant 0 : index
    %c0_37 = arith.constant 0 : index
    %99 = vector.load %arg6[%c0_36, %c0_37] : memref<1x64xf32, #tpu.memory_space<vmem>>, vector<1x64xf32>
    %100 = vector.broadcast %99 : vector<1x64xf32> to vector<16x64xf32>
    %101 = arith.addf %98, %100 : vector<16x64xf32>
    %c0_38 = arith.constant 0 : index
    %c0_39 = arith.constant 0 : index
    %102 = vector.load %arg7[%c0_38, %c0_39] : memref<1x64xf32, #tpu.memory_space<vmem>>, vector<1x64xf32>
    %c0_40 = arith.constant 0 : index
    %c0_41 = arith.constant 0 : index
    %103 = vector.load %arg8[%c0_40, %c0_41] : memref<1x64xf32, #tpu.memory_space<vmem>>, vector<1x64xf32>
    %cst_42 = arith.constant dense<0.000000e+00> : vector<16xf32>
    %104 = vector.multi_reduction <add>, %101, %cst_42 [1] : vector<16x64xf32> to vector<16xf32>
    %105 = vector.shape_cast %104 : vector<16xf32> to vector<16x1xf32>
    %cst_43 = arith.constant 6.400000e+01 : f32
    %106 = vector.broadcast %cst_43 : f32 to vector<16x1xf32>
    %107 = arith.divf %105, %106 : vector<16x1xf32>
    %108 = vector.broadcast %107 : vector<16x1xf32> to vector<16x64xf32>
    %109 = arith.subf %101, %108 : vector<16x64xf32>
    %110 = arith.mulf %109, %109 : vector<16x64xf32>
    %cst_44 = arith.constant dense<0.000000e+00> : vector<16xf32>
    %111 = vector.multi_reduction <add>, %110, %cst_44 [1] : vector<16x64xf32> to vector<16xf32>
    %112 = vector.shape_cast %111 : vector<16xf32> to vector<16x1xf32>
    %cst_45 = arith.constant 6.400000e+01 : f32
    %113 = vector.broadcast %cst_45 : f32 to vector<16x1xf32>
    %114 = arith.divf %112, %113 : vector<16x1xf32>
    %115 = vector.broadcast %107 : vector<16x1xf32> to vector<16x64xf32>
    %116 = arith.subf %101, %115 : vector<16x64xf32>
    %cst_46 = arith.constant 9.99999974E-6 : f32
    %117 = vector.broadcast %cst_46 : f32 to vector<16x1xf32>
    %118 = arith.addf %114, %117 : vector<16x1xf32>
    %119 = math.rsqrt %118 : vector<16x1xf32>
    %120 = vector.broadcast %119 : vector<16x1xf32> to vector<16x64xf32>
    %121 = arith.mulf %116, %120 : vector<16x64xf32>
    %122 = vector.broadcast %102 : vector<1x64xf32> to vector<16x64xf32>
    %123 = arith.mulf %121, %122 : vector<16x64xf32>
    %124 = vector.broadcast %103 : vector<1x64xf32> to vector<16x64xf32>
    %125 = arith.addf %123, %124 : vector<16x64xf32>
    %c0_47 = arith.constant 0 : index
    %c0_48 = arith.constant 0 : index
    %126 = vector.load %arg9[%c0_47, %c0_48] : memref<64x64xf32, #tpu.memory_space<vmem>>, vector<64x64xf32>
    %cst_49 = arith.constant dense<0.000000e+00> : vector<16x64xf32>
    %127 = tpu.matmul %125, %126, %cst_49 {dimension_numbers = #tpu.dot_dimension_numbers<[1], [0], [0], [1], [0, 0, 1, 1], [], []>} : vector<16x64xf32>, vector<64x64xf32>, vector<16x64xf32> -> vector<16x64xf32>
    %c0_50 = arith.constant 0 : index
    %c0_51 = arith.constant 0 : index
    %128 = vector.load %arg10[%c0_50, %c0_51] : memref<1x64xf32, #tpu.memory_space<vmem>>, vector<1x64xf32>
    %129 = vector.broadcast %128 : vector<1x64xf32> to vector<16x64xf32>
    %130 = arith.addf %127, %129 : vector<16x64xf32>
    %131 = arith.mulf %130, %130 : vector<16x64xf32>
    %132 = arith.mulf %130, %131 : vector<16x64xf32>
    %cst_52 = arith.constant 4.471500e-02 : f32
    %133 = vector.broadcast %cst_52 : f32 to vector<16x64xf32>
    %134 = arith.mulf %133, %132 : vector<16x64xf32>
    %135 = arith.addf %130, %134 : vector<16x64xf32>
    %cst_53 = arith.constant 0.797884583 : f32
    %136 = vector.broadcast %cst_53 : f32 to vector<16x64xf32>
    %137 = arith.mulf %136, %135 : vector<16x64xf32>
    %138 = math.tanh %137 : vector<16x64xf32>
    %cst_54 = arith.constant 1.000000e+00 : f32
    %139 = vector.broadcast %cst_54 : f32 to vector<16x64xf32>
    %140 = arith.addf %139, %138 : vector<16x64xf32>
    %cst_55 = arith.constant 5.000000e-01 : f32
    %141 = vector.broadcast %cst_55 : f32 to vector<16x64xf32>
    %142 = arith.mulf %141, %140 : vector<16x64xf32>
    %143 = arith.mulf %130, %142 : vector<16x64xf32>
    %c0_56 = arith.constant 0 : index
    %c0_57 = arith.constant 0 : index
    %144 = vector.load %arg11[%c0_56, %c0_57] : memref<64x64xf32, #tpu.memory_space<vmem>>, vector<64x64xf32>
    %cst_58 = arith.constant dense<0.000000e+00> : vector<16x64xf32>
    %145 = tpu.matmul %143, %144, %cst_58 {dimension_numbers = #tpu.dot_dimension_numbers<[1], [0], [0], [1], [0, 0, 1, 1], [], []>} : vector<16x64xf32>, vector<64x64xf32>, vector<16x64xf32> -> vector<16x64xf32>
    %c0_59 = arith.constant 0 : index
    %c0_60 = arith.constant 0 : index
    %146 = vector.load %arg12[%c0_59, %c0_60] : memref<1x64xf32, #tpu.memory_space<vmem>>, vector<1x64xf32>
    %147 = vector.broadcast %146 : vector<1x64xf32> to vector<16x64xf32>
    %148 = arith.addf %145, %147 : vector<16x64xf32>
    %149 = arith.addf %101, %148 : vector<16x64xf32>
    %c0_61 = arith.constant 0 : index
    %c0_62 = arith.constant 0 : index
    %c0_63 = arith.constant 0 : index
    %150 = vector.load %arg13[%c0_61, %c0_62, %c0_63] : memref<1x16x64xf32, #tpu.memory_space<vmem>>, vector<1x16x64xf32>
    %151 = vector.shape_cast %150 : vector<1x16x64xf32> to vector<16x64xf32>
    %152 = vector.shape_cast %149 : vector<16x64xf32> to vector<1x16x64xf32>
    tpu.vector_store %arg13[%c0_61, %c0_62, %c0_63], %152 {strides = array<i32>} : memref<1x16x64xf32, #tpu.memory_space<vmem>>, vector<1x16x64xf32>,
    return
  }
  func.func @transform_0(%arg0: i32) -> (i32, i32, i32) {
    %c0_i32 = arith.constant 0 : i32
    %c0_i32_0 = arith.constant 0 : i32
    %c0_i32_1 = arith.constant 0 : i32
    return %arg0, %c0_i32, %c0_i32_0 : i32, i32, i32
  }
  func.func @transform_1(%arg0: i32) -> (i32, i32) {
    %c0_i32 = arith.constant 0 : i32
    %c0_i32_0 = arith.constant 0 : i32
    %c0_i32_1 = arith.constant 0 : i32
    return %c0_i32, %c0_i32_0 : i32, i32
  }
  func.func @transform_2(%arg0: i32) -> (i32, i32) {
    %c0_i32 = arith.constant 0 : i32
    %c0_i32_0 = arith.constant 0 : i32
    %c0_i32_1 = arith.constant 0 : i32
    return %c0_i32, %c0_i32_0 : i32, i32
  }
  func.func @transform_3(%arg0: i32) -> (i32, i32) {
    %c0_i32 = arith.constant 0 : i32
    %c0_i32_0 = arith.constant 0 : i32
    %c0_i32_1 = arith.constant 0 : i32
    return %c0_i32, %c0_i32_0 : i32, i32
  }
  func.func @transform_4(%arg0: i32) -> (i32, i32) {
    %c0_i32 = arith.constant 0 : i32
    %c0_i32_0 = arith.constant 0 : i32
    %c0_i32_1 = arith.constant 0 : i32
    return %c0_i32, %c0_i32_0 : i32, i32
  }
  func.func @transform_5(%arg0: i32) -> (i32, i32) {
    %c0_i32 = arith.constant 0 : i32
    %c0_i32_0 = arith.constant 0 : i32
    %c0_i32_1 = arith.constant 0 : i32
    return %c0_i32, %c0_i32_0 : i32, i32
  }
  func.func @transform_6(%arg0: i32) -> (i32, i32) {
    %c0_i32 = arith.constant 0 : i32
    %c0_i32_0 = arith.constant 0 : i32
    %c0_i32_1 = arith.constant 0 : i32
    return %c0_i32, %c0_i32_0 : i32, i32
  }
  func.func @transform_7(%arg0: i32) -> (i32, i32) {
    %c0_i32 = arith.constant 0 : i32
    %c0_i32_0 = arith.constant 0 : i32
    %c0_i32_1 = arith.constant 0 : i32
    return %c0_i32, %c0_i32_0 : i32, i32
  }
  func.func @transform_8(%arg0: i32) -> (i32, i32) {
    %c0_i32 = arith.constant 0 : i32
    %c0_i32_0 = arith.constant 0 : i32
    %c0_i32_1 = arith.constant 0 : i32
    return %c0_i32, %c0_i32_0 : i32, i32
  }
  func.func @transform_9(%arg0: i32) -> (i32, i32) {
    %c0_i32 = arith.constant 0 : i32
    %c0_i32_0 = arith.constant 0 : i32
    %c0_i32_1 = arith.constant 0 : i32
    return %c0_i32, %c0_i32_0 : i32, i32
  }
  func.func @transform_10(%arg0: i32) -> (i32, i32) {
    %c0_i32 = arith.constant 0 : i32
    %c0_i32_0 = arith.constant 0 : i32
    %c0_i32_1 = arith.constant 0 : i32
    return %c0_i32, %c0_i32_0 : i32, i32
  }
  func.func @transform_11(%arg0: i32) -> (i32, i32) {
    %c0_i32 = arith.constant 0 : i32
    %c0_i32_0 = arith.constant 0 : i32
    %c0_i32_1 = arith.constant 0 : i32
    return %c0_i32, %c0_i32_0 : i32, i32
  }
  func.func @transform_12(%arg0: i32) -> (i32, i32, i32) {
    %c0_i32 = arith.constant 0 : i32
    %c0_i32_0 = arith.constant 0 : i32
    %c0_i32_1 = arith.constant 0 : i32
    return %arg0, %c0_i32, %c0_i32_0 : i32, i32, i32
  }
}

module attributes {stable_mosaic.version = 11 : i64} {
  func.func @_pixels_loss_kernel(%arg0: i32, %arg1: memref<1x16x64xf32, #tpu.memory_space<vmem>>, %arg2: memref<64x48xf32, #tpu.memory_space<vmem>>, %arg3: memref<1x48xf32, #tpu.memory_space<vmem>>, %arg4: memref<1x16x48xf32, #tpu.memory_space<vmem>>, %arg5: memref<1x16x48xf32, #tpu.memory_space<vmem>>, %arg6: memref<1x1xf32, #tpu.memory_space<vmem>>) attributes {dimension_semantics = [#tpu.dimension_semantics<arbitrary>], iteration_bounds = array<i64: 2>, scalar_prefetch = 0 : i64, scratch_operands = 0 : i64, tpu.core_type = #tpu.core_type<tc>, window_params = [{transform_indices = @transform_0, window_bounds = array<i64: 1, 16, 64>}, {pipeline_mode = #tpu.pipeline_mode<synchronous>, transform_indices = @transform_1, window_bounds = array<i64: 64, 48>}, {pipeline_mode = #tpu.pipeline_mode<synchronous>, transform_indices = @transform_2, window_bounds = array<i64: 1, 48>}, {transform_indices = @transform_3, window_bounds = array<i64: 1, 16, 48>}, {transform_indices = @transform_4, window_bounds = array<i64: 1, 16, 48>}, {pipeline_mode = #tpu.pipeline_mode<synchronous>, transform_indices = @transform_5, window_bounds = array<i64: 1, 1>}]} {
    %c0 = arith.constant 0 : index
    %c0_0 = arith.constant 0 : index
    %c0_1 = arith.constant 0 : index
    %0 = vector.load %arg1[%c0, %c0_0, %c0_1] : memref<1x16x64xf32, #tpu.memory_space<vmem>>, vector<1x16x64xf32>
    %1 = vector.shape_cast %0 : vector<1x16x64xf32> to vector<16x64xf32>
    %c0_2 = arith.constant 0 : index
    %c0_3 = arith.constant 0 : index
    %2 = vector.load %arg2[%c0_2, %c0_3] : memref<64x48xf32, #tpu.memory_space<vmem>>, vector<64x48xf32>
    %cst = arith.constant dense<0.000000e+00> : vector<16x48xf32>
    %3 = tpu.matmul %1, %2, %cst {dimension_numbers = #tpu.dot_dimension_numbers<[1], [0], [0], [1], [0, 0, 1, 1], [], []>} : vector<16x64xf32>, vector<64x48xf32>, vector<16x48xf32> -> vector<16x48xf32>
    %c0_4 = arith.constant 0 : index
    %c0_5 = arith.constant 0 : index
    %4 = vector.load %arg3[%c0_4, %c0_5] : memref<1x48xf32, #tpu.memory_space<vmem>>, vector<1x48xf32>
    %5 = vector.broadcast %4 : vector<1x48xf32> to vector<16x48xf32>
    %6 = arith.addf %3, %5 : vector<16x48xf32>
    %c0_6 = arith.constant 0 : index
    %c0_7 = arith.constant 0 : index
    %c0_8 = arith.constant 0 : index
    %7 = vector.load %arg5[%c0_6, %c0_7, %c0_8] : memref<1x16x48xf32, #tpu.memory_space<vmem>>, vector<1x16x48xf32>
    %8 = vector.shape_cast %7 : vector<1x16x48xf32> to vector<16x48xf32>
    %9 = vector.shape_cast %6 : vector<16x48xf32> to vector<1x16x48xf32>
    tpu.vector_store %arg5[%c0_6, %c0_7, %c0_8], %9 {strides = array<i32>} : memref<1x16x48xf32, #tpu.memory_space<vmem>>, vector<1x16x48xf32>,
    %c0_9 = arith.constant 0 : index
    %c0_10 = arith.constant 0 : index
    %c0_11 = arith.constant 0 : index
    %10 = vector.load %arg4[%c0_9, %c0_10, %c0_11] : memref<1x16x48xf32, #tpu.memory_space<vmem>>, vector<1x16x48xf32>
    %11 = vector.shape_cast %10 : vector<1x16x48xf32> to vector<16x48xf32>
    %12 = arith.subf %6, %11 : vector<16x48xf32>
    %c0_i32 = arith.constant 0 : i32
    %13 = arith.cmpi eq, %arg0, %c0_i32 : i32
    %14 = arith.extui %13 : i1 to i32
    %c0_i32_12 = arith.constant 0 : i32
    %15 = arith.cmpi ne, %14, %c0_i32_12 : i32
    scf.if %15 {
      %cst_18 = arith.constant 0.000000e+00 : f32
      %25 = vector.broadcast %cst_18 : f32 to vector<1x1xf32>
      %c0_19 = arith.constant 0 : index
      %c0_20 = arith.constant 0 : index
      %26 = vector.load %arg6[%c0_19, %c0_20] : memref<1x1xf32, #tpu.memory_space<vmem>>, vector<1x1xf32>
      tpu.vector_store %arg6[%c0_19, %c0_20], %25 {strides = array<i32>} : memref<1x1xf32, #tpu.memory_space<vmem>>, vector<1x1xf32>,
    } else {
    }
    %c0_13 = arith.constant 0 : index
    %c0_14 = arith.constant 0 : index
    %16 = vector.load %arg6[%c0_13, %c0_14] : memref<1x1xf32, #tpu.memory_space<vmem>>, vector<1x1xf32>
    %17 = arith.mulf %12, %12 : vector<16x48xf32>
    %18 = vector.shape_cast %17 : vector<16x48xf32> to vector<1x16x48xf32>
    %cst_15 = arith.constant dense<0.000000e+00> : vector<1xf32>
    %19 = vector.multi_reduction <add>, %18, %cst_15 [1, 2] : vector<1x16x48xf32> to vector<1xf32>
    %20 = vector.shape_cast %19 : vector<1xf32> to vector<1x1x1xf32>
    %21 = vector.extract %20[0, 0, 0] : f32 from vector<1x1x1xf32>
    %22 = vector.broadcast %21 : f32 to vector<1x1xf32>
    %23 = arith.addf %16, %22 : vector<1x1xf32>
    %c0_16 = arith.constant 0 : index
    %c0_17 = arith.constant 0 : index
    %24 = vector.load %arg6[%c0_16, %c0_17] : memref<1x1xf32, #tpu.memory_space<vmem>>, vector<1x1xf32>
    tpu.vector_store %arg6[%c0_16, %c0_17], %23 {strides = array<i32>} : memref<1x1xf32, #tpu.memory_space<vmem>>, vector<1x1xf32>,
    return
  }
  func.func @transform_0(%arg0: i32) -> (i32, i32, i32) {
    %c0_i32 = arith.constant 0 : i32
    %c0_i32_0 = arith.constant 0 : i32
    %c0_i32_1 = arith.constant 0 : i32
    return %arg0, %c0_i32, %c0_i32_0 : i32, i32, i32
  }
  func.func @transform_1(%arg0: i32) -> (i32, i32) {
    %c0_i32 = arith.constant 0 : i32
    %c0_i32_0 = arith.constant 0 : i32
    %c0_i32_1 = arith.constant 0 : i32
    return %c0_i32, %c0_i32_0 : i32, i32
  }
  func.func @transform_2(%arg0: i32) -> (i32, i32) {
    %c0_i32 = arith.constant 0 : i32
    %c0_i32_0 = arith.constant 0 : i32
    %c0_i32_1 = arith.constant 0 : i32
    return %c0_i32, %c0_i32_0 : i32, i32
  }
  func.func @transform_3(%arg0: i32) -> (i32, i32, i32) {
    %c0_i32 = arith.constant 0 : i32
    %c0_i32_0 = arith.constant 0 : i32
    %c0_i32_1 = arith.constant 0 : i32
    return %arg0, %c0_i32, %c0_i32_0 : i32, i32, i32
  }
  func.func @transform_4(%arg0: i32) -> (i32, i32, i32) {
    %c0_i32 = arith.constant 0 : i32
    %c0_i32_0 = arith.constant 0 : i32
    %c0_i32_1 = arith.constant 0 : i32
    return %arg0, %c0_i32, %c0_i32_0 : i32, i32, i32
  }
  func.func @transform_5(%arg0: i32) -> (i32, i32) {
    %c0_i32 = arith.constant 0 : i32
    %c0_i32_0 = arith.constant 0 : i32
    %c0_i32_1 = arith.constant 0 : i32
    return %c0_i32, %c0_i32_0 : i32, i32
  }
}

</mosaic_0001>

<llo_original>
// kernel: bin_model_forward.9
$region0: #{bin_model_forward.9}
  #allocation0 [shape = 'u32[]', space=smem, size = 0x4, offset = 0x4, fixed_abs, tag = 'smem constant byte address 0x4 - core index']
  #allocation1 [shape = 'u32[144,128]{1,0:T(1,128)}', space=vmem, size = 0x12000, scoped, tag = 'internal scratch']
  %s0 = inlined_call_operand.vmem [shape: f32[2,4,192], index: 0, kind: input, shape index: {}]
  %s1 = inlined_call_operand.vmem [shape: f32[192,32], index: 1, kind: input, shape index: {}]
  %s2 = inlined_call_operand.vmem [shape: f32[1,32], index: 2, kind: input, shape index: {}]
  %s3 = inlined_call_operand.vmem [shape: f32[1,4,32], index: 3, kind: input, shape index: {}]
  %s4 = inlined_call_operand.vmem [shape: f32[2,4,32], index: 4, kind: output, shape index: {}]
  %s5 = sld [smem:[#allocation0]]
  $region49: #{bin_model_forward.9} parent=0
    _
  %s7 = ssub.s32 1, %s5
  %s8 = scalar_select 0, %s7, %s5
  loop: start=0, step=1, limit=4
  $region2: #{bin_model_forward.9} parent=0 // loop_pre_header
    _
  $region3: #{bin_model_forward.9} parent=0 // loop_header
    %s10 = sphi 0, %s14
    %p11 = scmp.ge.s32.totalorder %s10, 4
    %s20 = sphi 0, %s22
    %s23 = sphi 0, %s20
    %s24 = sphi 0, %s23
    %s40 = sphi 0, %s24
    %s44 = sphi 0, %s44
    %s46 = sphi 0, %s44
    %s47 = sphi 0, %s46
    %s61 = sphi 0, %s47
    %s65 = sphi 0, %s65
    %s67 = sphi 0, %s65
    %s68 = sphi 0, %s67
    %s82 = sphi 0, %s68
    %s86 = sphi 0, %s86
    %s88 = sphi 0, %s86
    %s89 = sphi 0, %s88
    %s103 = sphi 0, %s89
    %s109 = sphi 0, %s111
    %s112 = sphi 0, %s109
    %s113 = sphi 0, %s112
    %s129 = sphi 0, %s113
  $region4: #{bin_model_forward.9} parent=0 // loop_header_branch
    %13 = sbr.rel (%p11) target = $region8
  $region5: #{bin_model_forward.9} parent=0 // loop_body
    %s15 = ssub.s32 %s10, 1
    %s16 = ssub.s32 %s10, 2
    %s17 = sadd.s32 %s10, 1
    %s18 = ssub.s32 %s10, %s17
    %p19 = scmp.eq.s32.totalorder %s18, 0
    %s21 = sadd.s32 %s20, 1
    %s22 = scalar_select %p19, %s20, %s21
    %p25 = pneg %p19
    %p26 = scmp.eq.s32.totalorder %s10, 1
    %p27 = por %p25, %p26
    %p28 = scmp.ne.s32.totalorder %s20, %s23
    %p29 = scmp.eq.s32.totalorder %s10, 0
    %p30 = por %p28, %p29
    %p31 = scmp.ne.s32.totalorder %s20, %s23
    %p32 = scmp.eq.s32.totalorder %s15, 1
    %p33 = por %p31, %p32
    %p34 = scmp.ne.s32.totalorder %s23, %s24
    %p35 = scmp.eq.s32.totalorder %s15, 0
    %p36 = por %p34, %p35
    %p37 = scmp.ne.s32.totalorder %s23, %s24
    %p38 = scmp.eq.s32.totalorder %s16, 1
    %p39 = por %p37, %p38
    %p41 = scmp.ne.s32.totalorder %s24, %s40
    %p42 = scmp.eq.s32.totalorder %s16, 0
    %p43 = por %p41, %p42
    %s45 = sadd.s32 %s44, 1
    %p48 = scmp.eq.s32.totalorder %s10, 1
    %p49 = scmp.ne.s32.totalorder %s44, %s46
    %p50 = scmp.eq.s32.totalorder %s10, 0
    %p51 = por %p49, %p50
    %p52 = scmp.ne.s32.totalorder %s44, %s46
    %p53 = scmp.eq.s32.totalorder %s15, 1
    %p54 = por %p52, %p53
    %p55 = scmp.ne.s32.totalorder %s46, %s47
    %p56 = scmp.eq.s32.totalorder %s15, 0
    %p57 = por %p55, %p56
    %p58 = scmp.ne.s32.totalorder %s46, %s47
    %p59 = scmp.eq.s32.totalorder %s16, 1
    %p60 = por %p58, %p59
    %p62 = scmp.ne.s32.totalorder %s47, %s61
    %p63 = scmp.eq.s32.totalorder %s16, 0
    %p64 = por %p62, %p63
    %s66 = sadd.s32 %s65, 1
    %p69 = scmp.eq.s32.totalorder %s10, 1
    %p70 = scmp.ne.s32.totalorder %s65, %s67
    %p71 = scmp.eq.s32.totalorder %s10, 0
    %p72 = por %p70, %p71
    %p73 = scmp.ne.s32.totalorder %s65, %s67
    %p74 = scmp.eq.s32.totalorder %s15, 1
    %p75 = por %p73, %p74
    %p76 = scmp.ne.s32.totalorder %s67, %s68
    %p77 = scmp.eq.s32.totalorder %s15, 0
    %p78 = por %p76, %p77
    %p79 = scmp.ne.s32.totalorder %s67, %s68
    %p80 = scmp.eq.s32.totalorder %s16, 1
    %p81 = por %p79, %p80
    %p83 = scmp.ne.s32.totalorder %s68, %s82
    %p84 = scmp.eq.s32.totalorder %s16, 0
    %p85 = por %p83, %p84
    %s87 = sadd.s32 %s86, 1
    %p90 = scmp.eq.s32.totalorder %s10, 1
    %p91 = scmp.ne.s32.totalorder %s86, %s88
    %p92 = scmp.eq.s32.totalorder %s10, 0
    %p93 = por %p91, %p92
    %p94 = scmp.ne.s32.totalorder %s86, %s88
    %p95 = scmp.eq.s32.totalorder %s15, 1
    %p96 = por %p94, %p95
    %p97 = scmp.ne.s32.totalorder %s88, %s89
    %p98 = scmp.eq.s32.totalorder %s15, 0
    %p99 = por %p97, %p98
    %p100 = scmp.ne.s32.totalorder %s88, %s89
    %p101 = scmp.eq.s32.totalorder %s16, 1
    %p102 = por %p100, %p101
    %p104 = scmp.ne.s32.totalorder %s89, %s103
    %p105 = scmp.eq.s32.totalorder %s16, 0
    %p106 = por %p104, %p105
    %s107 = ssub.s32 %s10, %s17
    %p108 = scmp.eq.s32.totalorder %s107, 0
    %s110 = sadd.s32 %s109, 1
    %s111 = scalar_select %p108, %s109, %s110
    %p114 = pneg %p108
    %p115 = scmp.eq.s32.totalorder %s10, 1
    %p116 = por %p114, %p115
    %p117 = scmp.ne.s32.totalorder %s109, %s112
    %p118 = scmp.eq.s32.totalorder %s10, 0
    %p119 = por %p117, %p118
    %p120 = scmp.ne.s32.totalorder %s109, %s112
    %p121 = scmp.eq.s32.totalorder %s15, 1
    %p122 = por %p120, %p121
    %p123 = scmp.ne.s32.totalorder %s112, %s113
    %p124 = scmp.eq.s32.totalorder %s15, 0
    %p125 = por %p123, %p124
    %p126 = scmp.ne.s32.totalorder %s112, %s113
    %p127 = scmp.eq.s32.totalorder %s16, 1
    %p128 = por %p126, %p127
    %p130 = scmp.ne.s32.totalorder %s113, %s129
    %p131 = scmp.eq.s32.totalorder %s16, 0
    %p132 = por %p130, %p131
    %p133 = scmp.le.s32.totalorder 1, %s10
    %p134 = scmp.lt.s32.totalorder %s10, 3
    %p135 = pnand %p133, %p134
    %p136 = pneg %p135
    // Predicated region
    $region9: #{bin_model_forward.9} parent=5 // pred_check
      _
    $region10: #{bin_model_forward.9} parent=5 // pred_check_branch
      %138 = sbr.rel (%p135) target = $region12
    $region11: #{bin_model_forward.9} parent=5 // pred_region
      %s139 = ssub.s32 %s10, 1
      // Predicated region
      $region13: #{bin_model_forward.9} parent=11 // pred_check
        %p140 = pneg %p57
      $region14: #{bin_model_forward.9} parent=11 // pred_check_branch
        %142 = sbr.rel (%p140) target = $region16
      $region15: #{bin_model_forward.9} parent=11 // pred_region
        _
      $region16: #{bin_model_forward.9} parent=11 // pred_fallthru
        _
      // Predicated region
      $region17: #{bin_model_forward.9} parent=11 // pred_check
        %p143 = pneg %p78
      $region18: #{bin_model_forward.9} parent=11 // pred_check_branch
        %145 = sbr.rel (%p143) target = $region20
      $region19: #{bin_model_forward.9} parent=11 // pred_region
        _
      $region20: #{bin_model_forward.9} parent=11 // pred_fallthru
        _
      // Predicated region
      $region21: #{bin_model_forward.9} parent=11 // pred_check
        %p146 = pneg %p99
      $region22: #{bin_model_forward.9} parent=11 // pred_check_branch
        %148 = sbr.rel (%p146) target = $region24
      $region23: #{bin_model_forward.9} parent=11 // pred_region
        _
      $region24: #{bin_model_forward.9} parent=11 // pred_fallthru
        _
    $region12: #{bin_model_forward.9} parent=5 // pred_fallthru
      _
    %p149 = scmp.lt.s32.totalorder %s10, 2
    // Predicated region
    $region25: #{bin_model_forward.9} parent=5 // pred_check
      %p150 = pneg %p149
    $region26: #{bin_model_forward.9} parent=5 // pred_check_branch
      %152 = sbr.rel (%p150) target = $region28
    $region27: #{bin_model_forward.9} parent=5 // pred_region
      // Predicated region
      $region29: #{bin_model_forward.9} parent=27 // pred_check
        %p153 = pneg %p30
      $region30: #{bin_model_forward.9} parent=27 // pred_check_branch
        %155 = sbr.rel (%p153) target = $region32
      $region31: #{bin_model_forward.9} parent=27 // pred_region
        %p156 = scmp.lt.s32.totalorder %s10, 1
        %s157 = scalar_select %p156, %s10, 1
        %s158 = smul.addr %s157, 2
        %s159 = smul.addr %s158, 4
        %s160 = scalar_lea.vmem %s0, %s159
      $region32: #{bin_model_forward.9} parent=27 // pred_fallthru
        _
    $region28: #{bin_model_forward.9} parent=5 // pred_fallthru
      _
    %p161 = scmp.le.s32.totalorder 1, %s10
    %p162 = scmp.lt.s32.totalorder %s10, 3
    %p163 = pnand %p161, %p162
    %p164 = pneg %p163
    // Predicated region
    $region33: #{bin_model_forward.9} parent=5 // pred_check
      _
    $region34: #{bin_model_forward.9} parent=5 // pred_check_branch
      %166 = sbr.rel (%p163) target = $region36
    $region35: #{bin_model_forward.9} parent=5 // pred_region
      %s167 = ssub.s32 %s10, 1
      %p168 = scmp.lt.s32.totalorder %s15, 1
      %s169 = scalar_select %p168, %s15, 1
      %s170 = smul.addr %s169, 2
      %s171 = smul.addr %s170, 4
      %s172 = scalar_lea.vmem %s0, %s171
      %p173 = pneg %p36
      %p174 = pneg %p33
      %p175 = pneg %p57
      %p176 = pneg %p54
      %p177 = pneg %p78
      %p178 = pneg %p75
      %p179 = pneg %p99
      %p180 = pneg %p96
      %p181 = pneg %p125
      %p182 = pneg %p122
      %p183 = scmp.lt.s32.totalorder %s15, 1
      %s184 = scalar_select %p183, %s15, 1
      %s185 = smul.addr %s184, 4
      %s186 = scalar_lea.vmem %s4, %s185
      %p187 = scmp.lt.s32.totalorder %s15, 1
      %s188 = scalar_select %p187, %s15, 1
      %s189 = smul.addr %s188, 2
      %s190 = smul.addr %s189, 4
      %s191 = scalar_lea.vmem %s0, %s190
      %p192 = scmp.lt.s32.totalorder %s15, 1
      %s193 = scalar_select %p192, %s15, 1
      %s194 = smul.addr %s193, 4
      %s195 = scalar_lea.vmem %s4, %s194
      %v196 = vld [vmem:[%s191] sm:$0xff]
      %v197 = vld [vmem:[%s1] sm:$0xff]
      %v198 = vld [vmem:[%s1 + $0x8] sm:$0xff]
      %v199 = vld [vmem:[%s1 + $0x10] sm:$0xff]
      %v200 = vld [vmem:[%s1 + $0x18] sm:$0xff]
      %v201 = vld [vmem:[%s1 + $0x20] sm:$0xff]
      %v202 = vld [vmem:[%s1 + $0x28] sm:$0xff]
      %v203 = vld [vmem:[%s1 + $0x30] sm:$0xff]
      %v204 = vld [vmem:[%s1 + $0x38] sm:$0xff]
      %v205 = vld [vmem:[%s1 + $0x40] sm:$0xff]
      %v206 = vld [vmem:[%s1 + $0x48] sm:$0xff]
      %v207 = vld [vmem:[%s1 + $0x50] sm:$0xff]
      %v208 = vld [vmem:[%s1 + $0x58] sm:$0xff]
      %v209 = vld [vmem:[%s1 + $0x60] sm:$0xff]
      %v210 = vld [vmem:[%s1 + $0x68] sm:$0xff]
      %v211 = vld [vmem:[%s1 + $0x70] sm:$0xff]
      %v212 = vld [vmem:[%s1 + $0x78] sm:$0xff]
      %v213 = vld [vmem:[%s1 + $0x80] sm:$0xff]
      %v214 = vld [vmem:[%s1 + $0x88] sm:$0xff]
      %v215 = vld [vmem:[%s1 + $0x90] sm:$0xff]
      %v216 = vld [vmem:[%s1 + $0x98] sm:$0xff]
      %v217 = vld [vmem:[%s1 + $0xa0] sm:$0xff]
      %v218 = vld [vmem:[%s1 + $0xa8] sm:$0xff]
      %v219 = vld [vmem:[%s1 + $0xb0] sm:$0xff]
      %v220 = vld [vmem:[%s1 + $0xb8] sm:$0xff]
      %v221 = vld [vmem:[%s2] sm:$0x1]
      %v223 = vlaneseq
      %v224 = vshrl.u32 %v223, 7
      %v225 = vsub.s32 0, %v224
      %v226 = vrot.slane %v221, %v225
      %v229 = vcombine.high %v196, %v196
      %vm230 = vcmask 523264
      %v231 = vsel %vm230, %v229, 0
      %233 = vmatprep.subr.mxu0 0.0
      %234 = vmatpush1.msra.mxu0 %v197
      %235 = vmatprep.subr.mxu0 0.0
      %236 = vmatpush1.msra.mxu0 %v198
      %237 = vmatprep.subr.mxu0 0.0
      %238 = vmatpush1.msra.mxu0 %v199
      %239 = vmatprep.subr.mxu0 0.0
      %240 = vmatpush1.msra.mxu0 %v200
      %241 = vmatprep.subr.mxu0 0.0
      %242 = vmatpush1.msra.mxu0 %v201
      %243 = vmatprep.subr.mxu0 0.0
      %244 = vmatpush1.msra.mxu0 %v202
      %245 = vmatprep.subr.mxu0 0.0
      %246 = vmatpush1.msra.mxu0 %v203
      %247 = vmatprep.subr.mxu0 0.0
      %248 = vmatpush1.msra.mxu0 %v204
      %249 = vmatprep.subr.mxu0 0.0
      %250 = vmatpush1.msra.mxu0 %v205
      %251 = vmatprep.subr.mxu0 0.0
      %252 = vmatpush1.msra.mxu0 %v206
      %253 = vmatprep.subr.mxu0 0.0
      %254 = vmatpush1.msra.mxu0 %v207
      %255 = vmatprep.subr.mxu0 0.0
      %256 = vmatpush1.msra.mxu0 %v208
      %257 = vmatprep.subr.mxu0 0.0
      %258 = vmatpush1.msra.mxu0 %v209
      %259 = vmatprep.subr.mxu0 0.0
      %260 = vmatpush1.msra.mxu0 %v210
      %261 = vmatprep.subr.mxu0 0.0
      %262 = vmatpush1.msra.mxu0 %v211
      %263 = vmatprep.subr.mxu0 0.0
      %264 = vmatpush1.msra.mxu0 %v212
      %265 = vmatprep.subr.mxu0 0.0
      %266 = vmatpush1.msra.mxu0 %v213
      %267 = vmatprep.subr.mxu0 0.0
      %268 = vmatpush1.msra.mxu0 %v214
      %269 = vmatprep.subr.mxu0 0.0
      %270 = vmatpush1.msra.mxu0 %v215
      %271 = vmatprep.subr.mxu0 0.0
      %272 = vmatpush1.msra.mxu0 %v216
      %273 = vmatprep.subr.mxu0 0.0
      %274 = vmatpush1.msra.mxu0 %v217
      %275 = vmatprep.subr.mxu0 0.0
      %276 = vmatpush1.msra.mxu0 %v218
      %277 = vmatprep.subr.mxu0 0.0
      %278 = vmatpush1.msra.mxu0 %v219
      %279 = vmatprep.subr.mxu0 0.0
      %280 = vmatpush1.msra.mxu0 %v220
      %281 = vmatprep.subr.mxu0 0.0
      %282 = vmatpush1.msra.mxu0 0.0
      %283 = vmatprep.subr.mxu0 0.0
      %284 = vmatpush1.msra.mxu0 0.0
      %285 = vmatprep.subr.mxu0 0.0
      %286 = vmatpush1.msra.mxu0 0.0
      %287 = vmatprep.subr.mxu0 0.0
      %288 = vmatpush1.msra.mxu0 0.0
      %289 = vmatprep.subr.mxu0 0.0
      %290 = vmatpush1.msra.mxu0 0.0
      %291 = vmatprep.subr.mxu0 0.0
      %292 = vmatpush1.msra.mxu0 0.0
      %293 = vmatprep.subr.mxu0 0.0
      %294 = vmatpush1.msra.mxu0 0.0
      %295 = vmatprep.subr.mxu0 0.0
      %296 = vmatpush1.msra.mxu0 0.0
      %297 = vmatprep.mubr.f32.mxu0 %v231
      %298 = vmatmul.mubr.f32.gmra.mrb[0].mxu0 %v196
      %v299 = vpop.f32.mrb[0].mxu0
      %v300 = vadd.f32 %v226, %v299
      %v301 = vpop.f32.mrb[0].mxu0
      %302 = vdwg.mxu0
      %v303 = vld [vmem:[%s3] sm:$0xf]
      %v304 = vadd.f32 %v300, %v303
      %vm305 = vcmask 257024
      %306 = vst.msk [vmem:[%s195] sm:$0xf] %vm305, %v304
      %p307 = scmp.lt.s32.totalorder %s15, 1
      %s308 = scalar_select %p307, %s15, 1
      %s309 = smul.addr %s308, 4
      %s310 = scalar_lea.vmem %s4, %s309
      // Predicated region
      $region37: #{bin_model_forward.9} parent=35 // pred_check
        %p311 = pneg %p122
      $region38: #{bin_model_forward.9} parent=35 // pred_check_branch
        %313 = sbr.rel (%p311) target = $region40
      $region39: #{bin_model_forward.9} parent=35 // pred_region
        _
      $region40: #{bin_model_forward.9} parent=35 // pred_fallthru
        _
    $region36: #{bin_model_forward.9} parent=5 // pred_fallthru
      _
    %p314 = scmp.le.s32.totalorder 2, %s10
    // Predicated region
    $region41: #{bin_model_forward.9} parent=5 // pred_check
      %p315 = pneg %p314
    $region42: #{bin_model_forward.9} parent=5 // pred_check_branch
      %317 = sbr.rel (%p315) target = $region44
    $region43: #{bin_model_forward.9} parent=5 // pred_region
      %s318 = ssub.s32 %s10, 2
      // Predicated region
      $region45: #{bin_model_forward.9} parent=43 // pred_check
        %p319 = pneg %p128
      $region46: #{bin_model_forward.9} parent=43 // pred_check_branch
        %321 = sbr.rel (%p319) target = $region48
      $region47: #{bin_model_forward.9} parent=43 // pred_region
        %p322 = scmp.lt.s32.totalorder %s16, 1
        %s323 = scalar_select %p322, %s16, 1
        %s324 = smul.addr %s323, 4
        %s325 = scalar_lea.vmem %s4, %s324
      $region48: #{bin_model_forward.9} parent=43 // pred_fallthru
        _
    $region44: #{bin_model_forward.9} parent=5 // pred_fallthru
      _
  $region6: #{bin_model_forward.9} parent=0 // loop_footer
    %s14 = sadd.s32 1, %s10
  $region7: #{bin_model_forward.9} parent=0 // loop_footer_branch
    %9 = sbr.rel target = $region3
  $region8: #{bin_model_forward.9} parent=0 // loop_exit
    _

// kernel: bin_model_forward.12
$region0: #{bin_model_forward.12}
  #allocation0 [shape = 'u32[]', space=smem, size = 0x4, offset = 0x4, fixed_abs, tag = 'smem constant byte address 0x4 - core index']
  #allocation1 [shape = 'u32[144,128]{1,0:T(1,128)}', space=vmem, size = 0x12000, scoped, tag = 'internal scratch']
  %s0 = inlined_call_operand.vmem [shape: f32[2,4,32], index: 0, kind: input, shape index: {}]
  %s1 = inlined_call_operand.vmem [shape: f32[1,32], index: 1, kind: input, shape index: {}]
  %s2 = inlined_call_operand.vmem [shape: f32[1,32], index: 2, kind: input, shape index: {}]
  %s3 = inlined_call_operand.vmem [shape: f32[32,96], index: 3, kind: input, shape index: {}]
  %s4 = inlined_call_operand.vmem [shape: f32[32,32], index: 4, kind: input, shape index: {}]
  %s5 = inlined_call_operand.vmem [shape: f32[1,32], index: 5, kind: input, shape index: {}]
  %s6 = inlined_call_operand.vmem [shape: f32[1,32], index: 6, kind: input, shape index: {}]
  %s7 = inlined_call_operand.vmem [shape: f32[1,32], index: 7, kind: input, shape index: {}]
  %s8 = inlined_call_operand.vmem [shape: f32[32,32], index: 8, kind: input, shape index: {}]
  %s9 = inlined_call_operand.vmem [shape: f32[1,32], index: 9, kind: input, shape index: {}]
  %s10 = inlined_call_operand.vmem [shape: f32[32,32], index: 10, kind: input, shape index: {}]
  %s11 = inlined_call_operand.vmem [shape: f32[1,32], index: 11, kind: input, shape index: {}]
  %s12 = inlined_call_operand.vmem [shape: f32[2,4,32], index: 12, kind: output, shape index: {}]
  %s13 = sld [smem:[#allocation0]]
  $region81: #{bin_model_forward.12} parent=0
    _
  %s15 = ssub.s32 1, %s13
  %s16 = scalar_select 0, %s15, %s13
  loop: start=0, step=1, limit=4
  $region2: #{bin_model_forward.12} parent=0 // loop_pre_header
    _
  $region3: #{bin_model_forward.12} parent=0 // loop_header
    %s18 = sphi 0, %s22
    %p19 = scmp.ge.s32.totalorder %s18, 4
    %s28 = sphi 0, %s30
    %s31 = sphi 0, %s28
    %s32 = sphi 0, %s31
    %s48 = sphi 0, %s32
    %s52 = sphi 0, %s52
    %s54 = sphi 0, %s52
    %s55 = sphi 0, %s54
    %s69 = sphi 0, %s55
    %s73 = sphi 0, %s73
    %s75 = sphi 0, %s73
    %s76 = sphi 0, %s75
    %s90 = sphi 0, %s76
    %s94 = sphi 0, %s94
    %s96 = sphi 0, %s94
    %s97 = sphi 0, %s96
    %s111 = sphi 0, %s97
    %s115 = sphi 0, %s115
    %s117 = sphi 0, %s115
    %s118 = sphi 0, %s117
    %s132 = sphi 0, %s118
    %s136 = sphi 0, %s136
    %s138 = sphi 0, %s136
    %s139 = sphi 0, %s138
    %s153 = sphi 0, %s139
    %s157 = sphi 0, %s157
    %s159 = sphi 0, %s157
    %s160 = sphi 0, %s159
    %s174 = sphi 0, %s160
    %s178 = sphi 0, %s178
    %s180 = sphi 0, %s178
    %s181 = sphi 0, %s180
    %s195 = sphi 0, %s181
    %s199 = sphi 0, %s199
    %s201 = sphi 0, %s199
    %s202 = sphi 0, %s201
    %s216 = sphi 0, %s202
    %s220 = sphi 0, %s220
    %s222 = sphi 0, %s220
    %s223 = sphi 0, %s222
    %s237 = sphi 0, %s223
    %s241 = sphi 0, %s241
    %s243 = sphi 0, %s241
    %s244 = sphi 0, %s243
    %s258 = sphi 0, %s244
    %s262 = sphi 0, %s262
    %s264 = sphi 0, %s262
    %s265 = sphi 0, %s264
    %s279 = sphi 0, %s265
    %s285 = sphi 0, %s287
    %s288 = sphi 0, %s285
    %s289 = sphi 0, %s288
    %s305 = sphi 0, %s289
  $region4: #{bin_model_forward.12} parent=0 // loop_header_branch
    %21 = sbr.rel (%p19) target = $region8
  $region5: #{bin_model_forward.12} parent=0 // loop_body
    %s23 = ssub.s32 %s18, 1
    %s24 = ssub.s32 %s18, 2
    %s25 = sadd.s32 %s18, 1
    %s26 = ssub.s32 %s18, %s25
    %p27 = scmp.eq.s32.totalorder %s26, 0
    %s29 = sadd.s32 %s28, 1
    %s30 = scalar_select %p27, %s28, %s29
    %p33 = pneg %p27
    %p34 = scmp.eq.s32.totalorder %s18, 1
    %p35 = por %p33, %p34
    %p36 = scmp.ne.s32.totalorder %s28, %s31
    %p37 = scmp.eq.s32.totalorder %s18, 0
    %p38 = por %p36, %p37
    %p39 = scmp.ne.s32.totalorder %s28, %s31
    %p40 = scmp.eq.s32.totalorder %s23, 1
    %p41 = por %p39, %p40
    %p42 = scmp.ne.s32.totalorder %s31, %s32
    %p43 = scmp.eq.s32.totalorder %s23, 0
    %p44 = por %p42, %p43
    %p45 = scmp.ne.s32.totalorder %s31, %s32
    %p46 = scmp.eq.s32.totalorder %s24, 1
    %p47 = por %p45, %p46
    %p49 = scmp.ne.s32.totalorder %s32, %s48
    %p50 = scmp.eq.s32.totalorder %s24, 0
    %p51 = por %p49, %p50
    %s53 = sadd.s32 %s52, 1
    %p56 = scmp.eq.s32.totalorder %s18, 1
    %p57 = scmp.ne.s32.totalorder %s52, %s54
    %p58 = scmp.eq.s32.totalorder %s18, 0
    %p59 = por %p57, %p58
    %p60 = scmp.ne.s32.totalorder %s52, %s54
    %p61 = scmp.eq.s32.totalorder %s23, 1
    %p62 = por %p60, %p61
    %p63 = scmp.ne.s32.totalorder %s54, %s55
    %p64 = scmp.eq.s32.totalorder %s23, 0
    %p65 = por %p63, %p64
    %p66 = scmp.ne.s32.totalorder %s54, %s55
    %p67 = scmp.eq.s32.totalorder %s24, 1
    %p68 = por %p66, %p67
    %p70 = scmp.ne.s32.totalorder %s55, %s69
    %p71 = scmp.eq.s32.totalorder %s24, 0
    %p72 = por %p70, %p71
    %s74 = sadd.s32 %s73, 1
    %p77 = scmp.eq.s32.totalorder %s18, 1
    %p78 = scmp.ne.s32.totalorder %s73, %s75
    %p79 = scmp.eq.s32.totalorder %s18, 0
    %p80 = por %p78, %p79
    %p81 = scmp.ne.s32.totalorder %s73, %s75
    %p82 = scmp.eq.s32.totalorder %s23, 1
    %p83 = por %p81, %p82
    %p84 = scmp.ne.s32.totalorder %s75, %s76
    %p85 = scmp.eq.s32.totalorder %s23, 0
    %p86 = por %p84, %p85
    %p87 = scmp.ne.s32.totalorder %s75, %s76
    %p88 = scmp.eq.s32.totalorder %s24, 1
    %p89 = por %p87, %p88
    %p91 = scmp.ne.s32.totalorder %s76, %s90
    %p92 = scmp.eq.s32.totalorder %s24, 0
    %p93 = por %p91, %p92
    %s95 = sadd.s32 %s94, 1
    %p98 = scmp.eq.s32.totalorder %s18, 1
    %p99 = scmp.ne.s32.totalorder %s94, %s96
    %p100 = scmp.eq.s32.totalorder %s18, 0
    %p101 = por %p99, %p100
    %p102 = scmp.ne.s32.totalorder %s94, %s96
    %p103 = scmp.eq.s32.totalorder %s23, 1
    %p104 = por %p102, %p103
    %p105 = scmp.ne.s32.totalorder %s96, %s97
    %p106 = scmp.eq.s32.totalorder %s23, 0
    %p107 = por %p105, %p106
    %p108 = scmp.ne.s32.totalorder %s96, %s97
    %p109 = scmp.eq.s32.totalorder %s24, 1
    %p110 = por %p108, %p109
    %p112 = scmp.ne.s32.totalorder %s97, %s111
    %p113 = scmp.eq.s32.totalorder %s24, 0
    %p114 = por %p112, %p113
    %s116 = sadd.s32 %s115, 1
    %p119 = scmp.eq.s32.totalorder %s18, 1
    %p120 = scmp.ne.s32.totalorder %s115, %s117
    %p121 = scmp.eq.s32.totalorder %s18, 0
    %p122 = por %p120, %p121
    %p123 = scmp.ne.s32.totalorder %s115, %s117
    %p124 = scmp.eq.s32.totalorder %s23, 1
    %p125 = por %p123, %p124
    %p126 = scmp.ne.s32.totalorder %s117, %s118
    %p127 = scmp.eq.s32.totalorder %s23, 0
    %p128 = por %p126, %p127
    %p129 = scmp.ne.s32.totalorder %s117, %s118
    %p130 = scmp.eq.s32.totalorder %s24, 1
    %p131 = por %p129, %p130
    %p133 = scmp.ne.s32.totalorder %s118, %s132
    %p134 = scmp.eq.s32.totalorder %s24, 0
    %p135 = por %p133, %p134
    %s137 = sadd.s32 %s136, 1
    %p140 = scmp.eq.s32.totalorder %s18, 1
    %p141 = scmp.ne.s32.totalorder %s136, %s138
    %p142 = scmp.eq.s32.totalorder %s18, 0
    %p143 = por %p141, %p142
    %p144 = scmp.ne.s32.totalorder %s136, %s138
    %p145 = scmp.eq.s32.totalorder %s23, 1
    %p146 = por %p144, %p145
    %p147 = scmp.ne.s32.totalorder %s138, %s139
    %p148 = scmp.eq.s32.totalorder %s23, 0
    %p149 = por %p147, %p148
    %p150 = scmp.ne.s32.totalorder %s138, %s139
    %p151 = scmp.eq.s32.totalorder %s24, 1
    %p152 = por %p150, %p151
    %p154 = scmp.ne.s32.totalorder %s139, %s153
    %p155 = scmp.eq.s32.totalorder %s24, 0
    %p156 = por %p154, %p155
    %s158 = sadd.s32 %s157, 1
    %p161 = scmp.eq.s32.totalorder %s18, 1
    %p162 = scmp.ne.s32.totalorder %s157, %s159
    %p163 = scmp.eq.s32.totalorder %s18, 0
    %p164 = por %p162, %p163
    %p165 = scmp.ne.s32.totalorder %s157, %s159
    %p166 = scmp.eq.s32.totalorder %s23, 1
    %p167 = por %p165, %p166
    %p168 = scmp.ne.s32.totalorder %s159, %s160
    %p169 = scmp.eq.s32.totalorder %s23, 0
    %p170 = por %p168, %p169
    %p171 = scmp.ne.s32.totalorder %s159, %s160
    %p172 = scmp.eq.s32.totalorder %s24, 1
    %p173 = por %p171, %p172
    %p175 = scmp.ne.s32.totalorder %s160, %s174
    %p176 = scmp.eq.s32.totalorder %s24, 0
    %p177 = por %p175, %p176
    %s179 = sadd.s32 %s178, 1
    %p182 = scmp.eq.s32.totalorder %s18, 1
    %p183 = scmp.ne.s32.totalorder %s178, %s180
    %p184 = scmp.eq.s32.totalorder %s18, 0
    %p185 = por %p183, %p184
    %p186 = scmp.ne.s32.totalorder %s178, %s180
    %p187 = scmp.eq.s32.totalorder %s23, 1
    %p188 = por %p186, %p187
    %p189 = scmp.ne.s32.totalorder %s180, %s181
    %p190 = scmp.eq.s32.totalorder %s23, 0
    %p191 = por %p189, %p190
    %p192 = scmp.ne.s32.totalorder %s180, %s181
    %p193 = scmp.eq.s32.totalorder %s24, 1
    %p194 = por %p192, %p193
    %p196 = scmp.ne.s32.totalorder %s181, %s195
    %p197 = scmp.eq.s32.totalorder %s24, 0
    %p198 = por %p196, %p197
    %s200 = sadd.s32 %s199, 1
    %p203 = scmp.eq.s32.totalorder %s18, 1
    %p204 = scmp.ne.s32.totalorder %s199, %s201
    %p205 = scmp.eq.s32.totalorder %s18, 0
    %p206 = por %p204, %p205
    %p207 = scmp.ne.s32.totalorder %s199, %s201
    %p208 = scmp.eq.s32.totalorder %s23, 1
    %p209 = por %p207, %p208
    %p210 = scmp.ne.s32.totalorder %s201, %s202
    %p211 = scmp.eq.s32.totalorder %s23, 0
    %p212 = por %p210, %p211
    %p213 = scmp.ne.s32.totalorder %s201, %s202
    %p214 = scmp.eq.s32.totalorder %s24, 1
    %p215 = por %p213, %p214
    %p217 = scmp.ne.s32.totalorder %s202, %s216
    %p218 = scmp.eq.s32.totalorder %s24, 0
    %p219 = por %p217, %p218
    %s221 = sadd.s32 %s220, 1
    %p224 = scmp.eq.s32.totalorder %s18, 1
    %p225 = scmp.ne.s32.totalorder %s220, %s222
    %p226 = scmp.eq.s32.totalorder %s18, 0
    %p227 = por %p225, %p226
    %p228 = scmp.ne.s32.totalorder %s220, %s222
    %p229 = scmp.eq.s32.totalorder %s23, 1
    %p230 = por %p228, %p229
    %p231 = scmp.ne.s32.totalorder %s222, %s223
    %p232 = scmp.eq.s32.totalorder %s23, 0
    %p233 = por %p231, %p232
    %p234 = scmp.ne.s32.totalorder %s222, %s223
    %p235 = scmp.eq.s32.totalorder %s24, 1
    %p236 = por %p234, %p235
    %p238 = scmp.ne.s32.totalorder %s223, %s237
    %p239 = scmp.eq.s32.totalorder %s24, 0
    %p240 = por %p238, %p239
    %s242 = sadd.s32 %s241, 1
    %p245 = scmp.eq.s32.totalorder %s18, 1
    %p246 = scmp.ne.s32.totalorder %s241, %s243
    %p247 = scmp.eq.s32.totalorder %s18, 0
    %p248 = por %p246, %p247
    %p249 = scmp.ne.s32.totalorder %s241, %s243
    %p250 = scmp.eq.s32.totalorder %s23, 1
    %p251 = por %p249, %p250
    %p252 = scmp.ne.s32.totalorder %s243, %s244
    %p253 = scmp.eq.s32.totalorder %s23, 0
    %p254 = por %p252, %p253
    %p255 = scmp.ne.s32.totalorder %s243, %s244
    %p256 = scmp.eq.s32.totalorder %s24, 1
    %p257 = por %p255, %p256
    %p259 = scmp.ne.s32.totalorder %s244, %s258
    %p260 = scmp.eq.s32.totalorder %s24, 0
    %p261 = por %p259, %p260
    %s263 = sadd.s32 %s262, 1
    %p266 = scmp.eq.s32.totalorder %s18, 1
    %p267 = scmp.ne.s32.totalorder %s262, %s264
    %p268 = scmp.eq.s32.totalorder %s18, 0
    %p269 = por %p267, %p268
    %p270 = scmp.ne.s32.totalorder %s262, %s264
    %p271 = scmp.eq.s32.totalorder %s23, 1
    %p272 = por %p270, %p271
    %p273 = scmp.ne.s32.totalorder %s264, %s265
    %p274 = scmp.eq.s32.totalorder %s23, 0
    %p275 = por %p273, %p274
    %p276 = scmp.ne.s32.totalorder %s264, %s265
    %p277 = scmp.eq.s32.totalorder %s24, 1
    %p278 = por %p276, %p277
    %p280 = scmp.ne.s32.totalorder %s265, %s279
    %p281 = scmp.eq.s32.totalorder %s24, 0
    %p282 = por %p280, %p281
    %s283 = ssub.s32 %s18, %s25
    %p284 = scmp.eq.s32.totalorder %s283, 0
    %s286 = sadd.s32 %s285, 1
    %s287 = scalar_select %p284, %s285, %s286
    %p290 = pneg %p284
    %p291 = scmp.eq.s32.totalorder %s18, 1
    %p292 = por %p290, %p291
    %p293 = scmp.ne.s32.totalorder %s285, %s288
    %p294 = scmp.eq.s32.totalorder %s18, 0
    %p295 = por %p293, %p294
    %p296 = scmp.ne.s32.totalorder %s285, %s288
    %p297 = scmp.eq.s32.totalorder %s23, 1
    %p298 = por %p296, %p297
    %p299 = scmp.ne.s32.totalorder %s288, %s289
    %p300 = scmp.eq.s32.totalorder %s23, 0
    %p301 = por %p299, %p300
    %p302 = scmp.ne.s32.totalorder %s288, %s289
    %p303 = scmp.eq.s32.totalorder %s24, 1
    %p304 = por %p302, %p303
    %p306 = scmp.ne.s32.totalorder %s289, %s305
    %p307 = scmp.eq.s32.totalorder %s24, 0
    %p308 = por %p306, %p307
    %p309 = scmp.le.s32.totalorder 1, %s18
    %p310 = scmp.lt.s32.totalorder %s18, 3
    %p311 = pnand %p309, %p310
    %p312 = pneg %p311
    // Predicated region
    $region9: #{bin_model_forward.12} parent=5 // pred_check
      _
    $region10: #{bin_model_forward.12} parent=5 // pred_check_branch
      %314 = sbr.rel (%p311) target = $region12
    $region11: #{bin_model_forward.12} parent=5 // pred_region
      %s315 = ssub.s32 %s18, 1
      // Predicated region
      $region13: #{bin_model_forward.12} parent=11 // pred_check
        %p316 = pneg %p65
      $region14: #{bin_model_forward.12} parent=11 // pred_check_branch
        %318 = sbr.rel (%p316) target = $region16
      $region15: #{bin_model_forward.12} parent=11 // pred_region
        _
      $region16: #{bin_model_forward.12} parent=11 // pred_fallthru
        _
      // Predicated region
      $region17: #{bin_model_forward.12} parent=11 // pred_check
        %p319 = pneg %p86
      $region18: #{bin_model_forward.12} parent=11 // pred_check_branch
        %321 = sbr.rel (%p319) target = $region20
      $region19: #{bin_model_forward.12} parent=11 // pred_region
        _
      $region20: #{bin_model_forward.12} parent=11 // pred_fallthru
        _
      // Predicated region
      $region21: #{bin_model_forward.12} parent=11 // pred_check
        %p322 = pneg %p107
      $region22: #{bin_model_forward.12} parent=11 // pred_check_branch
        %324 = sbr.rel (%p322) target = $region24
      $region23: #{bin_model_forward.12} parent=11 // pred_region
        _
      $region24: #{bin_model_forward.12} parent=11 // pred_fallthru
        _
      // Predicated region
      $region25: #{bin_model_forward.12} parent=11 // pred_check
        %p325 = pneg %p128
      $region26: #{bin_model_forward.12} parent=11 // pred_check_branch
        %327 = sbr.rel (%p325) target = $region28
      $region27: #{bin_model_forward.12} parent=11 // pred_region
        _
      $region28: #{bin_model_forward.12} parent=11 // pred_fallthru
        _
      // Predicated region
      $region29: #{bin_model_forward.12} parent=11 // pred_check
        %p328 = pneg %p149
      $region30: #{bin_model_forward.12} parent=11 // pred_check_branch
        %330 = sbr.rel (%p328) target = $region32
      $region31: #{bin_model_forward.12} parent=11 // pred_region
        _
      $region32: #{bin_model_forward.12} parent=11 // pred_fallthru
        _
      // Predicated region
      $region33: #{bin_model_forward.12} parent=11 // pred_check
        %p331 = pneg %p170
      $region34: #{bin_model_forward.12} parent=11 // pred_check_branch
        %333 = sbr.rel (%p331) target = $region36
      $region35: #{bin_model_forward.12} parent=11 // pred_region
        _
      $region36: #{bin_model_forward.12} parent=11 // pred_fallthru
        _
      // Predicated region
      $region37: #{bin_model_forward.12} parent=11 // pred_check
        %p334 = pneg %p191
      $region38: #{bin_model_forward.12} parent=11 // pred_check_branch
        %336 = sbr.rel (%p334) target = $region40
      $region39: #{bin_model_forward.12} parent=11 // pred_region
        _
      $region40: #{bin_model_forward.12} parent=11 // pred_fallthru
        _
      // Predicated region
      $region41: #{bin_model_forward.12} parent=11 // pred_check
        %p337 = pneg %p212
      $region42: #{bin_model_forward.12} parent=11 // pred_check_branch
        %339 = sbr.rel (%p337) target = $region44
      $region43: #{bin_model_forward.12} parent=11 // pred_region
        _
      $region44: #{bin_model_forward.12} parent=11 // pred_fallthru
        _
      // Predicated region
      $region45: #{bin_model_forward.12} parent=11 // pred_check
        %p340 = pneg %p233
      $region46: #{bin_model_forward.12} parent=11 // pred_check_branch
        %342 = sbr.rel (%p340) target = $region48
      $region47: #{bin_model_forward.12} parent=11 // pred_region
        _
      $region48: #{bin_model_forward.12} parent=11 // pred_fallthru
        _
      // Predicated region
      $region49: #{bin_model_forward.12} parent=11 // pred_check
        %p343 = pneg %p254
      $region50: #{bin_model_forward.12} parent=11 // pred_check_branch
        %345 = sbr.rel (%p343) target = $region52
      $region51: #{bin_model_forward.12} parent=11 // pred_region
        _
      $region52: #{bin_model_forward.12} parent=11 // pred_fallthru
        _
      // Predicated region
      $region53: #{bin_model_forward.12} parent=11 // pred_check
        %p346 = pneg %p275
      $region54: #{bin_model_forward.12} parent=11 // pred_check_branch
        %348 = sbr.rel (%p346) target = $region56
      $region55: #{bin_model_forward.12} parent=11 // pred_region
        _
      $region56: #{bin_model_forward.12} parent=11 // pred_fallthru
        _
    $region12: #{bin_model_forward.12} parent=5 // pred_fallthru
      _
    %p349 = scmp.lt.s32.totalorder %s18, 2
    // Predicated region
    $region57: #{bin_model_forward.12} parent=5 // pred_check
      %p350 = pneg %p349
    $region58: #{bin_model_forward.12} parent=5 // pred_check_branch
      %352 = sbr.rel (%p350) target = $region60
    $region59: #{bin_model_forward.12} parent=5 // pred_region
      // Predicated region
      $region61: #{bin_model_forward.12} parent=59 // pred_check
        %p353 = pneg %p38
      $region62: #{bin_model_forward.12} parent=59 // pred_check_branch
        %355 = sbr.rel (%p353) target = $region64
      $region63: #{bin_model_forward.12} parent=59 // pred_region
        %p356 = scmp.lt.s32.totalorder %s18, 1
        %s357 = scalar_select %p356, %s18, 1
        %s358 = smul.addr %s357, 4
        %s359 = scalar_lea.vmem %s0, %s358
      $region64: #{bin_model_forward.12} parent=59 // pred_fallthru
        _
    $region60: #{bin_model_forward.12} parent=5 // pred_fallthru
      _
    %p360 = scmp.le.s32.totalorder 1, %s18
    %p361 = scmp.lt.s32.totalorder %s18, 3
    %p362 = pnand %p360, %p361
    %p363 = pneg %p362
    // Predicated region
    $region65: #{bin_model_forward.12} parent=5 // pred_check
      _
    $region66: #{bin_model_forward.12} parent=5 // pred_check_branch
      %365 = sbr.rel (%p362) target = $region68
    $region67: #{bin_model_forward.12} parent=5 // pred_region
      %s366 = ssub.s32 %s18, 1
      %p367 = scmp.lt.s32.totalorder %s23, 1
      %s368 = scalar_select %p367, %s23, 1
      %s369 = smul.addr %s368, 4
      %s370 = scalar_lea.vmem %s0, %s369
      %p371 = pneg %p44
      %p372 = pneg %p41
      %p373 = pneg %p65
      %p374 = pneg %p62
      %p375 = pneg %p86
      %p376 = pneg %p83
      %p377 = pneg %p107
      %p378 = pneg %p104
      %p379 = pneg %p128
      %p380 = pneg %p125
      %p381 = pneg %p149
      %p382 = pneg %p146
      %p383 = pneg %p170
      %p384 = pneg %p167
      %p385 = pneg %p191
      %p386 = pneg %p188
      %p387 = pneg %p212
      %p388 = pneg %p209
      %p389 = pneg %p233
      %p390 = pneg %p230
      %p391 = pneg %p254
      %p392 = pneg %p251
      %p393 = pneg %p275
      %p394 = pneg %p272
      %p395 = pneg %p301
      %p396 = pneg %p298
      %p397 = scmp.lt.s32.totalorder %s23, 1
      %s398 = scalar_select %p397, %s23, 1
      %s399 = smul.addr %s398, 4
      %s400 = scalar_lea.vmem %s12, %s399
      %p401 = scmp.lt.s32.totalorder %s23, 1
      %s402 = scalar_select %p401, %s23, 1
      %s403 = smul.addr %s402, 4
      %s404 = scalar_lea.vmem %s0, %s403
      %p405 = scmp.lt.s32.totalorder %s23, 1
      %s406 = scalar_select %p405, %s23, 1
      %s407 = smul.addr %s406, 4
      %s408 = scalar_lea.vmem %s12, %s407
      %v409 = vld [vmem:[%s404] sm:$0xf]
      %v410 = vld [vmem:[%s1] sm:$0x1]
      %v411 = vld [vmem:[%s2] sm:$0x1]
      %vm412 = vcmask 257024
      %v413 = vsel %vm412, %v409, 0.0
      %414 = vadd.xlane.f32.xlu0 %v413
      %v415 = vpop.xlane.xlu0 %414
      %v416 = vrcp.pop 32.0
      %v417 = vmul.f32 %v415, %v416
      %v418 = vsub.f32 %v409, %v417
      %v419 = vmul.f32 %v418, %v418
      %v420 = vsel %vm412, %v419, 0.0
      %421 = vadd.xlane.f32.xlu0 %v420
      %v422 = vpop.xlane.xlu0 %421
      %v423 = vmul.f32 %v422, %v416
      %v424 = vadd.f32 %v423, 1e-05
      %v425 = vrsqrt.pop %v424
      %v426 = vmul.f32 %v418, %v425
      %v428 = vlaneseq
      %v429 = vshrl.u32 %v428, 7
      %v430 = vsub.s32 0, %v429
      %v431 = vrot.slane %v410, %v430
      %v433 = vmul.f32 %v426, %v431
      %v435 = vlaneseq
      %v436 = vshrl.u32 %v435, 7
      %v437 = vsub.s32 0, %v436
      %v438 = vrot.slane %v411, %v437
      %v440 = vadd.f32 %v433, %v438
      %v441 = vld [vmem:[%s3] sm:$0xff]
      %v442 = vld [vmem:[%s3 + $0x8] sm:$0xff]
      %v443 = vld [vmem:[%s3 + $0x10] sm:$0xff]
      %v444 = vld [vmem:[%s3 + $0x18] sm:$0xff]
      %vm445 = vcmask 261120
      %v447 = vsel %vm445, %v440, 0
      %449 = vmatprep.subr.mxu0 0.0
      %450 = vmatpush1.msra.mxu0 %v441
      %451 = vmatprep.subr.mxu0 0.0
      %452 = vmatpush1.msra.mxu0 %v442
      %453 = vmatprep.subr.mxu0 0.0
      %454 = vmatpush1.msra.mxu0 %v443
      %455 = vmatprep.subr.mxu0 0.0
      %456 = vmatpush1.msra.mxu0 %v444
      %457 = vmatprep.subr.mxu0 0.0
      %458 = vmatpush1.msra.mxu0 0.0
      %459 = vmatprep.subr.mxu0 0.0
      %460 = vmatpush1.msra.mxu0 0.0
      %461 = vmatprep.subr.mxu0 0.0
      %462 = vmatpush1.msra.mxu0 0.0
      %463 = vmatprep.subr.mxu0 0.0
      %464 = vmatpush1.msra.mxu0 0.0
      %465 = vmatprep.subr.mxu0 0.0
      %466 = vmatpush1.msra.mxu0 0.0
      %467 = vmatprep.subr.mxu0 0.0
      %468 = vmatpush1.msra.mxu0 0.0
      %469 = vmatprep.subr.mxu0 0.0
      %470 = vmatpush1.msra.mxu0 0.0
      %471 = vmatprep.subr.mxu0 0.0
      %472 = vmatpush1.msra.mxu0 0.0
      %473 = vmatprep.subr.mxu0 0.0
      %474 = vmatpush1.msra.mxu0 0.0
      %475 = vmatprep.subr.mxu0 0.0
      %476 = vmatpush1.msra.mxu0 0.0
      %477 = vmatprep.subr.mxu0 0.0
      %478 = vmatpush1.msra.mxu0 0.0
      %479 = vmatprep.subr.mxu0 0.0
      %480 = vmatpush1.msra.mxu0 0.0
      %481 = vmatprep.subr.mxu0 0.0
      %482 = vmatpush1.msra.mxu0 0.0
      %483 = vmatprep.subr.mxu0 0.0
      %484 = vmatpush1.msra.mxu0 0.0
      %485 = vmatprep.subr.mxu0 0.0
      %486 = vmatpush1.msra.mxu0 0.0
      %487 = vmatprep.subr.mxu0 0.0
      %488 = vmatpush1.msra.mxu0 0.0
      %489 = vmatprep.subr.mxu0 0.0
      %490 = vmatpush1.msra.mxu0 0.0
      %491 = vmatprep.subr.mxu0 0.0
      %492 = vmatpush1.msra.mxu0 0.0
      %493 = vmatprep.subr.mxu0 0.0
      %494 = vmatpush1.msra.mxu0 0.0
      %495 = vmatprep.subr.mxu0 0.0
      %496 = vmatpush1.msra.mxu0 0.0
      %497 = vmatprep.subr.mxu0 0.0
      %498 = vmatpush1.msra.mxu0 0.0
      %499 = vmatprep.subr.mxu0 0.0
      %500 = vmatpush1.msra.mxu0 0.0
      %501 = vmatprep.subr.mxu0 0.0
      %502 = vmatpush1.msra.mxu0 0.0
      %503 = vmatprep.subr.mxu0 0.0
      %504 = vmatpush1.msra.mxu0 0.0
      %505 = vmatprep.subr.mxu0 0.0
      %506 = vmatpush1.msra.mxu0 0.0
      %507 = vmatprep.subr.mxu0 0.0
      %508 = vmatpush1.msra.mxu0 0.0
      %509 = vmatprep.subr.mxu0 0.0
      %510 = vmatpush1.msra.mxu0 0.0
      %511 = vmatprep.subr.mxu0 0.0
      %512 = vmatpush1.msra.mxu0 0.0
      %513 = vmatprep.mubr.f32.mxu0 0.0
      %514 = vmatmul.mubr.f32.gmra.mrb[0].mxu0 %v447
      %v515 = vpop.f32.mrb[0].mxu0
      %v516 = vadd.f32 0.0, %v515
      %v517 = vpop.f32.mrb[0].mxu0
      %518 = vdwg.mxu0
      %520 = vrot.lane.b32.xlu0 %v516, 96
      %v521 = vpop.permute.xlu0 %520
      %vm522 = vcmask 64512
      %v523 = vsel %vm522, %v516, 0
      %v525 = vsel %vm522, %v521, 0
      %527 = vmatprep.subr.mxu0 0.0
      %528 = vmatpush1.xpose.msra.mxu0 %v525
      %529 = vmatprep.subr.mxu0 0.0
      %530 = vmatpush1.xpose.msra.mxu0 0.0
      %531 = vmatprep.subr.mxu0 0.0
      %532 = vmatpush1.xpose.msra.mxu0 0.0
      %533 = vmatprep.subr.mxu0 0.0
      %534 = vmatpush1.xpose.msra.mxu0 0.0
      %535 = vmatprep.subr.mxu0 0.0
      %536 = vmatpush1.xpose.msra.mxu0 0.0
      %537 = vmatprep.subr.mxu0 0.0
      %538 = vmatpush1.xpose.msra.mxu0 0.0
      %539 = vmatprep.subr.mxu0 0.0
      %540 = vmatpush1.xpose.msra.mxu0 0.0
      %541 = vmatprep.subr.mxu0 0.0
      %542 = vmatpush1.xpose.msra.mxu0 0.0
      %543 = vmatprep.subr.mxu0 0.0
      %544 = vmatpush1.xpose.msra.mxu0 0.0
      %545 = vmatprep.subr.mxu0 0.0
      %546 = vmatpush1.xpose.msra.mxu0 0.0
      %547 = vmatprep.subr.mxu0 0.0
      %548 = vmatpush1.xpose.msra.mxu0 0.0
      %549 = vmatprep.subr.mxu0 0.0
      %550 = vmatpush1.xpose.msra.mxu0 0.0
      %551 = vmatprep.subr.mxu0 0.0
      %552 = vmatpush1.xpose.msra.mxu0 0.0
      %553 = vmatprep.subr.mxu0 0.0
      %554 = vmatpush1.xpose.msra.mxu0 0.0
      %555 = vmatprep.subr.mxu0 0.0
      %556 = vmatpush1.xpose.msra.mxu0 0.0
      %557 = vmatprep.subr.mxu0 0.0
      %558 = vmatpush1.xpose.msra.mxu0 0.0
      %559 = vmatprep.subr.mxu0 0.0
      %560 = vmatpush1.xpose.msra.mxu0 0.0
      %561 = vmatprep.subr.mxu0 0.0
      %562 = vmatpush1.xpose.msra.mxu0 0.0
      %563 = vmatprep.subr.mxu0 0.0
      %564 = vmatpush1.xpose.msra.mxu0 0.0
      %565 = vmatprep.subr.mxu0 0.0
      %566 = vmatpush1.xpose.msra.mxu0 0.0
      %567 = vmatprep.subr.mxu0 0.0
      %568 = vmatpush1.xpose.msra.mxu0 0.0
      %569 = vmatprep.subr.mxu0 0.0
      %570 = vmatpush1.xpose.msra.mxu0 0.0
      %571 = vmatprep.subr.mxu0 0.0
      %572 = vmatpush1.xpose.msra.mxu0 0.0
      %573 = vmatprep.subr.mxu0 0.0
      %574 = vmatpush1.xpose.msra.mxu0 0.0
      %575 = vmatprep.subr.mxu0 0.0
      %576 = vmatpush1.xpose.msra.mxu0 0.0
      %577 = vmatprep.subr.mxu0 0.0
      %578 = vmatpush1.xpose.msra.mxu0 0.0
      %579 = vmatprep.subr.mxu0 0.0
      %580 = vmatpush1.xpose.msra.mxu0 0.0
      %581 = vmatprep.subr.mxu0 0.0
      %582 = vmatpush1.xpose.msra.mxu0 0.0
      %583 = vmatprep.subr.mxu0 0.0
      %584 = vmatpush1.xpose.msra.mxu0 0.0
      %585 = vmatprep.subr.mxu0 0.0
      %586 = vmatpush1.xpose.msra.mxu0 0.0
      %587 = vmatprep.subr.mxu0 0.0
      %588 = vmatpush1.xpose.msra.mxu0 0.0
      %589 = vmatprep.subr.mxu0 0.0
      %590 = vmatpush1.xpose.msra.mxu0 0.0
      %591 = vmatprep.mubr.f32.mxu0 0.0
      %592 = vmatmul.mubr.f32.gmra.mrb[0].mxu0 %v523
      %v593 = vpop.f32.mrb[0].mxu0
      %v594 = vadd.f32 0.0, %v593
      %v595 = vpop.f32.mrb[0].mxu0
      %596 = vdwg.mxu0
      %v597 = vmul.f32 %v594, 0.35355338
      %vm598 = vcmask 27648
      %v599 = vsel %vm598, %v597, -inf
      %600 = vmax.xlane.f32.xlu0 %v599
      %v601 = vpop.xlane.xlu0 %600
      %v602 = vsub.f32 %v597, %v601
      %v603 = vmul.f32 %v602, 1.442695
      %v604 = vpow.pop %v603
      %v605 = vsel %vm598, %v604, 0.0
      %606 = vadd.xlane.f32.xlu0 %v605
      %v607 = vpop.xlane.xlu0 %606
      %v608 = vrcp.pop %v607
      %v609 = vmul.f32 %v604, %v608
      %610 = vrot.lane.b32.xlu0 %v516, 64
      %v611 = vpop.permute.xlu0 %610
      %vm612 = vcmask 31744
      %v614 = vsel %vm612, %v609, 0
      %vm616 = vcmask 1043456
      %v617 = vsel %vm616, %v611, 0
      %619 = vmatprep.subr.mxu0 0.0
      %620 = vmatpush1.msra.mxu0 %v617
      %621 = vmatprep.subr.mxu0 0.0
      %622 = vmatpush1.msra.mxu0 0.0
      %623 = vmatprep.subr.mxu0 0.0
      %624 = vmatpush1.msra.mxu0 0.0
      %625 = vmatprep.subr.mxu0 0.0
      %626 = vmatpush1.msra.mxu0 0.0
      %627 = vmatprep.subr.mxu0 0.0
      %628 = vmatpush1.msra.mxu0 0.0
      %629 = vmatprep.subr.mxu0 0.0
      %630 = vmatpush1.msra.mxu0 0.0
      %631 = vmatprep.subr.mxu0 0.0
      %632 = vmatpush1.msra.mxu0 0.0
      %633 = vmatprep.subr.mxu0 0.0
      %634 = vmatpush1.msra.mxu0 0.0
      %635 = vmatprep.subr.mxu0 0.0
      %636 = vmatpush1.msra.mxu0 0.0
      %637 = vmatprep.subr.mxu0 0.0
      %638 = vmatpush1.msra.mxu0 0.0
      %639 = vmatprep.subr.mxu0 0.0
      %640 = vmatpush1.msra.mxu0 0.0
      %641 = vmatprep.subr.mxu0 0.0
      %642 = vmatpush1.msra.mxu0 0.0
      %643 = vmatprep.subr.mxu0 0.0
      %644 = vmatpush1.msra.mxu0 0.0
      %645 = vmatprep.subr.mxu0 0.0
      %646 = vmatpush1.msra.mxu0 0.0
      %647 = vmatprep.subr.mxu0 0.0
      %648 = vmatpush1.msra.mxu0 0.0
      %649 = vmatprep.subr.mxu0 0.0
      %650 = vmatpush1.msra.mxu0 0.0
      %651 = vmatprep.subr.mxu0 0.0
      %652 = vmatpush1.msra.mxu0 0.0
      %653 = vmatprep.subr.mxu0 0.0
      %654 = vmatpush1.msra.mxu0 0.0
      %655 = vmatprep.subr.mxu0 0.0
      %656 = vmatpush1.msra.mxu0 0.0
      %657 = vmatprep.subr.mxu0 0.0
      %658 = vmatpush1.msra.mxu0 0.0
      %659 = vmatprep.subr.mxu0 0.0
      %660 = vmatpush1.msra.mxu0 0.0
      %661 = vmatprep.subr.mxu0 0.0
      %662 = vmatpush1.msra.mxu0 0.0
      %663 = vmatprep.subr.mxu0 0.0
      %664 = vmatpush1.msra.mxu0 0.0
      %665 = vmatprep.subr.mxu0 0.0
      %666 = vmatpush1.msra.mxu0 0.0
      %667 = vmatprep.subr.mxu0 0.0
      %668 = vmatpush1.msra.mxu0 0.0
      %669 = vmatprep.subr.mxu0 0.0
      %670 = vmatpush1.msra.mxu0 0.0
      %671 = vmatprep.subr.mxu0 0.0
      %672 = vmatpush1.msra.mxu0 0.0
      %673 = vmatprep.subr.mxu0 0.0
      %674 = vmatpush1.msra.mxu0 0.0
      %675 = vmatprep.subr.mxu0 0.0
      %676 = vmatpush1.msra.mxu0 0.0
      %677 = vmatprep.subr.mxu0 0.0
      %678 = vmatpush1.msra.mxu0 0.0
      %679 = vmatprep.subr.mxu0 0.0
      %680 = vmatpush1.msra.mxu0 0.0
      %681 = vmatprep.subr.mxu0 0.0
      %682 = vmatpush1.msra.mxu0 0.0
      %683 = vmatprep.mubr.f32.mxu0 0.0
      %684 = vmatmul.mubr.f32.gmra.mrb[0].mxu0 %v614
      %v685 = vpop.f32.mrb[0].mxu0
      %v686 = vadd.f32 0.0, %v685
      %v687 = vpop.f32.mrb[0].mxu0
      %688 = vdwg.mxu0
      %689 = vrot.lane.b32.xlu0 %v516, 120
      %v690 = vpop.permute.xlu0 %689
      %691 = vrot.lane.b32.xlu0 %v516, 88
      %v692 = vpop.permute.xlu0 %691
      %v693 = vsel %vm522, %v690, 0
      %v695 = vsel %vm522, %v692, 0
      %697 = vmatprep.subr.mxu0 0.0
      %698 = vmatpush1.xpose.msra.mxu0 %v695
      %699 = vmatprep.subr.mxu0 0.0
      %700 = vmatpush1.xpose.msra.mxu0 0.0
      %701 = vmatprep.subr.mxu0 0.0
      %702 = vmatpush1.xpose.msra.mxu0 0.0
      %703 = vmatprep.subr.mxu0 0.0
      %704 = vmatpush1.xpose.msra.mxu0 0.0
      %705 = vmatprep.subr.mxu0 0.0
      %706 = vmatpush1.xpose.msra.mxu0 0.0
      %707 = vmatprep.subr.mxu0 0.0
      %708 = vmatpush1.xpose.msra.mxu0 0.0
      %709 = vmatprep.subr.mxu0 0.0
      %710 = vmatpush1.xpose.msra.mxu0 0.0
      %711 = vmatprep.subr.mxu0 0.0
      %712 = vmatpush1.xpose.msra.mxu0 0.0
      %713 = vmatprep.subr.mxu0 0.0
      %714 = vmatpush1.xpose.msra.mxu0 0.0
      %715 = vmatprep.subr.mxu0 0.0
      %716 = vmatpush1.xpose.msra.mxu0 0.0
      %717 = vmatprep.subr.mxu0 0.0
      %718 = vmatpush1.xpose.msra.mxu0 0.0
      %719 = vmatprep.subr.mxu0 0.0
      %720 = vmatpush1.xpose.msra.mxu0 0.0
      %721 = vmatprep.subr.mxu0 0.0
      %722 = vmatpush1.xpose.msra.mxu0 0.0
      %723 = vmatprep.subr.mxu0 0.0
      %724 = vmatpush1.xpose.msra.mxu0 0.0
      %725 = vmatprep.subr.mxu0 0.0
      %726 = vmatpush1.xpose.msra.mxu0 0.0
      %727 = vmatprep.subr.mxu0 0.0
      %728 = vmatpush1.xpose.msra.mxu0 0.0
      %729 = vmatprep.subr.mxu0 0.0
      %730 = vmatpush1.xpose.msra.mxu0 0.0
      %731 = vmatprep.subr.mxu0 0.0
      %732 = vmatpush1.xpose.msra.mxu0 0.0
      %733 = vmatprep.subr.mxu0 0.0
      %734 = vmatpush1.xpose.msra.mxu0 0.0
      %735 = vmatprep.subr.mxu0 0.0
      %736 = vmatpush1.xpose.msra.mxu0 0.0
      %737 = vmatprep.subr.mxu0 0.0
      %738 = vmatpush1.xpose.msra.mxu0 0.0
      %739 = vmatprep.subr.mxu0 0.0
      %740 = vmatpush1.xpose.msra.mxu0 0.0
      %741 = vmatprep.subr.mxu0 0.0
      %742 = vmatpush1.xpose.msra.mxu0 0.0
      %743 = vmatprep.subr.mxu0 0.0
      %744 = vmatpush1.xpose.msra.mxu0 0.0
      %745 = vmatprep.subr.mxu0 0.0
      %746 = vmatpush1.xpose.msra.mxu0 0.0
      %747 = vmatprep.subr.mxu0 0.0
      %748 = vmatpush1.xpose.msra.mxu0 0.0
      %749 = vmatprep.subr.mxu0 0.0
      %750 = vmatpush1.xpose.msra.mxu0 0.0
      %751 = vmatprep.subr.mxu0 0.0
      %752 = vmatpush1.xpose.msra.mxu0 0.0
      %753 = vmatprep.subr.mxu0 0.0
      %754 = vmatpush1.xpose.msra.mxu0 0.0
      %755 = vmatprep.subr.mxu0 0.0
      %756 = vmatpush1.xpose.msra.mxu0 0.0
      %757 = vmatprep.subr.mxu0 0.0
      %758 = vmatpush1.xpose.msra.mxu0 0.0
      %759 = vmatprep.subr.mxu0 0.0
      %760 = vmatpush1.xpose.msra.mxu0 0.0
      %761 = vmatprep.mubr.f32.mxu0 0.0
      %762 = vmatmul.mubr.f32.gmra.mrb[0].mxu0 %v693
      %v763 = vpop.f32.mrb[0].mxu0
      %v764 = vadd.f32 0.0, %v763
      %v765 = vpop.f32.mrb[0].mxu0
      %766 = vdwg.mxu0
      %v767 = vmul.f32 %v764, 0.35355338
      %v768 = vsel %vm598, %v767, -inf
      %769 = vmax.xlane.f32.xlu0 %v768
      %v770 = vpop.xlane.xlu0 %769
      %v771 = vsub.f32 %v767, %v770
      %v772 = vmul.f32 %v771, 1.442695
      %v773 = vpow.pop %v772
      %v774 = vsel %vm598, %v773, 0.0
      %775 = vadd.xlane.f32.xlu0 %v774
      %v776 = vpop.xlane.xlu0 %775
      %v777 = vrcp.pop %v776
      %v778 = vmul.f32 %v773, %v777
      %779 = vrot.lane.b32.xlu0 %v516, 56
      %v780 = vpop.permute.xlu0 %779
      %v782 = vsel %vm612, %v778, 0
      %v784 = vsel %vm616, %v780, 0
      %786 = vmatprep.subr.mxu0 0.0
      %787 = vmatpush1.msra.mxu0 %v784
      %788 = vmatprep.subr.mxu0 0.0
      %789 = vmatpush1.msra.mxu0 0.0
      %790 = vmatprep.subr.mxu0 0.0
      %791 = vmatpush1.msra.mxu0 0.0
      %792 = vmatprep.subr.mxu0 0.0
      %793 = vmatpush1.msra.mxu0 0.0
      %794 = vmatprep.subr.mxu0 0.0
      %795 = vmatpush1.msra.mxu0 0.0
      %796 = vmatprep.subr.mxu0 0.0
      %797 = vmatpush1.msra.mxu0 0.0
      %798 = vmatprep.subr.mxu0 0.0
      %799 = vmatpush1.msra.mxu0 0.0
      %800 = vmatprep.subr.mxu0 0.0
      %801 = vmatpush1.msra.mxu0 0.0
      %802 = vmatprep.subr.mxu0 0.0
      %803 = vmatpush1.msra.mxu0 0.0
      %804 = vmatprep.subr.mxu0 0.0
      %805 = vmatpush1.msra.mxu0 0.0
      %806 = vmatprep.subr.mxu0 0.0
      %807 = vmatpush1.msra.mxu0 0.0
      %808 = vmatprep.subr.mxu0 0.0
      %809 = vmatpush1.msra.mxu0 0.0
      %810 = vmatprep.subr.mxu0 0.0
      %811 = vmatpush1.msra.mxu0 0.0
      %812 = vmatprep.subr.mxu0 0.0
      %813 = vmatpush1.msra.mxu0 0.0
      %814 = vmatprep.subr.mxu0 0.0
      %815 = vmatpush1.msra.mxu0 0.0
      %816 = vmatprep.subr.mxu0 0.0
      %817 = vmatpush1.msra.mxu0 0.0
      %818 = vmatprep.subr.mxu0 0.0
      %819 = vmatpush1.msra.mxu0 0.0
      %820 = vmatprep.subr.mxu0 0.0
      %821 = vmatpush1.msra.mxu0 0.0
      %822 = vmatprep.subr.mxu0 0.0
      %823 = vmatpush1.msra.mxu0 0.0
      %824 = vmatprep.subr.mxu0 0.0
      %825 = vmatpush1.msra.mxu0 0.0
      %826 = vmatprep.subr.mxu0 0.0
      %827 = vmatpush1.msra.mxu0 0.0
      %828 = vmatprep.subr.mxu0 0.0
      %829 = vmatpush1.msra.mxu0 0.0
      %830 = vmatprep.subr.mxu0 0.0
      %831 = vmatpush1.msra.mxu0 0.0
      %832 = vmatprep.subr.mxu0 0.0
      %833 = vmatpush1.msra.mxu0 0.0
      %834 = vmatprep.subr.mxu0 0.0
      %835 = vmatpush1.msra.mxu0 0.0
      %836 = vmatprep.subr.mxu0 0.0
      %837 = vmatpush1.msra.mxu0 0.0
      %838 = vmatprep.subr.mxu0 0.0
      %839 = vmatpush1.msra.mxu0 0.0
      %840 = vmatprep.subr.mxu0 0.0
      %841 = vmatpush1.msra.mxu0 0.0
      %842 = vmatprep.subr.mxu0 0.0
      %843 = vmatpush1.msra.mxu0 0.0
      %844 = vmatprep.subr.mxu0 0.0
      %845 = vmatpush1.msra.mxu0 0.0
      %846 = vmatprep.subr.mxu0 0.0
      %847 = vmatpush1.msra.mxu0 0.0
      %848 = vmatprep.subr.mxu0 0.0
      %849 = vmatpush1.msra.mxu0 0.0
      %850 = vmatprep.mubr.f32.mxu0 0.0
      %851 = vmatmul.mubr.f32.gmra.mrb[0].mxu0 %v782
      %v852 = vpop.f32.mrb[0].mxu0
      %v853 = vadd.f32 0.0, %v852
      %v854 = vpop.f32.mrb[0].mxu0
      %855 = vdwg.mxu0
      %856 = vrot.lane.b32.xlu0 %v516, 112
      %v857 = vpop.permute.xlu0 %856
      %858 = vrot.lane.b32.xlu0 %v516, 80
      %v859 = vpop.permute.xlu0 %858
      %v860 = vsel %vm522, %v857, 0
      %v862 = vsel %vm522, %v859, 0
      %864 = vmatprep.subr.mxu0 0.0
      %865 = vmatpush1.xpose.msra.mxu0 %v862
      %866 = vmatprep.subr.mxu0 0.0
      %867 = vmatpush1.xpose.msra.mxu0 0.0
      %868 = vmatprep.subr.mxu0 0.0
      %869 = vmatpush1.xpose.msra.mxu0 0.0
      %870 = vmatprep.subr.mxu0 0.0
      %871 = vmatpush1.xpose.msra.mxu0 0.0
      %872 = vmatprep.subr.mxu0 0.0
      %873 = vmatpush1.xpose.msra.mxu0 0.0
      %874 = vmatprep.subr.mxu0 0.0
      %875 = vmatpush1.xpose.msra.mxu0 0.0
      %876 = vmatprep.subr.mxu0 0.0
      %877 = vmatpush1.xpose.msra.mxu0 0.0
      %878 = vmatprep.subr.mxu0 0.0
      %879 = vmatpush1.xpose.msra.mxu0 0.0
      %880 = vmatprep.subr.mxu0 0.0
      %881 = vmatpush1.xpose.msra.mxu0 0.0
      %882 = vmatprep.subr.mxu0 0.0
      %883 = vmatpush1.xpose.msra.mxu0 0.0
      %884 = vmatprep.subr.mxu0 0.0
      %885 = vmatpush1.xpose.msra.mxu0 0.0
      %886 = vmatprep.subr.mxu0 0.0
      %887 = vmatpush1.xpose.msra.mxu0 0.0
      %888 = vmatprep.subr.mxu0 0.0
      %889 = vmatpush1.xpose.msra.mxu0 0.0
      %890 = vmatprep.subr.mxu0 0.0
      %891 = vmatpush1.xpose.msra.mxu0 0.0
      %892 = vmatprep.subr.mxu0 0.0
      %893 = vmatpush1.xpose.msra.mxu0 0.0
      %894 = vmatprep.subr.mxu0 0.0
      %895 = vmatpush1.xpose.msra.mxu0 0.0
      %896 = vmatprep.subr.mxu0 0.0
      %897 = vmatpush1.xpose.msra.mxu0 0.0
      %898 = vmatprep.subr.mxu0 0.0
      %899 = vmatpush1.xpose.msra.mxu0 0.0
      %900 = vmatprep.subr.mxu0 0.0
      %901 = vmatpush1.xpose.msra.mxu0 0.0
      %902 = vmatprep.subr.mxu0 0.0
      %903 = vmatpush1.xpose.msra.mxu0 0.0
      %904 = vmatprep.subr.mxu0 0.0
      %905 = vmatpush1.xpose.msra.mxu0 0.0
      %906 = vmatprep.subr.mxu0 0.0
      %907 = vmatpush1.xpose.msra.mxu0 0.0
      %908 = vmatprep.subr.mxu0 0.0
      %909 = vmatpush1.xpose.msra.mxu0 0.0
      %910 = vmatprep.subr.mxu0 0.0
      %911 = vmatpush1.xpose.msra.mxu0 0.0
      %912 = vmatprep.subr.mxu0 0.0
      %913 = vmatpush1.xpose.msra.mxu0 0.0
      %914 = vmatprep.subr.mxu0 0.0
      %915 = vmatpush1.xpose.msra.mxu0 0.0
      %916 = vmatprep.subr.mxu0 0.0
      %917 = vmatpush1.xpose.msra.mxu0 0.0
      %918 = vmatprep.subr.mxu0 0.0
      %919 = vmatpush1.xpose.msra.mxu0 0.0
      %920 = vmatprep.subr.mxu0 0.0
      %921 = vmatpush1.xpose.msra.mxu0 0.0
      %922 = vmatprep.subr.mxu0 0.0
      %923 = vmatpush1.xpose.msra.mxu0 0.0
      %924 = vmatprep.subr.mxu0 0.0
      %925 = vmatpush1.xpose.msra.mxu0 0.0
      %926 = vmatprep.subr.mxu0 0.0
      %927 = vmatpush1.xpose.msra.mxu0 0.0
      %928 = vmatprep.mubr.f32.mxu0 0.0
      %929 = vmatmul.mubr.f32.gmra.mrb[0].mxu0 %v860
      %v930 = vpop.f32.mrb[0].mxu0
      %v931 = vadd.f32 0.0, %v930
      %v932 = vpop.f32.mrb[0].mxu0
      %933 = vdwg.mxu0
      %v934 = vmul.f32 %v931, 0.35355338
      %v935 = vsel %vm598, %v934, -inf
      %936 = vmax.xlane.f32.xlu0 %v935
      %v937 = vpop.xlane.xlu0 %936
      %v938 = vsub.f32 %v934, %v937
      %v939 = vmul.f32 %v938, 1.442695
      %v940 = vpow.pop %v939
      %v941 = vsel %vm598, %v940, 0.0
      %942 = vadd.xlane.f32.xlu0 %v941
      %v943 = vpop.xlane.xlu0 %942
      %v944 = vrcp.pop %v943
      %v945 = vmul.f32 %v940, %v944
      %946 = vrot.lane.b32.xlu0 %v516, 48
      %v947 = vpop.permute.xlu0 %946
      %v949 = vsel %vm612, %v945, 0
      %v951 = vsel %vm616, %v947, 0
      %953 = vmatprep.subr.mxu0 0.0
      %954 = vmatpush1.msra.mxu0 %v951
      %955 = vmatprep.subr.mxu0 0.0
      %956 = vmatpush1.msra.mxu0 0.0
      %957 = vmatprep.subr.mxu0 0.0
      %958 = vmatpush1.msra.mxu0 0.0
      %959 = vmatprep.subr.mxu0 0.0
      %960 = vmatpush1.msra.mxu0 0.0
      %961 = vmatprep.subr.mxu0 0.0
      %962 = vmatpush1.msra.mxu0 0.0
      %963 = vmatprep.subr.mxu0 0.0
      %964 = vmatpush1.msra.mxu0 0.0
      %965 = vmatprep.subr.mxu0 0.0
      %966 = vmatpush1.msra.mxu0 0.0
      %967 = vmatprep.subr.mxu0 0.0
      %968 = vmatpush1.msra.mxu0 0.0
      %969 = vmatprep.subr.mxu0 0.0
      %970 = vmatpush1.msra.mxu0 0.0
      %971 = vmatprep.subr.mxu0 0.0
      %972 = vmatpush1.msra.mxu0 0.0
      %973 = vmatprep.subr.mxu0 0.0
      %974 = vmatpush1.msra.mxu0 0.0
      %975 = vmatprep.subr.mxu0 0.0
      %976 = vmatpush1.msra.mxu0 0.0
      %977 = vmatprep.subr.mxu0 0.0
      %978 = vmatpush1.msra.mxu0 0.0
      %979 = vmatprep.subr.mxu0 0.0
      %980 = vmatpush1.msra.mxu0 0.0
      %981 = vmatprep.subr.mxu0 0.0
      %982 = vmatpush1.msra.mxu0 0.0
      %983 = vmatprep.subr.mxu0 0.0
      %984 = vmatpush1.msra.mxu0 0.0
      %985 = vmatprep.subr.mxu0 0.0
      %986 = vmatpush1.msra.mxu0 0.0
      %987 = vmatprep.subr.mxu0 0.0
      %988 = vmatpush1.msra.mxu0 0.0
      %989 = vmatprep.subr.mxu0 0.0
      %990 = vmatpush1.msra.mxu0 0.0
      %991 = vmatprep.subr.mxu0 0.0
      %992 = vmatpush1.msra.mxu0 0.0
      %993 = vmatprep.subr.mxu0 0.0
      %994 = vmatpush1.msra.mxu0 0.0
      %995 = vmatprep.subr.mxu0 0.0
      %996 = vmatpush1.msra.mxu0 0.0
      %997 = vmatprep.subr.mxu0 0.0
      %998 = vmatpush1.msra.mxu0 0.0
      %999 = vmatprep.subr.mxu0 0.0
      %1000 = vmatpush1.msra.mxu0 0.0
      %1001 = vmatprep.subr.mxu0 0.0
      %1002 = vmatpush1.msra.mxu0 0.0
      %1003 = vmatprep.subr.mxu0 0.0
      %1004 = vmatpush1.msra.mxu0 0.0
      %1005 = vmatprep.subr.mxu0 0.0
      %1006 = vmatpush1.msra.mxu0 0.0
      %1007 = vmatprep.subr.mxu0 0.0
      %1008 = vmatpush1.msra.mxu0 0.0
      %1009 = vmatprep.subr.mxu0 0.0
      %1010 = vmatpush1.msra.mxu0 0.0
      %1011 = vmatprep.subr.mxu0 0.0
      %1012 = vmatpush1.msra.mxu0 0.0
      %1013 = vmatprep.subr.mxu0 0.0
      %1014 = vmatpush1.msra.mxu0 0.0
      %1015 = vmatprep.subr.mxu0 0.0
      %1016 = vmatpush1.msra.mxu0 0.0
      %1017 = vmatprep.mubr.f32.mxu0 0.0
      %1018 = vmatmul.mubr.f32.gmra.mrb[0].mxu0 %v949
      %v1019 = vpop.f32.mrb[0].mxu0
      %v1020 = vadd.f32 0.0, %v1019
      %v1021 = vpop.f32.mrb[0].mxu0
      %1022 = vdwg.mxu0
      %1023 = vrot.lane.b32.xlu0 %v516, 104
      %v1024 = vpop.permute.xlu0 %1023
      %1025 = vrot.lane.b32.xlu0 %v516, 72
      %v1026 = vpop.permute.xlu0 %1025
      %v1027 = vsel %vm522, %v1024, 0
      %v1029 = vsel %vm522, %v1026, 0
      %1031 = vmatprep.subr.mxu0 0.0
      %1032 = vmatpush1.xpose.msra.mxu0 %v1029
      %1033 = vmatprep.subr.mxu0 0.0
      %1034 = vmatpush1.xpose.msra.mxu0 0.0
      %1035 = vmatprep.subr.mxu0 0.0
      %1036 = vmatpush1.xpose.msra.mxu0 0.0
      %1037 = vmatprep.subr.mxu0 0.0
      %1038 = vmatpush1.xpose.msra.mxu0 0.0
      %1039 = vmatprep.subr.mxu0 0.0
      %1040 = vmatpush1.xpose.msra.mxu0 0.0
      %1041 = vmatprep.subr.mxu0 0.0
      %1042 = vmatpush1.xpose.msra.mxu0 0.0
      %1043 = vmatprep.subr.mxu0 0.0
      %1044 = vmatpush1.xpose.msra.mxu0 0.0
      %1045 = vmatprep.subr.mxu0 0.0
      %1046 = vmatpush1.xpose.msra.mxu0 0.0
      %1047 = vmatprep.subr.mxu0 0.0
      %1048 = vmatpush1.xpose.msra.mxu0 0.0
      %1049 = vmatprep.subr.mxu0 0.0
      %1050 = vmatpush1.xpose.msra.mxu0 0.0
      %1051 = vmatprep.subr.mxu0 0.0
      %1052 = vmatpush1.xpose.msra.mxu0 0.0
      %1053 = vmatprep.subr.mxu0 0.0
      %1054 = vmatpush1.xpose.msra.mxu0 0.0
      %1055 = vmatprep.subr.mxu0 0.0
      %1056 = vmatpush1.xpose.msra.mxu0 0.0
      %1057 = vmatprep.subr.mxu0 0.0
      %1058 = vmatpush1.xpose.msra.mxu0 0.0
      %1059 = vmatprep.subr.mxu0 0.0
      %1060 = vmatpush1.xpose.msra.mxu0 0.0
      %1061 = vmatprep.subr.mxu0 0.0
      %1062 = vmatpush1.xpose.msra.mxu0 0.0
      %1063 = vmatprep.subr.mxu0 0.0
      %1064 = vmatpush1.xpose.msra.mxu0 0.0
      %1065 = vmatprep.subr.mxu0 0.0
      %1066 = vmatpush1.xpose.msra.mxu0 0.0
      %1067 = vmatprep.subr.mxu0 0.0
      %1068 = vmatpush1.xpose.msra.mxu0 0.0
      %1069 = vmatprep.subr.mxu0 0.0
      %1070 = vmatpush1.xpose.msra.mxu0 0.0
      %1071 = vmatprep.subr.mxu0 0.0
      %1072 = vmatpush1.xpose.msra.mxu0 0.0
      %1073 = vmatprep.subr.mxu0 0.0
      %1074 = vmatpush1.xpose.msra.mxu0 0.0
      %1075 = vmatprep.subr.mxu0 0.0
      %1076 = vmatpush1.xpose.msra.mxu0 0.0
      %1077 = vmatprep.subr.mxu0 0.0
      %1078 = vmatpush1.xpose.msra.mxu0 0.0
      %1079 = vmatprep.subr.mxu0 0.0
      %1080 = vmatpush1.xpose.msra.mxu0 0.0
      %1081 = vmatprep.subr.mxu0 0.0
      %1082 = vmatpush1.xpose.msra.mxu0 0.0
      %1083 = vmatprep.subr.mxu0 0.0
      %1084 = vmatpush1.xpose.msra.mxu0 0.0
      %1085 = vmatprep.subr.mxu0 0.0
      %1086 = vmatpush1.xpose.msra.mxu0 0.0
      %1087 = vmatprep.subr.mxu0 0.0
      %1088 = vmatpush1.xpose.msra.mxu0 0.0
      %1089 = vmatprep.subr.mxu0 0.0
      %1090 = vmatpush1.xpose.msra.mxu0 0.0
      %1091 = vmatprep.subr.mxu0 0.0
      %1092 = vmatpush1.xpose.msra.mxu0 0.0
      %1093 = vmatprep.subr.mxu0 0.0
      %1094 = vmatpush1.xpose.msra.mxu0 0.0
      %1095 = vmatprep.mubr.f32.mxu0 0.0
      %1096 = vmatmul.mubr.f32.gmra.mrb[0].mxu0 %v1027
      %v1097 = vpop.f32.mrb[0].mxu0
      %v1098 = vadd.f32 0.0, %v1097
      %v1099 = vpop.f32.mrb[0].mxu0
      %1100 = vdwg.mxu0
      %v1101 = vmul.f32 %v1098, 0.35355338
      %v1102 = vsel %vm598, %v1101, -inf
      %1103 = vmax.xlane.f32.xlu0 %v1102
      %v1104 = vpop.xlane.xlu0 %1103
      %v1105 = vsub.f32 %v1101, %v1104
      %v1106 = vmul.f32 %v1105, 1.442695
      %v1107 = vpow.pop %v1106
      %v1108 = vsel %vm598, %v1107, 0.0
      %1109 = vadd.xlane.f32.xlu0 %v1108
      %v1110 = vpop.xlane.xlu0 %1109
      %v1111 = vrcp.pop %v1110
      %v1112 = vmul.f32 %v1107, %v1111
      %1113 = vrot.lane.b32.xlu0 %v516, 40
      %v1114 = vpop.permute.xlu0 %1113
      %v1116 = vsel %vm612, %v1112, 0
      %v1118 = vsel %vm616, %v1114, 0
      %1120 = vmatprep.subr.mxu0 0.0
      %1121 = vmatpush1.msra.mxu0 %v1118
      %1122 = vmatprep.subr.mxu0 0.0
      %1123 = vmatpush1.msra.mxu0 0.0
      %1124 = vmatprep.subr.mxu0 0.0
      %1125 = vmatpush1.msra.mxu0 0.0
      %1126 = vmatprep.subr.mxu0 0.0
      %1127 = vmatpush1.msra.mxu0 0.0
      %1128 = vmatprep.subr.mxu0 0.0
      %1129 = vmatpush1.msra.mxu0 0.0
      %1130 = vmatprep.subr.mxu0 0.0
      %1131 = vmatpush1.msra.mxu0 0.0
      %1132 = vmatprep.subr.mxu0 0.0
      %1133 = vmatpush1.msra.mxu0 0.0
      %1134 = vmatprep.subr.mxu0 0.0
      %1135 = vmatpush1.msra.mxu0 0.0
      %1136 = vmatprep.subr.mxu0 0.0
      %1137 = vmatpush1.msra.mxu0 0.0
      %1138 = vmatprep.subr.mxu0 0.0
      %1139 = vmatpush1.msra.mxu0 0.0
      %1140 = vmatprep.subr.mxu0 0.0
      %1141 = vmatpush1.msra.mxu0 0.0
      %1142 = vmatprep.subr.mxu0 0.0
      %1143 = vmatpush1.msra.mxu0 0.0
      %1144 = vmatprep.subr.mxu0 0.0
      %1145 = vmatpush1.msra.mxu0 0.0
      %1146 = vmatprep.subr.mxu0 0.0
      %1147 = vmatpush1.msra.mxu0 0.0
      %1148 = vmatprep.subr.mxu0 0.0
      %1149 = vmatpush1.msra.mxu0 0.0
      %1150 = vmatprep.subr.mxu0 0.0
      %1151 = vmatpush1.msra.mxu0 0.0
      %1152 = vmatprep.subr.mxu0 0.0
      %1153 = vmatpush1.msra.mxu0 0.0
      %1154 = vmatprep.subr.mxu0 0.0
      %1155 = vmatpush1.msra.mxu0 0.0
      %1156 = vmatprep.subr.mxu0 0.0
      %1157 = vmatpush1.msra.mxu0 0.0
      %1158 = vmatprep.subr.mxu0 0.0
      %1159 = vmatpush1.msra.mxu0 0.0
      %1160 = vmatprep.subr.mxu0 0.0
      %1161 = vmatpush1.msra.mxu0 0.0
      %1162 = vmatprep.subr.mxu0 0.0
      %1163 = vmatpush1.msra.mxu0 0.0
      %1164 = vmatprep.subr.mxu0 0.0
      %1165 = vmatpush1.msra.mxu0 0.0
      %1166 = vmatprep.subr.mxu0 0.0
      %1167 = vmatpush1.msra.mxu0 0.0
      %1168 = vmatprep.subr.mxu0 0.0
      %1169 = vmatpush1.msra.mxu0 0.0
      %1170 = vmatprep.subr.mxu0 0.0
      %1171 = vmatpush1.msra.mxu0 0.0
      %1172 = vmatprep.subr.mxu0 0.0
      %1173 = vmatpush1.msra.mxu0 0.0
      %1174 = vmatprep.subr.mxu0 0.0
      %1175 = vmatpush1.msra.mxu0 0.0
      %1176 = vmatprep.subr.mxu0 0.0
      %1177 = vmatpush1.msra.mxu0 0.0
      %1178 = vmatprep.subr.mxu0 0.0
      %1179 = vmatpush1.msra.mxu0 0.0
      %1180 = vmatprep.subr.mxu0 0.0
      %1181 = vmatpush1.msra.mxu0 0.0
      %1182 = vmatprep.subr.mxu0 0.0
      %1183 = vmatpush1.msra.mxu0 0.0
      %1184 = vmatprep.mubr.f32.mxu0 0.0
      %1185 = vmatmul.mubr.f32.gmra.mrb[0].mxu0 %v1116
      %v1186 = vpop.f32.mrb[0].mxu0
      %v1187 = vadd.f32 0.0, %v1186
      %v1188 = vpop.f32.mrb[0].mxu0
      %1189 = vdwg.mxu0
      %1191 = vrot.lane.b32.xlu0 %v853, 8
      %v1192 = vpop.permute.xlu0 %1191
      %1195 = vrot.lane.b32.xlu0 %v1020, 16
      %v1196 = vpop.permute.xlu0 %1195
      %1199 = vrot.lane.b32.xlu0 %v1187, 24
      %v1200 = vpop.permute.xlu0 %1199
      %v1202 = vsel %vm522, %v686, %v1192
      %vm1203 = vcmask 130048
      %v1204 = vsel %vm1203, %v1202, %v1196
      %vm1205 = vcmask 195584
      %v1206 = vsel %vm1205, %v1204, %v1200
      %v1207 = vld [vmem:[%s4] sm:$0xff]
      %v1208 = vld [vmem:[%s4 + $0x8] sm:$0xff]
      %v1209 = vld [vmem:[%s4 + $0x10] sm:$0xff]
      %v1210 = vld [vmem:[%s4 + $0x18] sm:$0xff]
      %v1212 = vsel %vm445, %v1206, 0
      %1214 = vmatprep.subr.mxu0 0.0
      %1215 = vmatpush1.msra.mxu0 %v1207
      %1216 = vmatprep.subr.mxu0 0.0
      %1217 = vmatpush1.msra.mxu0 %v1208
      %1218 = vmatprep.subr.mxu0 0.0
      %1219 = vmatpush1.msra.mxu0 %v1209
      %1220 = vmatprep.subr.mxu0 0.0
      %1221 = vmatpush1.msra.mxu0 %v1210
      %1222 = vmatprep.subr.mxu0 0.0
      %1223 = vmatpush1.msra.mxu0 0.0
      %1224 = vmatprep.subr.mxu0 0.0
      %1225 = vmatpush1.msra.mxu0 0.0
      %1226 = vmatprep.subr.mxu0 0.0
      %1227 = vmatpush1.msra.mxu0 0.0
      %1228 = vmatprep.subr.mxu0 0.0
      %1229 = vmatpush1.msra.mxu0 0.0
      %1230 = vmatprep.subr.mxu0 0.0
      %1231 = vmatpush1.msra.mxu0 0.0
      %1232 = vmatprep.subr.mxu0 0.0
      %1233 = vmatpush1.msra.mxu0 0.0
      %1234 = vmatprep.subr.mxu0 0.0
      %1235 = vmatpush1.msra.mxu0 0.0
      %1236 = vmatprep.subr.mxu0 0.0
      %1237 = vmatpush1.msra.mxu0 0.0
      %1238 = vmatprep.subr.mxu0 0.0
      %1239 = vmatpush1.msra.mxu0 0.0
      %1240 = vmatprep.subr.mxu0 0.0
      %1241 = vmatpush1.msra.mxu0 0.0
      %1242 = vmatprep.subr.mxu0 0.0
      %1243 = vmatpush1.msra.mxu0 0.0
      %1244 = vmatprep.subr.mxu0 0.0
      %1245 = vmatpush1.msra.mxu0 0.0
      %1246 = vmatprep.subr.mxu0 0.0
      %1247 = vmatpush1.msra.mxu0 0.0
      %1248 = vmatprep.subr.mxu0 0.0
      %1249 = vmatpush1.msra.mxu0 0.0
      %1250 = vmatprep.subr.mxu0 0.0
      %1251 = vmatpush1.msra.mxu0 0.0
      %1252 = vmatprep.subr.mxu0 0.0
      %1253 = vmatpush1.msra.mxu0 0.0
      %1254 = vmatprep.subr.mxu0 0.0
      %1255 = vmatpush1.msra.mxu0 0.0
      %1256 = vmatprep.subr.mxu0 0.0
      %1257 = vmatpush1.msra.mxu0 0.0
      %1258 = vmatprep.subr.mxu0 0.0
      %1259 = vmatpush1.msra.mxu0 0.0
      %1260 = vmatprep.subr.mxu0 0.0
      %1261 = vmatpush1.msra.mxu0 0.0
      %1262 = vmatprep.subr.mxu0 0.0
      %1263 = vmatpush1.msra.mxu0 0.0
      %1264 = vmatprep.subr.mxu0 0.0
      %1265 = vmatpush1.msra.mxu0 0.0
      %1266 = vmatprep.subr.mxu0 0.0
      %1267 = vmatpush1.msra.mxu0 0.0
      %1268 = vmatprep.subr.mxu0 0.0
      %1269 = vmatpush1.msra.mxu0 0.0
      %1270 = vmatprep.subr.mxu0 0.0
      %1271 = vmatpush1.msra.mxu0 0.0
      %1272 = vmatprep.subr.mxu0 0.0
      %1273 = vmatpush1.msra.mxu0 0.0
      %1274 = vmatprep.subr.mxu0 0.0
      %1275 = vmatpush1.msra.mxu0 0.0
      %1276 = vmatprep.subr.mxu0 0.0
      %1277 = vmatpush1.msra.mxu0 0.0
      %1278 = vmatprep.mubr.f32.mxu0 0.0
      %1279 = vmatmul.mubr.f32.gmra.mrb[0].mxu0 %v1212
      %v1280 = vpop.f32.mrb[0].mxu0
      %v1281 = vadd.f32 0.0, %v1280
      %v1282 = vpop.f32.mrb[0].mxu0
      %1283 = vdwg.mxu0
      %v1284 = vadd.f32 %v409, %v1281
      %v1285 = vld [vmem:[%s5] sm:$0x1]
      %v1287 = vlaneseq
      %v1288 = vshrl.u32 %v1287, 7
      %v1289 = vsub.s32 0, %v1288
      %v1290 = vrot.slane %v1285, %v1289
      %v1292 = vadd.f32 %v1284, %v1290
      %v1293 = vld [vmem:[%s6] sm:$0x1]
      %v1294 = vld [vmem:[%s7] sm:$0x1]
      %v1295 = vsel %vm412, %v1292, 0.0
      %1296 = vadd.xlane.f32.xlu0 %v1295
      %v1297 = vpop.xlane.xlu0 %1296
      %v1298 = vmul.f32 %v1297, %v416
      %v1299 = vsub.f32 %v1292, %v1298
      %v1300 = vmul.f32 %v1299, %v1299
      %v1301 = vsel %vm412, %v1300, 0.0
      %1302 = vadd.xlane.f32.xlu0 %v1301
      %v1303 = vpop.xlane.xlu0 %1302
      %v1304 = vmul.f32 %v1303, %v416
      %v1305 = vadd.f32 %v1304, 1e-05
      %v1306 = vrsqrt.pop %v1305
      %v1307 = vmul.f32 %v1299, %v1306
      %v1309 = vlaneseq
      %v1310 = vshrl.u32 %v1309, 7
      %v1311 = vsub.s32 0, %v1310
      %v1312 = vrot.slane %v1293, %v1311
      %v1314 = vmul.f32 %v1307, %v1312
      %v1316 = vlaneseq
      %v1317 = vshrl.u32 %v1316, 7
      %v1318 = vsub.s32 0, %v1317
      %v1319 = vrot.slane %v1294, %v1318
      %v1321 = vadd.f32 %v1314, %v1319
      %v1322 = vld [vmem:[%s8] sm:$0xff]
      %v1323 = vld [vmem:[%s8 + $0x8] sm:$0xff]
      %v1324 = vld [vmem:[%s8 + $0x10] sm:$0xff]
      %v1325 = vld [vmem:[%s8 + $0x18] sm:$0xff]
      %v1326 = vld [vmem:[%s9] sm:$0x1]
      %v1328 = vlaneseq
      %v1329 = vshrl.u32 %v1328, 7
      %v1330 = vsub.s32 0, %v1329
      %v1331 = vrot.slane %v1326, %v1330
      %v1334 = vsel %vm445, %v1321, 0
      %1336 = vmatprep.subr.mxu0 0.0
      %1337 = vmatpush1.msra.mxu0 %v1322
      %1338 = vmatprep.subr.mxu0 0.0
      %1339 = vmatpush1.msra.mxu0 %v1323
      %1340 = vmatprep.subr.mxu0 0.0
      %1341 = vmatpush1.msra.mxu0 %v1324
      %1342 = vmatprep.subr.mxu0 0.0
      %1343 = vmatpush1.msra.mxu0 %v1325
      %1344 = vmatprep.subr.mxu0 0.0
      %1345 = vmatpush1.msra.mxu0 0.0
      %1346 = vmatprep.subr.mxu0 0.0
      %1347 = vmatpush1.msra.mxu0 0.0
      %1348 = vmatprep.subr.mxu0 0.0
      %1349 = vmatpush1.msra.mxu0 0.0
      %1350 = vmatprep.subr.mxu0 0.0
      %1351 = vmatpush1.msra.mxu0 0.0
      %1352 = vmatprep.subr.mxu0 0.0
      %1353 = vmatpush1.msra.mxu0 0.0
      %1354 = vmatprep.subr.mxu0 0.0
      %1355 = vmatpush1.msra.mxu0 0.0
      %1356 = vmatprep.subr.mxu0 0.0
      %1357 = vmatpush1.msra.mxu0 0.0
      %1358 = vmatprep.subr.mxu0 0.0
      %1359 = vmatpush1.msra.mxu0 0.0
      %1360 = vmatprep.subr.mxu0 0.0
      %1361 = vmatpush1.msra.mxu0 0.0
      %1362 = vmatprep.subr.mxu0 0.0
      %1363 = vmatpush1.msra.mxu0 0.0
      %1364 = vmatprep.subr.mxu0 0.0
      %1365 = vmatpush1.msra.mxu0 0.0
      %1366 = vmatprep.subr.mxu0 0.0
      %1367 = vmatpush1.msra.mxu0 0.0
      %1368 = vmatprep.subr.mxu0 0.0
      %1369 = vmatpush1.msra.mxu0 0.0
      %1370 = vmatprep.subr.mxu0 0.0
      %1371 = vmatpush1.msra.mxu0 0.0
      %1372 = vmatprep.subr.mxu0 0.0
      %1373 = vmatpush1.msra.mxu0 0.0
      %1374 = vmatprep.subr.mxu0 0.0
      %1375 = vmatpush1.msra.mxu0 0.0
      %1376 = vmatprep.subr.mxu0 0.0
      %1377 = vmatpush1.msra.mxu0 0.0
      %1378 = vmatprep.subr.mxu0 0.0
      %1379 = vmatpush1.msra.mxu0 0.0
      %1380 = vmatprep.subr.mxu0 0.0
      %1381 = vmatpush1.msra.mxu0 0.0
      %1382 = vmatprep.subr.mxu0 0.0
      %1383 = vmatpush1.msra.mxu0 0.0
      %1384 = vmatprep.subr.mxu0 0.0
      %1385 = vmatpush1.msra.mxu0 0.0
      %1386 = vmatprep.subr.mxu0 0.0
      %1387 = vmatpush1.msra.mxu0 0.0
      %1388 = vmatprep.subr.mxu0 0.0
      %1389 = vmatpush1.msra.mxu0 0.0
      %1390 = vmatprep.subr.mxu0 0.0
      %1391 = vmatpush1.msra.mxu0 0.0
      %1392 = vmatprep.subr.mxu0 0.0
      %1393 = vmatpush1.msra.mxu0 0.0
      %1394 = vmatprep.subr.mxu0 0.0
      %1395 = vmatpush1.msra.mxu0 0.0
      %1396 = vmatprep.subr.mxu0 0.0
      %1397 = vmatpush1.msra.mxu0 0.0
      %1398 = vmatprep.subr.mxu0 0.0
      %1399 = vmatpush1.msra.mxu0 0.0
      %1400 = vmatprep.mubr.f32.mxu0 0.0
      %1401 = vmatmul.mubr.f32.gmra.mrb[0].mxu0 %v1334
      %v1402 = vpop.f32.mrb[0].mxu0
      %v1403 = vadd.f32 %v1331, %v1402
      %v1404 = vpop.f32.mrb[0].mxu0
      %1405 = vdwg.mxu0
      %v1406 = vmul.f32 %v1403, %v1403
      %v1407 = vmul.f32 %v1403, %v1406
      %v1408 = vmul.f32 %v1407, 0.044715
      %v1409 = vadd.f32 %v1403, %v1408
      %v1410 = vmul.f32 %v1409, 0.7978846
      %v1411 = vtanh.pop %v1410
      %v1412 = vadd.f32 %v1411, 1.0
      %v1413 = vmul.f32 %v1412, 0.5
      %v1414 = vmul.f32 %v1403, %v1413
      %v1415 = vld [vmem:[%s10] sm:$0xff]
      %v1416 = vld [vmem:[%s10 + $0x8] sm:$0xff]
      %v1417 = vld [vmem:[%s10 + $0x10] sm:$0xff]
      %v1418 = vld [vmem:[%s10 + $0x18] sm:$0xff]
      %v1419 = vld [vmem:[%s11] sm:$0x1]
      %v1421 = vlaneseq
      %v1422 = vshrl.u32 %v1421, 7
      %v1423 = vsub.s32 0, %v1422
      %v1424 = vrot.slane %v1419, %v1423
      %v1427 = vsel %vm445, %v1414, 0
      %1429 = vmatprep.subr.mxu0 0.0
      %1430 = vmatpush1.msra.mxu0 %v1415
      %1431 = vmatprep.subr.mxu0 0.0
      %1432 = vmatpush1.msra.mxu0 %v1416
      %1433 = vmatprep.subr.mxu0 0.0
      %1434 = vmatpush1.msra.mxu0 %v1417
      %1435 = vmatprep.subr.mxu0 0.0
      %1436 = vmatpush1.msra.mxu0 %v1418
      %1437 = vmatprep.subr.mxu0 0.0
      %1438 = vmatpush1.msra.mxu0 0.0
      %1439 = vmatprep.subr.mxu0 0.0
      %1440 = vmatpush1.msra.mxu0 0.0
      %1441 = vmatprep.subr.mxu0 0.0
      %1442 = vmatpush1.msra.mxu0 0.0
      %1443 = vmatprep.subr.mxu0 0.0
      %1444 = vmatpush1.msra.mxu0 0.0
      %1445 = vmatprep.subr.mxu0 0.0
      %1446 = vmatpush1.msra.mxu0 0.0
      %1447 = vmatprep.subr.mxu0 0.0
      %1448 = vmatpush1.msra.mxu0 0.0
      %1449 = vmatprep.subr.mxu0 0.0
      %1450 = vmatpush1.msra.mxu0 0.0
      %1451 = vmatprep.subr.mxu0 0.0
      %1452 = vmatpush1.msra.mxu0 0.0
      %1453 = vmatprep.subr.mxu0 0.0
      %1454 = vmatpush1.msra.mxu0 0.0
      %1455 = vmatprep.subr.mxu0 0.0
      %1456 = vmatpush1.msra.mxu0 0.0
      %1457 = vmatprep.subr.mxu0 0.0
      %1458 = vmatpush1.msra.mxu0 0.0
      %1459 = vmatprep.subr.mxu0 0.0
      %1460 = vmatpush1.msra.mxu0 0.0
      %1461 = vmatprep.subr.mxu0 0.0
      %1462 = vmatpush1.msra.mxu0 0.0
      %1463 = vmatprep.subr.mxu0 0.0
      %1464 = vmatpush1.msra.mxu0 0.0
      %1465 = vmatprep.subr.mxu0 0.0
      %1466 = vmatpush1.msra.mxu0 0.0
      %1467 = vmatprep.subr.mxu0 0.0
      %1468 = vmatpush1.msra.mxu0 0.0
      %1469 = vmatprep.subr.mxu0 0.0
      %1470 = vmatpush1.msra.mxu0 0.0
      %1471 = vmatprep.subr.mxu0 0.0
      %1472 = vmatpush1.msra.mxu0 0.0
      %1473 = vmatprep.subr.mxu0 0.0
      %1474 = vmatpush1.msra.mxu0 0.0
      %1475 = vmatprep.subr.mxu0 0.0
      %1476 = vmatpush1.msra.mxu0 0.0
      %1477 = vmatprep.subr.mxu0 0.0
      %1478 = vmatpush1.msra.mxu0 0.0
      %1479 = vmatprep.subr.mxu0 0.0
      %1480 = vmatpush1.msra.mxu0 0.0
      %1481 = vmatprep.subr.mxu0 0.0
      %1482 = vmatpush1.msra.mxu0 0.0
      %1483 = vmatprep.subr.mxu0 0.0
      %1484 = vmatpush1.msra.mxu0 0.0
      %1485 = vmatprep.subr.mxu0 0.0
      %1486 = vmatpush1.msra.mxu0 0.0
      %1487 = vmatprep.subr.mxu0 0.0
      %1488 = vmatpush1.msra.mxu0 0.0
      %1489 = vmatprep.subr.mxu0 0.0
      %1490 = vmatpush1.msra.mxu0 0.0
      %1491 = vmatprep.subr.mxu0 0.0
      %1492 = vmatpush1.msra.mxu0 0.0
      %1493 = vmatprep.mubr.f32.mxu0 0.0
      %1494 = vmatmul.mubr.f32.gmra.mrb[0].mxu0 %v1427
      %v1495 = vpop.f32.mrb[0].mxu0
      %v1496 = vadd.f32 %v1424, %v1495
      %v1497 = vpop.f32.mrb[0].mxu0
      %1498 = vdwg.mxu0
      %v1499 = vadd.f32 %v1292, %v1496
      %1500 = vst.msk [vmem:[%s408] sm:$0xf] %vm412, %v1499
      %p1501 = scmp.lt.s32.totalorder %s23, 1
      %s1502 = scalar_select %p1501, %s23, 1
      %s1503 = smul.addr %s1502, 4
      %s1504 = scalar_lea.vmem %s12, %s1503
      // Predicated region
      $region69: #{bin_model_forward.12} parent=67 // pred_check
        %p1505 = pneg %p298
      $region70: #{bin_model_forward.12} parent=67 // pred_check_branch
        %1507 = sbr.rel (%p1505) target = $region72
      $region71: #{bin_model_forward.12} parent=67 // pred_region
        _
      $region72: #{bin_model_forward.12} parent=67 // pred_fallthru
        _
    $region68: #{bin_model_forward.12} parent=5 // pred_fallthru
      _
    %p1508 = scmp.le.s32.totalorder 2, %s18
    // Predicated region
    $region73: #{bin_model_forward.12} parent=5 // pred_check
      %p1509 = pneg %p1508
    $region74: #{bin_model_forward.12} parent=5 // pred_check_branch
      %1511 = sbr.rel (%p1509) target = $region76
    $region75: #{bin_model_forward.12} parent=5 // pred_region
      %s1512 = ssub.s32 %s18, 2
      // Predicated region
      $region77: #{bin_model_forward.12} parent=75 // pred_check
        %p1513 = pneg %p304
      $region78: #{bin_model_forward.12} parent=75 // pred_check_branch
        %1515 = sbr.rel (%p1513) target = $region80
      $region79: #{bin_model_forward.12} parent=75 // pred_region
        %p1516 = scmp.lt.s32.totalorder %s24, 1
        %s1517 = scalar_select %p1516, %s24, 1
        %s1518 = smul.addr %s1517, 4
        %s1519 = scalar_lea.vmem %s12, %s1518
      $region80: #{bin_model_forward.12} parent=75 // pred_fallthru
        _
    $region76: #{bin_model_forward.12} parent=5 // pred_fallthru
      _
  $region6: #{bin_model_forward.12} parent=0 // loop_footer
    %s22 = sadd.s32 1, %s18
  $region7: #{bin_model_forward.12} parent=0 // loop_footer_branch
    %17 = sbr.rel target = $region3
  $region8: #{bin_model_forward.12} parent=0 // loop_exit
    _

// kernel: bin_model_forward.10
$region0: #{bin_model_forward.10}
  #allocation0 [shape = 'u32[]', space=smem, size = 0x4, offset = 0x4, fixed_abs, tag = 'smem constant byte address 0x4 - core index']
  #allocation1 [shape = 'u32[144,128]{1,0:T(1,128)}', space=vmem, size = 0x12000, scoped, tag = 'internal scratch']
  %s0 = inlined_call_operand.vmem [shape: f32[2,16,48], index: 0, kind: input, shape index: {}]
  %s1 = inlined_call_operand.vmem [shape: f32[48,32], index: 1, kind: input, shape index: {}]
  %s2 = inlined_call_operand.vmem [shape: f32[1,32], index: 2, kind: input, shape index: {}]
  %s3 = inlined_call_operand.vmem [shape: f32[1,16,32], index: 3, kind: input, shape index: {}]
  %s4 = inlined_call_operand.vmem [shape: f32[2,16,32], index: 4, kind: output, shape index: {}]
  %s5 = sld [smem:[#allocation0]]
  $region49: #{bin_model_forward.10} parent=0
    _
  %s7 = ssub.s32 1, %s5
  %s8 = scalar_select 0, %s7, %s5
  loop: start=0, step=1, limit=4
  $region2: #{bin_model_forward.10} parent=0 // loop_pre_header
    _
  $region3: #{bin_model_forward.10} parent=0 // loop_header
    %s10 = sphi 0, %s14
    %p11 = scmp.ge.s32.totalorder %s10, 4
    %s20 = sphi 0, %s22
    %s23 = sphi 0, %s20
    %s24 = sphi 0, %s23
    %s40 = sphi 0, %s24
    %s44 = sphi 0, %s44
    %s46 = sphi 0, %s44
    %s47 = sphi 0, %s46
    %s61 = sphi 0, %s47
    %s65 = sphi 0, %s65
    %s67 = sphi 0, %s65
    %s68 = sphi 0, %s67
    %s82 = sphi 0, %s68
    %s86 = sphi 0, %s86
    %s88 = sphi 0, %s86
    %s89 = sphi 0, %s88
    %s103 = sphi 0, %s89
    %s109 = sphi 0, %s111
    %s112 = sphi 0, %s109
    %s113 = sphi 0, %s112
    %s129 = sphi 0, %s113
  $region4: #{bin_model_forward.10} parent=0 // loop_header_branch
    %13 = sbr.rel (%p11) target = $region8
  $region5: #{bin_model_forward.10} parent=0 // loop_body
    %s15 = ssub.s32 %s10, 1
    %s16 = ssub.s32 %s10, 2
    %s17 = sadd.s32 %s10, 1
    %s18 = ssub.s32 %s10, %s17
    %p19 = scmp.eq.s32.totalorder %s18, 0
    %s21 = sadd.s32 %s20, 1
    %s22 = scalar_select %p19, %s20, %s21
    %p25 = pneg %p19
    %p26 = scmp.eq.s32.totalorder %s10, 1
    %p27 = por %p25, %p26
    %p28 = scmp.ne.s32.totalorder %s20, %s23
    %p29 = scmp.eq.s32.totalorder %s10, 0
    %p30 = por %p28, %p29
    %p31 = scmp.ne.s32.totalorder %s20, %s23
    %p32 = scmp.eq.s32.totalorder %s15, 1
    %p33 = por %p31, %p32
    %p34 = scmp.ne.s32.totalorder %s23, %s24
    %p35 = scmp.eq.s32.totalorder %s15, 0
    %p36 = por %p34, %p35
    %p37 = scmp.ne.s32.totalorder %s23, %s24
    %p38 = scmp.eq.s32.totalorder %s16, 1
    %p39 = por %p37, %p38
    %p41 = scmp.ne.s32.totalorder %s24, %s40
    %p42 = scmp.eq.s32.totalorder %s16, 0
    %p43 = por %p41, %p42
    %s45 = sadd.s32 %s44, 1
    %p48 = scmp.eq.s32.totalorder %s10, 1
    %p49 = scmp.ne.s32.totalorder %s44, %s46
    %p50 = scmp.eq.s32.totalorder %s10, 0
    %p51 = por %p49, %p50
    %p52 = scmp.ne.s32.totalorder %s44, %s46
    %p53 = scmp.eq.s32.totalorder %s15, 1
    %p54 = por %p52, %p53
    %p55 = scmp.ne.s32.totalorder %s46, %s47
    %p56 = scmp.eq.s32.totalorder %s15, 0
    %p57 = por %p55, %p56
    %p58 = scmp.ne.s32.totalorder %s46, %s47
    %p59 = scmp.eq.s32.totalorder %s16, 1
    %p60 = por %p58, %p59
    %p62 = scmp.ne.s32.totalorder %s47, %s61
    %p63 = scmp.eq.s32.totalorder %s16, 0
    %p64 = por %p62, %p63
    %s66 = sadd.s32 %s65, 1
    %p69 = scmp.eq.s32.totalorder %s10, 1
    %p70 = scmp.ne.s32.totalorder %s65, %s67
    %p71 = scmp.eq.s32.totalorder %s10, 0
    %p72 = por %p70, %p71
    %p73 = scmp.ne.s32.totalorder %s65, %s67
    %p74 = scmp.eq.s32.totalorder %s15, 1
    %p75 = por %p73, %p74
    %p76 = scmp.ne.s32.totalorder %s67, %s68
    %p77 = scmp.eq.s32.totalorder %s15, 0
    %p78 = por %p76, %p77
    %p79 = scmp.ne.s32.totalorder %s67, %s68
    %p80 = scmp.eq.s32.totalorder %s16, 1
    %p81 = por %p79, %p80
    %p83 = scmp.ne.s32.totalorder %s68, %s82
    %p84 = scmp.eq.s32.totalorder %s16, 0
    %p85 = por %p83, %p84
    %s87 = sadd.s32 %s86, 1
    %p90 = scmp.eq.s32.totalorder %s10, 1
    %p91 = scmp.ne.s32.totalorder %s86, %s88
    %p92 = scmp.eq.s32.totalorder %s10, 0
    %p93 = por %p91, %p92
    %p94 = scmp.ne.s32.totalorder %s86, %s88
    %p95 = scmp.eq.s32.totalorder %s15, 1
    %p96 = por %p94, %p95
    %p97 = scmp.ne.s32.totalorder %s88, %s89
    %p98 = scmp.eq.s32.totalorder %s15, 0
    %p99 = por %p97, %p98
    %p100 = scmp.ne.s32.totalorder %s88, %s89
    %p101 = scmp.eq.s32.totalorder %s16, 1
    %p102 = por %p100, %p101
    %p104 = scmp.ne.s32.totalorder %s89, %s103
    %p105 = scmp.eq.s32.totalorder %s16, 0
    %p106 = por %p104, %p105
    %s107 = ssub.s32 %s10, %s17
    %p108 = scmp.eq.s32.totalorder %s107, 0
    %s110 = sadd.s32 %s109, 1
    %s111 = scalar_select %p108, %s109, %s110
    %p114 = pneg %p108
    %p115 = scmp.eq.s32.totalorder %s10, 1
    %p116 = por %p114, %p115
    %p117 = scmp.ne.s32.totalorder %s109, %s112
    %p118 = scmp.eq.s32.totalorder %s10, 0
    %p119 = por %p117, %p118
    %p120 = scmp.ne.s32.totalorder %s109, %s112
    %p121 = scmp.eq.s32.totalorder %s15, 1
    %p122 = por %p120, %p121
    %p123 = scmp.ne.s32.totalorder %s112, %s113
    %p124 = scmp.eq.s32.totalorder %s15, 0
    %p125 = por %p123, %p124
    %p126 = scmp.ne.s32.totalorder %s112, %s113
    %p127 = scmp.eq.s32.totalorder %s16, 1
    %p128 = por %p126, %p127
    %p130 = scmp.ne.s32.totalorder %s113, %s129
    %p131 = scmp.eq.s32.totalorder %s16, 0
    %p132 = por %p130, %p131
    %p133 = scmp.le.s32.totalorder 1, %s10
    %p134 = scmp.lt.s32.totalorder %s10, 3
    %p135 = pnand %p133, %p134
    %p136 = pneg %p135
    // Predicated region
    $region9: #{bin_model_forward.10} parent=5 // pred_check
      _
    $region10: #{bin_model_forward.10} parent=5 // pred_check_branch
      %138 = sbr.rel (%p135) target = $region12
    $region11: #{bin_model_forward.10} parent=5 // pred_region
      %s139 = ssub.s32 %s10, 1
      // Predicated region
      $region13: #{bin_model_forward.10} parent=11 // pred_check
        %p140 = pneg %p57
      $region14: #{bin_model_forward.10} parent=11 // pred_check_branch
        %142 = sbr.rel (%p140) target = $region16
      $region15: #{bin_model_forward.10} parent=11 // pred_region
        _
      $region16: #{bin_model_forward.10} parent=11 // pred_fallthru
        _
      // Predicated region
      $region17: #{bin_model_forward.10} parent=11 // pred_check
        %p143 = pneg %p78
      $region18: #{bin_model_forward.10} parent=11 // pred_check_branch
        %145 = sbr.rel (%p143) target = $region20
      $region19: #{bin_model_forward.10} parent=11 // pred_region
        _
      $region20: #{bin_model_forward.10} parent=11 // pred_fallthru
        _
      // Predicated region
      $region21: #{bin_model_forward.10} parent=11 // pred_check
        %p146 = pneg %p99
      $region22: #{bin_model_forward.10} parent=11 // pred_check_branch
        %148 = sbr.rel (%p146) target = $region24
      $region23: #{bin_model_forward.10} parent=11 // pred_region
        _
      $region24: #{bin_model_forward.10} parent=11 // pred_fallthru
        _
    $region12: #{bin_model_forward.10} parent=5 // pred_fallthru
      _
    %p149 = scmp.lt.s32.totalorder %s10, 2
    // Predicated region
    $region25: #{bin_model_forward.10} parent=5 // pred_check
      %p150 = pneg %p149
    $region26: #{bin_model_forward.10} parent=5 // pred_check_branch
      %152 = sbr.rel (%p150) target = $region28
    $region27: #{bin_model_forward.10} parent=5 // pred_region
      // Predicated region
      $region29: #{bin_model_forward.10} parent=27 // pred_check
        %p153 = pneg %p30
      $region30: #{bin_model_forward.10} parent=27 // pred_check_branch
        %155 = sbr.rel (%p153) target = $region32
      $region31: #{bin_model_forward.10} parent=27 // pred_region
        %p156 = scmp.lt.s32.totalorder %s10, 1
        %s157 = scalar_select %p156, %s10, 1
        %s158 = smul.addr %s157, 2
        %s159 = smul.addr %s158, 8
        %s160 = scalar_lea.vmem %s0, %s159
      $region32: #{bin_model_forward.10} parent=27 // pred_fallthru
        _
    $region28: #{bin_model_forward.10} parent=5 // pred_fallthru
      _
    %p161 = scmp.le.s32.totalorder 1, %s10
    %p162 = scmp.lt.s32.totalorder %s10, 3
    %p163 = pnand %p161, %p162
    %p164 = pneg %p163
    // Predicated region
    $region33: #{bin_model_forward.10} parent=5 // pred_check
      _
    $region34: #{bin_model_forward.10} parent=5 // pred_check_branch
      %166 = sbr.rel (%p163) target = $region36
    $region35: #{bin_model_forward.10} parent=5 // pred_region
      %s167 = ssub.s32 %s10, 1
      %p168 = scmp.lt.s32.totalorder %s15, 1
      %s169 = scalar_select %p168, %s15, 1
      %s170 = smul.addr %s169, 2
      %s171 = smul.addr %s170, 8
      %s172 = scalar_lea.vmem %s0, %s171
      %p173 = pneg %p36
      %p174 = pneg %p33
      %p175 = pneg %p57
      %p176 = pneg %p54
      %p177 = pneg %p78
      %p178 = pneg %p75
      %p179 = pneg %p99
      %p180 = pneg %p96
      %p181 = pneg %p125
      %p182 = pneg %p122
      %p183 = scmp.lt.s32.totalorder %s15, 1
      %s184 = scalar_select %p183, %s15, 1
      %s185 = smul.addr %s184, 2
      %s186 = smul.addr %s185, 8
      %s187 = scalar_lea.vmem %s4, %s186
      %p188 = scmp.lt.s32.totalorder %s15, 1
      %s189 = scalar_select %p188, %s15, 1
      %s190 = smul.addr %s189, 2
      %s191 = smul.addr %s190, 8
      %s192 = scalar_lea.vmem %s0, %s191
      %p193 = scmp.lt.s32.totalorder %s15, 1
      %s194 = scalar_select %p193, %s15, 1
      %s195 = smul.addr %s194, 2
      %s196 = smul.addr %s195, 8
      %s197 = scalar_lea.vmem %s4, %s196
      %v198 = vld [vmem:[%s192] sm:$0xff]
      %v199 = vld [vmem:[%s192 + $0x8] sm:$0xff]
      %v200 = vld [vmem:[%s1] sm:$0xff]
      %v201 = vld [vmem:[%s1 + $0x8] sm:$0xff]
      %v202 = vld [vmem:[%s1 + $0x10] sm:$0xff]
      %v203 = vld [vmem:[%s1 + $0x18] sm:$0xff]
      %v204 = vld [vmem:[%s1 + $0x20] sm:$0xff]
      %v205 = vld [vmem:[%s1 + $0x28] sm:$0xff]
      %v206 = vld [vmem:[%s2] sm:$0x1]
      %v208 = vlaneseq
      %v209 = vshrl.u32 %v208, 7
      %v210 = vsub.s32 0, %v209
      %v211 = vrot.slane %v206, %v210
      %vm213 = vcmask 392192
      %v215 = vsel %vm213, %v198, 0
      %v218 = vsel %vm213, %v199, 0
      %220 = vmatprep.subr.mxu0 0.0
      %221 = vmatpush1.msra.mxu0 %v200
      %222 = vmatprep.subr.mxu0 0.0
      %223 = vmatpush1.msra.mxu0 %v201
      %224 = vmatprep.subr.mxu0 0.0
      %225 = vmatpush1.msra.mxu0 %v202
      %226 = vmatprep.subr.mxu0 0.0
      %227 = vmatpush1.msra.mxu0 %v203
      %228 = vmatprep.subr.mxu0 0.0
      %229 = vmatpush1.msra.mxu0 %v204
      %230 = vmatprep.subr.mxu0 0.0
      %231 = vmatpush1.msra.mxu0 %v205
      %232 = vmatprep.subr.mxu0 0.0
      %233 = vmatpush1.msra.mxu0 0.0
      %234 = vmatprep.subr.mxu0 0.0
      %235 = vmatpush1.msra.mxu0 0.0
      %236 = vmatprep.subr.mxu0 0.0
      %237 = vmatpush1.msra.mxu0 0.0
      %238 = vmatprep.subr.mxu0 0.0
      %239 = vmatpush1.msra.mxu0 0.0
      %240 = vmatprep.subr.mxu0 0.0
      %241 = vmatpush1.msra.mxu0 0.0
      %242 = vmatprep.subr.mxu0 0.0
      %243 = vmatpush1.msra.mxu0 0.0
      %244 = vmatprep.subr.mxu0 0.0
      %245 = vmatpush1.msra.mxu0 0.0
      %246 = vmatprep.subr.mxu0 0.0
      %247 = vmatpush1.msra.mxu0 0.0
      %248 = vmatprep.subr.mxu0 0.0
      %249 = vmatpush1.msra.mxu0 0.0
      %250 = vmatprep.subr.mxu0 0.0
      %251 = vmatpush1.msra.mxu0 0.0
      %252 = vmatprep.subr.mxu0 0.0
      %253 = vmatpush1.msra.mxu0 0.0
      %254 = vmatprep.subr.mxu0 0.0
      %255 = vmatpush1.msra.mxu0 0.0
      %256 = vmatprep.subr.mxu0 0.0
      %257 = vmatpush1.msra.mxu0 0.0
      %258 = vmatprep.subr.mxu0 0.0
      %259 = vmatpush1.msra.mxu0 0.0
      %260 = vmatprep.subr.mxu0 0.0
      %261 = vmatpush1.msra.mxu0 0.0
      %262 = vmatprep.subr.mxu0 0.0
      %263 = vmatpush1.msra.mxu0 0.0
      %264 = vmatprep.subr.mxu0 0.0
      %265 = vmatpush1.msra.mxu0 0.0
      %266 = vmatprep.subr.mxu0 0.0
      %267 = vmatpush1.msra.mxu0 0.0
      %268 = vmatprep.subr.mxu0 0.0
      %269 = vmatpush1.msra.mxu0 0.0
      %270 = vmatprep.subr.mxu0 0.0
      %271 = vmatpush1.msra.mxu0 0.0
      %272 = vmatprep.subr.mxu0 0.0
      %273 = vmatpush1.msra.mxu0 0.0
      %274 = vmatprep.subr.mxu0 0.0
      %275 = vmatpush1.msra.mxu0 0.0
      %276 = vmatprep.subr.mxu0 0.0
      %277 = vmatpush1.msra.mxu0 0.0
      %278 = vmatprep.subr.mxu0 0.0
      %279 = vmatpush1.msra.mxu0 0.0
      %280 = vmatprep.subr.mxu0 0.0
      %281 = vmatpush1.msra.mxu0 0.0
      %282 = vmatprep.subr.mxu0 0.0
      %283 = vmatpush1.msra.mxu0 0.0
      %284 = vmatprep.mubr.f32.mxu0 0.0
      %285 = vmatmul.mubr.f32.gmra.mrb[0].mxu0 %v215
      %v286 = vpop.f32.mrb[0].mxu0
      %v287 = vadd.f32 %v211, %v286
      %v288 = vpop.f32.mrb[0].mxu0
      %289 = vmatprep.mubr.f32.mxu0 0.0
      %290 = vmatmul.mubr.f32.gmra.mrb[0].mxu0 %v218
      %v291 = vpop.f32.mrb[0].mxu0
      %v292 = vadd.f32 %v211, %v291
      %v293 = vpop.f32.mrb[0].mxu0
      %294 = vdwg.mxu0
      %v295 = vld [vmem:[%s3] sm:$0xff]
      %v296 = vld [vmem:[%s3 + $0x8] sm:$0xff]
      %v297 = vadd.f32 %v287, %v295
      %v298 = vadd.f32 %v292, %v296
      %vm299 = vcmask 261120
      %300 = vst.msk [vmem:[%s197] sm:$0xff] %vm299, %v297
      %301 = vst.msk [vmem:[%s197 + $0x8] sm:$0xff] %vm299, %v298
      %p302 = scmp.lt.s32.totalorder %s15, 1
      %s303 = scalar_select %p302, %s15, 1
      %s304 = smul.addr %s303, 2
      %s305 = smul.addr %s304, 8
      %s306 = scalar_lea.vmem %s4, %s305
      // Predicated region
      $region37: #{bin_model_forward.10} parent=35 // pred_check
        %p307 = pneg %p122
      $region38: #{bin_model_forward.10} parent=35 // pred_check_branch
        %309 = sbr.rel (%p307) target = $region40
      $region39: #{bin_model_forward.10} parent=35 // pred_region
        _
      $region40: #{bin_model_forward.10} parent=35 // pred_fallthru
        _
    $region36: #{bin_model_forward.10} parent=5 // pred_fallthru
      _
    %p310 = scmp.le.s32.totalorder 2, %s10
    // Predicated region
    $region41: #{bin_model_forward.10} parent=5 // pred_check
      %p311 = pneg %p310
    $region42: #{bin_model_forward.10} parent=5 // pred_check_branch
      %313 = sbr.rel (%p311) target = $region44
    $region43: #{bin_model_forward.10} parent=5 // pred_region
      %s314 = ssub.s32 %s10, 2
      // Predicated region
      $region45: #{bin_model_forward.10} parent=43 // pred_check
        %p315 = pneg %p128
      $region46: #{bin_model_forward.10} parent=43 // pred_check_branch
        %317 = sbr.rel (%p315) target = $region48
      $region47: #{bin_model_forward.10} parent=43 // pred_region
        %p318 = scmp.lt.s32.totalorder %s16, 1
        %s319 = scalar_select %p318, %s16, 1
        %s320 = smul.addr %s319, 2
        %s321 = smul.addr %s320, 8
        %s322 = scalar_lea.vmem %s4, %s321
      $region48: #{bin_model_forward.10} parent=43 // pred_fallthru
        _
    $region44: #{bin_model_forward.10} parent=5 // pred_fallthru
      _
  $region6: #{bin_model_forward.10} parent=0 // loop_footer
    %s14 = sadd.s32 1, %s10
  $region7: #{bin_model_forward.10} parent=0 // loop_footer_branch
    %9 = sbr.rel target = $region3
  $region8: #{bin_model_forward.10} parent=0 // loop_exit
    _

// kernel: bin_model_forward.14
$region0: #{bin_model_forward.14}
  #allocation0 [shape = 'u32[]', space=smem, size = 0x4, offset = 0x4, fixed_abs, tag = 'smem constant byte address 0x4 - core index']
  #allocation1 [shape = 'u32[144,128]{1,0:T(1,128)}', space=vmem, size = 0x12000, scoped, tag = 'internal scratch']
  %s0 = inlined_call_operand.vmem [shape: f32[2,16,32], index: 0, kind: input, shape index: {}]
  %s1 = inlined_call_operand.vmem [shape: f32[32,64], index: 1, kind: input, shape index: {}]
  %s2 = inlined_call_operand.vmem [shape: f32[1,64], index: 2, kind: input, shape index: {}]
  %s3 = inlined_call_operand.vmem [shape: f32[2,16,64], index: 3, kind: output, shape index: {}]
  %s4 = sld [smem:[#allocation0]]
  $region45: #{bin_model_forward.14} parent=0
    _
  %s6 = ssub.s32 1, %s4
  %s7 = scalar_select 0, %s6, %s4
  loop: start=0, step=1, limit=4
  $region2: #{bin_model_forward.14} parent=0 // loop_pre_header
    _
  $region3: #{bin_model_forward.14} parent=0 // loop_header
    %s9 = sphi 0, %s13
    %p10 = scmp.ge.s32.totalorder %s9, 4
    %s19 = sphi 0, %s21
    %s22 = sphi 0, %s19
    %s23 = sphi 0, %s22
    %s39 = sphi 0, %s23
    %s43 = sphi 0, %s43
    %s45 = sphi 0, %s43
    %s46 = sphi 0, %s45
    %s60 = sphi 0, %s46
    %s64 = sphi 0, %s64
    %s66 = sphi 0, %s64
    %s67 = sphi 0, %s66
    %s81 = sphi 0, %s67
    %s87 = sphi 0, %s89
    %s90 = sphi 0, %s87
    %s91 = sphi 0, %s90
    %s107 = sphi 0, %s91
  $region4: #{bin_model_forward.14} parent=0 // loop_header_branch
    %12 = sbr.rel (%p10) target = $region8
  $region5: #{bin_model_forward.14} parent=0 // loop_body
    %s14 = ssub.s32 %s9, 1
    %s15 = ssub.s32 %s9, 2
    %s16 = sadd.s32 %s9, 1
    %s17 = ssub.s32 %s9, %s16
    %p18 = scmp.eq.s32.totalorder %s17, 0
    %s20 = sadd.s32 %s19, 1
    %s21 = scalar_select %p18, %s19, %s20
    %p24 = pneg %p18
    %p25 = scmp.eq.s32.totalorder %s9, 1
    %p26 = por %p24, %p25
    %p27 = scmp.ne.s32.totalorder %s19, %s22
    %p28 = scmp.eq.s32.totalorder %s9, 0
    %p29 = por %p27, %p28
    %p30 = scmp.ne.s32.totalorder %s19, %s22
    %p31 = scmp.eq.s32.totalorder %s14, 1
    %p32 = por %p30, %p31
    %p33 = scmp.ne.s32.totalorder %s22, %s23
    %p34 = scmp.eq.s32.totalorder %s14, 0
    %p35 = por %p33, %p34
    %p36 = scmp.ne.s32.totalorder %s22, %s23
    %p37 = scmp.eq.s32.totalorder %s15, 1
    %p38 = por %p36, %p37
    %p40 = scmp.ne.s32.totalorder %s23, %s39
    %p41 = scmp.eq.s32.totalorder %s15, 0
    %p42 = por %p40, %p41
    %s44 = sadd.s32 %s43, 1
    %p47 = scmp.eq.s32.totalorder %s9, 1
    %p48 = scmp.ne.s32.totalorder %s43, %s45
    %p49 = scmp.eq.s32.totalorder %s9, 0
    %p50 = por %p48, %p49
    %p51 = scmp.ne.s32.totalorder %s43, %s45
    %p52 = scmp.eq.s32.totalorder %s14, 1
    %p53 = por %p51, %p52
    %p54 = scmp.ne.s32.totalorder %s45, %s46
    %p55 = scmp.eq.s32.totalorder %s14, 0
    %p56 = por %p54, %p55
    %p57 = scmp.ne.s32.totalorder %s45, %s46
    %p58 = scmp.eq.s32.totalorder %s15, 1
    %p59 = por %p57, %p58
    %p61 = scmp.ne.s32.totalorder %s46, %s60
    %p62 = scmp.eq.s32.totalorder %s15, 0
    %p63 = por %p61, %p62
    %s65 = sadd.s32 %s64, 1
    %p68 = scmp.eq.s32.totalorder %s9, 1
    %p69 = scmp.ne.s32.totalorder %s64, %s66
    %p70 = scmp.eq.s32.totalorder %s9, 0
    %p71 = por %p69, %p70
    %p72 = scmp.ne.s32.totalorder %s64, %s66
    %p73 = scmp.eq.s32.totalorder %s14, 1
    %p74 = por %p72, %p73
    %p75 = scmp.ne.s32.totalorder %s66, %s67
    %p76 = scmp.eq.s32.totalorder %s14, 0
    %p77 = por %p75, %p76
    %p78 = scmp.ne.s32.totalorder %s66, %s67
    %p79 = scmp.eq.s32.totalorder %s15, 1
    %p80 = por %p78, %p79
    %p82 = scmp.ne.s32.totalorder %s67, %s81
    %p83 = scmp.eq.s32.totalorder %s15, 0
    %p84 = por %p82, %p83
    %s85 = ssub.s32 %s9, %s16
    %p86 = scmp.eq.s32.totalorder %s85, 0
    %s88 = sadd.s32 %s87, 1
    %s89 = scalar_select %p86, %s87, %s88
    %p92 = pneg %p86
    %p93 = scmp.eq.s32.totalorder %s9, 1
    %p94 = por %p92, %p93
    %p95 = scmp.ne.s32.totalorder %s87, %s90
    %p96 = scmp.eq.s32.totalorder %s9, 0
    %p97 = por %p95, %p96
    %p98 = scmp.ne.s32.totalorder %s87, %s90
    %p99 = scmp.eq.s32.totalorder %s14, 1
    %p100 = por %p98, %p99
    %p101 = scmp.ne.s32.totalorder %s90, %s91
    %p102 = scmp.eq.s32.totalorder %s14, 0
    %p103 = por %p101, %p102
    %p104 = scmp.ne.s32.totalorder %s90, %s91
    %p105 = scmp.eq.s32.totalorder %s15, 1
    %p106 = por %p104, %p105
    %p108 = scmp.ne.s32.totalorder %s91, %s107
    %p109 = scmp.eq.s32.totalorder %s15, 0
    %p110 = por %p108, %p109
    %p111 = scmp.le.s32.totalorder 1, %s9
    %p112 = scmp.lt.s32.totalorder %s9, 3
    %p113 = pnand %p111, %p112
    %p114 = pneg %p113
    // Predicated region
    $region9: #{bin_model_forward.14} parent=5 // pred_check
      _
    $region10: #{bin_model_forward.14} parent=5 // pred_check_branch
      %116 = sbr.rel (%p113) target = $region12
    $region11: #{bin_model_forward.14} parent=5 // pred_region
      %s117 = ssub.s32 %s9, 1
      // Predicated region
      $region13: #{bin_model_forward.14} parent=11 // pred_check
        %p118 = pneg %p56
      $region14: #{bin_model_forward.14} parent=11 // pred_check_branch
        %120 = sbr.rel (%p118) target = $region16
      $region15: #{bin_model_forward.14} parent=11 // pred_region
        _
      $region16: #{bin_model_forward.14} parent=11 // pred_fallthru
        _
      // Predicated region
      $region17: #{bin_model_forward.14} parent=11 // pred_check
        %p121 = pneg %p77
      $region18: #{bin_model_forward.14} parent=11 // pred_check_branch
        %123 = sbr.rel (%p121) target = $region20
      $region19: #{bin_model_forward.14} parent=11 // pred_region
        _
      $region20: #{bin_model_forward.14} parent=11 // pred_fallthru
        _
    $region12: #{bin_model_forward.14} parent=5 // pred_fallthru
      _
    %p124 = scmp.lt.s32.totalorder %s9, 2
    // Predicated region
    $region21: #{bin_model_forward.14} parent=5 // pred_check
      %p125 = pneg %p124
    $region22: #{bin_model_forward.14} parent=5 // pred_check_branch
      %127 = sbr.rel (%p125) target = $region24
    $region23: #{bin_model_forward.14} parent=5 // pred_region
      // Predicated region
      $region25: #{bin_model_forward.14} parent=23 // pred_check
        %p128 = pneg %p29
      $region26: #{bin_model_forward.14} parent=23 // pred_check_branch
        %130 = sbr.rel (%p128) target = $region28
      $region27: #{bin_model_forward.14} parent=23 // pred_region
        %p131 = scmp.lt.s32.totalorder %s9, 1
        %s132 = scalar_select %p131, %s9, 1
        %s133 = smul.addr %s132, 2
        %s134 = smul.addr %s133, 8
        %s135 = scalar_lea.vmem %s0, %s134
      $region28: #{bin_model_forward.14} parent=23 // pred_fallthru
        _
    $region24: #{bin_model_forward.14} parent=5 // pred_fallthru
      _
    %p136 = scmp.le.s32.totalorder 1, %s9
    %p137 = scmp.lt.s32.totalorder %s9, 3
    %p138 = pnand %p136, %p137
    %p139 = pneg %p138
    // Predicated region
    $region29: #{bin_model_forward.14} parent=5 // pred_check
      _
    $region30: #{bin_model_forward.14} parent=5 // pred_check_branch
      %141 = sbr.rel (%p138) target = $region32
    $region31: #{bin_model_forward.14} parent=5 // pred_region
      %s142 = ssub.s32 %s9, 1
      %p143 = scmp.lt.s32.totalorder %s14, 1
      %s144 = scalar_select %p143, %s14, 1
      %s145 = smul.addr %s144, 2
      %s146 = smul.addr %s145, 8
      %s147 = scalar_lea.vmem %s0, %s146
      %p148 = pneg %p35
      %p149 = pneg %p32
      %p150 = pneg %p56
      %p151 = pneg %p53
      %p152 = pneg %p77
      %p153 = pneg %p74
      %p154 = pneg %p103
      %p155 = pneg %p100
      %p156 = scmp.lt.s32.totalorder %s14, 1
      %s157 = scalar_select %p156, %s14, 1
      %s158 = smul.addr %s157, 2
      %s159 = smul.addr %s158, 8
      %s160 = scalar_lea.vmem %s3, %s159
      %p161 = scmp.lt.s32.totalorder %s14, 1
      %s162 = scalar_select %p161, %s14, 1
      %s163 = smul.addr %s162, 2
      %s164 = smul.addr %s163, 8
      %s165 = scalar_lea.vmem %s0, %s164
      %p166 = scmp.lt.s32.totalorder %s14, 1
      %s167 = scalar_select %p166, %s14, 1
      %s168 = smul.addr %s167, 2
      %s169 = smul.addr %s168, 8
      %s170 = scalar_lea.vmem %s3, %s169
      %v171 = vld [vmem:[%s165] sm:$0xff]
      %v172 = vld [vmem:[%s165 + $0x8] sm:$0xff]
      %v173 = vld [vmem:[%s1] sm:$0xff]
      %v174 = vld [vmem:[%s1 + $0x8] sm:$0xff]
      %v175 = vld [vmem:[%s1 + $0x10] sm:$0xff]
      %v176 = vld [vmem:[%s1 + $0x18] sm:$0xff]
      %v177 = vld [vmem:[%s2] sm:$0x1]
      %v179 = vlaneseq
      %v180 = vshrl.u32 %v179, 7
      %v181 = vsub.s32 0, %v180
      %v182 = vrot.slane %v177, %v181
      %vm184 = vcmask 261120
      %v186 = vsel %vm184, %v171, 0
      %v189 = vsel %vm184, %v172, 0
      %191 = vmatprep.subr.mxu0 0.0
      %192 = vmatpush1.msra.mxu0 %v173
      %193 = vmatprep.subr.mxu0 0.0
      %194 = vmatpush1.msra.mxu0 %v174
      %195 = vmatprep.subr.mxu0 0.0
      %196 = vmatpush1.msra.mxu0 %v175
      %197 = vmatprep.subr.mxu0 0.0
      %198 = vmatpush1.msra.mxu0 %v176
      %199 = vmatprep.subr.mxu0 0.0
      %200 = vmatpush1.msra.mxu0 0.0
      %201 = vmatprep.subr.mxu0 0.0
      %202 = vmatpush1.msra.mxu0 0.0
      %203 = vmatprep.subr.mxu0 0.0
      %204 = vmatpush1.msra.mxu0 0.0
      %205 = vmatprep.subr.mxu0 0.0
      %206 = vmatpush1.msra.mxu0 0.0
      %207 = vmatprep.subr.mxu0 0.0
      %208 = vmatpush1.msra.mxu0 0.0
      %209 = vmatprep.subr.mxu0 0.0
      %210 = vmatpush1.msra.mxu0 0.0
      %211 = vmatprep.subr.mxu0 0.0
      %212 = vmatpush1.msra.mxu0 0.0
      %213 = vmatprep.subr.mxu0 0.0
      %214 = vmatpush1.msra.mxu0 0.0
      %215 = vmatprep.subr.mxu0 0.0
      %216 = vmatpush1.msra.mxu0 0.0
      %217 = vmatprep.subr.mxu0 0.0
      %218 = vmatpush1.msra.mxu0 0.0
      %219 = vmatprep.subr.mxu0 0.0
      %220 = vmatpush1.msra.mxu0 0.0
      %221 = vmatprep.subr.mxu0 0.0
      %222 = vmatpush1.msra.mxu0 0.0
      %223 = vmatprep.subr.mxu0 0.0
      %224 = vmatpush1.msra.mxu0 0.0
      %225 = vmatprep.subr.mxu0 0.0
      %226 = vmatpush1.msra.mxu0 0.0
      %227 = vmatprep.subr.mxu0 0.0
      %228 = vmatpush1.msra.mxu0 0.0
      %229 = vmatprep.subr.mxu0 0.0
      %230 = vmatpush1.msra.mxu0 0.0
      %231 = vmatprep.subr.mxu0 0.0
      %232 = vmatpush1.msra.mxu0 0.0
      %233 = vmatprep.subr.mxu0 0.0
      %234 = vmatpush1.msra.mxu0 0.0
      %235 = vmatprep.subr.mxu0 0.0
      %236 = vmatpush1.msra.mxu0 0.0
      %237 = vmatprep.subr.mxu0 0.0
      %238 = vmatpush1.msra.mxu0 0.0
      %239 = vmatprep.subr.mxu0 0.0
      %240 = vmatpush1.msra.mxu0 0.0
      %241 = vmatprep.subr.mxu0 0.0
      %242 = vmatpush1.msra.mxu0 0.0
      %243 = vmatprep.subr.mxu0 0.0
      %244 = vmatpush1.msra.mxu0 0.0
      %245 = vmatprep.subr.mxu0 0.0
      %246 = vmatpush1.msra.mxu0 0.0
      %247 = vmatprep.subr.mxu0 0.0
      %248 = vmatpush1.msra.mxu0 0.0
      %249 = vmatprep.subr.mxu0 0.0
      %250 = vmatpush1.msra.mxu0 0.0
      %251 = vmatprep.subr.mxu0 0.0
      %252 = vmatpush1.msra.mxu0 0.0
      %253 = vmatprep.subr.mxu0 0.0
      %254 = vmatpush1.msra.mxu0 0.0
      %255 = vmatprep.mubr.f32.mxu0 0.0
      %256 = vmatmul.mubr.f32.gmra.mrb[0].mxu0 %v186
      %v257 = vpop.f32.mrb[0].mxu0
      %v258 = vadd.f32 %v182, %v257
      %v259 = vpop.f32.mrb[0].mxu0
      %260 = vmatprep.mubr.f32.mxu0 0.0
      %261 = vmatmul.mubr.f32.gmra.mrb[0].mxu0 %v189
      %v262 = vpop.f32.mrb[0].mxu0
      %v263 = vadd.f32 %v182, %v262
      %v264 = vpop.f32.mrb[0].mxu0
      %265 = vdwg.mxu0
      %vm266 = vcmask 523264
      %267 = vst.msk [vmem:[%s170] sm:$0xff] %vm266, %v258
      %268 = vst.msk [vmem:[%s170 + $0x8] sm:$0xff] %vm266, %v263
      %p269 = scmp.lt.s32.totalorder %s14, 1
      %s270 = scalar_select %p269, %s14, 1
      %s271 = smul.addr %s270, 2
      %s272 = smul.addr %s271, 8
      %s273 = scalar_lea.vmem %s3, %s272
      // Predicated region
      $region33: #{bin_model_forward.14} parent=31 // pred_check
        %p274 = pneg %p100
      $region34: #{bin_model_forward.14} parent=31 // pred_check_branch
        %276 = sbr.rel (%p274) target = $region36
      $region35: #{bin_model_forward.14} parent=31 // pred_region
        _
      $region36: #{bin_model_forward.14} parent=31 // pred_fallthru
        _
    $region32: #{bin_model_forward.14} parent=5 // pred_fallthru
      _
    %p277 = scmp.le.s32.totalorder 2, %s9
    // Predicated region
    $region37: #{bin_model_forward.14} parent=5 // pred_check
      %p278 = pneg %p277
    $region38: #{bin_model_forward.14} parent=5 // pred_check_branch
      %280 = sbr.rel (%p278) target = $region40
    $region39: #{bin_model_forward.14} parent=5 // pred_region
      %s281 = ssub.s32 %s9, 2
      // Predicated region
      $region41: #{bin_model_forward.14} parent=39 // pred_check
        %p282 = pneg %p106
      $region42: #{bin_model_forward.14} parent=39 // pred_check_branch
        %284 = sbr.rel (%p282) target = $region44
      $region43: #{bin_model_forward.14} parent=39 // pred_region
        %p285 = scmp.lt.s32.totalorder %s15, 1
        %s286 = scalar_select %p285, %s15, 1
        %s287 = smul.addr %s286, 2
        %s288 = smul.addr %s287, 8
        %s289 = scalar_lea.vmem %s3, %s288
      $region44: #{bin_model_forward.14} parent=39 // pred_fallthru
        _
    $region40: #{bin_model_forward.14} parent=5 // pred_fallthru
      _
  $region6: #{bin_model_forward.14} parent=0 // loop_footer
    %s13 = sadd.s32 1, %s9
  $region7: #{bin_model_forward.14} parent=0 // loop_footer_branch
    %8 = sbr.rel target = $region3
  $region8: #{bin_model_forward.14} parent=0 // loop_exit
    _

// kernel: bin_model_forward.11
$region0: #{bin_model_forward.11}
  #allocation0 [shape = 'u32[]', space=smem, size = 0x4, offset = 0x4, fixed_abs, tag = 'smem constant byte address 0x4 - core index']
  #allocation1 [shape = 'u32[144,128]{1,0:T(1,128)}', space=vmem, size = 0x12000, scoped, tag = 'internal scratch']
  %s0 = inlined_call_operand.vmem [shape: f32[2,16,32], index: 0, kind: input, shape index: {}]
  %s1 = inlined_call_operand.vmem [shape: f32[1,32], index: 1, kind: input, shape index: {}]
  %s2 = inlined_call_operand.vmem [shape: f32[1,32], index: 2, kind: input, shape index: {}]
  %s3 = inlined_call_operand.vmem [shape: f32[32,96], index: 3, kind: input, shape index: {}]
  %s4 = inlined_call_operand.vmem [shape: f32[32,32], index: 4, kind: input, shape index: {}]
  %s5 = inlined_call_operand.vmem [shape: f32[1,32], index: 5, kind: input, shape index: {}]
  %s6 = inlined_call_operand.vmem [shape: f32[1,32], index: 6, kind: input, shape index: {}]
  %s7 = inlined_call_operand.vmem [shape: f32[1,32], index: 7, kind: input, shape index: {}]
  %s8 = inlined_call_operand.vmem [shape: f32[32,32], index: 8, kind: input, shape index: {}]
  %s9 = inlined_call_operand.vmem [shape: f32[1,32], index: 9, kind: input, shape index: {}]
  %s10 = inlined_call_operand.vmem [shape: f32[32,32], index: 10, kind: input, shape index: {}]
  %s11 = inlined_call_operand.vmem [shape: f32[1,32], index: 11, kind: input, shape index: {}]
  %s12 = inlined_call_operand.vmem [shape: f32[2,16,32], index: 12, kind: output, shape index: {}]
  %s13 = sld [smem:[#allocation0]]
  $region81: #{bin_model_forward.11} parent=0
    _
  %s15 = ssub.s32 1, %s13
  %s16 = scalar_select 0, %s15, %s13
  loop: start=0, step=1, limit=4
  $region2: #{bin_model_forward.11} parent=0 // loop_pre_header
    _
  $region3: #{bin_model_forward.11} parent=0 // loop_header
    %s18 = sphi 0, %s22
    %p19 = scmp.ge.s32.totalorder %s18, 4
    %s28 = sphi 0, %s30
    %s31 = sphi 0, %s28
    %s32 = sphi 0, %s31
    %s48 = sphi 0, %s32
    %s52 = sphi 0, %s52
    %s54 = sphi 0, %s52
    %s55 = sphi 0, %s54
    %s69 = sphi 0, %s55
    %s73 = sphi 0, %s73
    %s75 = sphi 0, %s73
    %s76 = sphi 0, %s75
    %s90 = sphi 0, %s76
    %s94 = sphi 0, %s94
    %s96 = sphi 0, %s94
    %s97 = sphi 0, %s96
    %s111 = sphi 0, %s97
    %s115 = sphi 0, %s115
    %s117 = sphi 0, %s115
    %s118 = sphi 0, %s117
    %s132 = sphi 0, %s118
    %s136 = sphi 0, %s136
    %s138 = sphi 0, %s136
    %s139 = sphi 0, %s138
    %s153 = sphi 0, %s139
    %s157 = sphi 0, %s157
    %s159 = sphi 0, %s157
    %s160 = sphi 0, %s159
    %s174 = sphi 0, %s160
    %s178 = sphi 0, %s178
    %s180 = sphi 0, %s178
    %s181 = sphi 0, %s180
    %s195 = sphi 0, %s181
    %s199 = sphi 0, %s199
    %s201 = sphi 0, %s199
    %s202 = sphi 0, %s201
    %s216 = sphi 0, %s202
    %s220 = sphi 0, %s220
    %s222 = sphi 0, %s220
    %s223 = sphi 0, %s222
    %s237 = sphi 0, %s223
    %s241 = sphi 0, %s241
    %s243 = sphi 0, %s241
    %s244 = sphi 0, %s243
    %s258 = sphi 0, %s244
    %s262 = sphi 0, %s262
    %s264 = sphi 0, %s262
    %s265 = sphi 0, %s264
    %s279 = sphi 0, %s265
    %s285 = sphi 0, %s287
    %s288 = sphi 0, %s285
    %s289 = sphi 0, %s288
    %s305 = sphi 0, %s289
  $region4: #{bin_model_forward.11} parent=0 // loop_header_branch
    %21 = sbr.rel (%p19) target = $region8
  $region5: #{bin_model_forward.11} parent=0 // loop_body
    %s23 = ssub.s32 %s18, 1
    %s24 = ssub.s32 %s18, 2
    %s25 = sadd.s32 %s18, 1
    %s26 = ssub.s32 %s18, %s25
    %p27 = scmp.eq.s32.totalorder %s26, 0
    %s29 = sadd.s32 %s28, 1
    %s30 = scalar_select %p27, %s28, %s29
    %p33 = pneg %p27
    %p34 = scmp.eq.s32.totalorder %s18, 1
    %p35 = por %p33, %p34
    %p36 = scmp.ne.s32.totalorder %s28, %s31
    %p37 = scmp.eq.s32.totalorder %s18, 0
    %p38 = por %p36, %p37
    %p39 = scmp.ne.s32.totalorder %s28, %s31
    %p40 = scmp.eq.s32.totalorder %s23, 1
    %p41 = por %p39, %p40
    %p42 = scmp.ne.s32.totalorder %s31, %s32
    %p43 = scmp.eq.s32.totalorder %s23, 0
    %p44 = por %p42, %p43
    %p45 = scmp.ne.s32.totalorder %s31, %s32
    %p46 = scmp.eq.s32.totalorder %s24, 1
    %p47 = por %p45, %p46
    %p49 = scmp.ne.s32.totalorder %s32, %s48
    %p50 = scmp.eq.s32.totalorder %s24, 0
    %p51 = por %p49, %p50
    %s53 = sadd.s32 %s52, 1
    %p56 = scmp.eq.s32.totalorder %s18, 1
    %p57 = scmp.ne.s32.totalorder %s52, %s54
    %p58 = scmp.eq.s32.totalorder %s18, 0
    %p59 = por %p57, %p58
    %p60 = scmp.ne.s32.totalorder %s52, %s54
    %p61 = scmp.eq.s32.totalorder %s23, 1
    %p62 = por %p60, %p61
    %p63 = scmp.ne.s32.totalorder %s54, %s55
    %p64 = scmp.eq.s32.totalorder %s23, 0
    %p65 = por %p63, %p64
    %p66 = scmp.ne.s32.totalorder %s54, %s55
    %p67 = scmp.eq.s32.totalorder %s24, 1
    %p68 = por %p66, %p67
    %p70 = scmp.ne.s32.totalorder %s55, %s69
    %p71 = scmp.eq.s32.totalorder %s24, 0
    %p72 = por %p70, %p71
    %s74 = sadd.s32 %s73, 1
    %p77 = scmp.eq.s32.totalorder %s18, 1
    %p78 = scmp.ne.s32.totalorder %s73, %s75
    %p79 = scmp.eq.s32.totalorder %s18, 0
    %p80 = por %p78, %p79
    %p81 = scmp.ne.s32.totalorder %s73, %s75
    %p82 = scmp.eq.s32.totalorder %s23, 1
    %p83 = por %p81, %p82
    %p84 = scmp.ne.s32.totalorder %s75, %s76
    %p85 = scmp.eq.s32.totalorder %s23, 0
    %p86 = por %p84, %p85
    %p87 = scmp.ne.s32.totalorder %s75, %s76
    %p88 = scmp.eq.s32.totalorder %s24, 1
    %p89 = por %p87, %p88
    %p91 = scmp.ne.s32.totalorder %s76, %s90
    %p92 = scmp.eq.s32.totalorder %s24, 0
    %p93 = por %p91, %p92
    %s95 = sadd.s32 %s94, 1
    %p98 = scmp.eq.s32.totalorder %s18, 1
    %p99 = scmp.ne.s32.totalorder %s94, %s96
    %p100 = scmp.eq.s32.totalorder %s18, 0
    %p101 = por %p99, %p100
    %p102 = scmp.ne.s32.totalorder %s94, %s96
    %p103 = scmp.eq.s32.totalorder %s23, 1
    %p104 = por %p102, %p103
    %p105 = scmp.ne.s32.totalorder %s96, %s97
    %p106 = scmp.eq.s32.totalorder %s23, 0
    %p107 = por %p105, %p106
    %p108 = scmp.ne.s32.totalorder %s96, %s97
    %p109 = scmp.eq.s32.totalorder %s24, 1
    %p110 = por %p108, %p109
    %p112 = scmp.ne.s32.totalorder %s97, %s111
    %p113 = scmp.eq.s32.totalorder %s24, 0
    %p114 = por %p112, %p113
    %s116 = sadd.s32 %s115, 1
    %p119 = scmp.eq.s32.totalorder %s18, 1
    %p120 = scmp.ne.s32.totalorder %s115, %s117
    %p121 = scmp.eq.s32.totalorder %s18, 0
    %p122 = por %p120, %p121
    %p123 = scmp.ne.s32.totalorder %s115, %s117
    %p124 = scmp.eq.s32.totalorder %s23, 1
    %p125 = por %p123, %p124
    %p126 = scmp.ne.s32.totalorder %s117, %s118
    %p127 = scmp.eq.s32.totalorder %s23, 0
    %p128 = por %p126, %p127
    %p129 = scmp.ne.s32.totalorder %s117, %s118
    %p130 = scmp.eq.s32.totalorder %s24, 1
    %p131 = por %p129, %p130
    %p133 = scmp.ne.s32.totalorder %s118, %s132
    %p134 = scmp.eq.s32.totalorder %s24, 0
    %p135 = por %p133, %p134
    %s137 = sadd.s32 %s136, 1
    %p140 = scmp.eq.s32.totalorder %s18, 1
    %p141 = scmp.ne.s32.totalorder %s136, %s138
    %p142 = scmp.eq.s32.totalorder %s18, 0
    %p143 = por %p141, %p142
    %p144 = scmp.ne.s32.totalorder %s136, %s138
    %p145 = scmp.eq.s32.totalorder %s23, 1
    %p146 = por %p144, %p145
    %p147 = scmp.ne.s32.totalorder %s138, %s139
    %p148 = scmp.eq.s32.totalorder %s23, 0
    %p149 = por %p147, %p148
    %p150 = scmp.ne.s32.totalorder %s138, %s139
    %p151 = scmp.eq.s32.totalorder %s24, 1
    %p152 = por %p150, %p151
    %p154 = scmp.ne.s32.totalorder %s139, %s153
    %p155 = scmp.eq.s32.totalorder %s24, 0
    %p156 = por %p154, %p155
    %s158 = sadd.s32 %s157, 1
    %p161 = scmp.eq.s32.totalorder %s18, 1
    %p162 = scmp.ne.s32.totalorder %s157, %s159
    %p163 = scmp.eq.s32.totalorder %s18, 0
    %p164 = por %p162, %p163
    %p165 = scmp.ne.s32.totalorder %s157, %s159
    %p166 = scmp.eq.s32.totalorder %s23, 1
    %p167 = por %p165, %p166
    %p168 = scmp.ne.s32.totalorder %s159, %s160
    %p169 = scmp.eq.s32.totalorder %s23, 0
    %p170 = por %p168, %p169
    %p171 = scmp.ne.s32.totalorder %s159, %s160
    %p172 = scmp.eq.s32.totalorder %s24, 1
    %p173 = por %p171, %p172
    %p175 = scmp.ne.s32.totalorder %s160, %s174
    %p176 = scmp.eq.s32.totalorder %s24, 0
    %p177 = por %p175, %p176
    %s179 = sadd.s32 %s178, 1
    %p182 = scmp.eq.s32.totalorder %s18, 1
    %p183 = scmp.ne.s32.totalorder %s178, %s180
    %p184 = scmp.eq.s32.totalorder %s18, 0
    %p185 = por %p183, %p184
    %p186 = scmp.ne.s32.totalorder %s178, %s180
    %p187 = scmp.eq.s32.totalorder %s23, 1
    %p188 = por %p186, %p187
    %p189 = scmp.ne.s32.totalorder %s180, %s181
    %p190 = scmp.eq.s32.totalorder %s23, 0
    %p191 = por %p189, %p190
    %p192 = scmp.ne.s32.totalorder %s180, %s181
    %p193 = scmp.eq.s32.totalorder %s24, 1
    %p194 = por %p192, %p193
    %p196 = scmp.ne.s32.totalorder %s181, %s195
    %p197 = scmp.eq.s32.totalorder %s24, 0
    %p198 = por %p196, %p197
    %s200 = sadd.s32 %s199, 1
    %p203 = scmp.eq.s32.totalorder %s18, 1
    %p204 = scmp.ne.s32.totalorder %s199, %s201
    %p205 = scmp.eq.s32.totalorder %s18, 0
    %p206 = por %p204, %p205
    %p207 = scmp.ne.s32.totalorder %s199, %s201
    %p208 = scmp.eq.s32.totalorder %s23, 1
    %p209 = por %p207, %p208
    %p210 = scmp.ne.s32.totalorder %s201, %s202
    %p211 = scmp.eq.s32.totalorder %s23, 0
    %p212 = por %p210, %p211
    %p213 = scmp.ne.s32.totalorder %s201, %s202
    %p214 = scmp.eq.s32.totalorder %s24, 1
    %p215 = por %p213, %p214
    %p217 = scmp.ne.s32.totalorder %s202, %s216
    %p218 = scmp.eq.s32.totalorder %s24, 0
    %p219 = por %p217, %p218
    %s221 = sadd.s32 %s220, 1
    %p224 = scmp.eq.s32.totalorder %s18, 1
    %p225 = scmp.ne.s32.totalorder %s220, %s222
    %p226 = scmp.eq.s32.totalorder %s18, 0
    %p227 = por %p225, %p226
    %p228 = scmp.ne.s32.totalorder %s220, %s222
    %p229 = scmp.eq.s32.totalorder %s23, 1
    %p230 = por %p228, %p229
    %p231 = scmp.ne.s32.totalorder %s222, %s223
    %p232 = scmp.eq.s32.totalorder %s23, 0
    %p233 = por %p231, %p232
    %p234 = scmp.ne.s32.totalorder %s222, %s223
    %p235 = scmp.eq.s32.totalorder %s24, 1
    %p236 = por %p234, %p235
    %p238 = scmp.ne.s32.totalorder %s223, %s237
    %p239 = scmp.eq.s32.totalorder %s24, 0
    %p240 = por %p238, %p239
    %s242 = sadd.s32 %s241, 1
    %p245 = scmp.eq.s32.totalorder %s18, 1
    %p246 = scmp.ne.s32.totalorder %s241, %s243
    %p247 = scmp.eq.s32.totalorder %s18, 0
    %p248 = por %p246, %p247
    %p249 = scmp.ne.s32.totalorder %s241, %s243
    %p250 = scmp.eq.s32.totalorder %s23, 1
    %p251 = por %p249, %p250
    %p252 = scmp.ne.s32.totalorder %s243, %s244
    %p253 = scmp.eq.s32.totalorder %s23, 0
    %p254 = por %p252, %p253
    %p255 = scmp.ne.s32.totalorder %s243, %s244
    %p256 = scmp.eq.s32.totalorder %s24, 1
    %p257 = por %p255, %p256
    %p259 = scmp.ne.s32.totalorder %s244, %s258
    %p260 = scmp.eq.s32.totalorder %s24, 0
    %p261 = por %p259, %p260
    %s263 = sadd.s32 %s262, 1
    %p266 = scmp.eq.s32.totalorder %s18, 1
    %p267 = scmp.ne.s32.totalorder %s262, %s264
    %p268 = scmp.eq.s32.totalorder %s18, 0
    %p269 = por %p267, %p268
    %p270 = scmp.ne.s32.totalorder %s262, %s264
    %p271 = scmp.eq.s32.totalorder %s23, 1
    %p272 = por %p270, %p271
    %p273 = scmp.ne.s32.totalorder %s264, %s265
    %p274 = scmp.eq.s32.totalorder %s23, 0
    %p275 = por %p273, %p274
    %p276 = scmp.ne.s32.totalorder %s264, %s265
    %p277 = scmp.eq.s32.totalorder %s24, 1
    %p278 = por %p276, %p277
    %p280 = scmp.ne.s32.totalorder %s265, %s279
    %p281 = scmp.eq.s32.totalorder %s24, 0
    %p282 = por %p280, %p281
    %s283 = ssub.s32 %s18, %s25
    %p284 = scmp.eq.s32.totalorder %s283, 0
    %s286 = sadd.s32 %s285, 1
    %s287 = scalar_select %p284, %s285, %s286
    %p290 = pneg %p284
    %p291 = scmp.eq.s32.totalorder %s18, 1
    %p292 = por %p290, %p291
    %p293 = scmp.ne.s32.totalorder %s285, %s288
    %p294 = scmp.eq.s32.totalorder %s18, 0
    %p295 = por %p293, %p294
    %p296 = scmp.ne.s32.totalorder %s285, %s288
    %p297 = scmp.eq.s32.totalorder %s23, 1
    %p298 = por %p296, %p297
    %p299 = scmp.ne.s32.totalorder %s288, %s289
    %p300 = scmp.eq.s32.totalorder %s23, 0
    %p301 = por %p299, %p300
    %p302 = scmp.ne.s32.totalorder %s288, %s289
    %p303 = scmp.eq.s32.totalorder %s24, 1
    %p304 = por %p302, %p303
    %p306 = scmp.ne.s32.totalorder %s289, %s305
    %p307 = scmp.eq.s32.totalorder %s24, 0
    %p308 = por %p306, %p307
    %p309 = scmp.le.s32.totalorder 1, %s18
    %p310 = scmp.lt.s32.totalorder %s18, 3
    %p311 = pnand %p309, %p310
    %p312 = pneg %p311
    // Predicated region
    $region9: #{bin_model_forward.11} parent=5 // pred_check
      _
    $region10: #{bin_model_forward.11} parent=5 // pred_check_branch
      %314 = sbr.rel (%p311) target = $region12
    $region11: #{bin_model_forward.11} parent=5 // pred_region
      %s315 = ssub.s32 %s18, 1
      // Predicated region
      $region13: #{bin_model_forward.11} parent=11 // pred_check
        %p316 = pneg %p65
      $region14: #{bin_model_forward.11} parent=11 // pred_check_branch
        %318 = sbr.rel (%p316) target = $region16
      $region15: #{bin_model_forward.11} parent=11 // pred_region
        _
      $region16: #{bin_model_forward.11} parent=11 // pred_fallthru
        _
      // Predicated region
      $region17: #{bin_model_forward.11} parent=11 // pred_check
        %p319 = pneg %p86
      $region18: #{bin_model_forward.11} parent=11 // pred_check_branch
        %321 = sbr.rel (%p319) target = $region20
      $region19: #{bin_model_forward.11} parent=11 // pred_region
        _
      $region20: #{bin_model_forward.11} parent=11 // pred_fallthru
        _
      // Predicated region
      $region21: #{bin_model_forward.11} parent=11 // pred_check
        %p322 = pneg %p107
      $region22: #{bin_model_forward.11} parent=11 // pred_check_branch
        %324 = sbr.rel (%p322) target = $region24
      $region23: #{bin_model_forward.11} parent=11 // pred_region
        _
      $region24: #{bin_model_forward.11} parent=11 // pred_fallthru
        _
      // Predicated region
      $region25: #{bin_model_forward.11} parent=11 // pred_check
        %p325 = pneg %p128
      $region26: #{bin_model_forward.11} parent=11 // pred_check_branch
        %327 = sbr.rel (%p325) target = $region28
      $region27: #{bin_model_forward.11} parent=11 // pred_region
        _
      $region28: #{bin_model_forward.11} parent=11 // pred_fallthru
        _
      // Predicated region
      $region29: #{bin_model_forward.11} parent=11 // pred_check
        %p328 = pneg %p149
      $region30: #{bin_model_forward.11} parent=11 // pred_check_branch
        %330 = sbr.rel (%p328) target = $region32
      $region31: #{bin_model_forward.11} parent=11 // pred_region
        _
      $region32: #{bin_model_forward.11} parent=11 // pred_fallthru
        _
      // Predicated region
      $region33: #{bin_model_forward.11} parent=11 // pred_check
        %p331 = pneg %p170
      $region34: #{bin_model_forward.11} parent=11 // pred_check_branch
        %333 = sbr.rel (%p331) target = $region36
      $region35: #{bin_model_forward.11} parent=11 // pred_region
        _
      $region36: #{bin_model_forward.11} parent=11 // pred_fallthru
        _
      // Predicated region
      $region37: #{bin_model_forward.11} parent=11 // pred_check
        %p334 = pneg %p191
      $region38: #{bin_model_forward.11} parent=11 // pred_check_branch
        %336 = sbr.rel (%p334) target = $region40
      $region39: #{bin_model_forward.11} parent=11 // pred_region
        _
      $region40: #{bin_model_forward.11} parent=11 // pred_fallthru
        _
      // Predicated region
      $region41: #{bin_model_forward.11} parent=11 // pred_check
        %p337 = pneg %p212
      $region42: #{bin_model_forward.11} parent=11 // pred_check_branch
        %339 = sbr.rel (%p337) target = $region44
      $region43: #{bin_model_forward.11} parent=11 // pred_region
        _
      $region44: #{bin_model_forward.11} parent=11 // pred_fallthru
        _
      // Predicated region
      $region45: #{bin_model_forward.11} parent=11 // pred_check
        %p340 = pneg %p233
      $region46: #{bin_model_forward.11} parent=11 // pred_check_branch
        %342 = sbr.rel (%p340) target = $region48
      $region47: #{bin_model_forward.11} parent=11 // pred_region
        _
      $region48: #{bin_model_forward.11} parent=11 // pred_fallthru
        _
      // Predicated region
      $region49: #{bin_model_forward.11} parent=11 // pred_check
        %p343 = pneg %p254
      $region50: #{bin_model_forward.11} parent=11 // pred_check_branch
        %345 = sbr.rel (%p343) target = $region52
      $region51: #{bin_model_forward.11} parent=11 // pred_region
        _
      $region52: #{bin_model_forward.11} parent=11 // pred_fallthru
        _
      // Predicated region
      $region53: #{bin_model_forward.11} parent=11 // pred_check
        %p346 = pneg %p275
      $region54: #{bin_model_forward.11} parent=11 // pred_check_branch
        %348 = sbr.rel (%p346) target = $region56
      $region55: #{bin_model_forward.11} parent=11 // pred_region
        _
      $region56: #{bin_model_forward.11} parent=11 // pred_fallthru
        _
    $region12: #{bin_model_forward.11} parent=5 // pred_fallthru
      _
    %p349 = scmp.lt.s32.totalorder %s18, 2
    // Predicated region
    $region57: #{bin_model_forward.11} parent=5 // pred_check
      %p350 = pneg %p349
    $region58: #{bin_model_forward.11} parent=5 // pred_check_branch
      %352 = sbr.rel (%p350) target = $region60
    $region59: #{bin_model_forward.11} parent=5 // pred_region
      // Predicated region
      $region61: #{bin_model_forward.11} parent=59 // pred_check
        %p353 = pneg %p38
      $region62: #{bin_model_forward.11} parent=59 // pred_check_branch
        %355 = sbr.rel (%p353) target = $region64
      $region63: #{bin_model_forward.11} parent=59 // pred_region
        %p356 = scmp.lt.s32.totalorder %s18, 1
        %s357 = scalar_select %p356, %s18, 1
        %s358 = smul.addr %s357, 2
        %s359 = smul.addr %s358, 8
        %s360 = scalar_lea.vmem %s0, %s359
      $region64: #{bin_model_forward.11} parent=59 // pred_fallthru
        _
    $region60: #{bin_model_forward.11} parent=5 // pred_fallthru
      _
    %p361 = scmp.le.s32.totalorder 1, %s18
    %p362 = scmp.lt.s32.totalorder %s18, 3
    %p363 = pnand %p361, %p362
    %p364 = pneg %p363
    // Predicated region
    $region65: #{bin_model_forward.11} parent=5 // pred_check
      _
    $region66: #{bin_model_forward.11} parent=5 // pred_check_branch
      %366 = sbr.rel (%p363) target = $region68
    $region67: #{bin_model_forward.11} parent=5 // pred_region
      %s367 = ssub.s32 %s18, 1
      %p368 = scmp.lt.s32.totalorder %s23, 1
      %s369 = scalar_select %p368, %s23, 1
      %s370 = smul.addr %s369, 2
      %s371 = smul.addr %s370, 8
      %s372 = scalar_lea.vmem %s0, %s371
      %p373 = pneg %p44
      %p374 = pneg %p41
      %p375 = pneg %p65
      %p376 = pneg %p62
      %p377 = pneg %p86
      %p378 = pneg %p83
      %p379 = pneg %p107
      %p380 = pneg %p104
      %p381 = pneg %p128
      %p382 = pneg %p125
      %p383 = pneg %p149
      %p384 = pneg %p146
      %p385 = pneg %p170
      %p386 = pneg %p167
      %p387 = pneg %p191
      %p388 = pneg %p188
      %p389 = pneg %p212
      %p390 = pneg %p209
      %p391 = pneg %p233
      %p392 = pneg %p230
      %p393 = pneg %p254
      %p394 = pneg %p251
      %p395 = pneg %p275
      %p396 = pneg %p272
      %p397 = pneg %p301
      %p398 = pneg %p298
      %p399 = scmp.lt.s32.totalorder %s23, 1
      %s400 = scalar_select %p399, %s23, 1
      %s401 = smul.addr %s400, 2
      %s402 = smul.addr %s401, 8
      %s403 = scalar_lea.vmem %s12, %s402
      %p404 = scmp.lt.s32.totalorder %s23, 1
      %s405 = scalar_select %p404, %s23, 1
      %s406 = smul.addr %s405, 2
      %s407 = smul.addr %s406, 8
      %s408 = scalar_lea.vmem %s0, %s407
      %p409 = scmp.lt.s32.totalorder %s23, 1
      %s410 = scalar_select %p409, %s23, 1
      %s411 = smul.addr %s410, 2
      %s412 = smul.addr %s411, 8
      %s413 = scalar_lea.vmem %s12, %s412
      %v414 = vld [vmem:[%s408] sm:$0xff]
      %v415 = vld [vmem:[%s408 + $0x8] sm:$0xff]
      %v416 = vld [vmem:[%s1] sm:$0x1]
      %v417 = vld [vmem:[%s2] sm:$0x1]
      %vm418 = vcmask 261120
      %v419 = vsel %vm418, %v414, 0.0
      %420 = vadd.xlane.f32.xlu0 %v419
      %v421 = vpop.xlane.xlu0 %420
      %v422 = vsel %vm418, %v415, 0.0
      %423 = vadd.xlane.f32.xlu0 %v422
      %v424 = vpop.xlane.xlu0 %423
      %v425 = vrcp.pop 32.0
      %v426 = vmul.f32 %v421, %v425
      %v427 = vmul.f32 %v424, %v425
      %v428 = vsub.f32 %v414, %v426
      %v429 = vsub.f32 %v415, %v427
      %v430 = vmul.f32 %v428, %v428
      %v431 = vmul.f32 %v429, %v429
      %v432 = vsel %vm418, %v430, 0.0
      %433 = vadd.xlane.f32.xlu0 %v432
      %v434 = vpop.xlane.xlu0 %433
      %v435 = vsel %vm418, %v431, 0.0
      %436 = vadd.xlane.f32.xlu0 %v435
      %v437 = vpop.xlane.xlu0 %436
      %v438 = vmul.f32 %v434, %v425
      %v439 = vmul.f32 %v437, %v425
      %v440 = vadd.f32 %v438, 1e-05
      %v441 = vadd.f32 %v439, 1e-05
      %v442 = vrsqrt.pop %v440
      %v443 = vrsqrt.pop %v441
      %v444 = vmul.f32 %v428, %v442
      %v445 = vmul.f32 %v429, %v443
      %v447 = vlaneseq
      %v448 = vshrl.u32 %v447, 7
      %v449 = vsub.s32 0, %v448
      %v450 = vrot.slane %v416, %v449
      %v452 = vmul.f32 %v444, %v450
      %v453 = vmul.f32 %v445, %v450
      %v455 = vlaneseq
      %v456 = vshrl.u32 %v455, 7
      %v457 = vsub.s32 0, %v456
      %v458 = vrot.slane %v417, %v457
      %v460 = vadd.f32 %v452, %v458
      %v461 = vadd.f32 %v453, %v458
      %v462 = vld [vmem:[%s3] sm:$0xff]
      %v463 = vld [vmem:[%s3 + $0x8] sm:$0xff]
      %v464 = vld [vmem:[%s3 + $0x10] sm:$0xff]
      %v465 = vld [vmem:[%s3 + $0x18] sm:$0xff]
      %v467 = vsel %vm418, %v460, 0
      %v470 = vsel %vm418, %v461, 0
      %472 = vmatprep.subr.mxu0 0.0
      %473 = vmatpush1.msra.mxu0 %v462
      %474 = vmatprep.subr.mxu0 0.0
      %475 = vmatpush1.msra.mxu0 %v463
      %476 = vmatprep.subr.mxu0 0.0
      %477 = vmatpush1.msra.mxu0 %v464
      %478 = vmatprep.subr.mxu0 0.0
      %479 = vmatpush1.msra.mxu0 %v465
      %480 = vmatprep.subr.mxu0 0.0
      %481 = vmatpush1.msra.mxu0 0.0
      %482 = vmatprep.subr.mxu0 0.0
      %483 = vmatpush1.msra.mxu0 0.0
      %484 = vmatprep.subr.mxu0 0.0
      %485 = vmatpush1.msra.mxu0 0.0
      %486 = vmatprep.subr.mxu0 0.0
      %487 = vmatpush1.msra.mxu0 0.0
      %488 = vmatprep.subr.mxu0 0.0
      %489 = vmatpush1.msra.mxu0 0.0
      %490 = vmatprep.subr.mxu0 0.0
      %491 = vmatpush1.msra.mxu0 0.0
      %492 = vmatprep.subr.mxu0 0.0
      %493 = vmatpush1.msra.mxu0 0.0
      %494 = vmatprep.subr.mxu0 0.0
      %495 = vmatpush1.msra.mxu0 0.0
      %496 = vmatprep.subr.mxu0 0.0
      %497 = vmatpush1.msra.mxu0 0.0
      %498 = vmatprep.subr.mxu0 0.0
      %499 = vmatpush1.msra.mxu0 0.0
      %500 = vmatprep.subr.mxu0 0.0
      %501 = vmatpush1.msra.mxu0 0.0
      %502 = vmatprep.subr.mxu0 0.0
      %503 = vmatpush1.msra.mxu0 0.0
      %504 = vmatprep.subr.mxu0 0.0
      %505 = vmatpush1.msra.mxu0 0.0
      %506 = vmatprep.subr.mxu0 0.0
      %507 = vmatpush1.msra.mxu0 0.0
      %508 = vmatprep.subr.mxu0 0.0
      %509 = vmatpush1.msra.mxu0 0.0
      %510 = vmatprep.subr.mxu0 0.0
      %511 = vmatpush1.msra.mxu0 0.0
      %512 = vmatprep.subr.mxu0 0.0
      %513 = vmatpush1.msra.mxu0 0.0
      %514 = vmatprep.subr.mxu0 0.0
      %515 = vmatpush1.msra.mxu0 0.0
      %516 = vmatprep.subr.mxu0 0.0
      %517 = vmatpush1.msra.mxu0 0.0
      %518 = vmatprep.subr.mxu0 0.0
      %519 = vmatpush1.msra.mxu0 0.0
      %520 = vmatprep.subr.mxu0 0.0
      %521 = vmatpush1.msra.mxu0 0.0
      %522 = vmatprep.subr.mxu0 0.0
      %523 = vmatpush1.msra.mxu0 0.0
      %524 = vmatprep.subr.mxu0 0.0
      %525 = vmatpush1.msra.mxu0 0.0
      %526 = vmatprep.subr.mxu0 0.0
      %527 = vmatpush1.msra.mxu0 0.0
      %528 = vmatprep.subr.mxu0 0.0
      %529 = vmatpush1.msra.mxu0 0.0
      %530 = vmatprep.subr.mxu0 0.0
      %531 = vmatpush1.msra.mxu0 0.0
      %532 = vmatprep.subr.mxu0 0.0
      %533 = vmatpush1.msra.mxu0 0.0
      %534 = vmatprep.subr.mxu0 0.0
      %535 = vmatpush1.msra.mxu0 0.0
      %536 = vmatprep.mubr.f32.mxu0 0.0
      %537 = vmatmul.mubr.f32.gmra.mrb[0].mxu0 %v467
      %v538 = vpop.f32.mrb[0].mxu0
      %v539 = vadd.f32 0.0, %v538
      %v540 = vpop.f32.mrb[0].mxu0
      %541 = vmatprep.mubr.f32.mxu0 0.0
      %542 = vmatmul.mubr.f32.gmra.mrb[0].mxu0 %v470
      %v543 = vpop.f32.mrb[0].mxu0
      %v544 = vadd.f32 0.0, %v543
      %v545 = vpop.f32.mrb[0].mxu0
      %546 = vdwg.mxu0
      %549 = vrot.lane.b32.xlu0 %v539, 96
      %v550 = vpop.permute.xlu0 %549
      %551 = vrot.lane.b32.xlu0 %v544, 96
      %v552 = vpop.permute.xlu0 %551
      %vm553 = vcmask 64512
      %v554 = vsel %vm553, %v539, 0
      %v556 = vsel %vm553, %v544, 0
      %v558 = vsel %vm553, %v550, 0
      %v560 = vsel %vm553, %v552, 0
      %562 = vmatprep.subr.mxu0 0.0
      %563 = vmatpush1.xpose.msra.mxu0 %v558
      %564 = vmatprep.subr.mxu0 0.0
      %565 = vmatpush1.xpose.msra.mxu0 %v560
      %566 = vmatprep.subr.mxu0 0.0
      %567 = vmatpush1.xpose.msra.mxu0 0.0
      %568 = vmatprep.subr.mxu0 0.0
      %569 = vmatpush1.xpose.msra.mxu0 0.0
      %570 = vmatprep.subr.mxu0 0.0
      %571 = vmatpush1.xpose.msra.mxu0 0.0
      %572 = vmatprep.subr.mxu0 0.0
      %573 = vmatpush1.xpose.msra.mxu0 0.0
      %574 = vmatprep.subr.mxu0 0.0
      %575 = vmatpush1.xpose.msra.mxu0 0.0
      %576 = vmatprep.subr.mxu0 0.0
      %577 = vmatpush1.xpose.msra.mxu0 0.0
      %578 = vmatprep.subr.mxu0 0.0
      %579 = vmatpush1.xpose.msra.mxu0 0.0
      %580 = vmatprep.subr.mxu0 0.0
      %581 = vmatpush1.xpose.msra.mxu0 0.0
      %582 = vmatprep.subr.mxu0 0.0
      %583 = vmatpush1.xpose.msra.mxu0 0.0
      %584 = vmatprep.subr.mxu0 0.0
      %585 = vmatpush1.xpose.msra.mxu0 0.0
      %586 = vmatprep.subr.mxu0 0.0
      %587 = vmatpush1.xpose.msra.mxu0 0.0
      %588 = vmatprep.subr.mxu0 0.0
      %589 = vmatpush1.xpose.msra.mxu0 0.0
      %590 = vmatprep.subr.mxu0 0.0
      %591 = vmatpush1.xpose.msra.mxu0 0.0
      %592 = vmatprep.subr.mxu0 0.0
      %593 = vmatpush1.xpose.msra.mxu0 0.0
      %594 = vmatprep.subr.mxu0 0.0
      %595 = vmatpush1.xpose.msra.mxu0 0.0
      %596 = vmatprep.subr.mxu0 0.0
      %597 = vmatpush1.xpose.msra.mxu0 0.0
      %598 = vmatprep.subr.mxu0 0.0
      %599 = vmatpush1.xpose.msra.mxu0 0.0
      %600 = vmatprep.subr.mxu0 0.0
      %601 = vmatpush1.xpose.msra.mxu0 0.0
      %602 = vmatprep.subr.mxu0 0.0
      %603 = vmatpush1.xpose.msra.mxu0 0.0
      %604 = vmatprep.subr.mxu0 0.0
      %605 = vmatpush1.xpose.msra.mxu0 0.0
      %606 = vmatprep.subr.mxu0 0.0
      %607 = vmatpush1.xpose.msra.mxu0 0.0
      %608 = vmatprep.subr.mxu0 0.0
      %609 = vmatpush1.xpose.msra.mxu0 0.0
      %610 = vmatprep.subr.mxu0 0.0
      %611 = vmatpush1.xpose.msra.mxu0 0.0
      %612 = vmatprep.subr.mxu0 0.0
      %613 = vmatpush1.xpose.msra.mxu0 0.0
      %614 = vmatprep.subr.mxu0 0.0
      %615 = vmatpush1.xpose.msra.mxu0 0.0
      %616 = vmatprep.subr.mxu0 0.0
      %617 = vmatpush1.xpose.msra.mxu0 0.0
      %618 = vmatprep.subr.mxu0 0.0
      %619 = vmatpush1.xpose.msra.mxu0 0.0
      %620 = vmatprep.subr.mxu0 0.0
      %621 = vmatpush1.xpose.msra.mxu0 0.0
      %622 = vmatprep.subr.mxu0 0.0
      %623 = vmatpush1.xpose.msra.mxu0 0.0
      %624 = vmatprep.subr.mxu0 0.0
      %625 = vmatpush1.xpose.msra.mxu0 0.0
      %626 = vmatprep.mubr.f32.mxu0 0.0
      %627 = vmatmul.mubr.f32.gmra.mrb[0].mxu0 %v554
      %v628 = vpop.f32.mrb[0].mxu0
      %v629 = vadd.f32 0.0, %v628
      %v630 = vpop.f32.mrb[0].mxu0
      %631 = vmatprep.mubr.f32.mxu0 0.0
      %632 = vmatmul.mubr.f32.gmra.mrb[0].mxu0 %v556
      %v633 = vpop.f32.mrb[0].mxu0
      %v634 = vadd.f32 0.0, %v633
      %v635 = vpop.f32.mrb[0].mxu0
      %636 = vdwg.mxu0
      %v637 = vmul.f32 %v629, 0.35355338
      %v638 = vmul.f32 %v634, 0.35355338
      %vm639 = vcmask 130048
      %v640 = vsel %vm639, %v637, -inf
      %641 = vmax.xlane.f32.xlu0 %v640
      %v642 = vpop.xlane.xlu0 %641
      %v643 = vsel %vm639, %v638, -inf
      %644 = vmax.xlane.f32.xlu0 %v643
      %v645 = vpop.xlane.xlu0 %644
      %v646 = vsub.f32 %v637, %v642
      %v647 = vsub.f32 %v638, %v645
      %v648 = vmul.f32 %v646, 1.442695
      %v649 = vpow.pop %v648
      %v650 = vmul.f32 %v647, 1.442695
      %v651 = vpow.pop %v650
      %v652 = vsel %vm639, %v649, 0.0
      %653 = vadd.xlane.f32.xlu0 %v652
      %v654 = vpop.xlane.xlu0 %653
      %v655 = vsel %vm639, %v651, 0.0
      %656 = vadd.xlane.f32.xlu0 %v655
      %v657 = vpop.xlane.xlu0 %656
      %v658 = vrcp.pop %v654
      %v659 = vmul.f32 %v649, %v658
      %v660 = vrcp.pop %v657
      %v661 = vmul.f32 %v651, %v660
      %662 = vrot.lane.b32.xlu0 %v539, 64
      %v663 = vpop.permute.xlu0 %662
      %664 = vrot.lane.b32.xlu0 %v544, 64
      %v665 = vpop.permute.xlu0 %664
      %v669 = vsel %vm639, %v659, 0
      %v672 = vsel %vm639, %v661, 0
      %674 = vmatprep.subr.mxu0 0.0
      %675 = vmatpush1.msra.mxu0 %v663
      %676 = vmatprep.subr.mxu0 0.0
      %677 = vmatpush1.msra.mxu0 %v665
      %678 = vmatprep.subr.mxu0 0.0
      %679 = vmatpush1.msra.mxu0 0.0
      %680 = vmatprep.subr.mxu0 0.0
      %681 = vmatpush1.msra.mxu0 0.0
      %682 = vmatprep.subr.mxu0 0.0
      %683 = vmatpush1.msra.mxu0 0.0
      %684 = vmatprep.subr.mxu0 0.0
      %685 = vmatpush1.msra.mxu0 0.0
      %686 = vmatprep.subr.mxu0 0.0
      %687 = vmatpush1.msra.mxu0 0.0
      %688 = vmatprep.subr.mxu0 0.0
      %689 = vmatpush1.msra.mxu0 0.0
      %690 = vmatprep.subr.mxu0 0.0
      %691 = vmatpush1.msra.mxu0 0.0
      %692 = vmatprep.subr.mxu0 0.0
      %693 = vmatpush1.msra.mxu0 0.0
      %694 = vmatprep.subr.mxu0 0.0
      %695 = vmatpush1.msra.mxu0 0.0
      %696 = vmatprep.subr.mxu0 0.0
      %697 = vmatpush1.msra.mxu0 0.0
      %698 = vmatprep.subr.mxu0 0.0
      %699 = vmatpush1.msra.mxu0 0.0
      %700 = vmatprep.subr.mxu0 0.0
      %701 = vmatpush1.msra.mxu0 0.0
      %702 = vmatprep.subr.mxu0 0.0
      %703 = vmatpush1.msra.mxu0 0.0
      %704 = vmatprep.subr.mxu0 0.0
      %705 = vmatpush1.msra.mxu0 0.0
      %706 = vmatprep.subr.mxu0 0.0
      %707 = vmatpush1.msra.mxu0 0.0
      %708 = vmatprep.subr.mxu0 0.0
      %709 = vmatpush1.msra.mxu0 0.0
      %710 = vmatprep.subr.mxu0 0.0
      %711 = vmatpush1.msra.mxu0 0.0
      %712 = vmatprep.subr.mxu0 0.0
      %713 = vmatpush1.msra.mxu0 0.0
      %714 = vmatprep.subr.mxu0 0.0
      %715 = vmatpush1.msra.mxu0 0.0
      %716 = vmatprep.subr.mxu0 0.0
      %717 = vmatpush1.msra.mxu0 0.0
      %718 = vmatprep.subr.mxu0 0.0
      %719 = vmatpush1.msra.mxu0 0.0
      %720 = vmatprep.subr.mxu0 0.0
      %721 = vmatpush1.msra.mxu0 0.0
      %722 = vmatprep.subr.mxu0 0.0
      %723 = vmatpush1.msra.mxu0 0.0
      %724 = vmatprep.subr.mxu0 0.0
      %725 = vmatpush1.msra.mxu0 0.0
      %726 = vmatprep.subr.mxu0 0.0
      %727 = vmatpush1.msra.mxu0 0.0
      %728 = vmatprep.subr.mxu0 0.0
      %729 = vmatpush1.msra.mxu0 0.0
      %730 = vmatprep.subr.mxu0 0.0
      %731 = vmatpush1.msra.mxu0 0.0
      %732 = vmatprep.subr.mxu0 0.0
      %733 = vmatpush1.msra.mxu0 0.0
      %734 = vmatprep.subr.mxu0 0.0
      %735 = vmatpush1.msra.mxu0 0.0
      %736 = vmatprep.subr.mxu0 0.0
      %737 = vmatpush1.msra.mxu0 0.0
      %738 = vmatprep.mubr.f32.mxu0 0.0
      %739 = vmatmul.mubr.f32.gmra.mrb[0].mxu0 %v669
      %v740 = vpop.f32.mrb[0].mxu0
      %v741 = vadd.f32 0.0, %v740
      %v742 = vpop.f32.mrb[0].mxu0
      %743 = vmatprep.mubr.f32.mxu0 0.0
      %744 = vmatmul.mubr.f32.gmra.mrb[0].mxu0 %v672
      %v745 = vpop.f32.mrb[0].mxu0
      %v746 = vadd.f32 0.0, %v745
      %v747 = vpop.f32.mrb[0].mxu0
      %748 = vdwg.mxu0
      %749 = vrot.lane.b32.xlu0 %v539, 120
      %v750 = vpop.permute.xlu0 %749
      %751 = vrot.lane.b32.xlu0 %v544, 120
      %v752 = vpop.permute.xlu0 %751
      %753 = vrot.lane.b32.xlu0 %v539, 88
      %v754 = vpop.permute.xlu0 %753
      %755 = vrot.lane.b32.xlu0 %v544, 88
      %v756 = vpop.permute.xlu0 %755
      %v757 = vsel %vm553, %v750, 0
      %v759 = vsel %vm553, %v752, 0
      %v761 = vsel %vm553, %v754, 0
      %v763 = vsel %vm553, %v756, 0
      %765 = vmatprep.subr.mxu0 0.0
      %766 = vmatpush1.xpose.msra.mxu0 %v761
      %767 = vmatprep.subr.mxu0 0.0
      %768 = vmatpush1.xpose.msra.mxu0 %v763
      %769 = vmatprep.subr.mxu0 0.0
      %770 = vmatpush1.xpose.msra.mxu0 0.0
      %771 = vmatprep.subr.mxu0 0.0
      %772 = vmatpush1.xpose.msra.mxu0 0.0
      %773 = vmatprep.subr.mxu0 0.0
      %774 = vmatpush1.xpose.msra.mxu0 0.0
      %775 = vmatprep.subr.mxu0 0.0
      %776 = vmatpush1.xpose.msra.mxu0 0.0
      %777 = vmatprep.subr.mxu0 0.0
      %778 = vmatpush1.xpose.msra.mxu0 0.0
      %779 = vmatprep.subr.mxu0 0.0
      %780 = vmatpush1.xpose.msra.mxu0 0.0
      %781 = vmatprep.subr.mxu0 0.0
      %782 = vmatpush1.xpose.msra.mxu0 0.0
      %783 = vmatprep.subr.mxu0 0.0
      %784 = vmatpush1.xpose.msra.mxu0 0.0
      %785 = vmatprep.subr.mxu0 0.0
      %786 = vmatpush1.xpose.msra.mxu0 0.0
      %787 = vmatprep.subr.mxu0 0.0
      %788 = vmatpush1.xpose.msra.mxu0 0.0
      %789 = vmatprep.subr.mxu0 0.0
      %790 = vmatpush1.xpose.msra.mxu0 0.0
      %791 = vmatprep.subr.mxu0 0.0
      %792 = vmatpush1.xpose.msra.mxu0 0.0
      %793 = vmatprep.subr.mxu0 0.0
      %794 = vmatpush1.xpose.msra.mxu0 0.0
      %795 = vmatprep.subr.mxu0 0.0
      %796 = vmatpush1.xpose.msra.mxu0 0.0
      %797 = vmatprep.subr.mxu0 0.0
      %798 = vmatpush1.xpose.msra.mxu0 0.0
      %799 = vmatprep.subr.mxu0 0.0
      %800 = vmatpush1.xpose.msra.mxu0 0.0
      %801 = vmatprep.subr.mxu0 0.0
      %802 = vmatpush1.xpose.msra.mxu0 0.0
      %803 = vmatprep.subr.mxu0 0.0
      %804 = vmatpush1.xpose.msra.mxu0 0.0
      %805 = vmatprep.subr.mxu0 0.0
      %806 = vmatpush1.xpose.msra.mxu0 0.0
      %807 = vmatprep.subr.mxu0 0.0
      %808 = vmatpush1.xpose.msra.mxu0 0.0
      %809 = vmatprep.subr.mxu0 0.0
      %810 = vmatpush1.xpose.msra.mxu0 0.0
      %811 = vmatprep.subr.mxu0 0.0
      %812 = vmatpush1.xpose.msra.mxu0 0.0
      %813 = vmatprep.subr.mxu0 0.0
      %814 = vmatpush1.xpose.msra.mxu0 0.0
      %815 = vmatprep.subr.mxu0 0.0
      %816 = vmatpush1.xpose.msra.mxu0 0.0
      %817 = vmatprep.subr.mxu0 0.0
      %818 = vmatpush1.xpose.msra.mxu0 0.0
      %819 = vmatprep.subr.mxu0 0.0
      %820 = vmatpush1.xpose.msra.mxu0 0.0
      %821 = vmatprep.subr.mxu0 0.0
      %822 = vmatpush1.xpose.msra.mxu0 0.0
      %823 = vmatprep.subr.mxu0 0.0
      %824 = vmatpush1.xpose.msra.mxu0 0.0
      %825 = vmatprep.subr.mxu0 0.0
      %826 = vmatpush1.xpose.msra.mxu0 0.0
      %827 = vmatprep.subr.mxu0 0.0
      %828 = vmatpush1.xpose.msra.mxu0 0.0
      %829 = vmatprep.mubr.f32.mxu0 0.0
      %830 = vmatmul.mubr.f32.gmra.mrb[0].mxu0 %v757
      %v831 = vpop.f32.mrb[0].mxu0
      %v832 = vadd.f32 0.0, %v831
      %v833 = vpop.f32.mrb[0].mxu0
      %834 = vmatprep.mubr.f32.mxu0 0.0
      %835 = vmatmul.mubr.f32.gmra.mrb[0].mxu0 %v759
      %v836 = vpop.f32.mrb[0].mxu0
      %v837 = vadd.f32 0.0, %v836
      %v838 = vpop.f32.mrb[0].mxu0
      %839 = vdwg.mxu0
      %v840 = vmul.f32 %v832, 0.35355338
      %v841 = vmul.f32 %v837, 0.35355338
      %v842 = vsel %vm639, %v840, -inf
      %843 = vmax.xlane.f32.xlu0 %v842
      %v844 = vpop.xlane.xlu0 %843
      %v845 = vsel %vm639, %v841, -inf
      %846 = vmax.xlane.f32.xlu0 %v845
      %v847 = vpop.xlane.xlu0 %846
      %v848 = vsub.f32 %v840, %v844
      %v849 = vsub.f32 %v841, %v847
      %v850 = vmul.f32 %v848, 1.442695
      %v851 = vpow.pop %v850
      %v852 = vmul.f32 %v849, 1.442695
      %v853 = vpow.pop %v852
      %v854 = vsel %vm639, %v851, 0.0
      %855 = vadd.xlane.f32.xlu0 %v854
      %v856 = vpop.xlane.xlu0 %855
      %v857 = vsel %vm639, %v853, 0.0
      %858 = vadd.xlane.f32.xlu0 %v857
      %v859 = vpop.xlane.xlu0 %858
      %v860 = vrcp.pop %v856
      %v861 = vmul.f32 %v851, %v860
      %v862 = vrcp.pop %v859
      %v863 = vmul.f32 %v853, %v862
      %864 = vrot.lane.b32.xlu0 %v539, 56
      %v865 = vpop.permute.xlu0 %864
      %866 = vrot.lane.b32.xlu0 %v544, 56
      %v867 = vpop.permute.xlu0 %866
      %v871 = vsel %vm639, %v861, 0
      %v874 = vsel %vm639, %v863, 0
      %876 = vmatprep.subr.mxu0 0.0
      %877 = vmatpush1.msra.mxu0 %v865
      %878 = vmatprep.subr.mxu0 0.0
      %879 = vmatpush1.msra.mxu0 %v867
      %880 = vmatprep.subr.mxu0 0.0
      %881 = vmatpush1.msra.mxu0 0.0
      %882 = vmatprep.subr.mxu0 0.0
      %883 = vmatpush1.msra.mxu0 0.0
      %884 = vmatprep.subr.mxu0 0.0
      %885 = vmatpush1.msra.mxu0 0.0
      %886 = vmatprep.subr.mxu0 0.0
      %887 = vmatpush1.msra.mxu0 0.0
      %888 = vmatprep.subr.mxu0 0.0
      %889 = vmatpush1.msra.mxu0 0.0
      %890 = vmatprep.subr.mxu0 0.0
      %891 = vmatpush1.msra.mxu0 0.0
      %892 = vmatprep.subr.mxu0 0.0
      %893 = vmatpush1.msra.mxu0 0.0
      %894 = vmatprep.subr.mxu0 0.0
      %895 = vmatpush1.msra.mxu0 0.0
      %896 = vmatprep.subr.mxu0 0.0
      %897 = vmatpush1.msra.mxu0 0.0
      %898 = vmatprep.subr.mxu0 0.0
      %899 = vmatpush1.msra.mxu0 0.0
      %900 = vmatprep.subr.mxu0 0.0
      %901 = vmatpush1.msra.mxu0 0.0
      %902 = vmatprep.subr.mxu0 0.0
      %903 = vmatpush1.msra.mxu0 0.0
      %904 = vmatprep.subr.mxu0 0.0
      %905 = vmatpush1.msra.mxu0 0.0
      %906 = vmatprep.subr.mxu0 0.0
      %907 = vmatpush1.msra.mxu0 0.0
      %908 = vmatprep.subr.mxu0 0.0
      %909 = vmatpush1.msra.mxu0 0.0
      %910 = vmatprep.subr.mxu0 0.0
      %911 = vmatpush1.msra.mxu0 0.0
      %912 = vmatprep.subr.mxu0 0.0
      %913 = vmatpush1.msra.mxu0 0.0
      %914 = vmatprep.subr.mxu0 0.0
      %915 = vmatpush1.msra.mxu0 0.0
      %916 = vmatprep.subr.mxu0 0.0
      %917 = vmatpush1.msra.mxu0 0.0
      %918 = vmatprep.subr.mxu0 0.0
      %919 = vmatpush1.msra.mxu0 0.0
      %920 = vmatprep.subr.mxu0 0.0
      %921 = vmatpush1.msra.mxu0 0.0
      %922 = vmatprep.subr.mxu0 0.0
      %923 = vmatpush1.msra.mxu0 0.0
      %924 = vmatprep.subr.mxu0 0.0
      %925 = vmatpush1.msra.mxu0 0.0
      %926 = vmatprep.subr.mxu0 0.0
      %927 = vmatpush1.msra.mxu0 0.0
      %928 = vmatprep.subr.mxu0 0.0
      %929 = vmatpush1.msra.mxu0 0.0
      %930 = vmatprep.subr.mxu0 0.0
      %931 = vmatpush1.msra.mxu0 0.0
      %932 = vmatprep.subr.mxu0 0.0
      %933 = vmatpush1.msra.mxu0 0.0
      %934 = vmatprep.subr.mxu0 0.0
      %935 = vmatpush1.msra.mxu0 0.0
      %936 = vmatprep.subr.mxu0 0.0
      %937 = vmatpush1.msra.mxu0 0.0
      %938 = vmatprep.subr.mxu0 0.0
      %939 = vmatpush1.msra.mxu0 0.0
      %940 = vmatprep.mubr.f32.mxu0 0.0
      %941 = vmatmul.mubr.f32.gmra.mrb[0].mxu0 %v871
      %v942 = vpop.f32.mrb[0].mxu0
      %v943 = vadd.f32 0.0, %v942
      %v944 = vpop.f32.mrb[0].mxu0
      %945 = vmatprep.mubr.f32.mxu0 0.0
      %946 = vmatmul.mubr.f32.gmra.mrb[0].mxu0 %v874
      %v947 = vpop.f32.mrb[0].mxu0
      %v948 = vadd.f32 0.0, %v947
      %v949 = vpop.f32.mrb[0].mxu0
      %950 = vdwg.mxu0
      %951 = vrot.lane.b32.xlu0 %v539, 112
      %v952 = vpop.permute.xlu0 %951
      %953 = vrot.lane.b32.xlu0 %v544, 112
      %v954 = vpop.permute.xlu0 %953
      %955 = vrot.lane.b32.xlu0 %v539, 80
      %v956 = vpop.permute.xlu0 %955
      %957 = vrot.lane.b32.xlu0 %v544, 80
      %v958 = vpop.permute.xlu0 %957
      %v959 = vsel %vm553, %v952, 0
      %v961 = vsel %vm553, %v954, 0
      %v963 = vsel %vm553, %v956, 0
      %v965 = vsel %vm553, %v958, 0
      %967 = vmatprep.subr.mxu0 0.0
      %968 = vmatpush1.xpose.msra.mxu0 %v963
      %969 = vmatprep.subr.mxu0 0.0
      %970 = vmatpush1.xpose.msra.mxu0 %v965
      %971 = vmatprep.subr.mxu0 0.0
      %972 = vmatpush1.xpose.msra.mxu0 0.0
      %973 = vmatprep.subr.mxu0 0.0
      %974 = vmatpush1.xpose.msra.mxu0 0.0
      %975 = vmatprep.subr.mxu0 0.0
      %976 = vmatpush1.xpose.msra.mxu0 0.0
      %977 = vmatprep.subr.mxu0 0.0
      %978 = vmatpush1.xpose.msra.mxu0 0.0
      %979 = vmatprep.subr.mxu0 0.0
      %980 = vmatpush1.xpose.msra.mxu0 0.0
      %981 = vmatprep.subr.mxu0 0.0
      %982 = vmatpush1.xpose.msra.mxu0 0.0
      %983 = vmatprep.subr.mxu0 0.0
      %984 = vmatpush1.xpose.msra.mxu0 0.0
      %985 = vmatprep.subr.mxu0 0.0
      %986 = vmatpush1.xpose.msra.mxu0 0.0
      %987 = vmatprep.subr.mxu0 0.0
      %988 = vmatpush1.xpose.msra.mxu0 0.0
      %989 = vmatprep.subr.mxu0 0.0
      %990 = vmatpush1.xpose.msra.mxu0 0.0
      %991 = vmatprep.subr.mxu0 0.0
      %992 = vmatpush1.xpose.msra.mxu0 0.0
      %993 = vmatprep.subr.mxu0 0.0
      %994 = vmatpush1.xpose.msra.mxu0 0.0
      %995 = vmatprep.subr.mxu0 0.0
      %996 = vmatpush1.xpose.msra.mxu0 0.0
      %997 = vmatprep.subr.mxu0 0.0
      %998 = vmatpush1.xpose.msra.mxu0 0.0
      %999 = vmatprep.subr.mxu0 0.0
      %1000 = vmatpush1.xpose.msra.mxu0 0.0
      %1001 = vmatprep.subr.mxu0 0.0
      %1002 = vmatpush1.xpose.msra.mxu0 0.0
      %1003 = vmatprep.subr.mxu0 0.0
      %1004 = vmatpush1.xpose.msra.mxu0 0.0
      %1005 = vmatprep.subr.mxu0 0.0
      %1006 = vmatpush1.xpose.msra.mxu0 0.0
      %1007 = vmatprep.subr.mxu0 0.0
      %1008 = vmatpush1.xpose.msra.mxu0 0.0
      %1009 = vmatprep.subr.mxu0 0.0
      %1010 = vmatpush1.xpose.msra.mxu0 0.0
      %1011 = vmatprep.subr.mxu0 0.0
      %1012 = vmatpush1.xpose.msra.mxu0 0.0
      %1013 = vmatprep.subr.mxu0 0.0
      %1014 = vmatpush1.xpose.msra.mxu0 0.0
      %1015 = vmatprep.subr.mxu0 0.0
      %1016 = vmatpush1.xpose.msra.mxu0 0.0
      %1017 = vmatprep.subr.mxu0 0.0
      %1018 = vmatpush1.xpose.msra.mxu0 0.0
      %1019 = vmatprep.subr.mxu0 0.0
      %1020 = vmatpush1.xpose.msra.mxu0 0.0
      %1021 = vmatprep.subr.mxu0 0.0
      %1022 = vmatpush1.xpose.msra.mxu0 0.0
      %1023 = vmatprep.subr.mxu0 0.0
      %1024 = vmatpush1.xpose.msra.mxu0 0.0
      %1025 = vmatprep.subr.mxu0 0.0
      %1026 = vmatpush1.xpose.msra.mxu0 0.0
      %1027 = vmatprep.subr.mxu0 0.0
      %1028 = vmatpush1.xpose.msra.mxu0 0.0
      %1029 = vmatprep.subr.mxu0 0.0
      %1030 = vmatpush1.xpose.msra.mxu0 0.0
      %1031 = vmatprep.mubr.f32.mxu0 0.0
      %1032 = vmatmul.mubr.f32.gmra.mrb[0].mxu0 %v959
      %v1033 = vpop.f32.mrb[0].mxu0
      %v1034 = vadd.f32 0.0, %v1033
      %v1035 = vpop.f32.mrb[0].mxu0
      %1036 = vmatprep.mubr.f32.mxu0 0.0
      %1037 = vmatmul.mubr.f32.gmra.mrb[0].mxu0 %v961
      %v1038 = vpop.f32.mrb[0].mxu0
      %v1039 = vadd.f32 0.0, %v1038
      %v1040 = vpop.f32.mrb[0].mxu0
      %1041 = vdwg.mxu0
      %v1042 = vmul.f32 %v1034, 0.35355338
      %v1043 = vmul.f32 %v1039, 0.35355338
      %v1044 = vsel %vm639, %v1042, -inf
      %1045 = vmax.xlane.f32.xlu0 %v1044
      %v1046 = vpop.xlane.xlu0 %1045
      %v1047 = vsel %vm639, %v1043, -inf
      %1048 = vmax.xlane.f32.xlu0 %v1047
      %v1049 = vpop.xlane.xlu0 %1048
      %v1050 = vsub.f32 %v1042, %v1046
      %v1051 = vsub.f32 %v1043, %v1049
      %v1052 = vmul.f32 %v1050, 1.442695
      %v1053 = vpow.pop %v1052
      %v1054 = vmul.f32 %v1051, 1.442695
      %v1055 = vpow.pop %v1054
      %v1056 = vsel %vm639, %v1053, 0.0
      %1057 = vadd.xlane.f32.xlu0 %v1056
      %v1058 = vpop.xlane.xlu0 %1057
      %v1059 = vsel %vm639, %v1055, 0.0
      %1060 = vadd.xlane.f32.xlu0 %v1059
      %v1061 = vpop.xlane.xlu0 %1060
      %v1062 = vrcp.pop %v1058
      %v1063 = vmul.f32 %v1053, %v1062
      %v1064 = vrcp.pop %v1061
      %v1065 = vmul.f32 %v1055, %v1064
      %1066 = vrot.lane.b32.xlu0 %v539, 48
      %v1067 = vpop.permute.xlu0 %1066
      %1068 = vrot.lane.b32.xlu0 %v544, 48
      %v1069 = vpop.permute.xlu0 %1068
      %v1073 = vsel %vm639, %v1063, 0
      %v1076 = vsel %vm639, %v1065, 0
      %1078 = vmatprep.subr.mxu0 0.0
      %1079 = vmatpush1.msra.mxu0 %v1067
      %1080 = vmatprep.subr.mxu0 0.0
      %1081 = vmatpush1.msra.mxu0 %v1069
      %1082 = vmatprep.subr.mxu0 0.0
      %1083 = vmatpush1.msra.mxu0 0.0
      %1084 = vmatprep.subr.mxu0 0.0
      %1085 = vmatpush1.msra.mxu0 0.0
      %1086 = vmatprep.subr.mxu0 0.0
      %1087 = vmatpush1.msra.mxu0 0.0
      %1088 = vmatprep.subr.mxu0 0.0
      %1089 = vmatpush1.msra.mxu0 0.0
      %1090 = vmatprep.subr.mxu0 0.0
      %1091 = vmatpush1.msra.mxu0 0.0
      %1092 = vmatprep.subr.mxu0 0.0
      %1093 = vmatpush1.msra.mxu0 0.0
      %1094 = vmatprep.subr.mxu0 0.0
      %1095 = vmatpush1.msra.mxu0 0.0
      %1096 = vmatprep.subr.mxu0 0.0
      %1097 = vmatpush1.msra.mxu0 0.0
      %1098 = vmatprep.subr.mxu0 0.0
      %1099 = vmatpush1.msra.mxu0 0.0
      %1100 = vmatprep.subr.mxu0 0.0
      %1101 = vmatpush1.msra.mxu0 0.0
      %1102 = vmatprep.subr.mxu0 0.0
      %1103 = vmatpush1.msra.mxu0 0.0
      %1104 = vmatprep.subr.mxu0 0.0
      %1105 = vmatpush1.msra.mxu0 0.0
      %1106 = vmatprep.subr.mxu0 0.0
      %1107 = vmatpush1.msra.mxu0 0.0
      %1108 = vmatprep.subr.mxu0 0.0
      %1109 = vmatpush1.msra.mxu0 0.0
      %1110 = vmatprep.subr.mxu0 0.0
      %1111 = vmatpush1.msra.mxu0 0.0
      %1112 = vmatprep.subr.mxu0 0.0
      %1113 = vmatpush1.msra.mxu0 0.0
      %1114 = vmatprep.subr.mxu0 0.0
      %1115 = vmatpush1.msra.mxu0 0.0
      %1116 = vmatprep.subr.mxu0 0.0
      %1117 = vmatpush1.msra.mxu0 0.0
      %1118 = vmatprep.subr.mxu0 0.0
      %1119 = vmatpush1.msra.mxu0 0.0
      %1120 = vmatprep.subr.mxu0 0.0
      %1121 = vmatpush1.msra.mxu0 0.0
      %1122 = vmatprep.subr.mxu0 0.0
      %1123 = vmatpush1.msra.mxu0 0.0
      %1124 = vmatprep.subr.mxu0 0.0
      %1125 = vmatpush1.msra.mxu0 0.0
      %1126 = vmatprep.subr.mxu0 0.0
      %1127 = vmatpush1.msra.mxu0 0.0
      %1128 = vmatprep.subr.mxu0 0.0
      %1129 = vmatpush1.msra.mxu0 0.0
      %1130 = vmatprep.subr.mxu0 0.0
      %1131 = vmatpush1.msra.mxu0 0.0
      %1132 = vmatprep.subr.mxu0 0.0
      %1133 = vmatpush1.msra.mxu0 0.0
      %1134 = vmatprep.subr.mxu0 0.0
      %1135 = vmatpush1.msra.mxu0 0.0
      %1136 = vmatprep.subr.mxu0 0.0
      %1137 = vmatpush1.msra.mxu0 0.0
      %1138 = vmatprep.subr.mxu0 0.0
      %1139 = vmatpush1.msra.mxu0 0.0
      %1140 = vmatprep.subr.mxu0 0.0
      %1141 = vmatpush1.msra.mxu0 0.0
      %1142 = vmatprep.mubr.f32.mxu0 0.0
      %1143 = vmatmul.mubr.f32.gmra.mrb[0].mxu0 %v1073
      %v1144 = vpop.f32.mrb[0].mxu0
      %v1145 = vadd.f32 0.0, %v1144
      %v1146 = vpop.f32.mrb[0].mxu0
      %1147 = vmatprep.mubr.f32.mxu0 0.0
      %1148 = vmatmul.mubr.f32.gmra.mrb[0].mxu0 %v1076
      %v1149 = vpop.f32.mrb[0].mxu0
      %v1150 = vadd.f32 0.0, %v1149
      %v1151 = vpop.f32.mrb[0].mxu0
      %1152 = vdwg.mxu0
      %1153 = vrot.lane.b32.xlu0 %v539, 104
      %v1154 = vpop.permute.xlu0 %1153
      %1155 = vrot.lane.b32.xlu0 %v544, 104
      %v1156 = vpop.permute.xlu0 %1155
      %1157 = vrot.lane.b32.xlu0 %v539, 72
      %v1158 = vpop.permute.xlu0 %1157
      %1159 = vrot.lane.b32.xlu0 %v544, 72
      %v1160 = vpop.permute.xlu0 %1159
      %v1161 = vsel %vm553, %v1154, 0
      %v1163 = vsel %vm553, %v1156, 0
      %v1165 = vsel %vm553, %v1158, 0
      %v1167 = vsel %vm553, %v1160, 0
      %1169 = vmatprep.subr.mxu0 0.0
      %1170 = vmatpush1.xpose.msra.mxu0 %v1165
      %1171 = vmatprep.subr.mxu0 0.0
      %1172 = vmatpush1.xpose.msra.mxu0 %v1167
      %1173 = vmatprep.subr.mxu0 0.0
      %1174 = vmatpush1.xpose.msra.mxu0 0.0
      %1175 = vmatprep.subr.mxu0 0.0
      %1176 = vmatpush1.xpose.msra.mxu0 0.0
      %1177 = vmatprep.subr.mxu0 0.0
      %1178 = vmatpush1.xpose.msra.mxu0 0.0
      %1179 = vmatprep.subr.mxu0 0.0
      %1180 = vmatpush1.xpose.msra.mxu0 0.0
      %1181 = vmatprep.subr.mxu0 0.0
      %1182 = vmatpush1.xpose.msra.mxu0 0.0
      %1183 = vmatprep.subr.mxu0 0.0
      %1184 = vmatpush1.xpose.msra.mxu0 0.0
      %1185 = vmatprep.subr.mxu0 0.0
      %1186 = vmatpush1.xpose.msra.mxu0 0.0
      %1187 = vmatprep.subr.mxu0 0.0
      %1188 = vmatpush1.xpose.msra.mxu0 0.0
      %1189 = vmatprep.subr.mxu0 0.0
      %1190 = vmatpush1.xpose.msra.mxu0 0.0
      %1191 = vmatprep.subr.mxu0 0.0
      %1192 = vmatpush1.xpose.msra.mxu0 0.0
      %1193 = vmatprep.subr.mxu0 0.0
      %1194 = vmatpush1.xpose.msra.mxu0 0.0
      %1195 = vmatprep.subr.mxu0 0.0
      %1196 = vmatpush1.xpose.msra.mxu0 0.0
      %1197 = vmatprep.subr.mxu0 0.0
      %1198 = vmatpush1.xpose.msra.mxu0 0.0
      %1199 = vmatprep.subr.mxu0 0.0
      %1200 = vmatpush1.xpose.msra.mxu0 0.0
      %1201 = vmatprep.subr.mxu0 0.0
      %1202 = vmatpush1.xpose.msra.mxu0 0.0
      %1203 = vmatprep.subr.mxu0 0.0
      %1204 = vmatpush1.xpose.msra.mxu0 0.0
      %1205 = vmatprep.subr.mxu0 0.0
      %1206 = vmatpush1.xpose.msra.mxu0 0.0
      %1207 = vmatprep.subr.mxu0 0.0
      %1208 = vmatpush1.xpose.msra.mxu0 0.0
      %1209 = vmatprep.subr.mxu0 0.0
      %1210 = vmatpush1.xpose.msra.mxu0 0.0
      %1211 = vmatprep.subr.mxu0 0.0
      %1212 = vmatpush1.xpose.msra.mxu0 0.0
      %1213 = vmatprep.subr.mxu0 0.0
      %1214 = vmatpush1.xpose.msra.mxu0 0.0
      %1215 = vmatprep.subr.mxu0 0.0
      %1216 = vmatpush1.xpose.msra.mxu0 0.0
      %1217 = vmatprep.subr.mxu0 0.0
      %1218 = vmatpush1.xpose.msra.mxu0 0.0
      %1219 = vmatprep.subr.mxu0 0.0
      %1220 = vmatpush1.xpose.msra.mxu0 0.0
      %1221 = vmatprep.subr.mxu0 0.0
      %1222 = vmatpush1.xpose.msra.mxu0 0.0
      %1223 = vmatprep.subr.mxu0 0.0
      %1224 = vmatpush1.xpose.msra.mxu0 0.0
      %1225 = vmatprep.subr.mxu0 0.0
      %1226 = vmatpush1.xpose.msra.mxu0 0.0
      %1227 = vmatprep.subr.mxu0 0.0
      %1228 = vmatpush1.xpose.msra.mxu0 0.0
      %1229 = vmatprep.subr.mxu0 0.0
      %1230 = vmatpush1.xpose.msra.mxu0 0.0
      %1231 = vmatprep.subr.mxu0 0.0
      %1232 = vmatpush1.xpose.msra.mxu0 0.0
      %1233 = vmatprep.mubr.f32.mxu0 0.0
      %1234 = vmatmul.mubr.f32.gmra.mrb[0].mxu0 %v1161
      %v1235 = vpop.f32.mrb[0].mxu0
      %v1236 = vadd.f32 0.0, %v1235
      %v1237 = vpop.f32.mrb[0].mxu0
      %1238 = vmatprep.mubr.f32.mxu0 0.0
      %1239 = vmatmul.mubr.f32.gmra.mrb[0].mxu0 %v1163
      %v1240 = vpop.f32.mrb[0].mxu0
      %v1241 = vadd.f32 0.0, %v1240
      %v1242 = vpop.f32.mrb[0].mxu0
      %1243 = vdwg.mxu0
      %v1244 = vmul.f32 %v1236, 0.35355338
      %v1245 = vmul.f32 %v1241, 0.35355338
      %v1246 = vsel %vm639, %v1244, -inf
      %1247 = vmax.xlane.f32.xlu0 %v1246
      %v1248 = vpop.xlane.xlu0 %1247
      %v1249 = vsel %vm639, %v1245, -inf
      %1250 = vmax.xlane.f32.xlu0 %v1249
      %v1251 = vpop.xlane.xlu0 %1250
      %v1252 = vsub.f32 %v1244, %v1248
      %v1253 = vsub.f32 %v1245, %v1251
      %v1254 = vmul.f32 %v1252, 1.442695
      %v1255 = vpow.pop %v1254
      %v1256 = vmul.f32 %v1253, 1.442695
      %v1257 = vpow.pop %v1256
      %v1258 = vsel %vm639, %v1255, 0.0
      %1259 = vadd.xlane.f32.xlu0 %v1258
      %v1260 = vpop.xlane.xlu0 %1259
      %v1261 = vsel %vm639, %v1257, 0.0
      %1262 = vadd.xlane.f32.xlu0 %v1261
      %v1263 = vpop.xlane.xlu0 %1262
      %v1264 = vrcp.pop %v1260
      %v1265 = vmul.f32 %v1255, %v1264
      %v1266 = vrcp.pop %v1263
      %v1267 = vmul.f32 %v1257, %v1266
      %1268 = vrot.lane.b32.xlu0 %v539, 40
      %v1269 = vpop.permute.xlu0 %1268
      %1270 = vrot.lane.b32.xlu0 %v544, 40
      %v1271 = vpop.permute.xlu0 %1270
      %v1275 = vsel %vm639, %v1265, 0
      %v1278 = vsel %vm639, %v1267, 0
      %1280 = vmatprep.subr.mxu0 0.0
      %1281 = vmatpush1.msra.mxu0 %v1269
      %1282 = vmatprep.subr.mxu0 0.0
      %1283 = vmatpush1.msra.mxu0 %v1271
      %1284 = vmatprep.subr.mxu0 0.0
      %1285 = vmatpush1.msra.mxu0 0.0
      %1286 = vmatprep.subr.mxu0 0.0
      %1287 = vmatpush1.msra.mxu0 0.0
      %1288 = vmatprep.subr.mxu0 0.0
      %1289 = vmatpush1.msra.mxu0 0.0
      %1290 = vmatprep.subr.mxu0 0.0
      %1291 = vmatpush1.msra.mxu0 0.0
      %1292 = vmatprep.subr.mxu0 0.0
      %1293 = vmatpush1.msra.mxu0 0.0
      %1294 = vmatprep.subr.mxu0 0.0
      %1295 = vmatpush1.msra.mxu0 0.0
      %1296 = vmatprep.subr.mxu0 0.0
      %1297 = vmatpush1.msra.mxu0 0.0
      %1298 = vmatprep.subr.mxu0 0.0
      %1299 = vmatpush1.msra.mxu0 0.0
      %1300 = vmatprep.subr.mxu0 0.0
      %1301 = vmatpush1.msra.mxu0 0.0
      %1302 = vmatprep.subr.mxu0 0.0
      %1303 = vmatpush1.msra.mxu0 0.0
      %1304 = vmatprep.subr.mxu0 0.0
      %1305 = vmatpush1.msra.mxu0 0.0
      %1306 = vmatprep.subr.mxu0 0.0
      %1307 = vmatpush1.msra.mxu0 0.0
      %1308 = vmatprep.subr.mxu0 0.0
      %1309 = vmatpush1.msra.mxu0 0.0
      %1310 = vmatprep.subr.mxu0 0.0
      %1311 = vmatpush1.msra.mxu0 0.0
      %1312 = vmatprep.subr.mxu0 0.0
      %1313 = vmatpush1.msra.mxu0 0.0
      %1314 = vmatprep.subr.mxu0 0.0
      %1315 = vmatpush1.msra.mxu0 0.0
      %1316 = vmatprep.subr.mxu0 0.0
      %1317 = vmatpush1.msra.mxu0 0.0
      %1318 = vmatprep.subr.mxu0 0.0
      %1319 = vmatpush1.msra.mxu0 0.0
      %1320 = vmatprep.subr.mxu0 0.0
      %1321 = vmatpush1.msra.mxu0 0.0
      %1322 = vmatprep.subr.mxu0 0.0
      %1323 = vmatpush1.msra.mxu0 0.0
      %1324 = vmatprep.subr.mxu0 0.0
      %1325 = vmatpush1.msra.mxu0 0.0
      %1326 = vmatprep.subr.mxu0 0.0
      %1327 = vmatpush1.msra.mxu0 0.0
      %1328 = vmatprep.subr.mxu0 0.0
      %1329 = vmatpush1.msra.mxu0 0.0
      %1330 = vmatprep.subr.mxu0 0.0
      %1331 = vmatpush1.msra.mxu0 0.0
      %1332 = vmatprep.subr.mxu0 0.0
      %1333 = vmatpush1.msra.mxu0 0.0
      %1334 = vmatprep.subr.mxu0 0.0
      %1335 = vmatpush1.msra.mxu0 0.0
      %1336 = vmatprep.subr.mxu0 0.0
      %1337 = vmatpush1.msra.mxu0 0.0
      %1338 = vmatprep.subr.mxu0 0.0
      %1339 = vmatpush1.msra.mxu0 0.0
      %1340 = vmatprep.subr.mxu0 0.0
      %1341 = vmatpush1.msra.mxu0 0.0
      %1342 = vmatprep.subr.mxu0 0.0
      %1343 = vmatpush1.msra.mxu0 0.0
      %1344 = vmatprep.mubr.f32.mxu0 0.0
      %1345 = vmatmul.mubr.f32.gmra.mrb[0].mxu0 %v1275
      %v1346 = vpop.f32.mrb[0].mxu0
      %v1347 = vadd.f32 0.0, %v1346
      %v1348 = vpop.f32.mrb[0].mxu0
      %1349 = vmatprep.mubr.f32.mxu0 0.0
      %1350 = vmatmul.mubr.f32.gmra.mrb[0].mxu0 %v1278
      %v1351 = vpop.f32.mrb[0].mxu0
      %v1352 = vadd.f32 0.0, %v1351
      %v1353 = vpop.f32.mrb[0].mxu0
      %1354 = vdwg.mxu0
      %1357 = vrot.lane.b32.xlu0 %v943, 8
      %v1358 = vpop.permute.xlu0 %1357
      %1359 = vrot.lane.b32.xlu0 %v948, 8
      %v1360 = vpop.permute.xlu0 %1359
      %1365 = vrot.lane.b32.xlu0 %v1145, 16
      %v1366 = vpop.permute.xlu0 %1365
      %1367 = vrot.lane.b32.xlu0 %v1150, 16
      %v1368 = vpop.permute.xlu0 %1367
      %1373 = vrot.lane.b32.xlu0 %v1347, 24
      %v1374 = vpop.permute.xlu0 %1373
      %1375 = vrot.lane.b32.xlu0 %v1352, 24
      %v1376 = vpop.permute.xlu0 %1375
      %v1379 = vsel %vm553, %v741, %v1358
      %v1380 = vsel %vm553, %v746, %v1360
      %v1381 = vsel %vm639, %v1379, %v1366
      %v1382 = vsel %vm639, %v1380, %v1368
      %vm1383 = vcmask 195584
      %v1384 = vsel %vm1383, %v1381, %v1374
      %v1385 = vsel %vm1383, %v1382, %v1376
      %v1386 = vld [vmem:[%s4] sm:$0xff]
      %v1387 = vld [vmem:[%s4 + $0x8] sm:$0xff]
      %v1388 = vld [vmem:[%s4 + $0x10] sm:$0xff]
      %v1389 = vld [vmem:[%s4 + $0x18] sm:$0xff]
      %v1391 = vsel %vm418, %v1384, 0
      %v1394 = vsel %vm418, %v1385, 0
      %1396 = vmatprep.subr.mxu0 0.0
      %1397 = vmatpush1.msra.mxu0 %v1386
      %1398 = vmatprep.subr.mxu0 0.0
      %1399 = vmatpush1.msra.mxu0 %v1387
      %1400 = vmatprep.subr.mxu0 0.0
      %1401 = vmatpush1.msra.mxu0 %v1388
      %1402 = vmatprep.subr.mxu0 0.0
      %1403 = vmatpush1.msra.mxu0 %v1389
      %1404 = vmatprep.subr.mxu0 0.0
      %1405 = vmatpush1.msra.mxu0 0.0
      %1406 = vmatprep.subr.mxu0 0.0
      %1407 = vmatpush1.msra.mxu0 0.0
      %1408 = vmatprep.subr.mxu0 0.0
      %1409 = vmatpush1.msra.mxu0 0.0
      %1410 = vmatprep.subr.mxu0 0.0
      %1411 = vmatpush1.msra.mxu0 0.0
      %1412 = vmatprep.subr.mxu0 0.0
      %1413 = vmatpush1.msra.mxu0 0.0
      %1414 = vmatprep.subr.mxu0 0.0
      %1415 = vmatpush1.msra.mxu0 0.0
      %1416 = vmatprep.subr.mxu0 0.0
      %1417 = vmatpush1.msra.mxu0 0.0
      %1418 = vmatprep.subr.mxu0 0.0
      %1419 = vmatpush1.msra.mxu0 0.0
      %1420 = vmatprep.subr.mxu0 0.0
      %1421 = vmatpush1.msra.mxu0 0.0
      %1422 = vmatprep.subr.mxu0 0.0
      %1423 = vmatpush1.msra.mxu0 0.0
      %1424 = vmatprep.subr.mxu0 0.0
      %1425 = vmatpush1.msra.mxu0 0.0
      %1426 = vmatprep.subr.mxu0 0.0
      %1427 = vmatpush1.msra.mxu0 0.0
      %1428 = vmatprep.subr.mxu0 0.0
      %1429 = vmatpush1.msra.mxu0 0.0
      %1430 = vmatprep.subr.mxu0 0.0
      %1431 = vmatpush1.msra.mxu0 0.0
      %1432 = vmatprep.subr.mxu0 0.0
      %1433 = vmatpush1.msra.mxu0 0.0
      %1434 = vmatprep.subr.mxu0 0.0
      %1435 = vmatpush1.msra.mxu0 0.0
      %1436 = vmatprep.subr.mxu0 0.0
      %1437 = vmatpush1.msra.mxu0 0.0
      %1438 = vmatprep.subr.mxu0 0.0
      %1439 = vmatpush1.msra.mxu0 0.0
      %1440 = vmatprep.subr.mxu0 0.0
      %1441 = vmatpush1.msra.mxu0 0.0
      %1442 = vmatprep.subr.mxu0 0.0
      %1443 = vmatpush1.msra.mxu0 0.0
      %1444 = vmatprep.subr.mxu0 0.0
      %1445 = vmatpush1.msra.mxu0 0.0
      %1446 = vmatprep.subr.mxu0 0.0
      %1447 = vmatpush1.msra.mxu0 0.0
      %1448 = vmatprep.subr.mxu0 0.0
      %1449 = vmatpush1.msra.mxu0 0.0
      %1450 = vmatprep.subr.mxu0 0.0
      %1451 = vmatpush1.msra.mxu0 0.0
      %1452 = vmatprep.subr.mxu0 0.0
      %1453 = vmatpush1.msra.mxu0 0.0
      %1454 = vmatprep.subr.mxu0 0.0
      %1455 = vmatpush1.msra.mxu0 0.0
      %1456 = vmatprep.subr.mxu0 0.0
      %1457 = vmatpush1.msra.mxu0 0.0
      %1458 = vmatprep.subr.mxu0 0.0
      %1459 = vmatpush1.msra.mxu0 0.0
      %1460 = vmatprep.mubr.f32.mxu0 0.0
      %1461 = vmatmul.mubr.f32.gmra.mrb[0].mxu0 %v1391
      %v1462 = vpop.f32.mrb[0].mxu0
      %v1463 = vadd.f32 0.0, %v1462
      %v1464 = vpop.f32.mrb[0].mxu0
      %1465 = vmatprep.mubr.f32.mxu0 0.0
      %1466 = vmatmul.mubr.f32.gmra.mrb[0].mxu0 %v1394
      %v1467 = vpop.f32.mrb[0].mxu0
      %v1468 = vadd.f32 0.0, %v1467
      %v1469 = vpop.f32.mrb[0].mxu0
      %1470 = vdwg.mxu0
      %v1471 = vadd.f32 %v414, %v1463
      %v1472 = vadd.f32 %v415, %v1468
      %v1473 = vld [vmem:[%s5] sm:$0x1]
      %v1475 = vlaneseq
      %v1476 = vshrl.u32 %v1475, 7
      %v1477 = vsub.s32 0, %v1476
      %v1478 = vrot.slane %v1473, %v1477
      %v1480 = vadd.f32 %v1471, %v1478
      %v1481 = vadd.f32 %v1472, %v1478
      %v1482 = vld [vmem:[%s6] sm:$0x1]
      %v1483 = vld [vmem:[%s7] sm:$0x1]
      %v1484 = vsel %vm418, %v1480, 0.0
      %1485 = vadd.xlane.f32.xlu0 %v1484
      %v1486 = vpop.xlane.xlu0 %1485
      %v1487 = vsel %vm418, %v1481, 0.0
      %1488 = vadd.xlane.f32.xlu0 %v1487
      %v1489 = vpop.xlane.xlu0 %1488
      %v1490 = vmul.f32 %v1486, %v425
      %v1491 = vmul.f32 %v1489, %v425
      %v1492 = vsub.f32 %v1480, %v1490
      %v1493 = vsub.f32 %v1481, %v1491
      %v1494 = vmul.f32 %v1492, %v1492
      %v1495 = vmul.f32 %v1493, %v1493
      %v1496 = vsel %vm418, %v1494, 0.0
      %1497 = vadd.xlane.f32.xlu0 %v1496
      %v1498 = vpop.xlane.xlu0 %1497
      %v1499 = vsel %vm418, %v1495, 0.0
      %1500 = vadd.xlane.f32.xlu0 %v1499
      %v1501 = vpop.xlane.xlu0 %1500
      %v1502 = vmul.f32 %v1498, %v425
      %v1503 = vmul.f32 %v1501, %v425
      %v1504 = vadd.f32 %v1502, 1e-05
      %v1505 = vadd.f32 %v1503, 1e-05
      %v1506 = vrsqrt.pop %v1504
      %v1507 = vrsqrt.pop %v1505
      %v1508 = vmul.f32 %v1492, %v1506
      %v1509 = vmul.f32 %v1493, %v1507
      %v1511 = vlaneseq
      %v1512 = vshrl.u32 %v1511, 7
      %v1513 = vsub.s32 0, %v1512
      %v1514 = vrot.slane %v1482, %v1513
      %v1516 = vmul.f32 %v1508, %v1514
      %v1517 = vmul.f32 %v1509, %v1514
      %v1519 = vlaneseq
      %v1520 = vshrl.u32 %v1519, 7
      %v1521 = vsub.s32 0, %v1520
      %v1522 = vrot.slane %v1483, %v1521
      %v1524 = vadd.f32 %v1516, %v1522
      %v1525 = vadd.f32 %v1517, %v1522
      %v1526 = vld [vmem:[%s8] sm:$0xff]
      %v1527 = vld [vmem:[%s8 + $0x8] sm:$0xff]
      %v1528 = vld [vmem:[%s8 + $0x10] sm:$0xff]
      %v1529 = vld [vmem:[%s8 + $0x18] sm:$0xff]
      %v1530 = vld [vmem:[%s9] sm:$0x1]
      %v1532 = vlaneseq
      %v1533 = vshrl.u32 %v1532, 7
      %v1534 = vsub.s32 0, %v1533
      %v1535 = vrot.slane %v1530, %v1534
      %v1538 = vsel %vm418, %v1524, 0
      %v1541 = vsel %vm418, %v1525, 0
      %1543 = vmatprep.subr.mxu0 0.0
      %1544 = vmatpush1.msra.mxu0 %v1526
      %1545 = vmatprep.subr.mxu0 0.0
      %1546 = vmatpush1.msra.mxu0 %v1527
      %1547 = vmatprep.subr.mxu0 0.0
      %1548 = vmatpush1.msra.mxu0 %v1528
      %1549 = vmatprep.subr.mxu0 0.0
      %1550 = vmatpush1.msra.mxu0 %v1529
      %1551 = vmatprep.subr.mxu0 0.0
      %1552 = vmatpush1.msra.mxu0 0.0
      %1553 = vmatprep.subr.mxu0 0.0
      %1554 = vmatpush1.msra.mxu0 0.0
      %1555 = vmatprep.subr.mxu0 0.0
      %1556 = vmatpush1.msra.mxu0 0.0
      %1557 = vmatprep.subr.mxu0 0.0
      %1558 = vmatpush1.msra.mxu0 0.0
      %1559 = vmatprep.subr.mxu0 0.0
      %1560 = vmatpush1.msra.mxu0 0.0
      %1561 = vmatprep.subr.mxu0 0.0
      %1562 = vmatpush1.msra.mxu0 0.0
      %1563 = vmatprep.subr.mxu0 0.0
      %1564 = vmatpush1.msra.mxu0 0.0
      %1565 = vmatprep.subr.mxu0 0.0
      %1566 = vmatpush1.msra.mxu0 0.0
      %1567 = vmatprep.subr.mxu0 0.0
      %1568 = vmatpush1.msra.mxu0 0.0
      %1569 = vmatprep.subr.mxu0 0.0
      %1570 = vmatpush1.msra.mxu0 0.0
      %1571 = vmatprep.subr.mxu0 0.0
      %1572 = vmatpush1.msra.mxu0 0.0
      %1573 = vmatprep.subr.mxu0 0.0
      %1574 = vmatpush1.msra.mxu0 0.0
      %1575 = vmatprep.subr.mxu0 0.0
      %1576 = vmatpush1.msra.mxu0 0.0
      %1577 = vmatprep.subr.mxu0 0.0
      %1578 = vmatpush1.msra.mxu0 0.0
      %1579 = vmatprep.subr.mxu0 0.0
      %1580 = vmatpush1.msra.mxu0 0.0
      %1581 = vmatprep.subr.mxu0 0.0
      %1582 = vmatpush1.msra.mxu0 0.0
      %1583 = vmatprep.subr.mxu0 0.0
      %1584 = vmatpush1.msra.mxu0 0.0
      %1585 = vmatprep.subr.mxu0 0.0
      %1586 = vmatpush1.msra.mxu0 0.0
      %1587 = vmatprep.subr.mxu0 0.0
      %1588 = vmatpush1.msra.mxu0 0.0
      %1589 = vmatprep.subr.mxu0 0.0
      %1590 = vmatpush1.msra.mxu0 0.0
      %1591 = vmatprep.subr.mxu0 0.0
      %1592 = vmatpush1.msra.mxu0 0.0
      %1593 = vmatprep.subr.mxu0 0.0
      %1594 = vmatpush1.msra.mxu0 0.0
      %1595 = vmatprep.subr.mxu0 0.0
      %1596 = vmatpush1.msra.mxu0 0.0
      %1597 = vmatprep.subr.mxu0 0.0
      %1598 = vmatpush1.msra.mxu0 0.0
      %1599 = vmatprep.subr.mxu0 0.0
      %1600 = vmatpush1.msra.mxu0 0.0
      %1601 = vmatprep.subr.mxu0 0.0
      %1602 = vmatpush1.msra.mxu0 0.0
      %1603 = vmatprep.subr.mxu0 0.0
      %1604 = vmatpush1.msra.mxu0 0.0
      %1605 = vmatprep.subr.mxu0 0.0
      %1606 = vmatpush1.msra.mxu0 0.0
      %1607 = vmatprep.mubr.f32.mxu0 0.0
      %1608 = vmatmul.mubr.f32.gmra.mrb[0].mxu0 %v1538
      %v1609 = vpop.f32.mrb[0].mxu0
      %v1610 = vadd.f32 %v1535, %v1609
      %v1611 = vpop.f32.mrb[0].mxu0
      %1612 = vmatprep.mubr.f32.mxu0 0.0
      %1613 = vmatmul.mubr.f32.gmra.mrb[0].mxu0 %v1541
      %v1614 = vpop.f32.mrb[0].mxu0
      %v1615 = vadd.f32 %v1535, %v1614
      %v1616 = vpop.f32.mrb[0].mxu0
      %1617 = vdwg.mxu0
      %v1618 = vmul.f32 %v1610, %v1610
      %v1619 = vmul.f32 %v1615, %v1615
      %v1620 = vmul.f32 %v1610, %v1618
      %v1621 = vmul.f32 %v1615, %v1619
      %v1622 = vmul.f32 %v1620, 0.044715
      %v1623 = vmul.f32 %v1621, 0.044715
      %v1624 = vadd.f32 %v1610, %v1622
      %v1625 = vadd.f32 %v1615, %v1623
      %v1626 = vmul.f32 %v1624, 0.7978846
      %v1627 = vmul.f32 %v1625, 0.7978846
      %v1628 = vtanh.pop %v1626
      %v1629 = vtanh.pop %v1627
      %v1630 = vadd.f32 %v1628, 1.0
      %v1631 = vadd.f32 %v1629, 1.0
      %v1632 = vmul.f32 %v1630, 0.5
      %v1633 = vmul.f32 %v1631, 0.5
      %v1634 = vmul.f32 %v1610, %v1632
      %v1635 = vmul.f32 %v1615, %v1633
      %v1636 = vld [vmem:[%s10] sm:$0xff]
      %v1637 = vld [vmem:[%s10 + $0x8] sm:$0xff]
      %v1638 = vld [vmem:[%s10 + $0x10] sm:$0xff]
      %v1639 = vld [vmem:[%s10 + $0x18] sm:$0xff]
      %v1640 = vld [vmem:[%s11] sm:$0x1]
      %v1642 = vlaneseq
      %v1643 = vshrl.u32 %v1642, 7
      %v1644 = vsub.s32 0, %v1643
      %v1645 = vrot.slane %v1640, %v1644
      %v1648 = vsel %vm418, %v1634, 0
      %v1651 = vsel %vm418, %v1635, 0
      %1653 = vmatprep.subr.mxu0 0.0
      %1654 = vmatpush1.msra.mxu0 %v1636
      %1655 = vmatprep.subr.mxu0 0.0
      %1656 = vmatpush1.msra.mxu0 %v1637
      %1657 = vmatprep.subr.mxu0 0.0
      %1658 = vmatpush1.msra.mxu0 %v1638
      %1659 = vmatprep.subr.mxu0 0.0
      %1660 = vmatpush1.msra.mxu0 %v1639
      %1661 = vmatprep.subr.mxu0 0.0
      %1662 = vmatpush1.msra.mxu0 0.0
      %1663 = vmatprep.subr.mxu0 0.0
      %1664 = vmatpush1.msra.mxu0 0.0
      %1665 = vmatprep.subr.mxu0 0.0
      %1666 = vmatpush1.msra.mxu0 0.0
      %1667 = vmatprep.subr.mxu0 0.0
      %1668 = vmatpush1.msra.mxu0 0.0
      %1669 = vmatprep.subr.mxu0 0.0
      %1670 = vmatpush1.msra.mxu0 0.0
      %1671 = vmatprep.subr.mxu0 0.0
      %1672 = vmatpush1.msra.mxu0 0.0
      %1673 = vmatprep.subr.mxu0 0.0
      %1674 = vmatpush1.msra.mxu0 0.0
      %1675 = vmatprep.subr.mxu0 0.0
      %1676 = vmatpush1.msra.mxu0 0.0
      %1677 = vmatprep.subr.mxu0 0.0
      %1678 = vmatpush1.msra.mxu0 0.0
      %1679 = vmatprep.subr.mxu0 0.0
      %1680 = vmatpush1.msra.mxu0 0.0
      %1681 = vmatprep.subr.mxu0 0.0
      %1682 = vmatpush1.msra.mxu0 0.0
      %1683 = vmatprep.subr.mxu0 0.0
      %1684 = vmatpush1.msra.mxu0 0.0
      %1685 = vmatprep.subr.mxu0 0.0
      %1686 = vmatpush1.msra.mxu0 0.0
      %1687 = vmatprep.subr.mxu0 0.0
      %1688 = vmatpush1.msra.mxu0 0.0
      %1689 = vmatprep.subr.mxu0 0.0
      %1690 = vmatpush1.msra.mxu0 0.0
      %1691 = vmatprep.subr.mxu0 0.0
      %1692 = vmatpush1.msra.mxu0 0.0
      %1693 = vmatprep.subr.mxu0 0.0
      %1694 = vmatpush1.msra.mxu0 0.0
      %1695 = vmatprep.subr.mxu0 0.0
      %1696 = vmatpush1.msra.mxu0 0.0
      %1697 = vmatprep.subr.mxu0 0.0
      %1698 = vmatpush1.msra.mxu0 0.0
      %1699 = vmatprep.subr.mxu0 0.0
      %1700 = vmatpush1.msra.mxu0 0.0
      %1701 = vmatprep.subr.mxu0 0.0
      %1702 = vmatpush1.msra.mxu0 0.0
      %1703 = vmatprep.subr.mxu0 0.0
      %1704 = vmatpush1.msra.mxu0 0.0
      %1705 = vmatprep.subr.mxu0 0.0
      %1706 = vmatpush1.msra.mxu0 0.0
      %1707 = vmatprep.subr.mxu0 0.0
      %1708 = vmatpush1.msra.mxu0 0.0
      %1709 = vmatprep.subr.mxu0 0.0
      %1710 = vmatpush1.msra.mxu0 0.0
      %1711 = vmatprep.subr.mxu0 0.0
      %1712 = vmatpush1.msra.mxu0 0.0
      %1713 = vmatprep.subr.mxu0 0.0
      %1714 = vmatpush1.msra.mxu0 0.0
      %1715 = vmatprep.subr.mxu0 0.0
      %1716 = vmatpush1.msra.mxu0 0.0
      %1717 = vmatprep.mubr.f32.mxu0 0.0
      %1718 = vmatmul.mubr.f32.gmra.mrb[0].mxu0 %v1648
      %v1719 = vpop.f32.mrb[0].mxu0
      %v1720 = vadd.f32 %v1645, %v1719
      %v1721 = vpop.f32.mrb[0].mxu0
      %1722 = vmatprep.mubr.f32.mxu0 0.0
      %1723 = vmatmul.mubr.f32.gmra.mrb[0].mxu0 %v1651
      %v1724 = vpop.f32.mrb[0].mxu0
      %v1725 = vadd.f32 %v1645, %v1724
      %v1726 = vpop.f32.mrb[0].mxu0
      %1727 = vdwg.mxu0
      %v1728 = vadd.f32 %v1480, %v1720
      %v1729 = vadd.f32 %v1481, %v1725
      %1730 = vst.msk [vmem:[%s413] sm:$0xff] %vm418, %v1728
      %1731 = vst.msk [vmem:[%s413 + $0x8] sm:$0xff] %vm418, %v1729
      %p1732 = scmp.lt.s32.totalorder %s23, 1
      %s1733 = scalar_select %p1732, %s23, 1
      %s1734 = smul.addr %s1733, 2
      %s1735 = smul.addr %s1734, 8
      %s1736 = scalar_lea.vmem %s12, %s1735
      // Predicated region
      $region69: #{bin_model_forward.11} parent=67 // pred_check
        %p1737 = pneg %p298
      $region70: #{bin_model_forward.11} parent=67 // pred_check_branch
        %1739 = sbr.rel (%p1737) target = $region72
      $region71: #{bin_model_forward.11} parent=67 // pred_region
        _
      $region72: #{bin_model_forward.11} parent=67 // pred_fallthru
        _
    $region68: #{bin_model_forward.11} parent=5 // pred_fallthru
      _
    %p1740 = scmp.le.s32.totalorder 2, %s18
    // Predicated region
    $region73: #{bin_model_forward.11} parent=5 // pred_check
      %p1741 = pneg %p1740
    $region74: #{bin_model_forward.11} parent=5 // pred_check_branch
      %1743 = sbr.rel (%p1741) target = $region76
    $region75: #{bin_model_forward.11} parent=5 // pred_region
      %s1744 = ssub.s32 %s18, 2
      // Predicated region
      $region77: #{bin_model_forward.11} parent=75 // pred_check
        %p1745 = pneg %p304
      $region78: #{bin_model_forward.11} parent=75 // pred_check_branch
        %1747 = sbr.rel (%p1745) target = $region80
      $region79: #{bin_model_forward.11} parent=75 // pred_region
        %p1748 = scmp.lt.s32.totalorder %s24, 1
        %s1749 = scalar_select %p1748, %s24, 1
        %s1750 = smul.addr %s1749, 2
        %s1751 = smul.addr %s1750, 8
        %s1752 = scalar_lea.vmem %s12, %s1751
      $region80: #{bin_model_forward.11} parent=75 // pred_fallthru
        _
    $region76: #{bin_model_forward.11} parent=5 // pred_fallthru
      _
  $region6: #{bin_model_forward.11} parent=0 // loop_footer
    %s22 = sadd.s32 1, %s18
  $region7: #{bin_model_forward.11} parent=0 // loop_footer_branch
    %17 = sbr.rel target = $region3
  $region8: #{bin_model_forward.11} parent=0 // loop_exit
    _

// kernel: bin_model_forward.13
$region0: #{bin_model_forward.13}
  #allocation0 [shape = 'u32[]', space=smem, size = 0x4, offset = 0x4, fixed_abs, tag = 'smem constant byte address 0x4 - core index']
  #allocation1 [shape = 'u32[144,128]{1,0:T(1,128)}', space=vmem, size = 0x12000, scoped, tag = 'internal scratch']
  %s0 = inlined_call_operand.vmem [shape: f32[2,16,32], index: 0, kind: input, shape index: {}]
  %s1 = inlined_call_operand.vmem [shape: f32[2,4,32], index: 1, kind: input, shape index: {}]
  %s2 = inlined_call_operand.vmem [shape: f32[1,32], index: 2, kind: input, shape index: {}]
  %s3 = inlined_call_operand.vmem [shape: f32[1,32], index: 3, kind: input, shape index: {}]
  %s4 = inlined_call_operand.vmem [shape: f32[1,32], index: 4, kind: input, shape index: {}]
  %s5 = inlined_call_operand.vmem [shape: f32[1,32], index: 5, kind: input, shape index: {}]
  %s6 = inlined_call_operand.vmem [shape: f32[32,32], index: 6, kind: input, shape index: {}]
  %s7 = inlined_call_operand.vmem [shape: f32[32,64], index: 7, kind: input, shape index: {}]
  %s8 = inlined_call_operand.vmem [shape: f32[32,32], index: 8, kind: input, shape index: {}]
  %s9 = inlined_call_operand.vmem [shape: f32[1,32], index: 9, kind: input, shape index: {}]
  %s10 = inlined_call_operand.vmem [shape: f32[2,16,32], index: 10, kind: output, shape index: {}]
  %s11 = sld [smem:[#allocation0]]
  $region73: #{bin_model_forward.13} parent=0
    _
  %s13 = ssub.s32 1, %s11
  %s14 = scalar_select 0, %s13, %s11
  loop: start=0, step=1, limit=4
  $region2: #{bin_model_forward.13} parent=0 // loop_pre_header
    _
  $region3: #{bin_model_forward.13} parent=0 // loop_header
    %s16 = sphi 0, %s20
    %p17 = scmp.ge.s32.totalorder %s16, 4
    %s26 = sphi 0, %s28
    %s29 = sphi 0, %s26
    %s30 = sphi 0, %s29
    %s46 = sphi 0, %s30
    %s52 = sphi 0, %s54
    %s55 = sphi 0, %s52
    %s56 = sphi 0, %s55
    %s72 = sphi 0, %s56
    %s76 = sphi 0, %s76
    %s78 = sphi 0, %s76
    %s79 = sphi 0, %s78
    %s93 = sphi 0, %s79
    %s97 = sphi 0, %s97
    %s99 = sphi 0, %s97
    %s100 = sphi 0, %s99
    %s114 = sphi 0, %s100
    %s118 = sphi 0, %s118
    %s120 = sphi 0, %s118
    %s121 = sphi 0, %s120
    %s135 = sphi 0, %s121
    %s139 = sphi 0, %s139
    %s141 = sphi 0, %s139
    %s142 = sphi 0, %s141
    %s156 = sphi 0, %s142
    %s160 = sphi 0, %s160
    %s162 = sphi 0, %s160
    %s163 = sphi 0, %s162
    %s177 = sphi 0, %s163
    %s181 = sphi 0, %s181
    %s183 = sphi 0, %s181
    %s184 = sphi 0, %s183
    %s198 = sphi 0, %s184
    %s202 = sphi 0, %s202
    %s204 = sphi 0, %s202
    %s205 = sphi 0, %s204
    %s219 = sphi 0, %s205
    %s223 = sphi 0, %s223
    %s225 = sphi 0, %s223
    %s226 = sphi 0, %s225
    %s240 = sphi 0, %s226
    %s246 = sphi 0, %s248
    %s249 = sphi 0, %s246
    %s250 = sphi 0, %s249
    %s266 = sphi 0, %s250
  $region4: #{bin_model_forward.13} parent=0 // loop_header_branch
    %19 = sbr.rel (%p17) target = $region8
  $region5: #{bin_model_forward.13} parent=0 // loop_body
    %s21 = ssub.s32 %s16, 1
    %s22 = ssub.s32 %s16, 2
    %s23 = sadd.s32 %s16, 1
    %s24 = ssub.s32 %s16, %s23
    %p25 = scmp.eq.s32.totalorder %s24, 0
    %s27 = sadd.s32 %s26, 1
    %s28 = scalar_select %p25, %s26, %s27
    %p31 = pneg %p25
    %p32 = scmp.eq.s32.totalorder %s16, 1
    %p33 = por %p31, %p32
    %p34 = scmp.ne.s32.totalorder %s26, %s29
    %p35 = scmp.eq.s32.totalorder %s16, 0
    %p36 = por %p34, %p35
    %p37 = scmp.ne.s32.totalorder %s26, %s29
    %p38 = scmp.eq.s32.totalorder %s21, 1
    %p39 = por %p37, %p38
    %p40 = scmp.ne.s32.totalorder %s29, %s30
    %p41 = scmp.eq.s32.totalorder %s21, 0
    %p42 = por %p40, %p41
    %p43 = scmp.ne.s32.totalorder %s29, %s30
    %p44 = scmp.eq.s32.totalorder %s22, 1
    %p45 = por %p43, %p44
    %p47 = scmp.ne.s32.totalorder %s30, %s46
    %p48 = scmp.eq.s32.totalorder %s22, 0
    %p49 = por %p47, %p48
    %s50 = ssub.s32 %s16, %s23
    %p51 = scmp.eq.s32.totalorder %s50, 0
    %s53 = sadd.s32 %s52, 1
    %s54 = scalar_select %p51, %s52, %s53
    %p57 = pneg %p51
    %p58 = scmp.eq.s32.totalorder %s16, 1
    %p59 = por %p57, %p58
    %p60 = scmp.ne.s32.totalorder %s52, %s55
    %p61 = scmp.eq.s32.totalorder %s16, 0
    %p62 = por %p60, %p61
    %p63 = scmp.ne.s32.totalorder %s52, %s55
    %p64 = scmp.eq.s32.totalorder %s21, 1
    %p65 = por %p63, %p64
    %p66 = scmp.ne.s32.totalorder %s55, %s56
    %p67 = scmp.eq.s32.totalorder %s21, 0
    %p68 = por %p66, %p67
    %p69 = scmp.ne.s32.totalorder %s55, %s56
    %p70 = scmp.eq.s32.totalorder %s22, 1
    %p71 = por %p69, %p70
    %p73 = scmp.ne.s32.totalorder %s56, %s72
    %p74 = scmp.eq.s32.totalorder %s22, 0
    %p75 = por %p73, %p74
    %s77 = sadd.s32 %s76, 1
    %p80 = scmp.eq.s32.totalorder %s16, 1
    %p81 = scmp.ne.s32.totalorder %s76, %s78
    %p82 = scmp.eq.s32.totalorder %s16, 0
    %p83 = por %p81, %p82
    %p84 = scmp.ne.s32.totalorder %s76, %s78
    %p85 = scmp.eq.s32.totalorder %s21, 1
    %p86 = por %p84, %p85
    %p87 = scmp.ne.s32.totalorder %s78, %s79
    %p88 = scmp.eq.s32.totalorder %s21, 0
    %p89 = por %p87, %p88
    %p90 = scmp.ne.s32.totalorder %s78, %s79
    %p91 = scmp.eq.s32.totalorder %s22, 1
    %p92 = por %p90, %p91
    %p94 = scmp.ne.s32.totalorder %s79, %s93
    %p95 = scmp.eq.s32.totalorder %s22, 0
    %p96 = por %p94, %p95
    %s98 = sadd.s32 %s97, 1
    %p101 = scmp.eq.s32.totalorder %s16, 1
    %p102 = scmp.ne.s32.totalorder %s97, %s99
    %p103 = scmp.eq.s32.totalorder %s16, 0
    %p104 = por %p102, %p103
    %p105 = scmp.ne.s32.totalorder %s97, %s99
    %p106 = scmp.eq.s32.totalorder %s21, 1
    %p107 = por %p105, %p106
    %p108 = scmp.ne.s32.totalorder %s99, %s100
    %p109 = scmp.eq.s32.totalorder %s21, 0
    %p110 = por %p108, %p109
    %p111 = scmp.ne.s32.totalorder %s99, %s100
    %p112 = scmp.eq.s32.totalorder %s22, 1
    %p113 = por %p111, %p112
    %p115 = scmp.ne.s32.totalorder %s100, %s114
    %p116 = scmp.eq.s32.totalorder %s22, 0
    %p117 = por %p115, %p116
    %s119 = sadd.s32 %s118, 1
    %p122 = scmp.eq.s32.totalorder %s16, 1
    %p123 = scmp.ne.s32.totalorder %s118, %s120
    %p124 = scmp.eq.s32.totalorder %s16, 0
    %p125 = por %p123, %p124
    %p126 = scmp.ne.s32.totalorder %s118, %s120
    %p127 = scmp.eq.s32.totalorder %s21, 1
    %p128 = por %p126, %p127
    %p129 = scmp.ne.s32.totalorder %s120, %s121
    %p130 = scmp.eq.s32.totalorder %s21, 0
    %p131 = por %p129, %p130
    %p132 = scmp.ne.s32.totalorder %s120, %s121
    %p133 = scmp.eq.s32.totalorder %s22, 1
    %p134 = por %p132, %p133
    %p136 = scmp.ne.s32.totalorder %s121, %s135
    %p137 = scmp.eq.s32.totalorder %s22, 0
    %p138 = por %p136, %p137
    %s140 = sadd.s32 %s139, 1
    %p143 = scmp.eq.s32.totalorder %s16, 1
    %p144 = scmp.ne.s32.totalorder %s139, %s141
    %p145 = scmp.eq.s32.totalorder %s16, 0
    %p146 = por %p144, %p145
    %p147 = scmp.ne.s32.totalorder %s139, %s141
    %p148 = scmp.eq.s32.totalorder %s21, 1
    %p149 = por %p147, %p148
    %p150 = scmp.ne.s32.totalorder %s141, %s142
    %p151 = scmp.eq.s32.totalorder %s21, 0
    %p152 = por %p150, %p151
    %p153 = scmp.ne.s32.totalorder %s141, %s142
    %p154 = scmp.eq.s32.totalorder %s22, 1
    %p155 = por %p153, %p154
    %p157 = scmp.ne.s32.totalorder %s142, %s156
    %p158 = scmp.eq.s32.totalorder %s22, 0
    %p159 = por %p157, %p158
    %s161 = sadd.s32 %s160, 1
    %p164 = scmp.eq.s32.totalorder %s16, 1
    %p165 = scmp.ne.s32.totalorder %s160, %s162
    %p166 = scmp.eq.s32.totalorder %s16, 0
    %p167 = por %p165, %p166
    %p168 = scmp.ne.s32.totalorder %s160, %s162
    %p169 = scmp.eq.s32.totalorder %s21, 1
    %p170 = por %p168, %p169
    %p171 = scmp.ne.s32.totalorder %s162, %s163
    %p172 = scmp.eq.s32.totalorder %s21, 0
    %p173 = por %p171, %p172
    %p174 = scmp.ne.s32.totalorder %s162, %s163
    %p175 = scmp.eq.s32.totalorder %s22, 1
    %p176 = por %p174, %p175
    %p178 = scmp.ne.s32.totalorder %s163, %s177
    %p179 = scmp.eq.s32.totalorder %s22, 0
    %p180 = por %p178, %p179
    %s182 = sadd.s32 %s181, 1
    %p185 = scmp.eq.s32.totalorder %s16, 1
    %p186 = scmp.ne.s32.totalorder %s181, %s183
    %p187 = scmp.eq.s32.totalorder %s16, 0
    %p188 = por %p186, %p187
    %p189 = scmp.ne.s32.totalorder %s181, %s183
    %p190 = scmp.eq.s32.totalorder %s21, 1
    %p191 = por %p189, %p190
    %p192 = scmp.ne.s32.totalorder %s183, %s184
    %p193 = scmp.eq.s32.totalorder %s21, 0
    %p194 = por %p192, %p193
    %p195 = scmp.ne.s32.totalorder %s183, %s184
    %p196 = scmp.eq.s32.totalorder %s22, 1
    %p197 = por %p195, %p196
    %p199 = scmp.ne.s32.totalorder %s184, %s198
    %p200 = scmp.eq.s32.totalorder %s22, 0
    %p201 = por %p199, %p200
    %s203 = sadd.s32 %s202, 1
    %p206 = scmp.eq.s32.totalorder %s16, 1
    %p207 = scmp.ne.s32.totalorder %s202, %s204
    %p208 = scmp.eq.s32.totalorder %s16, 0
    %p209 = por %p207, %p208
    %p210 = scmp.ne.s32.totalorder %s202, %s204
    %p211 = scmp.eq.s32.totalorder %s21, 1
    %p212 = por %p210, %p211
    %p213 = scmp.ne.s32.totalorder %s204, %s205
    %p214 = scmp.eq.s32.totalorder %s21, 0
    %p215 = por %p213, %p214
    %p216 = scmp.ne.s32.totalorder %s204, %s205
    %p217 = scmp.eq.s32.totalorder %s22, 1
    %p218 = por %p216, %p217
    %p220 = scmp.ne.s32.totalorder %s205, %s219
    %p221 = scmp.eq.s32.totalorder %s22, 0
    %p222 = por %p220, %p221
    %s224 = sadd.s32 %s223, 1
    %p227 = scmp.eq.s32.totalorder %s16, 1
    %p228 = scmp.ne.s32.totalorder %s223, %s225
    %p229 = scmp.eq.s32.totalorder %s16, 0
    %p230 = por %p228, %p229
    %p231 = scmp.ne.s32.totalorder %s223, %s225
    %p232 = scmp.eq.s32.totalorder %s21, 1
    %p233 = por %p231, %p232
    %p234 = scmp.ne.s32.totalorder %s225, %s226
    %p235 = scmp.eq.s32.totalorder %s21, 0
    %p236 = por %p234, %p235
    %p237 = scmp.ne.s32.totalorder %s225, %s226
    %p238 = scmp.eq.s32.totalorder %s22, 1
    %p239 = por %p237, %p238
    %p241 = scmp.ne.s32.totalorder %s226, %s240
    %p242 = scmp.eq.s32.totalorder %s22, 0
    %p243 = por %p241, %p242
    %s244 = ssub.s32 %s16, %s23
    %p245 = scmp.eq.s32.totalorder %s244, 0
    %s247 = sadd.s32 %s246, 1
    %s248 = scalar_select %p245, %s246, %s247
    %p251 = pneg %p245
    %p252 = scmp.eq.s32.totalorder %s16, 1
    %p253 = por %p251, %p252
    %p254 = scmp.ne.s32.totalorder %s246, %s249
    %p255 = scmp.eq.s32.totalorder %s16, 0
    %p256 = por %p254, %p255
    %p257 = scmp.ne.s32.totalorder %s246, %s249
    %p258 = scmp.eq.s32.totalorder %s21, 1
    %p259 = por %p257, %p258
    %p260 = scmp.ne.s32.totalorder %s249, %s250
    %p261 = scmp.eq.s32.totalorder %s21, 0
    %p262 = por %p260, %p261
    %p263 = scmp.ne.s32.totalorder %s249, %s250
    %p264 = scmp.eq.s32.totalorder %s22, 1
    %p265 = por %p263, %p264
    %p267 = scmp.ne.s32.totalorder %s250, %s266
    %p268 = scmp.eq.s32.totalorder %s22, 0
    %p269 = por %p267, %p268
    %p270 = scmp.le.s32.totalorder 1, %s16
    %p271 = scmp.lt.s32.totalorder %s16, 3
    %p272 = pnand %p270, %p271
    %p273 = pneg %p272
    // Predicated region
    $region9: #{bin_model_forward.13} parent=5 // pred_check
      _
    $region10: #{bin_model_forward.13} parent=5 // pred_check_branch
      %275 = sbr.rel (%p272) target = $region12
    $region11: #{bin_model_forward.13} parent=5 // pred_region
      %s276 = ssub.s32 %s16, 1
      // Predicated region
      $region13: #{bin_model_forward.13} parent=11 // pred_check
        %p277 = pneg %p89
      $region14: #{bin_model_forward.13} parent=11 // pred_check_branch
        %279 = sbr.rel (%p277) target = $region16
      $region15: #{bin_model_forward.13} parent=11 // pred_region
        _
      $region16: #{bin_model_forward.13} parent=11 // pred_fallthru
        _
      // Predicated region
      $region17: #{bin_model_forward.13} parent=11 // pred_check
        %p280 = pneg %p110
      $region18: #{bin_model_forward.13} parent=11 // pred_check_branch
        %282 = sbr.rel (%p280) target = $region20
      $region19: #{bin_model_forward.13} parent=11 // pred_region
        _
      $region20: #{bin_model_forward.13} parent=11 // pred_fallthru
        _
      // Predicated region
      $region21: #{bin_model_forward.13} parent=11 // pred_check
        %p283 = pneg %p131
      $region22: #{bin_model_forward.13} parent=11 // pred_check_branch
        %285 = sbr.rel (%p283) target = $region24
      $region23: #{bin_model_forward.13} parent=11 // pred_region
        _
      $region24: #{bin_model_forward.13} parent=11 // pred_fallthru
        _
      // Predicated region
      $region25: #{bin_model_forward.13} parent=11 // pred_check
        %p286 = pneg %p152
      $region26: #{bin_model_forward.13} parent=11 // pred_check_branch
        %288 = sbr.rel (%p286) target = $region28
      $region27: #{bin_model_forward.13} parent=11 // pred_region
        _
      $region28: #{bin_model_forward.13} parent=11 // pred_fallthru
        _
      // Predicated region
      $region29: #{bin_model_forward.13} parent=11 // pred_check
        %p289 = pneg %p173
      $region30: #{bin_model_forward.13} parent=11 // pred_check_branch
        %291 = sbr.rel (%p289) target = $region32
      $region31: #{bin_model_forward.13} parent=11 // pred_region
        _
      $region32: #{bin_model_forward.13} parent=11 // pred_fallthru
        _
      // Predicated region
      $region33: #{bin_model_forward.13} parent=11 // pred_check
        %p292 = pneg %p194
      $region34: #{bin_model_forward.13} parent=11 // pred_check_branch
        %294 = sbr.rel (%p292) target = $region36
      $region35: #{bin_model_forward.13} parent=11 // pred_region
        _
      $region36: #{bin_model_forward.13} parent=11 // pred_fallthru
        _
      // Predicated region
      $region37: #{bin_model_forward.13} parent=11 // pred_check
        %p295 = pneg %p215
      $region38: #{bin_model_forward.13} parent=11 // pred_check_branch
        %297 = sbr.rel (%p295) target = $region40
      $region39: #{bin_model_forward.13} parent=11 // pred_region
        _
      $region40: #{bin_model_forward.13} parent=11 // pred_fallthru
        _
      // Predicated region
      $region41: #{bin_model_forward.13} parent=11 // pred_check
        %p298 = pneg %p236
      $region42: #{bin_model_forward.13} parent=11 // pred_check_branch
        %300 = sbr.rel (%p298) target = $region44
      $region43: #{bin_model_forward.13} parent=11 // pred_region
        _
      $region44: #{bin_model_forward.13} parent=11 // pred_fallthru
        _
    $region12: #{bin_model_forward.13} parent=5 // pred_fallthru
      _
    %p301 = scmp.lt.s32.totalorder %s16, 2
    // Predicated region
    $region45: #{bin_model_forward.13} parent=5 // pred_check
      %p302 = pneg %p301
    $region46: #{bin_model_forward.13} parent=5 // pred_check_branch
      %304 = sbr.rel (%p302) target = $region48
    $region47: #{bin_model_forward.13} parent=5 // pred_region
      // Predicated region
      $region49: #{bin_model_forward.13} parent=47 // pred_check
        %p305 = pneg %p36
      $region50: #{bin_model_forward.13} parent=47 // pred_check_branch
        %307 = sbr.rel (%p305) target = $region52
      $region51: #{bin_model_forward.13} parent=47 // pred_region
        %p308 = scmp.lt.s32.totalorder %s16, 1
        %s309 = scalar_select %p308, %s16, 1
        %s310 = smul.addr %s309, 2
        %s311 = smul.addr %s310, 8
        %s312 = scalar_lea.vmem %s0, %s311
      $region52: #{bin_model_forward.13} parent=47 // pred_fallthru
        _
      // Predicated region
      $region53: #{bin_model_forward.13} parent=47 // pred_check
        %p313 = pneg %p62
      $region54: #{bin_model_forward.13} parent=47 // pred_check_branch
        %315 = sbr.rel (%p313) target = $region56
      $region55: #{bin_model_forward.13} parent=47 // pred_region
        %p316 = scmp.lt.s32.totalorder %s16, 1
        %s317 = scalar_select %p316, %s16, 1
        %s318 = smul.addr %s317, 4
        %s319 = scalar_lea.vmem %s1, %s318
      $region56: #{bin_model_forward.13} parent=47 // pred_fallthru
        _
    $region48: #{bin_model_forward.13} parent=5 // pred_fallthru
      _
    %p320 = scmp.le.s32.totalorder 1, %s16
    %p321 = scmp.lt.s32.totalorder %s16, 3
    %p322 = pnand %p320, %p321
    %p323 = pneg %p322
    // Predicated region
    $region57: #{bin_model_forward.13} parent=5 // pred_check
      _
    $region58: #{bin_model_forward.13} parent=5 // pred_check_branch
      %325 = sbr.rel (%p322) target = $region60
    $region59: #{bin_model_forward.13} parent=5 // pred_region
      %s326 = ssub.s32 %s16, 1
      %p327 = scmp.lt.s32.totalorder %s21, 1
      %s328 = scalar_select %p327, %s21, 1
      %s329 = smul.addr %s328, 2
      %s330 = smul.addr %s329, 8
      %s331 = scalar_lea.vmem %s0, %s330
      %p332 = pneg %p42
      %p333 = pneg %p39
      %p334 = scmp.lt.s32.totalorder %s21, 1
      %s335 = scalar_select %p334, %s21, 1
      %s336 = smul.addr %s335, 4
      %s337 = scalar_lea.vmem %s1, %s336
      %p338 = pneg %p68
      %p339 = pneg %p65
      %p340 = pneg %p89
      %p341 = pneg %p86
      %p342 = pneg %p110
      %p343 = pneg %p107
      %p344 = pneg %p131
      %p345 = pneg %p128
      %p346 = pneg %p152
      %p347 = pneg %p149
      %p348 = pneg %p173
      %p349 = pneg %p170
      %p350 = pneg %p194
      %p351 = pneg %p191
      %p352 = pneg %p215
      %p353 = pneg %p212
      %p354 = pneg %p236
      %p355 = pneg %p233
      %p356 = pneg %p262
      %p357 = pneg %p259
      %p358 = scmp.lt.s32.totalorder %s21, 1
      %s359 = scalar_select %p358, %s21, 1
      %s360 = smul.addr %s359, 2
      %s361 = smul.addr %s360, 8
      %s362 = scalar_lea.vmem %s10, %s361
      %p363 = scmp.lt.s32.totalorder %s21, 1
      %s364 = scalar_select %p363, %s21, 1
      %s365 = smul.addr %s364, 2
      %s366 = smul.addr %s365, 8
      %s367 = scalar_lea.vmem %s0, %s366
      %p368 = scmp.lt.s32.totalorder %s21, 1
      %s369 = scalar_select %p368, %s21, 1
      %s370 = smul.addr %s369, 4
      %s371 = scalar_lea.vmem %s1, %s370
      %p372 = scmp.lt.s32.totalorder %s21, 1
      %s373 = scalar_select %p372, %s21, 1
      %s374 = smul.addr %s373, 2
      %s375 = smul.addr %s374, 8
      %s376 = scalar_lea.vmem %s10, %s375
      %v377 = vld [vmem:[%s367] sm:$0xff]
      %v378 = vld [vmem:[%s367 + $0x8] sm:$0xff]
      %v379 = vld [vmem:[%s371] sm:$0xf]
      %v380 = vld [vmem:[%s2] sm:$0x1]
      %v381 = vld [vmem:[%s3] sm:$0x1]
      %vm382 = vcmask 261120
      %v383 = vsel %vm382, %v377, 0.0
      %384 = vadd.xlane.f32.xlu0 %v383
      %v385 = vpop.xlane.xlu0 %384
      %v386 = vsel %vm382, %v378, 0.0
      %387 = vadd.xlane.f32.xlu0 %v386
      %v388 = vpop.xlane.xlu0 %387
      %v389 = vrcp.pop 32.0
      %v390 = vmul.f32 %v385, %v389
      %v391 = vmul.f32 %v388, %v389
      %v392 = vsub.f32 %v377, %v390
      %v393 = vsub.f32 %v378, %v391
      %v394 = vmul.f32 %v392, %v392
      %v395 = vmul.f32 %v393, %v393
      %v396 = vsel %vm382, %v394, 0.0
      %397 = vadd.xlane.f32.xlu0 %v396
      %v398 = vpop.xlane.xlu0 %397
      %v399 = vsel %vm382, %v395, 0.0
      %400 = vadd.xlane.f32.xlu0 %v399
      %v401 = vpop.xlane.xlu0 %400
      %v402 = vmul.f32 %v398, %v389
      %v403 = vmul.f32 %v401, %v389
      %v404 = vadd.f32 %v402, 1e-05
      %v405 = vadd.f32 %v403, 1e-05
      %v406 = vrsqrt.pop %v404
      %v407 = vrsqrt.pop %v405
      %v408 = vmul.f32 %v392, %v406
      %v409 = vmul.f32 %v393, %v407
      %v411 = vlaneseq
      %v412 = vshrl.u32 %v411, 7
      %v413 = vsub.s32 0, %v412
      %v414 = vrot.slane %v380, %v413
      %v416 = vmul.f32 %v408, %v414
      %v417 = vmul.f32 %v409, %v414
      %v419 = vlaneseq
      %v420 = vshrl.u32 %v419, 7
      %v421 = vsub.s32 0, %v420
      %v422 = vrot.slane %v381, %v421
      %v424 = vadd.f32 %v416, %v422
      %v425 = vadd.f32 %v417, %v422
      %v426 = vld [vmem:[%s4] sm:$0x1]
      %v427 = vld [vmem:[%s5] sm:$0x1]
      %vm428 = vcmask 257024
      %v429 = vsel %vm428, %v379, 0.0
      %430 = vadd.xlane.f32.xlu0 %v429
      %v431 = vpop.xlane.xlu0 %430
      %v432 = vmul.f32 %v431, %v389
      %v433 = vsub.f32 %v379, %v432
      %v434 = vmul.f32 %v433, %v433
      %v435 = vsel %vm428, %v434, 0.0
      %436 = vadd.xlane.f32.xlu0 %v435
      %v437 = vpop.xlane.xlu0 %436
      %v438 = vmul.f32 %v437, %v389
      %v439 = vadd.f32 %v438, 1e-05
      %v440 = vrsqrt.pop %v439
      %v441 = vmul.f32 %v433, %v440
      %v443 = vlaneseq
      %v444 = vshrl.u32 %v443, 7
      %v445 = vsub.s32 0, %v444
      %v446 = vrot.slane %v426, %v445
      %v448 = vmul.f32 %v441, %v446
      %v450 = vlaneseq
      %v451 = vshrl.u32 %v450, 7
      %v452 = vsub.s32 0, %v451
      %v453 = vrot.slane %v427, %v452
      %v455 = vadd.f32 %v448, %v453
      %v456 = vld [vmem:[%s6] sm:$0xff]
      %v457 = vld [vmem:[%s6 + $0x8] sm:$0xff]
      %v458 = vld [vmem:[%s6 + $0x10] sm:$0xff]
      %v459 = vld [vmem:[%s6 + $0x18] sm:$0xff]
      %v461 = vsel %vm382, %v424, 0
      %v464 = vsel %vm382, %v425, 0
      %466 = vmatprep.subr.mxu0 0.0
      %467 = vmatpush1.msra.mxu0 %v456
      %468 = vmatprep.subr.mxu0 0.0
      %469 = vmatpush1.msra.mxu0 %v457
      %470 = vmatprep.subr.mxu0 0.0
      %471 = vmatpush1.msra.mxu0 %v458
      %472 = vmatprep.subr.mxu0 0.0
      %473 = vmatpush1.msra.mxu0 %v459
      %474 = vmatprep.subr.mxu0 0.0
      %475 = vmatpush1.msra.mxu0 0.0
      %476 = vmatprep.subr.mxu0 0.0
      %477 = vmatpush1.msra.mxu0 0.0
      %478 = vmatprep.subr.mxu0 0.0
      %479 = vmatpush1.msra.mxu0 0.0
      %480 = vmatprep.subr.mxu0 0.0
      %481 = vmatpush1.msra.mxu0 0.0
      %482 = vmatprep.subr.mxu0 0.0
      %483 = vmatpush1.msra.mxu0 0.0
      %484 = vmatprep.subr.mxu0 0.0
      %485 = vmatpush1.msra.mxu0 0.0
      %486 = vmatprep.subr.mxu0 0.0
      %487 = vmatpush1.msra.mxu0 0.0
      %488 = vmatprep.subr.mxu0 0.0
      %489 = vmatpush1.msra.mxu0 0.0
      %490 = vmatprep.subr.mxu0 0.0
      %491 = vmatpush1.msra.mxu0 0.0
      %492 = vmatprep.subr.mxu0 0.0
      %493 = vmatpush1.msra.mxu0 0.0
      %494 = vmatprep.subr.mxu0 0.0
      %495 = vmatpush1.msra.mxu0 0.0
      %496 = vmatprep.subr.mxu0 0.0
      %497 = vmatpush1.msra.mxu0 0.0
      %498 = vmatprep.subr.mxu0 0.0
      %499 = vmatpush1.msra.mxu0 0.0
      %500 = vmatprep.subr.mxu0 0.0
      %501 = vmatpush1.msra.mxu0 0.0
      %502 = vmatprep.subr.mxu0 0.0
      %503 = vmatpush1.msra.mxu0 0.0
      %504 = vmatprep.subr.mxu0 0.0
      %505 = vmatpush1.msra.mxu0 0.0
      %506 = vmatprep.subr.mxu0 0.0
      %507 = vmatpush1.msra.mxu0 0.0
      %508 = vmatprep.subr.mxu0 0.0
      %509 = vmatpush1.msra.mxu0 0.0
      %510 = vmatprep.subr.mxu0 0.0
      %511 = vmatpush1.msra.mxu0 0.0
      %512 = vmatprep.subr.mxu0 0.0
      %513 = vmatpush1.msra.mxu0 0.0
      %514 = vmatprep.subr.mxu0 0.0
      %515 = vmatpush1.msra.mxu0 0.0
      %516 = vmatprep.subr.mxu0 0.0
      %517 = vmatpush1.msra.mxu0 0.0
      %518 = vmatprep.subr.mxu0 0.0
      %519 = vmatpush1.msra.mxu0 0.0
      %520 = vmatprep.subr.mxu0 0.0
      %521 = vmatpush1.msra.mxu0 0.0
      %522 = vmatprep.subr.mxu0 0.0
      %523 = vmatpush1.msra.mxu0 0.0
      %524 = vmatprep.subr.mxu0 0.0
      %525 = vmatpush1.msra.mxu0 0.0
      %526 = vmatprep.subr.mxu0 0.0
      %527 = vmatpush1.msra.mxu0 0.0
      %528 = vmatprep.subr.mxu0 0.0
      %529 = vmatpush1.msra.mxu0 0.0
      %530 = vmatprep.mubr.f32.mxu0 0.0
      %531 = vmatmul.mubr.f32.gmra.mrb[0].mxu0 %v461
      %v532 = vpop.f32.mrb[0].mxu0
      %v533 = vadd.f32 0.0, %v532
      %v534 = vpop.f32.mrb[0].mxu0
      %535 = vmatprep.mubr.f32.mxu0 0.0
      %536 = vmatmul.mubr.f32.gmra.mrb[0].mxu0 %v464
      %v537 = vpop.f32.mrb[0].mxu0
      %v538 = vadd.f32 0.0, %v537
      %v539 = vpop.f32.mrb[0].mxu0
      %540 = vdwg.mxu0
      %v541 = vld [vmem:[%s7] sm:$0xff]
      %v542 = vld [vmem:[%s7 + $0x8] sm:$0xff]
      %v543 = vld [vmem:[%s7 + $0x10] sm:$0xff]
      %v544 = vld [vmem:[%s7 + $0x18] sm:$0xff]
      %v546 = vsel %vm382, %v455, 0
      %548 = vmatprep.subr.mxu0 0.0
      %549 = vmatpush1.msra.mxu0 %v541
      %550 = vmatprep.subr.mxu0 0.0
      %551 = vmatpush1.msra.mxu0 %v542
      %552 = vmatprep.subr.mxu0 0.0
      %553 = vmatpush1.msra.mxu0 %v543
      %554 = vmatprep.subr.mxu0 0.0
      %555 = vmatpush1.msra.mxu0 %v544
      %556 = vmatprep.subr.mxu0 0.0
      %557 = vmatpush1.msra.mxu0 0.0
      %558 = vmatprep.subr.mxu0 0.0
      %559 = vmatpush1.msra.mxu0 0.0
      %560 = vmatprep.subr.mxu0 0.0
      %561 = vmatpush1.msra.mxu0 0.0
      %562 = vmatprep.subr.mxu0 0.0
      %563 = vmatpush1.msra.mxu0 0.0
      %564 = vmatprep.subr.mxu0 0.0
      %565 = vmatpush1.msra.mxu0 0.0
      %566 = vmatprep.subr.mxu0 0.0
      %567 = vmatpush1.msra.mxu0 0.0
      %568 = vmatprep.subr.mxu0 0.0
      %569 = vmatpush1.msra.mxu0 0.0
      %570 = vmatprep.subr.mxu0 0.0
      %571 = vmatpush1.msra.mxu0 0.0
      %572 = vmatprep.subr.mxu0 0.0
      %573 = vmatpush1.msra.mxu0 0.0
      %574 = vmatprep.subr.mxu0 0.0
      %575 = vmatpush1.msra.mxu0 0.0
      %576 = vmatprep.subr.mxu0 0.0
      %577 = vmatpush1.msra.mxu0 0.0
      %578 = vmatprep.subr.mxu0 0.0
      %579 = vmatpush1.msra.mxu0 0.0
      %580 = vmatprep.subr.mxu0 0.0
      %581 = vmatpush1.msra.mxu0 0.0
      %582 = vmatprep.subr.mxu0 0.0
      %583 = vmatpush1.msra.mxu0 0.0
      %584 = vmatprep.subr.mxu0 0.0
      %585 = vmatpush1.msra.mxu0 0.0
      %586 = vmatprep.subr.mxu0 0.0
      %587 = vmatpush1.msra.mxu0 0.0
      %588 = vmatprep.subr.mxu0 0.0
      %589 = vmatpush1.msra.mxu0 0.0
      %590 = vmatprep.subr.mxu0 0.0
      %591 = vmatpush1.msra.mxu0 0.0
      %592 = vmatprep.subr.mxu0 0.0
      %593 = vmatpush1.msra.mxu0 0.0
      %594 = vmatprep.subr.mxu0 0.0
      %595 = vmatpush1.msra.mxu0 0.0
      %596 = vmatprep.subr.mxu0 0.0
      %597 = vmatpush1.msra.mxu0 0.0
      %598 = vmatprep.subr.mxu0 0.0
      %599 = vmatpush1.msra.mxu0 0.0
      %600 = vmatprep.subr.mxu0 0.0
      %601 = vmatpush1.msra.mxu0 0.0
      %602 = vmatprep.subr.mxu0 0.0
      %603 = vmatpush1.msra.mxu0 0.0
      %604 = vmatprep.subr.mxu0 0.0
      %605 = vmatpush1.msra.mxu0 0.0
      %606 = vmatprep.subr.mxu0 0.0
      %607 = vmatpush1.msra.mxu0 0.0
      %608 = vmatprep.subr.mxu0 0.0
      %609 = vmatpush1.msra.mxu0 0.0
      %610 = vmatprep.subr.mxu0 0.0
      %611 = vmatpush1.msra.mxu0 0.0
      %612 = vmatprep.mubr.f32.mxu0 0.0
      %613 = vmatmul.mubr.f32.gmra.mrb[0].mxu0 %v546
      %v614 = vpop.f32.mrb[0].mxu0
      %v615 = vadd.f32 0.0, %v614
      %v616 = vpop.f32.mrb[0].mxu0
      %617 = vdwg.mxu0
      %vm618 = vcmask 64512
      %v620 = vsel %vm618, %v533, 0
      %v623 = vsel %vm618, %v538, 0
      %v626 = vsel %vm618, %v615, 0
      %628 = vmatprep.subr.mxu0 0.0
      %629 = vmatpush1.xpose.msra.mxu0 %v626
      %630 = vmatprep.subr.mxu0 0.0
      %631 = vmatpush1.xpose.msra.mxu0 0.0
      %632 = vmatprep.subr.mxu0 0.0
      %633 = vmatpush1.xpose.msra.mxu0 0.0
      %634 = vmatprep.subr.mxu0 0.0
      %635 = vmatpush1.xpose.msra.mxu0 0.0
      %636 = vmatprep.subr.mxu0 0.0
      %637 = vmatpush1.xpose.msra.mxu0 0.0
      %638 = vmatprep.subr.mxu0 0.0
      %639 = vmatpush1.xpose.msra.mxu0 0.0
      %640 = vmatprep.subr.mxu0 0.0
      %641 = vmatpush1.xpose.msra.mxu0 0.0
      %642 = vmatprep.subr.mxu0 0.0
      %643 = vmatpush1.xpose.msra.mxu0 0.0
      %644 = vmatprep.subr.mxu0 0.0
      %645 = vmatpush1.xpose.msra.mxu0 0.0
      %646 = vmatprep.subr.mxu0 0.0
      %647 = vmatpush1.xpose.msra.mxu0 0.0
      %648 = vmatprep.subr.mxu0 0.0
      %649 = vmatpush1.xpose.msra.mxu0 0.0
      %650 = vmatprep.subr.mxu0 0.0
      %651 = vmatpush1.xpose.msra.mxu0 0.0
      %652 = vmatprep.subr.mxu0 0.0
      %653 = vmatpush1.xpose.msra.mxu0 0.0
      %654 = vmatprep.subr.mxu0 0.0
      %655 = vmatpush1.xpose.msra.mxu0 0.0
      %656 = vmatprep.subr.mxu0 0.0
      %657 = vmatpush1.xpose.msra.mxu0 0.0
      %658 = vmatprep.subr.mxu0 0.0
      %659 = vmatpush1.xpose.msra.mxu0 0.0
      %660 = vmatprep.subr.mxu0 0.0
      %661 = vmatpush1.xpose.msra.mxu0 0.0
      %662 = vmatprep.subr.mxu0 0.0
      %663 = vmatpush1.xpose.msra.mxu0 0.0
      %664 = vmatprep.subr.mxu0 0.0
      %665 = vmatpush1.xpose.msra.mxu0 0.0
      %666 = vmatprep.subr.mxu0 0.0
      %667 = vmatpush1.xpose.msra.mxu0 0.0
      %668 = vmatprep.subr.mxu0 0.0
      %669 = vmatpush1.xpose.msra.mxu0 0.0
      %670 = vmatprep.subr.mxu0 0.0
      %671 = vmatpush1.xpose.msra.mxu0 0.0
      %672 = vmatprep.subr.mxu0 0.0
      %673 = vmatpush1.xpose.msra.mxu0 0.0
      %674 = vmatprep.subr.mxu0 0.0
      %675 = vmatpush1.xpose.msra.mxu0 0.0
      %676 = vmatprep.subr.mxu0 0.0
      %677 = vmatpush1.xpose.msra.mxu0 0.0
      %678 = vmatprep.subr.mxu0 0.0
      %679 = vmatpush1.xpose.msra.mxu0 0.0
      %680 = vmatprep.subr.mxu0 0.0
      %681 = vmatpush1.xpose.msra.mxu0 0.0
      %682 = vmatprep.subr.mxu0 0.0
      %683 = vmatpush1.xpose.msra.mxu0 0.0
      %684 = vmatprep.subr.mxu0 0.0
      %685 = vmatpush1.xpose.msra.mxu0 0.0
      %686 = vmatprep.subr.mxu0 0.0
      %687 = vmatpush1.xpose.msra.mxu0 0.0
      %688 = vmatprep.subr.mxu0 0.0
      %689 = vmatpush1.xpose.msra.mxu0 0.0
      %690 = vmatprep.subr.mxu0 0.0
      %691 = vmatpush1.xpose.msra.mxu0 0.0
      %692 = vmatprep.mubr.f32.mxu0 0.0
      %693 = vmatmul.mubr.f32.gmra.mrb[0].mxu0 %v620
      %v694 = vpop.f32.mrb[0].mxu0
      %v695 = vadd.f32 0.0, %v694
      %v696 = vpop.f32.mrb[0].mxu0
      %697 = vmatprep.mubr.f32.mxu0 0.0
      %698 = vmatmul.mubr.f32.gmra.mrb[0].mxu0 %v623
      %v699 = vpop.f32.mrb[0].mxu0
      %v700 = vadd.f32 0.0, %v699
      %v701 = vpop.f32.mrb[0].mxu0
      %702 = vdwg.mxu0
      %v703 = vmul.f32 %v695, 0.35355338
      %v704 = vmul.f32 %v700, 0.35355338
      %vm705 = vcmask 31744
      %v706 = vsel %vm705, %v703, -inf
      %707 = vmax.xlane.f32.xlu0 %v706
      %v708 = vpop.xlane.xlu0 %707
      %v709 = vsel %vm705, %v704, -inf
      %710 = vmax.xlane.f32.xlu0 %v709
      %v711 = vpop.xlane.xlu0 %710
      %v712 = vsub.f32 %v703, %v708
      %v713 = vsub.f32 %v704, %v711
      %v714 = vmul.f32 %v712, 1.442695
      %v715 = vpow.pop %v714
      %v716 = vmul.f32 %v713, 1.442695
      %v717 = vpow.pop %v716
      %v718 = vsel %vm705, %v715, 0.0
      %719 = vadd.xlane.f32.xlu0 %v718
      %v720 = vpop.xlane.xlu0 %719
      %v721 = vsel %vm705, %v717, 0.0
      %722 = vadd.xlane.f32.xlu0 %v721
      %v723 = vpop.xlane.xlu0 %722
      %v724 = vrcp.pop %v720
      %v725 = vmul.f32 %v715, %v724
      %v726 = vrcp.pop %v723
      %v727 = vmul.f32 %v717, %v726
      %728 = vrot.lane.b32.xlu0 %v615, 96
      %v729 = vpop.permute.xlu0 %728
      %v731 = vsel %vm705, %v725, 0
      %v734 = vsel %vm705, %v727, 0
      %vm736 = vcmask 1043456
      %v737 = vsel %vm736, %v729, 0
      %739 = vmatprep.subr.mxu0 0.0
      %740 = vmatpush1.msra.mxu0 %v737
      %741 = vmatprep.subr.mxu0 0.0
      %742 = vmatpush1.msra.mxu0 0.0
      %743 = vmatprep.subr.mxu0 0.0
      %744 = vmatpush1.msra.mxu0 0.0
      %745 = vmatprep.subr.mxu0 0.0
      %746 = vmatpush1.msra.mxu0 0.0
      %747 = vmatprep.subr.mxu0 0.0
      %748 = vmatpush1.msra.mxu0 0.0
      %749 = vmatprep.subr.mxu0 0.0
      %750 = vmatpush1.msra.mxu0 0.0
      %751 = vmatprep.subr.mxu0 0.0
      %752 = vmatpush1.msra.mxu0 0.0
      %753 = vmatprep.subr.mxu0 0.0
      %754 = vmatpush1.msra.mxu0 0.0
      %755 = vmatprep.subr.mxu0 0.0
      %756 = vmatpush1.msra.mxu0 0.0
      %757 = vmatprep.subr.mxu0 0.0
      %758 = vmatpush1.msra.mxu0 0.0
      %759 = vmatprep.subr.mxu0 0.0
      %760 = vmatpush1.msra.mxu0 0.0
      %761 = vmatprep.subr.mxu0 0.0
      %762 = vmatpush1.msra.mxu0 0.0
      %763 = vmatprep.subr.mxu0 0.0
      %764 = vmatpush1.msra.mxu0 0.0
      %765 = vmatprep.subr.mxu0 0.0
      %766 = vmatpush1.msra.mxu0 0.0
      %767 = vmatprep.subr.mxu0 0.0
      %768 = vmatpush1.msra.mxu0 0.0
      %769 = vmatprep.subr.mxu0 0.0
      %770 = vmatpush1.msra.mxu0 0.0
      %771 = vmatprep.subr.mxu0 0.0
      %772 = vmatpush1.msra.mxu0 0.0
      %773 = vmatprep.subr.mxu0 0.0
      %774 = vmatpush1.msra.mxu0 0.0
      %775 = vmatprep.subr.mxu0 0.0
      %776 = vmatpush1.msra.mxu0 0.0
      %777 = vmatprep.subr.mxu0 0.0
      %778 = vmatpush1.msra.mxu0 0.0
      %779 = vmatprep.subr.mxu0 0.0
      %780 = vmatpush1.msra.mxu0 0.0
      %781 = vmatprep.subr.mxu0 0.0
      %782 = vmatpush1.msra.mxu0 0.0
      %783 = vmatprep.subr.mxu0 0.0
      %784 = vmatpush1.msra.mxu0 0.0
      %785 = vmatprep.subr.mxu0 0.0
      %786 = vmatpush1.msra.mxu0 0.0
      %787 = vmatprep.subr.mxu0 0.0
      %788 = vmatpush1.msra.mxu0 0.0
      %789 = vmatprep.subr.mxu0 0.0
      %790 = vmatpush1.msra.mxu0 0.0
      %791 = vmatprep.subr.mxu0 0.0
      %792 = vmatpush1.msra.mxu0 0.0
      %793 = vmatprep.subr.mxu0 0.0
      %794 = vmatpush1.msra.mxu0 0.0
      %795 = vmatprep.subr.mxu0 0.0
      %796 = vmatpush1.msra.mxu0 0.0
      %797 = vmatprep.subr.mxu0 0.0
      %798 = vmatpush1.msra.mxu0 0.0
      %799 = vmatprep.subr.mxu0 0.0
      %800 = vmatpush1.msra.mxu0 0.0
      %801 = vmatprep.subr.mxu0 0.0
      %802 = vmatpush1.msra.mxu0 0.0
      %803 = vmatprep.mubr.f32.mxu0 0.0
      %804 = vmatmul.mubr.f32.gmra.mrb[0].mxu0 %v731
      %v805 = vpop.f32.mrb[0].mxu0
      %v806 = vadd.f32 0.0, %v805
      %v807 = vpop.f32.mrb[0].mxu0
      %808 = vmatprep.mubr.f32.mxu0 0.0
      %809 = vmatmul.mubr.f32.gmra.mrb[0].mxu0 %v734
      %v810 = vpop.f32.mrb[0].mxu0
      %v811 = vadd.f32 0.0, %v810
      %v812 = vpop.f32.mrb[0].mxu0
      %813 = vdwg.mxu0
      %814 = vrot.lane.b32.xlu0 %v533, 120
      %v815 = vpop.permute.xlu0 %814
      %816 = vrot.lane.b32.xlu0 %v538, 120
      %v817 = vpop.permute.xlu0 %816
      %818 = vrot.lane.b32.xlu0 %v615, 120
      %v819 = vpop.permute.xlu0 %818
      %v820 = vsel %vm618, %v815, 0
      %v822 = vsel %vm618, %v817, 0
      %v824 = vsel %vm618, %v819, 0
      %826 = vmatprep.subr.mxu0 0.0
      %827 = vmatpush1.xpose.msra.mxu0 %v824
      %828 = vmatprep.subr.mxu0 0.0
      %829 = vmatpush1.xpose.msra.mxu0 0.0
      %830 = vmatprep.subr.mxu0 0.0
      %831 = vmatpush1.xpose.msra.mxu0 0.0
      %832 = vmatprep.subr.mxu0 0.0
      %833 = vmatpush1.xpose.msra.mxu0 0.0
      %834 = vmatprep.subr.mxu0 0.0
      %835 = vmatpush1.xpose.msra.mxu0 0.0
      %836 = vmatprep.subr.mxu0 0.0
      %837 = vmatpush1.xpose.msra.mxu0 0.0
      %838 = vmatprep.subr.mxu0 0.0
      %839 = vmatpush1.xpose.msra.mxu0 0.0
      %840 = vmatprep.subr.mxu0 0.0
      %841 = vmatpush1.xpose.msra.mxu0 0.0
      %842 = vmatprep.subr.mxu0 0.0
      %843 = vmatpush1.xpose.msra.mxu0 0.0
      %844 = vmatprep.subr.mxu0 0.0
      %845 = vmatpush1.xpose.msra.mxu0 0.0
      %846 = vmatprep.subr.mxu0 0.0
      %847 = vmatpush1.xpose.msra.mxu0 0.0
      %848 = vmatprep.subr.mxu0 0.0
      %849 = vmatpush1.xpose.msra.mxu0 0.0
      %850 = vmatprep.subr.mxu0 0.0
      %851 = vmatpush1.xpose.msra.mxu0 0.0
      %852 = vmatprep.subr.mxu0 0.0
      %853 = vmatpush1.xpose.msra.mxu0 0.0
      %854 = vmatprep.subr.mxu0 0.0
      %855 = vmatpush1.xpose.msra.mxu0 0.0
      %856 = vmatprep.subr.mxu0 0.0
      %857 = vmatpush1.xpose.msra.mxu0 0.0
      %858 = vmatprep.subr.mxu0 0.0
      %859 = vmatpush1.xpose.msra.mxu0 0.0
      %860 = vmatprep.subr.mxu0 0.0
      %861 = vmatpush1.xpose.msra.mxu0 0.0
      %862 = vmatprep.subr.mxu0 0.0
      %863 = vmatpush1.xpose.msra.mxu0 0.0
      %864 = vmatprep.subr.mxu0 0.0
      %865 = vmatpush1.xpose.msra.mxu0 0.0
      %866 = vmatprep.subr.mxu0 0.0
      %867 = vmatpush1.xpose.msra.mxu0 0.0
      %868 = vmatprep.subr.mxu0 0.0
      %869 = vmatpush1.xpose.msra.mxu0 0.0
      %870 = vmatprep.subr.mxu0 0.0
      %871 = vmatpush1.xpose.msra.mxu0 0.0
      %872 = vmatprep.subr.mxu0 0.0
      %873 = vmatpush1.xpose.msra.mxu0 0.0
      %874 = vmatprep.subr.mxu0 0.0
      %875 = vmatpush1.xpose.msra.mxu0 0.0
      %876 = vmatprep.subr.mxu0 0.0
      %877 = vmatpush1.xpose.msra.mxu0 0.0
      %878 = vmatprep.subr.mxu0 0.0
      %879 = vmatpush1.xpose.msra.mxu0 0.0
      %880 = vmatprep.subr.mxu0 0.0
      %881 = vmatpush1.xpose.msra.mxu0 0.0
      %882 = vmatprep.subr.mxu0 0.0
      %883 = vmatpush1.xpose.msra.mxu0 0.0
      %884 = vmatprep.subr.mxu0 0.0
      %885 = vmatpush1.xpose.msra.mxu0 0.0
      %886 = vmatprep.subr.mxu0 0.0
      %887 = vmatpush1.xpose.msra.mxu0 0.0
      %888 = vmatprep.subr.mxu0 0.0
      %889 = vmatpush1.xpose.msra.mxu0 0.0
      %890 = vmatprep.mubr.f32.mxu0 0.0
      %891 = vmatmul.mubr.f32.gmra.mrb[0].mxu0 %v820
      %v892 = vpop.f32.mrb[0].mxu0
      %v893 = vadd.f32 0.0, %v892
      %v894 = vpop.f32.mrb[0].mxu0
      %895 = vmatprep.mubr.f32.mxu0 0.0
      %896 = vmatmul.mubr.f32.gmra.mrb[0].mxu0 %v822
      %v897 = vpop.f32.mrb[0].mxu0
      %v898 = vadd.f32 0.0, %v897
      %v899 = vpop.f32.mrb[0].mxu0
      %900 = vdwg.mxu0
      %v901 = vmul.f32 %v893, 0.35355338
      %v902 = vmul.f32 %v898, 0.35355338
      %v903 = vsel %vm705, %v901, -inf
      %904 = vmax.xlane.f32.xlu0 %v903
      %v905 = vpop.xlane.xlu0 %904
      %v906 = vsel %vm705, %v902, -inf
      %907 = vmax.xlane.f32.xlu0 %v906
      %v908 = vpop.xlane.xlu0 %907
      %v909 = vsub.f32 %v901, %v905
      %v910 = vsub.f32 %v902, %v908
      %v911 = vmul.f32 %v909, 1.442695
      %v912 = vpow.pop %v911
      %v913 = vmul.f32 %v910, 1.442695
      %v914 = vpow.pop %v913
      %v915 = vsel %vm705, %v912, 0.0
      %916 = vadd.xlane.f32.xlu0 %v915
      %v917 = vpop.xlane.xlu0 %916
      %v918 = vsel %vm705, %v914, 0.0
      %919 = vadd.xlane.f32.xlu0 %v918
      %v920 = vpop.xlane.xlu0 %919
      %v921 = vrcp.pop %v917
      %v922 = vmul.f32 %v912, %v921
      %v923 = vrcp.pop %v920
      %v924 = vmul.f32 %v914, %v923
      %925 = vrot.lane.b32.xlu0 %v615, 88
      %v926 = vpop.permute.xlu0 %925
      %v928 = vsel %vm705, %v922, 0
      %v931 = vsel %vm705, %v924, 0
      %v933 = vsel %vm736, %v926, 0
      %935 = vmatprep.subr.mxu0 0.0
      %936 = vmatpush1.msra.mxu0 %v933
      %937 = vmatprep.subr.mxu0 0.0
      %938 = vmatpush1.msra.mxu0 0.0
      %939 = vmatprep.subr.mxu0 0.0
      %940 = vmatpush1.msra.mxu0 0.0
      %941 = vmatprep.subr.mxu0 0.0
      %942 = vmatpush1.msra.mxu0 0.0
      %943 = vmatprep.subr.mxu0 0.0
      %944 = vmatpush1.msra.mxu0 0.0
      %945 = vmatprep.subr.mxu0 0.0
      %946 = vmatpush1.msra.mxu0 0.0
      %947 = vmatprep.subr.mxu0 0.0
      %948 = vmatpush1.msra.mxu0 0.0
      %949 = vmatprep.subr.mxu0 0.0
      %950 = vmatpush1.msra.mxu0 0.0
      %951 = vmatprep.subr.mxu0 0.0
      %952 = vmatpush1.msra.mxu0 0.0
      %953 = vmatprep.subr.mxu0 0.0
      %954 = vmatpush1.msra.mxu0 0.0
      %955 = vmatprep.subr.mxu0 0.0
      %956 = vmatpush1.msra.mxu0 0.0
      %957 = vmatprep.subr.mxu0 0.0
      %958 = vmatpush1.msra.mxu0 0.0
      %959 = vmatprep.subr.mxu0 0.0
      %960 = vmatpush1.msra.mxu0 0.0
      %961 = vmatprep.subr.mxu0 0.0
      %962 = vmatpush1.msra.mxu0 0.0
      %963 = vmatprep.subr.mxu0 0.0
      %964 = vmatpush1.msra.mxu0 0.0
      %965 = vmatprep.subr.mxu0 0.0
      %966 = vmatpush1.msra.mxu0 0.0
      %967 = vmatprep.subr.mxu0 0.0
      %968 = vmatpush1.msra.mxu0 0.0
      %969 = vmatprep.subr.mxu0 0.0
      %970 = vmatpush1.msra.mxu0 0.0
      %971 = vmatprep.subr.mxu0 0.0
      %972 = vmatpush1.msra.mxu0 0.0
      %973 = vmatprep.subr.mxu0 0.0
      %974 = vmatpush1.msra.mxu0 0.0
      %975 = vmatprep.subr.mxu0 0.0
      %976 = vmatpush1.msra.mxu0 0.0
      %977 = vmatprep.subr.mxu0 0.0
      %978 = vmatpush1.msra.mxu0 0.0
      %979 = vmatprep.subr.mxu0 0.0
      %980 = vmatpush1.msra.mxu0 0.0
      %981 = vmatprep.subr.mxu0 0.0
      %982 = vmatpush1.msra.mxu0 0.0
      %983 = vmatprep.subr.mxu0 0.0
      %984 = vmatpush1.msra.mxu0 0.0
      %985 = vmatprep.subr.mxu0 0.0
      %986 = vmatpush1.msra.mxu0 0.0
      %987 = vmatprep.subr.mxu0 0.0
      %988 = vmatpush1.msra.mxu0 0.0
      %989 = vmatprep.subr.mxu0 0.0
      %990 = vmatpush1.msra.mxu0 0.0
      %991 = vmatprep.subr.mxu0 0.0
      %992 = vmatpush1.msra.mxu0 0.0
      %993 = vmatprep.subr.mxu0 0.0
      %994 = vmatpush1.msra.mxu0 0.0
      %995 = vmatprep.subr.mxu0 0.0
      %996 = vmatpush1.msra.mxu0 0.0
      %997 = vmatprep.subr.mxu0 0.0
      %998 = vmatpush1.msra.mxu0 0.0
      %999 = vmatprep.mubr.f32.mxu0 0.0
      %1000 = vmatmul.mubr.f32.gmra.mrb[0].mxu0 %v928
      %v1001 = vpop.f32.mrb[0].mxu0
      %v1002 = vadd.f32 0.0, %v1001
      %v1003 = vpop.f32.mrb[0].mxu0
      %1004 = vmatprep.mubr.f32.mxu0 0.0
      %1005 = vmatmul.mubr.f32.gmra.mrb[0].mxu0 %v931
      %v1006 = vpop.f32.mrb[0].mxu0
      %v1007 = vadd.f32 0.0, %v1006
      %v1008 = vpop.f32.mrb[0].mxu0
      %1009 = vdwg.mxu0
      %1010 = vrot.lane.b32.xlu0 %v533, 112
      %v1011 = vpop.permute.xlu0 %1010
      %1012 = vrot.lane.b32.xlu0 %v538, 112
      %v1013 = vpop.permute.xlu0 %1012
      %1014 = vrot.lane.b32.xlu0 %v615, 112
      %v1015 = vpop.permute.xlu0 %1014
      %v1016 = vsel %vm618, %v1011, 0
      %v1018 = vsel %vm618, %v1013, 0
      %v1020 = vsel %vm618, %v1015, 0
      %1022 = vmatprep.subr.mxu0 0.0
      %1023 = vmatpush1.xpose.msra.mxu0 %v1020
      %1024 = vmatprep.subr.mxu0 0.0
      %1025 = vmatpush1.xpose.msra.mxu0 0.0
      %1026 = vmatprep.subr.mxu0 0.0
      %1027 = vmatpush1.xpose.msra.mxu0 0.0
      %1028 = vmatprep.subr.mxu0 0.0
      %1029 = vmatpush1.xpose.msra.mxu0 0.0
      %1030 = vmatprep.subr.mxu0 0.0
      %1031 = vmatpush1.xpose.msra.mxu0 0.0
      %1032 = vmatprep.subr.mxu0 0.0
      %1033 = vmatpush1.xpose.msra.mxu0 0.0
      %1034 = vmatprep.subr.mxu0 0.0
      %1035 = vmatpush1.xpose.msra.mxu0 0.0
      %1036 = vmatprep.subr.mxu0 0.0
      %1037 = vmatpush1.xpose.msra.mxu0 0.0
      %1038 = vmatprep.subr.mxu0 0.0
      %1039 = vmatpush1.xpose.msra.mxu0 0.0
      %1040 = vmatprep.subr.mxu0 0.0
      %1041 = vmatpush1.xpose.msra.mxu0 0.0
      %1042 = vmatprep.subr.mxu0 0.0
      %1043 = vmatpush1.xpose.msra.mxu0 0.0
      %1044 = vmatprep.subr.mxu0 0.0
      %1045 = vmatpush1.xpose.msra.mxu0 0.0
      %1046 = vmatprep.subr.mxu0 0.0
      %1047 = vmatpush1.xpose.msra.mxu0 0.0
      %1048 = vmatprep.subr.mxu0 0.0
      %1049 = vmatpush1.xpose.msra.mxu0 0.0
      %1050 = vmatprep.subr.mxu0 0.0
      %1051 = vmatpush1.xpose.msra.mxu0 0.0
      %1052 = vmatprep.subr.mxu0 0.0
      %1053 = vmatpush1.xpose.msra.mxu0 0.0
      %1054 = vmatprep.subr.mxu0 0.0
      %1055 = vmatpush1.xpose.msra.mxu0 0.0
      %1056 = vmatprep.subr.mxu0 0.0
      %1057 = vmatpush1.xpose.msra.mxu0 0.0
      %1058 = vmatprep.subr.mxu0 0.0
      %1059 = vmatpush1.xpose.msra.mxu0 0.0
      %1060 = vmatprep.subr.mxu0 0.0
      %1061 = vmatpush1.xpose.msra.mxu0 0.0
      %1062 = vmatprep.subr.mxu0 0.0
      %1063 = vmatpush1.xpose.msra.mxu0 0.0
      %1064 = vmatprep.subr.mxu0 0.0
      %1065 = vmatpush1.xpose.msra.mxu0 0.0
      %1066 = vmatprep.subr.mxu0 0.0
      %1067 = vmatpush1.xpose.msra.mxu0 0.0
      %1068 = vmatprep.subr.mxu0 0.0
      %1069 = vmatpush1.xpose.msra.mxu0 0.0
      %1070 = vmatprep.subr.mxu0 0.0
      %1071 = vmatpush1.xpose.msra.mxu0 0.0
      %1072 = vmatprep.subr.mxu0 0.0
      %1073 = vmatpush1.xpose.msra.mxu0 0.0
      %1074 = vmatprep.subr.mxu0 0.0
      %1075 = vmatpush1.xpose.msra.mxu0 0.0
      %1076 = vmatprep.subr.mxu0 0.0
      %1077 = vmatpush1.xpose.msra.mxu0 0.0
      %1078 = vmatprep.subr.mxu0 0.0
      %1079 = vmatpush1.xpose.msra.mxu0 0.0
      %1080 = vmatprep.subr.mxu0 0.0
      %1081 = vmatpush1.xpose.msra.mxu0 0.0
      %1082 = vmatprep.subr.mxu0 0.0
      %1083 = vmatpush1.xpose.msra.mxu0 0.0
      %1084 = vmatprep.subr.mxu0 0.0
      %1085 = vmatpush1.xpose.msra.mxu0 0.0
      %1086 = vmatprep.mubr.f32.mxu0 0.0
      %1087 = vmatmul.mubr.f32.gmra.mrb[0].mxu0 %v1016
      %v1088 = vpop.f32.mrb[0].mxu0
      %v1089 = vadd.f32 0.0, %v1088
      %v1090 = vpop.f32.mrb[0].mxu0
      %1091 = vmatprep.mubr.f32.mxu0 0.0
      %1092 = vmatmul.mubr.f32.gmra.mrb[0].mxu0 %v1018
      %v1093 = vpop.f32.mrb[0].mxu0
      %v1094 = vadd.f32 0.0, %v1093
      %v1095 = vpop.f32.mrb[0].mxu0
      %1096 = vdwg.mxu0
      %v1097 = vmul.f32 %v1089, 0.35355338
      %v1098 = vmul.f32 %v1094, 0.35355338
      %v1099 = vsel %vm705, %v1097, -inf
      %1100 = vmax.xlane.f32.xlu0 %v1099
      %v1101 = vpop.xlane.xlu0 %1100
      %v1102 = vsel %vm705, %v1098, -inf
      %1103 = vmax.xlane.f32.xlu0 %v1102
      %v1104 = vpop.xlane.xlu0 %1103
      %v1105 = vsub.f32 %v1097, %v1101
      %v1106 = vsub.f32 %v1098, %v1104
      %v1107 = vmul.f32 %v1105, 1.442695
      %v1108 = vpow.pop %v1107
      %v1109 = vmul.f32 %v1106, 1.442695
      %v1110 = vpow.pop %v1109
      %v1111 = vsel %vm705, %v1108, 0.0
      %1112 = vadd.xlane.f32.xlu0 %v1111
      %v1113 = vpop.xlane.xlu0 %1112
      %v1114 = vsel %vm705, %v1110, 0.0
      %1115 = vadd.xlane.f32.xlu0 %v1114
      %v1116 = vpop.xlane.xlu0 %1115
      %v1117 = vrcp.pop %v1113
      %v1118 = vmul.f32 %v1108, %v1117
      %v1119 = vrcp.pop %v1116
      %v1120 = vmul.f32 %v1110, %v1119
      %1121 = vrot.lane.b32.xlu0 %v615, 80
      %v1122 = vpop.permute.xlu0 %1121
      %v1124 = vsel %vm705, %v1118, 0
      %v1127 = vsel %vm705, %v1120, 0
      %v1129 = vsel %vm736, %v1122, 0
      %1131 = vmatprep.subr.mxu0 0.0
      %1132 = vmatpush1.msra.mxu0 %v1129
      %1133 = vmatprep.subr.mxu0 0.0
      %1134 = vmatpush1.msra.mxu0 0.0
      %1135 = vmatprep.subr.mxu0 0.0
      %1136 = vmatpush1.msra.mxu0 0.0
      %1137 = vmatprep.subr.mxu0 0.0
      %1138 = vmatpush1.msra.mxu0 0.0
      %1139 = vmatprep.subr.mxu0 0.0
      %1140 = vmatpush1.msra.mxu0 0.0
      %1141 = vmatprep.subr.mxu0 0.0
      %1142 = vmatpush1.msra.mxu0 0.0
      %1143 = vmatprep.subr.mxu0 0.0
      %1144 = vmatpush1.msra.mxu0 0.0
      %1145 = vmatprep.subr.mxu0 0.0
      %1146 = vmatpush1.msra.mxu0 0.0
      %1147 = vmatprep.subr.mxu0 0.0
      %1148 = vmatpush1.msra.mxu0 0.0
      %1149 = vmatprep.subr.mxu0 0.0
      %1150 = vmatpush1.msra.mxu0 0.0
      %1151 = vmatprep.subr.mxu0 0.0
      %1152 = vmatpush1.msra.mxu0 0.0
      %1153 = vmatprep.subr.mxu0 0.0
      %1154 = vmatpush1.msra.mxu0 0.0
      %1155 = vmatprep.subr.mxu0 0.0
      %1156 = vmatpush1.msra.mxu0 0.0
      %1157 = vmatprep.subr.mxu0 0.0
      %1158 = vmatpush1.msra.mxu0 0.0
      %1159 = vmatprep.subr.mxu0 0.0
      %1160 = vmatpush1.msra.mxu0 0.0
      %1161 = vmatprep.subr.mxu0 0.0
      %1162 = vmatpush1.msra.mxu0 0.0
      %1163 = vmatprep.subr.mxu0 0.0
      %1164 = vmatpush1.msra.mxu0 0.0
      %1165 = vmatprep.subr.mxu0 0.0
      %1166 = vmatpush1.msra.mxu0 0.0
      %1167 = vmatprep.subr.mxu0 0.0
      %1168 = vmatpush1.msra.mxu0 0.0
      %1169 = vmatprep.subr.mxu0 0.0
      %1170 = vmatpush1.msra.mxu0 0.0
      %1171 = vmatprep.subr.mxu0 0.0
      %1172 = vmatpush1.msra.mxu0 0.0
      %1173 = vmatprep.subr.mxu0 0.0
      %1174 = vmatpush1.msra.mxu0 0.0
      %1175 = vmatprep.subr.mxu0 0.0
      %1176 = vmatpush1.msra.mxu0 0.0
      %1177 = vmatprep.subr.mxu0 0.0
      %1178 = vmatpush1.msra.mxu0 0.0
      %1179 = vmatprep.subr.mxu0 0.0
      %1180 = vmatpush1.msra.mxu0 0.0
      %1181 = vmatprep.subr.mxu0 0.0
      %1182 = vmatpush1.msra.mxu0 0.0
      %1183 = vmatprep.subr.mxu0 0.0
      %1184 = vmatpush1.msra.mxu0 0.0
      %1185 = vmatprep.subr.mxu0 0.0
      %1186 = vmatpush1.msra.mxu0 0.0
      %1187 = vmatprep.subr.mxu0 0.0
      %1188 = vmatpush1.msra.mxu0 0.0
      %1189 = vmatprep.subr.mxu0 0.0
      %1190 = vmatpush1.msra.mxu0 0.0
      %1191 = vmatprep.subr.mxu0 0.0
      %1192 = vmatpush1.msra.mxu0 0.0
      %1193 = vmatprep.subr.mxu0 0.0
      %1194 = vmatpush1.msra.mxu0 0.0
      %1195 = vmatprep.mubr.f32.mxu0 0.0
      %1196 = vmatmul.mubr.f32.gmra.mrb[0].mxu0 %v1124
      %v1197 = vpop.f32.mrb[0].mxu0
      %v1198 = vadd.f32 0.0, %v1197
      %v1199 = vpop.f32.mrb[0].mxu0
      %1200 = vmatprep.mubr.f32.mxu0 0.0
      %1201 = vmatmul.mubr.f32.gmra.mrb[0].mxu0 %v1127
      %v1202 = vpop.f32.mrb[0].mxu0
      %v1203 = vadd.f32 0.0, %v1202
      %v1204 = vpop.f32.mrb[0].mxu0
      %1205 = vdwg.mxu0
      %1206 = vrot.lane.b32.xlu0 %v533, 104
      %v1207 = vpop.permute.xlu0 %1206
      %1208 = vrot.lane.b32.xlu0 %v538, 104
      %v1209 = vpop.permute.xlu0 %1208
      %1210 = vrot.lane.b32.xlu0 %v615, 104
      %v1211 = vpop.permute.xlu0 %1210
      %v1212 = vsel %vm618, %v1207, 0
      %v1214 = vsel %vm618, %v1209, 0
      %v1216 = vsel %vm618, %v1211, 0
      %1218 = vmatprep.subr.mxu0 0.0
      %1219 = vmatpush1.xpose.msra.mxu0 %v1216
      %1220 = vmatprep.subr.mxu0 0.0
      %1221 = vmatpush1.xpose.msra.mxu0 0.0
      %1222 = vmatprep.subr.mxu0 0.0
      %1223 = vmatpush1.xpose.msra.mxu0 0.0
      %1224 = vmatprep.subr.mxu0 0.0
      %1225 = vmatpush1.xpose.msra.mxu0 0.0
      %1226 = vmatprep.subr.mxu0 0.0
      %1227 = vmatpush1.xpose.msra.mxu0 0.0
      %1228 = vmatprep.subr.mxu0 0.0
      %1229 = vmatpush1.xpose.msra.mxu0 0.0
      %1230 = vmatprep.subr.mxu0 0.0
      %1231 = vmatpush1.xpose.msra.mxu0 0.0
      %1232 = vmatprep.subr.mxu0 0.0
      %1233 = vmatpush1.xpose.msra.mxu0 0.0
      %1234 = vmatprep.subr.mxu0 0.0
      %1235 = vmatpush1.xpose.msra.mxu0 0.0
      %1236 = vmatprep.subr.mxu0 0.0
      %1237 = vmatpush1.xpose.msra.mxu0 0.0
      %1238 = vmatprep.subr.mxu0 0.0
      %1239 = vmatpush1.xpose.msra.mxu0 0.0
      %1240 = vmatprep.subr.mxu0 0.0
      %1241 = vmatpush1.xpose.msra.mxu0 0.0
      %1242 = vmatprep.subr.mxu0 0.0
      %1243 = vmatpush1.xpose.msra.mxu0 0.0
      %1244 = vmatprep.subr.mxu0 0.0
      %1245 = vmatpush1.xpose.msra.mxu0 0.0
      %1246 = vmatprep.subr.mxu0 0.0
      %1247 = vmatpush1.xpose.msra.mxu0 0.0
      %1248 = vmatprep.subr.mxu0 0.0
      %1249 = vmatpush1.xpose.msra.mxu0 0.0
      %1250 = vmatprep.subr.mxu0 0.0
      %1251 = vmatpush1.xpose.msra.mxu0 0.0
      %1252 = vmatprep.subr.mxu0 0.0
      %1253 = vmatpush1.xpose.msra.mxu0 0.0
      %1254 = vmatprep.subr.mxu0 0.0
      %1255 = vmatpush1.xpose.msra.mxu0 0.0
      %1256 = vmatprep.subr.mxu0 0.0
      %1257 = vmatpush1.xpose.msra.mxu0 0.0
      %1258 = vmatprep.subr.mxu0 0.0
      %1259 = vmatpush1.xpose.msra.mxu0 0.0
      %1260 = vmatprep.subr.mxu0 0.0
      %1261 = vmatpush1.xpose.msra.mxu0 0.0
      %1262 = vmatprep.subr.mxu0 0.0
      %1263 = vmatpush1.xpose.msra.mxu0 0.0
      %1264 = vmatprep.subr.mxu0 0.0
      %1265 = vmatpush1.xpose.msra.mxu0 0.0
      %1266 = vmatprep.subr.mxu0 0.0
      %1267 = vmatpush1.xpose.msra.mxu0 0.0
      %1268 = vmatprep.subr.mxu0 0.0
      %1269 = vmatpush1.xpose.msra.mxu0 0.0
      %1270 = vmatprep.subr.mxu0 0.0
      %1271 = vmatpush1.xpose.msra.mxu0 0.0
      %1272 = vmatprep.subr.mxu0 0.0
      %1273 = vmatpush1.xpose.msra.mxu0 0.0
      %1274 = vmatprep.subr.mxu0 0.0
      %1275 = vmatpush1.xpose.msra.mxu0 0.0
      %1276 = vmatprep.subr.mxu0 0.0
      %1277 = vmatpush1.xpose.msra.mxu0 0.0
      %1278 = vmatprep.subr.mxu0 0.0
      %1279 = vmatpush1.xpose.msra.mxu0 0.0
      %1280 = vmatprep.subr.mxu0 0.0
      %1281 = vmatpush1.xpose.msra.mxu0 0.0
      %1282 = vmatprep.mubr.f32.mxu0 0.0
      %1283 = vmatmul.mubr.f32.gmra.mrb[0].mxu0 %v1212
      %v1284 = vpop.f32.mrb[0].mxu0
      %v1285 = vadd.f32 0.0, %v1284
      %v1286 = vpop.f32.mrb[0].mxu0
      %1287 = vmatprep.mubr.f32.mxu0 0.0
      %1288 = vmatmul.mubr.f32.gmra.mrb[0].mxu0 %v1214
      %v1289 = vpop.f32.mrb[0].mxu0
      %v1290 = vadd.f32 0.0, %v1289
      %v1291 = vpop.f32.mrb[0].mxu0
      %1292 = vdwg.mxu0
      %v1293 = vmul.f32 %v1285, 0.35355338
      %v1294 = vmul.f32 %v1290, 0.35355338
      %v1295 = vsel %vm705, %v1293, -inf
      %1296 = vmax.xlane.f32.xlu0 %v1295
      %v1297 = vpop.xlane.xlu0 %1296
      %v1298 = vsel %vm705, %v1294, -inf
      %1299 = vmax.xlane.f32.xlu0 %v1298
      %v1300 = vpop.xlane.xlu0 %1299
      %v1301 = vsub.f32 %v1293, %v1297
      %v1302 = vsub.f32 %v1294, %v1300
      %v1303 = vmul.f32 %v1301, 1.442695
      %v1304 = vpow.pop %v1303
      %v1305 = vmul.f32 %v1302, 1.442695
      %v1306 = vpow.pop %v1305
      %v1307 = vsel %vm705, %v1304, 0.0
      %1308 = vadd.xlane.f32.xlu0 %v1307
      %v1309 = vpop.xlane.xlu0 %1308
      %v1310 = vsel %vm705, %v1306, 0.0
      %1311 = vadd.xlane.f32.xlu0 %v1310
      %v1312 = vpop.xlane.xlu0 %1311
      %v1313 = vrcp.pop %v1309
      %v1314 = vmul.f32 %v1304, %v1313
      %v1315 = vrcp.pop %v1312
      %v1316 = vmul.f32 %v1306, %v1315
      %1317 = vrot.lane.b32.xlu0 %v615, 72
      %v1318 = vpop.permute.xlu0 %1317
      %v1320 = vsel %vm705, %v1314, 0
      %v1323 = vsel %vm705, %v1316, 0
      %v1325 = vsel %vm736, %v1318, 0
      %1327 = vmatprep.subr.mxu0 0.0
      %1328 = vmatpush1.msra.mxu0 %v1325
      %1329 = vmatprep.subr.mxu0 0.0
      %1330 = vmatpush1.msra.mxu0 0.0
      %1331 = vmatprep.subr.mxu0 0.0
      %1332 = vmatpush1.msra.mxu0 0.0
      %1333 = vmatprep.subr.mxu0 0.0
      %1334 = vmatpush1.msra.mxu0 0.0
      %1335 = vmatprep.subr.mxu0 0.0
      %1336 = vmatpush1.msra.mxu0 0.0
      %1337 = vmatprep.subr.mxu0 0.0
      %1338 = vmatpush1.msra.mxu0 0.0
      %1339 = vmatprep.subr.mxu0 0.0
      %1340 = vmatpush1.msra.mxu0 0.0
      %1341 = vmatprep.subr.mxu0 0.0
      %1342 = vmatpush1.msra.mxu0 0.0
      %1343 = vmatprep.subr.mxu0 0.0
      %1344 = vmatpush1.msra.mxu0 0.0
      %1345 = vmatprep.subr.mxu0 0.0
      %1346 = vmatpush1.msra.mxu0 0.0
      %1347 = vmatprep.subr.mxu0 0.0
      %1348 = vmatpush1.msra.mxu0 0.0
      %1349 = vmatprep.subr.mxu0 0.0
      %1350 = vmatpush1.msra.mxu0 0.0
      %1351 = vmatprep.subr.mxu0 0.0
      %1352 = vmatpush1.msra.mxu0 0.0
      %1353 = vmatprep.subr.mxu0 0.0
      %1354 = vmatpush1.msra.mxu0 0.0
      %1355 = vmatprep.subr.mxu0 0.0
      %1356 = vmatpush1.msra.mxu0 0.0
      %1357 = vmatprep.subr.mxu0 0.0
      %1358 = vmatpush1.msra.mxu0 0.0
      %1359 = vmatprep.subr.mxu0 0.0
      %1360 = vmatpush1.msra.mxu0 0.0
      %1361 = vmatprep.subr.mxu0 0.0
      %1362 = vmatpush1.msra.mxu0 0.0
      %1363 = vmatprep.subr.mxu0 0.0
      %1364 = vmatpush1.msra.mxu0 0.0
      %1365 = vmatprep.subr.mxu0 0.0
      %1366 = vmatpush1.msra.mxu0 0.0
      %1367 = vmatprep.subr.mxu0 0.0
      %1368 = vmatpush1.msra.mxu0 0.0
      %1369 = vmatprep.subr.mxu0 0.0
      %1370 = vmatpush1.msra.mxu0 0.0
      %1371 = vmatprep.subr.mxu0 0.0
      %1372 = vmatpush1.msra.mxu0 0.0
      %1373 = vmatprep.subr.mxu0 0.0
      %1374 = vmatpush1.msra.mxu0 0.0
      %1375 = vmatprep.subr.mxu0 0.0
      %1376 = vmatpush1.msra.mxu0 0.0
      %1377 = vmatprep.subr.mxu0 0.0
      %1378 = vmatpush1.msra.mxu0 0.0
      %1379 = vmatprep.subr.mxu0 0.0
      %1380 = vmatpush1.msra.mxu0 0.0
      %1381 = vmatprep.subr.mxu0 0.0
      %1382 = vmatpush1.msra.mxu0 0.0
      %1383 = vmatprep.subr.mxu0 0.0
      %1384 = vmatpush1.msra.mxu0 0.0
      %1385 = vmatprep.subr.mxu0 0.0
      %1386 = vmatpush1.msra.mxu0 0.0
      %1387 = vmatprep.subr.mxu0 0.0
      %1388 = vmatpush1.msra.mxu0 0.0
      %1389 = vmatprep.subr.mxu0 0.0
      %1390 = vmatpush1.msra.mxu0 0.0
      %1391 = vmatprep.mubr.f32.mxu0 0.0
      %1392 = vmatmul.mubr.f32.gmra.mrb[0].mxu0 %v1320
      %v1393 = vpop.f32.mrb[0].mxu0
      %v1394 = vadd.f32 0.0, %v1393
      %v1395 = vpop.f32.mrb[0].mxu0
      %1396 = vmatprep.mubr.f32.mxu0 0.0
      %1397 = vmatmul.mubr.f32.gmra.mrb[0].mxu0 %v1323
      %v1398 = vpop.f32.mrb[0].mxu0
      %v1399 = vadd.f32 0.0, %v1398
      %v1400 = vpop.f32.mrb[0].mxu0
      %1401 = vdwg.mxu0
      %1404 = vrot.lane.b32.xlu0 %v1002, 8
      %v1405 = vpop.permute.xlu0 %1404
      %1406 = vrot.lane.b32.xlu0 %v1007, 8
      %v1407 = vpop.permute.xlu0 %1406
      %1412 = vrot.lane.b32.xlu0 %v1198, 16
      %v1413 = vpop.permute.xlu0 %1412
      %1414 = vrot.lane.b32.xlu0 %v1203, 16
      %v1415 = vpop.permute.xlu0 %1414
      %1420 = vrot.lane.b32.xlu0 %v1394, 24
      %v1421 = vpop.permute.xlu0 %1420
      %1422 = vrot.lane.b32.xlu0 %v1399, 24
      %v1423 = vpop.permute.xlu0 %1422
      %v1426 = vsel %vm618, %v806, %v1405
      %v1427 = vsel %vm618, %v811, %v1407
      %vm1428 = vcmask 130048
      %v1429 = vsel %vm1428, %v1426, %v1413
      %v1430 = vsel %vm1428, %v1427, %v1415
      %vm1431 = vcmask 195584
      %v1432 = vsel %vm1431, %v1429, %v1421
      %v1433 = vsel %vm1431, %v1430, %v1423
      %v1434 = vld [vmem:[%s8] sm:$0xff]
      %v1435 = vld [vmem:[%s8 + $0x8] sm:$0xff]
      %v1436 = vld [vmem:[%s8 + $0x10] sm:$0xff]
      %v1437 = vld [vmem:[%s8 + $0x18] sm:$0xff]
      %v1438 = vld [vmem:[%s9] sm:$0x1]
      %v1440 = vlaneseq
      %v1441 = vshrl.u32 %v1440, 7
      %v1442 = vsub.s32 0, %v1441
      %v1443 = vrot.slane %v1438, %v1442
      %v1446 = vsel %vm382, %v1432, 0
      %v1449 = vsel %vm382, %v1433, 0
      %1451 = vmatprep.subr.mxu0 0.0
      %1452 = vmatpush1.msra.mxu0 %v1434
      %1453 = vmatprep.subr.mxu0 0.0
      %1454 = vmatpush1.msra.mxu0 %v1435
      %1455 = vmatprep.subr.mxu0 0.0
      %1456 = vmatpush1.msra.mxu0 %v1436
      %1457 = vmatprep.subr.mxu0 0.0
      %1458 = vmatpush1.msra.mxu0 %v1437
      %1459 = vmatprep.subr.mxu0 0.0
      %1460 = vmatpush1.msra.mxu0 0.0
      %1461 = vmatprep.subr.mxu0 0.0
      %1462 = vmatpush1.msra.mxu0 0.0
      %1463 = vmatprep.subr.mxu0 0.0
      %1464 = vmatpush1.msra.mxu0 0.0
      %1465 = vmatprep.subr.mxu0 0.0
      %1466 = vmatpush1.msra.mxu0 0.0
      %1467 = vmatprep.subr.mxu0 0.0
      %1468 = vmatpush1.msra.mxu0 0.0
      %1469 = vmatprep.subr.mxu0 0.0
      %1470 = vmatpush1.msra.mxu0 0.0
      %1471 = vmatprep.subr.mxu0 0.0
      %1472 = vmatpush1.msra.mxu0 0.0
      %1473 = vmatprep.subr.mxu0 0.0
      %1474 = vmatpush1.msra.mxu0 0.0
      %1475 = vmatprep.subr.mxu0 0.0
      %1476 = vmatpush1.msra.mxu0 0.0
      %1477 = vmatprep.subr.mxu0 0.0
      %1478 = vmatpush1.msra.mxu0 0.0
      %1479 = vmatprep.subr.mxu0 0.0
      %1480 = vmatpush1.msra.mxu0 0.0
      %1481 = vmatprep.subr.mxu0 0.0
      %1482 = vmatpush1.msra.mxu0 0.0
      %1483 = vmatprep.subr.mxu0 0.0
      %1484 = vmatpush1.msra.mxu0 0.0
      %1485 = vmatprep.subr.mxu0 0.0
      %1486 = vmatpush1.msra.mxu0 0.0
      %1487 = vmatprep.subr.mxu0 0.0
      %1488 = vmatpush1.msra.mxu0 0.0
      %1489 = vmatprep.subr.mxu0 0.0
      %1490 = vmatpush1.msra.mxu0 0.0
      %1491 = vmatprep.subr.mxu0 0.0
      %1492 = vmatpush1.msra.mxu0 0.0
      %1493 = vmatprep.subr.mxu0 0.0
      %1494 = vmatpush1.msra.mxu0 0.0
      %1495 = vmatprep.subr.mxu0 0.0
      %1496 = vmatpush1.msra.mxu0 0.0
      %1497 = vmatprep.subr.mxu0 0.0
      %1498 = vmatpush1.msra.mxu0 0.0
      %1499 = vmatprep.subr.mxu0 0.0
      %1500 = vmatpush1.msra.mxu0 0.0
      %1501 = vmatprep.subr.mxu0 0.0
      %1502 = vmatpush1.msra.mxu0 0.0
      %1503 = vmatprep.subr.mxu0 0.0
      %1504 = vmatpush1.msra.mxu0 0.0
      %1505 = vmatprep.subr.mxu0 0.0
      %1506 = vmatpush1.msra.mxu0 0.0
      %1507 = vmatprep.subr.mxu0 0.0
      %1508 = vmatpush1.msra.mxu0 0.0
      %1509 = vmatprep.subr.mxu0 0.0
      %1510 = vmatpush1.msra.mxu0 0.0
      %1511 = vmatprep.subr.mxu0 0.0
      %1512 = vmatpush1.msra.mxu0 0.0
      %1513 = vmatprep.subr.mxu0 0.0
      %1514 = vmatpush1.msra.mxu0 0.0
      %1515 = vmatprep.mubr.f32.mxu0 0.0
      %1516 = vmatmul.mubr.f32.gmra.mrb[0].mxu0 %v1446
      %v1517 = vpop.f32.mrb[0].mxu0
      %v1518 = vadd.f32 %v1443, %v1517
      %v1519 = vpop.f32.mrb[0].mxu0
      %1520 = vmatprep.mubr.f32.mxu0 0.0
      %1521 = vmatmul.mubr.f32.gmra.mrb[0].mxu0 %v1449
      %v1522 = vpop.f32.mrb[0].mxu0
      %v1523 = vadd.f32 %v1443, %v1522
      %v1524 = vpop.f32.mrb[0].mxu0
      %1525 = vdwg.mxu0
      %v1526 = vadd.f32 %v377, %v1518
      %v1527 = vadd.f32 %v378, %v1523
      %1528 = vst.msk [vmem:[%s376] sm:$0xff] %vm382, %v1526
      %1529 = vst.msk [vmem:[%s376 + $0x8] sm:$0xff] %vm382, %v1527
      %p1530 = scmp.lt.s32.totalorder %s21, 1
      %s1531 = scalar_select %p1530, %s21, 1
      %s1532 = smul.addr %s1531, 2
      %s1533 = smul.addr %s1532, 8
      %s1534 = scalar_lea.vmem %s10, %s1533
      // Predicated region
      $region61: #{bin_model_forward.13} parent=59 // pred_check
        %p1535 = pneg %p259
      $region62: #{bin_model_forward.13} parent=59 // pred_check_branch
        %1537 = sbr.rel (%p1535) target = $region64
      $region63: #{bin_model_forward.13} parent=59 // pred_region
        _
      $region64: #{bin_model_forward.13} parent=59 // pred_fallthru
        _
    $region60: #{bin_model_forward.13} parent=5 // pred_fallthru
      _
    %p1538 = scmp.le.s32.totalorder 2, %s16
    // Predicated region
    $region65: #{bin_model_forward.13} parent=5 // pred_check
      %p1539 = pneg %p1538
    $region66: #{bin_model_forward.13} parent=5 // pred_check_branch
      %1541 = sbr.rel (%p1539) target = $region68
    $region67: #{bin_model_forward.13} parent=5 // pred_region
      %s1542 = ssub.s32 %s16, 2
      // Predicated region
      $region69: #{bin_model_forward.13} parent=67 // pred_check
        %p1543 = pneg %p265
      $region70: #{bin_model_forward.13} parent=67 // pred_check_branch
        %1545 = sbr.rel (%p1543) target = $region72
      $region71: #{bin_model_forward.13} parent=67 // pred_region
        %p1546 = scmp.lt.s32.totalorder %s22, 1
        %s1547 = scalar_select %p1546, %s22, 1
        %s1548 = smul.addr %s1547, 2
        %s1549 = smul.addr %s1548, 8
        %s1550 = scalar_lea.vmem %s10, %s1549
      $region72: #{bin_model_forward.13} parent=67 // pred_fallthru
        _
    $region68: #{bin_model_forward.13} parent=5 // pred_fallthru
      _
  $region6: #{bin_model_forward.13} parent=0 // loop_footer
    %s20 = sadd.s32 1, %s16
  $region7: #{bin_model_forward.13} parent=0 // loop_footer_branch
    %15 = sbr.rel target = $region3
  $region8: #{bin_model_forward.13} parent=0 // loop_exit
    _

// kernel: bin_model_forward.15
$region0: #{bin_model_forward.15}
  #allocation0 [shape = 'u32[]', space=smem, size = 0x4, offset = 0x4, fixed_abs, tag = 'smem constant byte address 0x4 - core index']
  #allocation1 [shape = 'u32[144,128]{1,0:T(1,128)}', space=vmem, size = 0x12000, scoped, tag = 'internal scratch']
  %s0 = inlined_call_operand.vmem [shape: f32[2,16,64], index: 0, kind: input, shape index: {}]
  %s1 = inlined_call_operand.vmem [shape: f32[1,64], index: 1, kind: input, shape index: {}]
  %s2 = inlined_call_operand.vmem [shape: f32[1,64], index: 2, kind: input, shape index: {}]
  %s3 = inlined_call_operand.vmem [shape: f32[64,192], index: 3, kind: input, shape index: {}]
  %s4 = inlined_call_operand.vmem [shape: f32[64,64], index: 4, kind: input, shape index: {}]
  %s5 = inlined_call_operand.vmem [shape: f32[1,64], index: 5, kind: input, shape index: {}]
  %s6 = inlined_call_operand.vmem [shape: f32[1,64], index: 6, kind: input, shape index: {}]
  %s7 = inlined_call_operand.vmem [shape: f32[1,64], index: 7, kind: input, shape index: {}]
  %s8 = inlined_call_operand.vmem [shape: f32[64,64], index: 8, kind: input, shape index: {}]
  %s9 = inlined_call_operand.vmem [shape: f32[1,64], index: 9, kind: input, shape index: {}]
  %s10 = inlined_call_operand.vmem [shape: f32[64,64], index: 10, kind: input, shape index: {}]
  %s11 = inlined_call_operand.vmem [shape: f32[1,64], index: 11, kind: input, shape index: {}]
  %s12 = inlined_call_operand.vmem [shape: f32[2,16,64], index: 12, kind: output, shape index: {}]
  %s13 = sld [smem:[#allocation0]]
  $region81: #{bin_model_forward.15} parent=0
    _
  %s15 = ssub.s32 1, %s13
  %s16 = scalar_select 0, %s15, %s13
  loop: start=0, step=1, limit=4
  $region2: #{bin_model_forward.15} parent=0 // loop_pre_header
    _
  $region3: #{bin_model_forward.15} parent=0 // loop_header
    %s18 = sphi 0, %s22
    %p19 = scmp.ge.s32.totalorder %s18, 4
    %s28 = sphi 0, %s30
    %s31 = sphi 0, %s28
    %s32 = sphi 0, %s31
    %s48 = sphi 0, %s32
    %s52 = sphi 0, %s52
    %s54 = sphi 0, %s52
    %s55 = sphi 0, %s54
    %s69 = sphi 0, %s55
    %s73 = sphi 0, %s73
    %s75 = sphi 0, %s73
    %s76 = sphi 0, %s75
    %s90 = sphi 0, %s76
    %s94 = sphi 0, %s94
    %s96 = sphi 0, %s94
    %s97 = sphi 0, %s96
    %s111 = sphi 0, %s97
    %s115 = sphi 0, %s115
    %s117 = sphi 0, %s115
    %s118 = sphi 0, %s117
    %s132 = sphi 0, %s118
    %s136 = sphi 0, %s136
    %s138 = sphi 0, %s136
    %s139 = sphi 0, %s138
    %s153 = sphi 0, %s139
    %s157 = sphi 0, %s157
    %s159 = sphi 0, %s157
    %s160 = sphi 0, %s159
    %s174 = sphi 0, %s160
    %s178 = sphi 0, %s178
    %s180 = sphi 0, %s178
    %s181 = sphi 0, %s180
    %s195 = sphi 0, %s181
    %s199 = sphi 0, %s199
    %s201 = sphi 0, %s199
    %s202 = sphi 0, %s201
    %s216 = sphi 0, %s202
    %s220 = sphi 0, %s220
    %s222 = sphi 0, %s220
    %s223 = sphi 0, %s222
    %s237 = sphi 0, %s223
    %s241 = sphi 0, %s241
    %s243 = sphi 0, %s241
    %s244 = sphi 0, %s243
    %s258 = sphi 0, %s244
    %s262 = sphi 0, %s262
    %s264 = sphi 0, %s262
    %s265 = sphi 0, %s264
    %s279 = sphi 0, %s265
    %s285 = sphi 0, %s287
    %s288 = sphi 0, %s285
    %s289 = sphi 0, %s288
    %s305 = sphi 0, %s289
  $region4: #{bin_model_forward.15} parent=0 // loop_header_branch
    %21 = sbr.rel (%p19) target = $region8
  $region5: #{bin_model_forward.15} parent=0 // loop_body
    %s23 = ssub.s32 %s18, 1
    %s24 = ssub.s32 %s18, 2
    %s25 = sadd.s32 %s18, 1
    %s26 = ssub.s32 %s18, %s25
    %p27 = scmp.eq.s32.totalorder %s26, 0
    %s29 = sadd.s32 %s28, 1
    %s30 = scalar_select %p27, %s28, %s29
    %p33 = pneg %p27
    %p34 = scmp.eq.s32.totalorder %s18, 1
    %p35 = por %p33, %p34
    %p36 = scmp.ne.s32.totalorder %s28, %s31
    %p37 = scmp.eq.s32.totalorder %s18, 0
    %p38 = por %p36, %p37
    %p39 = scmp.ne.s32.totalorder %s28, %s31
    %p40 = scmp.eq.s32.totalorder %s23, 1
    %p41 = por %p39, %p40
    %p42 = scmp.ne.s32.totalorder %s31, %s32
    %p43 = scmp.eq.s32.totalorder %s23, 0
    %p44 = por %p42, %p43
    %p45 = scmp.ne.s32.totalorder %s31, %s32
    %p46 = scmp.eq.s32.totalorder %s24, 1
    %p47 = por %p45, %p46
    %p49 = scmp.ne.s32.totalorder %s32, %s48
    %p50 = scmp.eq.s32.totalorder %s24, 0
    %p51 = por %p49, %p50
    %s53 = sadd.s32 %s52, 1
    %p56 = scmp.eq.s32.totalorder %s18, 1
    %p57 = scmp.ne.s32.totalorder %s52, %s54
    %p58 = scmp.eq.s32.totalorder %s18, 0
    %p59 = por %p57, %p58
    %p60 = scmp.ne.s32.totalorder %s52, %s54
    %p61 = scmp.eq.s32.totalorder %s23, 1
    %p62 = por %p60, %p61
    %p63 = scmp.ne.s32.totalorder %s54, %s55
    %p64 = scmp.eq.s32.totalorder %s23, 0
    %p65 = por %p63, %p64
    %p66 = scmp.ne.s32.totalorder %s54, %s55
    %p67 = scmp.eq.s32.totalorder %s24, 1
    %p68 = por %p66, %p67
    %p70 = scmp.ne.s32.totalorder %s55, %s69
    %p71 = scmp.eq.s32.totalorder %s24, 0
    %p72 = por %p70, %p71
    %s74 = sadd.s32 %s73, 1
    %p77 = scmp.eq.s32.totalorder %s18, 1
    %p78 = scmp.ne.s32.totalorder %s73, %s75
    %p79 = scmp.eq.s32.totalorder %s18, 0
    %p80 = por %p78, %p79
    %p81 = scmp.ne.s32.totalorder %s73, %s75
    %p82 = scmp.eq.s32.totalorder %s23, 1
    %p83 = por %p81, %p82
    %p84 = scmp.ne.s32.totalorder %s75, %s76
    %p85 = scmp.eq.s32.totalorder %s23, 0
    %p86 = por %p84, %p85
    %p87 = scmp.ne.s32.totalorder %s75, %s76
    %p88 = scmp.eq.s32.totalorder %s24, 1
    %p89 = por %p87, %p88
    %p91 = scmp.ne.s32.totalorder %s76, %s90
    %p92 = scmp.eq.s32.totalorder %s24, 0
    %p93 = por %p91, %p92
    %s95 = sadd.s32 %s94, 1
    %p98 = scmp.eq.s32.totalorder %s18, 1
    %p99 = scmp.ne.s32.totalorder %s94, %s96
    %p100 = scmp.eq.s32.totalorder %s18, 0
    %p101 = por %p99, %p100
    %p102 = scmp.ne.s32.totalorder %s94, %s96
    %p103 = scmp.eq.s32.totalorder %s23, 1
    %p104 = por %p102, %p103
    %p105 = scmp.ne.s32.totalorder %s96, %s97
    %p106 = scmp.eq.s32.totalorder %s23, 0
    %p107 = por %p105, %p106
    %p108 = scmp.ne.s32.totalorder %s96, %s97
    %p109 = scmp.eq.s32.totalorder %s24, 1
    %p110 = por %p108, %p109
    %p112 = scmp.ne.s32.totalorder %s97, %s111
    %p113 = scmp.eq.s32.totalorder %s24, 0
    %p114 = por %p112, %p113
    %s116 = sadd.s32 %s115, 1
    %p119 = scmp.eq.s32.totalorder %s18, 1
    %p120 = scmp.ne.s32.totalorder %s115, %s117
    %p121 = scmp.eq.s32.totalorder %s18, 0
    %p122 = por %p120, %p121
    %p123 = scmp.ne.s32.totalorder %s115, %s117
    %p124 = scmp.eq.s32.totalorder %s23, 1
    %p125 = por %p123, %p124
    %p126 = scmp.ne.s32.totalorder %s117, %s118
    %p127 = scmp.eq.s32.totalorder %s23, 0
    %p128 = por %p126, %p127
    %p129 = scmp.ne.s32.totalorder %s117, %s118
    %p130 = scmp.eq.s32.totalorder %s24, 1
    %p131 = por %p129, %p130
    %p133 = scmp.ne.s32.totalorder %s118, %s132
    %p134 = scmp.eq.s32.totalorder %s24, 0
    %p135 = por %p133, %p134
    %s137 = sadd.s32 %s136, 1
    %p140 = scmp.eq.s32.totalorder %s18, 1
    %p141 = scmp.ne.s32.totalorder %s136, %s138
    %p142 = scmp.eq.s32.totalorder %s18, 0
    %p143 = por %p141, %p142
    %p144 = scmp.ne.s32.totalorder %s136, %s138
    %p145 = scmp.eq.s32.totalorder %s23, 1
    %p146 = por %p144, %p145
    %p147 = scmp.ne.s32.totalorder %s138, %s139
    %p148 = scmp.eq.s32.totalorder %s23, 0
    %p149 = por %p147, %p148
    %p150 = scmp.ne.s32.totalorder %s138, %s139
    %p151 = scmp.eq.s32.totalorder %s24, 1
    %p152 = por %p150, %p151
    %p154 = scmp.ne.s32.totalorder %s139, %s153
    %p155 = scmp.eq.s32.totalorder %s24, 0
    %p156 = por %p154, %p155
    %s158 = sadd.s32 %s157, 1
    %p161 = scmp.eq.s32.totalorder %s18, 1
    %p162 = scmp.ne.s32.totalorder %s157, %s159
    %p163 = scmp.eq.s32.totalorder %s18, 0
    %p164 = por %p162, %p163
    %p165 = scmp.ne.s32.totalorder %s157, %s159
    %p166 = scmp.eq.s32.totalorder %s23, 1
    %p167 = por %p165, %p166
    %p168 = scmp.ne.s32.totalorder %s159, %s160
    %p169 = scmp.eq.s32.totalorder %s23, 0
    %p170 = por %p168, %p169
    %p171 = scmp.ne.s32.totalorder %s159, %s160
    %p172 = scmp.eq.s32.totalorder %s24, 1
    %p173 = por %p171, %p172
    %p175 = scmp.ne.s32.totalorder %s160, %s174
    %p176 = scmp.eq.s32.totalorder %s24, 0
    %p177 = por %p175, %p176
    %s179 = sadd.s32 %s178, 1
    %p182 = scmp.eq.s32.totalorder %s18, 1
    %p183 = scmp.ne.s32.totalorder %s178, %s180
    %p184 = scmp.eq.s32.totalorder %s18, 0
    %p185 = por %p183, %p184
    %p186 = scmp.ne.s32.totalorder %s178, %s180
    %p187 = scmp.eq.s32.totalorder %s23, 1
    %p188 = por %p186, %p187
    %p189 = scmp.ne.s32.totalorder %s180, %s181
    %p190 = scmp.eq.s32.totalorder %s23, 0
    %p191 = por %p189, %p190
    %p192 = scmp.ne.s32.totalorder %s180, %s181
    %p193 = scmp.eq.s32.totalorder %s24, 1
    %p194 = por %p192, %p193
    %p196 = scmp.ne.s32.totalorder %s181, %s195
    %p197 = scmp.eq.s32.totalorder %s24, 0
    %p198 = por %p196, %p197
    %s200 = sadd.s32 %s199, 1
    %p203 = scmp.eq.s32.totalorder %s18, 1
    %p204 = scmp.ne.s32.totalorder %s199, %s201
    %p205 = scmp.eq.s32.totalorder %s18, 0
    %p206 = por %p204, %p205
    %p207 = scmp.ne.s32.totalorder %s199, %s201
    %p208 = scmp.eq.s32.totalorder %s23, 1
    %p209 = por %p207, %p208
    %p210 = scmp.ne.s32.totalorder %s201, %s202
    %p211 = scmp.eq.s32.totalorder %s23, 0
    %p212 = por %p210, %p211
    %p213 = scmp.ne.s32.totalorder %s201, %s202
    %p214 = scmp.eq.s32.totalorder %s24, 1
    %p215 = por %p213, %p214
    %p217 = scmp.ne.s32.totalorder %s202, %s216
    %p218 = scmp.eq.s32.totalorder %s24, 0
    %p219 = por %p217, %p218
    %s221 = sadd.s32 %s220, 1
    %p224 = scmp.eq.s32.totalorder %s18, 1
    %p225 = scmp.ne.s32.totalorder %s220, %s222
    %p226 = scmp.eq.s32.totalorder %s18, 0
    %p227 = por %p225, %p226
    %p228 = scmp.ne.s32.totalorder %s220, %s222
    %p229 = scmp.eq.s32.totalorder %s23, 1
    %p230 = por %p228, %p229
    %p231 = scmp.ne.s32.totalorder %s222, %s223
    %p232 = scmp.eq.s32.totalorder %s23, 0
    %p233 = por %p231, %p232
    %p234 = scmp.ne.s32.totalorder %s222, %s223
    %p235 = scmp.eq.s32.totalorder %s24, 1
    %p236 = por %p234, %p235
    %p238 = scmp.ne.s32.totalorder %s223, %s237
    %p239 = scmp.eq.s32.totalorder %s24, 0
    %p240 = por %p238, %p239
    %s242 = sadd.s32 %s241, 1
    %p245 = scmp.eq.s32.totalorder %s18, 1
    %p246 = scmp.ne.s32.totalorder %s241, %s243
    %p247 = scmp.eq.s32.totalorder %s18, 0
    %p248 = por %p246, %p247
    %p249 = scmp.ne.s32.totalorder %s241, %s243
    %p250 = scmp.eq.s32.totalorder %s23, 1
    %p251 = por %p249, %p250
    %p252 = scmp.ne.s32.totalorder %s243, %s244
    %p253 = scmp.eq.s32.totalorder %s23, 0
    %p254 = por %p252, %p253
    %p255 = scmp.ne.s32.totalorder %s243, %s244
    %p256 = scmp.eq.s32.totalorder %s24, 1
    %p257 = por %p255, %p256
    %p259 = scmp.ne.s32.totalorder %s244, %s258
    %p260 = scmp.eq.s32.totalorder %s24, 0
    %p261 = por %p259, %p260
    %s263 = sadd.s32 %s262, 1
    %p266 = scmp.eq.s32.totalorder %s18, 1
    %p267 = scmp.ne.s32.totalorder %s262, %s264
    %p268 = scmp.eq.s32.totalorder %s18, 0
    %p269 = por %p267, %p268
    %p270 = scmp.ne.s32.totalorder %s262, %s264
    %p271 = scmp.eq.s32.totalorder %s23, 1
    %p272 = por %p270, %p271
    %p273 = scmp.ne.s32.totalorder %s264, %s265
    %p274 = scmp.eq.s32.totalorder %s23, 0
    %p275 = por %p273, %p274
    %p276 = scmp.ne.s32.totalorder %s264, %s265
    %p277 = scmp.eq.s32.totalorder %s24, 1
    %p278 = por %p276, %p277
    %p280 = scmp.ne.s32.totalorder %s265, %s279
    %p281 = scmp.eq.s32.totalorder %s24, 0
    %p282 = por %p280, %p281
    %s283 = ssub.s32 %s18, %s25
    %p284 = scmp.eq.s32.totalorder %s283, 0
    %s286 = sadd.s32 %s285, 1
    %s287 = scalar_select %p284, %s285, %s286
    %p290 = pneg %p284
    %p291 = scmp.eq.s32.totalorder %s18, 1
    %p292 = por %p290, %p291
    %p293 = scmp.ne.s32.totalorder %s285, %s288
    %p294 = scmp.eq.s32.totalorder %s18, 0
    %p295 = por %p293, %p294
    %p296 = scmp.ne.s32.totalorder %s285, %s288
    %p297 = scmp.eq.s32.totalorder %s23, 1
    %p298 = por %p296, %p297
    %p299 = scmp.ne.s32.totalorder %s288, %s289
    %p300 = scmp.eq.s32.totalorder %s23, 0
    %p301 = por %p299, %p300
    %p302 = scmp.ne.s32.totalorder %s288, %s289
    %p303 = scmp.eq.s32.totalorder %s24, 1
    %p304 = por %p302, %p303
    %p306 = scmp.ne.s32.totalorder %s289, %s305
    %p307 = scmp.eq.s32.totalorder %s24, 0
    %p308 = por %p306, %p307
    %p309 = scmp.le.s32.totalorder 1, %s18
    %p310 = scmp.lt.s32.totalorder %s18, 3
    %p311 = pnand %p309, %p310
    %p312 = pneg %p311
    // Predicated region
    $region9: #{bin_model_forward.15} parent=5 // pred_check
      _
    $region10: #{bin_model_forward.15} parent=5 // pred_check_branch
      %314 = sbr.rel (%p311) target = $region12
    $region11: #{bin_model_forward.15} parent=5 // pred_region
      %s315 = ssub.s32 %s18, 1
      // Predicated region
      $region13: #{bin_model_forward.15} parent=11 // pred_check
        %p316 = pneg %p65
      $region14: #{bin_model_forward.15} parent=11 // pred_check_branch
        %318 = sbr.rel (%p316) target = $region16
      $region15: #{bin_model_forward.15} parent=11 // pred_region
        _
      $region16: #{bin_model_forward.15} parent=11 // pred_fallthru
        _
      // Predicated region
      $region17: #{bin_model_forward.15} parent=11 // pred_check
        %p319 = pneg %p86
      $region18: #{bin_model_forward.15} parent=11 // pred_check_branch
        %321 = sbr.rel (%p319) target = $region20
      $region19: #{bin_model_forward.15} parent=11 // pred_region
        _
      $region20: #{bin_model_forward.15} parent=11 // pred_fallthru
        _
      // Predicated region
      $region21: #{bin_model_forward.15} parent=11 // pred_check
        %p322 = pneg %p107
      $region22: #{bin_model_forward.15} parent=11 // pred_check_branch
        %324 = sbr.rel (%p322) target = $region24
      $region23: #{bin_model_forward.15} parent=11 // pred_region
        _
      $region24: #{bin_model_forward.15} parent=11 // pred_fallthru
        _
      // Predicated region
      $region25: #{bin_model_forward.15} parent=11 // pred_check
        %p325 = pneg %p128
      $region26: #{bin_model_forward.15} parent=11 // pred_check_branch
        %327 = sbr.rel (%p325) target = $region28
      $region27: #{bin_model_forward.15} parent=11 // pred_region
        _
      $region28: #{bin_model_forward.15} parent=11 // pred_fallthru
        _
      // Predicated region
      $region29: #{bin_model_forward.15} parent=11 // pred_check
        %p328 = pneg %p149
      $region30: #{bin_model_forward.15} parent=11 // pred_check_branch
        %330 = sbr.rel (%p328) target = $region32
      $region31: #{bin_model_forward.15} parent=11 // pred_region
        _
      $region32: #{bin_model_forward.15} parent=11 // pred_fallthru
        _
      // Predicated region
      $region33: #{bin_model_forward.15} parent=11 // pred_check
        %p331 = pneg %p170
      $region34: #{bin_model_forward.15} parent=11 // pred_check_branch
        %333 = sbr.rel (%p331) target = $region36
      $region35: #{bin_model_forward.15} parent=11 // pred_region
        _
      $region36: #{bin_model_forward.15} parent=11 // pred_fallthru
        _
      // Predicated region
      $region37: #{bin_model_forward.15} parent=11 // pred_check
        %p334 = pneg %p191
      $region38: #{bin_model_forward.15} parent=11 // pred_check_branch
        %336 = sbr.rel (%p334) target = $region40
      $region39: #{bin_model_forward.15} parent=11 // pred_region
        _
      $region40: #{bin_model_forward.15} parent=11 // pred_fallthru
        _
      // Predicated region
      $region41: #{bin_model_forward.15} parent=11 // pred_check
        %p337 = pneg %p212
      $region42: #{bin_model_forward.15} parent=11 // pred_check_branch
        %339 = sbr.rel (%p337) target = $region44
      $region43: #{bin_model_forward.15} parent=11 // pred_region
        _
      $region44: #{bin_model_forward.15} parent=11 // pred_fallthru
        _
      // Predicated region
      $region45: #{bin_model_forward.15} parent=11 // pred_check
        %p340 = pneg %p233
      $region46: #{bin_model_forward.15} parent=11 // pred_check_branch
        %342 = sbr.rel (%p340) target = $region48
      $region47: #{bin_model_forward.15} parent=11 // pred_region
        _
      $region48: #{bin_model_forward.15} parent=11 // pred_fallthru
        _
      // Predicated region
      $region49: #{bin_model_forward.15} parent=11 // pred_check
        %p343 = pneg %p254
      $region50: #{bin_model_forward.15} parent=11 // pred_check_branch
        %345 = sbr.rel (%p343) target = $region52
      $region51: #{bin_model_forward.15} parent=11 // pred_region
        _
      $region52: #{bin_model_forward.15} parent=11 // pred_fallthru
        _
      // Predicated region
      $region53: #{bin_model_forward.15} parent=11 // pred_check
        %p346 = pneg %p275
      $region54: #{bin_model_forward.15} parent=11 // pred_check_branch
        %348 = sbr.rel (%p346) target = $region56
      $region55: #{bin_model_forward.15} parent=11 // pred_region
        _
      $region56: #{bin_model_forward.15} parent=11 // pred_fallthru
        _
    $region12: #{bin_model_forward.15} parent=5 // pred_fallthru
      _
    %p349 = scmp.lt.s32.totalorder %s18, 2
    // Predicated region
    $region57: #{bin_model_forward.15} parent=5 // pred_check
      %p350 = pneg %p349
    $region58: #{bin_model_forward.15} parent=5 // pred_check_branch
      %352 = sbr.rel (%p350) target = $region60
    $region59: #{bin_model_forward.15} parent=5 // pred_region
      // Predicated region
      $region61: #{bin_model_forward.15} parent=59 // pred_check
        %p353 = pneg %p38
      $region62: #{bin_model_forward.15} parent=59 // pred_check_branch
        %355 = sbr.rel (%p353) target = $region64
      $region63: #{bin_model_forward.15} parent=59 // pred_region
        %p356 = scmp.lt.s32.totalorder %s18, 1
        %s357 = scalar_select %p356, %s18, 1
        %s358 = smul.addr %s357, 2
        %s359 = smul.addr %s358, 8
        %s360 = scalar_lea.vmem %s0, %s359
      $region64: #{bin_model_forward.15} parent=59 // pred_fallthru
        _
    $region60: #{bin_model_forward.15} parent=5 // pred_fallthru
      _
    %p361 = scmp.le.s32.totalorder 1, %s18
    %p362 = scmp.lt.s32.totalorder %s18, 3
    %p363 = pnand %p361, %p362
    %p364 = pneg %p363
    // Predicated region
    $region65: #{bin_model_forward.15} parent=5 // pred_check
      _
    $region66: #{bin_model_forward.15} parent=5 // pred_check_branch
      %366 = sbr.rel (%p363) target = $region68
    $region67: #{bin_model_forward.15} parent=5 // pred_region
      %s367 = ssub.s32 %s18, 1
      %p368 = scmp.lt.s32.totalorder %s23, 1
      %s369 = scalar_select %p368, %s23, 1
      %s370 = smul.addr %s369, 2
      %s371 = smul.addr %s370, 8
      %s372 = scalar_lea.vmem %s0, %s371
      %p373 = pneg %p44
      %p374 = pneg %p41
      %p375 = pneg %p65
      %p376 = pneg %p62
      %p377 = pneg %p86
      %p378 = pneg %p83
      %p379 = pneg %p107
      %p380 = pneg %p104
      %p381 = pneg %p128
      %p382 = pneg %p125
      %p383 = pneg %p149
      %p384 = pneg %p146
      %p385 = pneg %p170
      %p386 = pneg %p167
      %p387 = pneg %p191
      %p388 = pneg %p188
      %p389 = pneg %p212
      %p390 = pneg %p209
      %p391 = pneg %p233
      %p392 = pneg %p230
      %p393 = pneg %p254
      %p394 = pneg %p251
      %p395 = pneg %p275
      %p396 = pneg %p272
      %p397 = pneg %p301
      %p398 = pneg %p298
      %p399 = scmp.lt.s32.totalorder %s23, 1
      %s400 = scalar_select %p399, %s23, 1
      %s401 = smul.addr %s400, 2
      %s402 = smul.addr %s401, 8
      %s403 = scalar_lea.vmem %s12, %s402
      %p404 = scmp.lt.s32.totalorder %s23, 1
      %s405 = scalar_select %p404, %s23, 1
      %s406 = smul.addr %s405, 2
      %s407 = smul.addr %s406, 8
      %s408 = scalar_lea.vmem %s0, %s407
      %p409 = scmp.lt.s32.totalorder %s23, 1
      %s410 = scalar_select %p409, %s23, 1
      %s411 = smul.addr %s410, 2
      %s412 = smul.addr %s411, 8
      %s413 = scalar_lea.vmem %s12, %s412
      %v414 = vld [vmem:[%s408] sm:$0xff]
      %v415 = vld [vmem:[%s408 + $0x8] sm:$0xff]
      %v416 = vld [vmem:[%s1] sm:$0x1]
      %v417 = vld [vmem:[%s2] sm:$0x1]
      %vm418 = vcmask 523264
      %v419 = vsel %vm418, %v414, 0.0
      %420 = vadd.xlane.f32.xlu0 %v419
      %v421 = vpop.xlane.xlu0 %420
      %v422 = vsel %vm418, %v415, 0.0
      %423 = vadd.xlane.f32.xlu0 %v422
      %v424 = vpop.xlane.xlu0 %423
      %v425 = vrcp.pop 64.0
      %v426 = vmul.f32 %v421, %v425
      %v427 = vmul.f32 %v424, %v425
      %v428 = vsub.f32 %v414, %v426
      %v429 = vsub.f32 %v415, %v427
      %v430 = vmul.f32 %v428, %v428
      %v431 = vmul.f32 %v429, %v429
      %v432 = vsel %vm418, %v430, 0.0
      %433 = vadd.xlane.f32.xlu0 %v432
      %v434 = vpop.xlane.xlu0 %433
      %v435 = vsel %vm418, %v431, 0.0
      %436 = vadd.xlane.f32.xlu0 %v435
      %v437 = vpop.xlane.xlu0 %436
      %v438 = vmul.f32 %v434, %v425
      %v439 = vmul.f32 %v437, %v425
      %v440 = vadd.f32 %v438, 1e-05
      %v441 = vadd.f32 %v439, 1e-05
      %v442 = vrsqrt.pop %v440
      %v443 = vrsqrt.pop %v441
      %v444 = vmul.f32 %v428, %v442
      %v445 = vmul.f32 %v429, %v443
      %v447 = vlaneseq
      %v448 = vshrl.u32 %v447, 7
      %v449 = vsub.s32 0, %v448
      %v450 = vrot.slane %v416, %v449
      %v452 = vmul.f32 %v444, %v450
      %v453 = vmul.f32 %v445, %v450
      %v455 = vlaneseq
      %v456 = vshrl.u32 %v455, 7
      %v457 = vsub.s32 0, %v456
      %v458 = vrot.slane %v417, %v457
      %v460 = vadd.f32 %v452, %v458
      %v461 = vadd.f32 %v453, %v458
      %v462 = vld [vmem:[%s3] sm:$0xff]
      %v463 = vld [vmem:[%s3 + $0x8] sm:$0xff]
      %v464 = vld [vmem:[%s3 + $0x10] sm:$0xff]
      %v465 = vld [vmem:[%s3 + $0x18] sm:$0xff]
      %v466 = vld [vmem:[%s3 + $0x20] sm:$0xff]
      %v467 = vld [vmem:[%s3 + $0x28] sm:$0xff]
      %v468 = vld [vmem:[%s3 + $0x30] sm:$0xff]
      %v469 = vld [vmem:[%s3 + $0x38] sm:$0xff]
      %v470 = vld [vmem:[%s3 + $0x40] sm:$0xff]
      %v471 = vld [vmem:[%s3 + $0x48] sm:$0xff]
      %v472 = vld [vmem:[%s3 + $0x50] sm:$0xff]
      %v473 = vld [vmem:[%s3 + $0x58] sm:$0xff]
      %v474 = vld [vmem:[%s3 + $0x60] sm:$0xff]
      %v475 = vld [vmem:[%s3 + $0x68] sm:$0xff]
      %v476 = vld [vmem:[%s3 + $0x70] sm:$0xff]
      %v477 = vld [vmem:[%s3 + $0x78] sm:$0xff]
      %v479 = vsel %vm418, %v460, 0
      %v482 = vsel %vm418, %v461, 0
      %484 = vmatprep.subr.mxu0 %v463
      %485 = vmatpush1.msra.mxu0 %v462
      %486 = vmatprep.subr.mxu0 %v465
      %487 = vmatpush1.msra.mxu0 %v464
      %488 = vmatprep.subr.mxu0 %v467
      %489 = vmatpush1.msra.mxu0 %v466
      %490 = vmatprep.subr.mxu0 %v469
      %491 = vmatpush1.msra.mxu0 %v468
      %492 = vmatprep.subr.mxu0 %v471
      %493 = vmatpush1.msra.mxu0 %v470
      %494 = vmatprep.subr.mxu0 %v473
      %495 = vmatpush1.msra.mxu0 %v472
      %496 = vmatprep.subr.mxu0 %v475
      %497 = vmatpush1.msra.mxu0 %v474
      %498 = vmatprep.subr.mxu0 %v477
      %499 = vmatpush1.msra.mxu0 %v476
      %500 = vmatprep.subr.mxu0 0.0
      %501 = vmatpush1.msra.mxu0 0.0
      %502 = vmatprep.subr.mxu0 0.0
      %503 = vmatpush1.msra.mxu0 0.0
      %504 = vmatprep.subr.mxu0 0.0
      %505 = vmatpush1.msra.mxu0 0.0
      %506 = vmatprep.subr.mxu0 0.0
      %507 = vmatpush1.msra.mxu0 0.0
      %508 = vmatprep.subr.mxu0 0.0
      %509 = vmatpush1.msra.mxu0 0.0
      %510 = vmatprep.subr.mxu0 0.0
      %511 = vmatpush1.msra.mxu0 0.0
      %512 = vmatprep.subr.mxu0 0.0
      %513 = vmatpush1.msra.mxu0 0.0
      %514 = vmatprep.subr.mxu0 0.0
      %515 = vmatpush1.msra.mxu0 0.0
      %516 = vmatprep.subr.mxu0 0.0
      %517 = vmatpush1.msra.mxu0 0.0
      %518 = vmatprep.subr.mxu0 0.0
      %519 = vmatpush1.msra.mxu0 0.0
      %520 = vmatprep.subr.mxu0 0.0
      %521 = vmatpush1.msra.mxu0 0.0
      %522 = vmatprep.subr.mxu0 0.0
      %523 = vmatpush1.msra.mxu0 0.0
      %524 = vmatprep.subr.mxu0 0.0
      %525 = vmatpush1.msra.mxu0 0.0
      %526 = vmatprep.subr.mxu0 0.0
      %527 = vmatpush1.msra.mxu0 0.0
      %528 = vmatprep.subr.mxu0 0.0
      %529 = vmatpush1.msra.mxu0 0.0
      %530 = vmatprep.subr.mxu0 0.0
      %531 = vmatpush1.msra.mxu0 0.0
      %532 = vmatprep.subr.mxu0 0.0
      %533 = vmatpush1.msra.mxu0 0.0
      %534 = vmatprep.subr.mxu0 0.0
      %535 = vmatpush1.msra.mxu0 0.0
      %536 = vmatprep.subr.mxu0 0.0
      %537 = vmatpush1.msra.mxu0 0.0
      %538 = vmatprep.subr.mxu0 0.0
      %539 = vmatpush1.msra.mxu0 0.0
      %540 = vmatprep.subr.mxu0 0.0
      %541 = vmatpush1.msra.mxu0 0.0
      %542 = vmatprep.subr.mxu0 0.0
      %543 = vmatpush1.msra.mxu0 0.0
      %544 = vmatprep.subr.mxu0 0.0
      %545 = vmatpush1.msra.mxu0 0.0
      %546 = vmatprep.subr.mxu0 0.0
      %547 = vmatpush1.msra.mxu0 0.0
      %548 = vmatprep.mubr.f32.mxu0 0.0
      %549 = vmatmul.mubr.f32.gmra.mrb[0].mxu0 %v479
      %v550 = vpop.f32.mrb[0].mxu0
      %v551 = vadd.f32 0.0, %v550
      %v552 = vpop.f32.mrb[0].mxu0
      %v553 = vadd.f32 0.0, %v552
      %554 = vmatprep.mubr.f32.mxu0 0.0
      %555 = vmatmul.mubr.f32.gmra.mrb[0].mxu0 %v482
      %v556 = vpop.f32.mrb[0].mxu0
      %v557 = vadd.f32 0.0, %v556
      %v558 = vpop.f32.mrb[0].mxu0
      %v559 = vadd.f32 0.0, %v558
      %560 = vdwg.mxu0
      %563 = vrot.lane.b32.xlu0 %v551, 64
      %v564 = vpop.permute.xlu0 %563
      %565 = vrot.lane.b32.xlu0 %v557, 64
      %v566 = vpop.permute.xlu0 %565
      %vm567 = vcmask 130048
      %v568 = vsel %vm567, %v551, 0
      %v570 = vsel %vm567, %v557, 0
      %v572 = vsel %vm567, %v564, 0
      %v574 = vsel %vm567, %v566, 0
      %576 = vmatprep.subr.mxu0 0.0
      %577 = vmatpush1.xpose.msra.mxu0 %v572
      %578 = vmatprep.subr.mxu0 0.0
      %579 = vmatpush1.xpose.msra.mxu0 %v574
      %580 = vmatprep.subr.mxu0 0.0
      %581 = vmatpush1.xpose.msra.mxu0 0.0
      %582 = vmatprep.subr.mxu0 0.0
      %583 = vmatpush1.xpose.msra.mxu0 0.0
      %584 = vmatprep.subr.mxu0 0.0
      %585 = vmatpush1.xpose.msra.mxu0 0.0
      %586 = vmatprep.subr.mxu0 0.0
      %587 = vmatpush1.xpose.msra.mxu0 0.0
      %588 = vmatprep.subr.mxu0 0.0
      %589 = vmatpush1.xpose.msra.mxu0 0.0
      %590 = vmatprep.subr.mxu0 0.0
      %591 = vmatpush1.xpose.msra.mxu0 0.0
      %592 = vmatprep.subr.mxu0 0.0
      %593 = vmatpush1.xpose.msra.mxu0 0.0
      %594 = vmatprep.subr.mxu0 0.0
      %595 = vmatpush1.xpose.msra.mxu0 0.0
      %596 = vmatprep.subr.mxu0 0.0
      %597 = vmatpush1.xpose.msra.mxu0 0.0
      %598 = vmatprep.subr.mxu0 0.0
      %599 = vmatpush1.xpose.msra.mxu0 0.0
      %600 = vmatprep.subr.mxu0 0.0
      %601 = vmatpush1.xpose.msra.mxu0 0.0
      %602 = vmatprep.subr.mxu0 0.0
      %603 = vmatpush1.xpose.msra.mxu0 0.0
      %604 = vmatprep.subr.mxu0 0.0
      %605 = vmatpush1.xpose.msra.mxu0 0.0
      %606 = vmatprep.subr.mxu0 0.0
      %607 = vmatpush1.xpose.msra.mxu0 0.0
      %608 = vmatprep.subr.mxu0 0.0
      %609 = vmatpush1.xpose.msra.mxu0 0.0
      %610 = vmatprep.subr.mxu0 0.0
      %611 = vmatpush1.xpose.msra.mxu0 0.0
      %612 = vmatprep.subr.mxu0 0.0
      %613 = vmatpush1.xpose.msra.mxu0 0.0
      %614 = vmatprep.subr.mxu0 0.0
      %615 = vmatpush1.xpose.msra.mxu0 0.0
      %616 = vmatprep.subr.mxu0 0.0
      %617 = vmatpush1.xpose.msra.mxu0 0.0
      %618 = vmatprep.subr.mxu0 0.0
      %619 = vmatpush1.xpose.msra.mxu0 0.0
      %620 = vmatprep.subr.mxu0 0.0
      %621 = vmatpush1.xpose.msra.mxu0 0.0
      %622 = vmatprep.subr.mxu0 0.0
      %623 = vmatpush1.xpose.msra.mxu0 0.0
      %624 = vmatprep.subr.mxu0 0.0
      %625 = vmatpush1.xpose.msra.mxu0 0.0
      %626 = vmatprep.subr.mxu0 0.0
      %627 = vmatpush1.xpose.msra.mxu0 0.0
      %628 = vmatprep.subr.mxu0 0.0
      %629 = vmatpush1.xpose.msra.mxu0 0.0
      %630 = vmatprep.subr.mxu0 0.0
      %631 = vmatpush1.xpose.msra.mxu0 0.0
      %632 = vmatprep.subr.mxu0 0.0
      %633 = vmatpush1.xpose.msra.mxu0 0.0
      %634 = vmatprep.subr.mxu0 0.0
      %635 = vmatpush1.xpose.msra.mxu0 0.0
      %636 = vmatprep.subr.mxu0 0.0
      %637 = vmatpush1.xpose.msra.mxu0 0.0
      %638 = vmatprep.subr.mxu0 0.0
      %639 = vmatpush1.xpose.msra.mxu0 0.0
      %640 = vmatprep.mubr.f32.mxu0 0.0
      %641 = vmatmul.mubr.f32.gmra.mrb[0].mxu0 %v568
      %v642 = vpop.f32.mrb[0].mxu0
      %v643 = vadd.f32 0.0, %v642
      %v644 = vpop.f32.mrb[0].mxu0
      %645 = vmatprep.mubr.f32.mxu0 0.0
      %646 = vmatmul.mubr.f32.gmra.mrb[0].mxu0 %v570
      %v647 = vpop.f32.mrb[0].mxu0
      %v648 = vadd.f32 0.0, %v647
      %v649 = vpop.f32.mrb[0].mxu0
      %650 = vdwg.mxu0
      %v651 = vmul.f32 %v643, 0.25
      %v652 = vmul.f32 %v648, 0.25
      %v653 = vsel %vm567, %v651, -inf
      %654 = vmax.xlane.f32.xlu0 %v653
      %v655 = vpop.xlane.xlu0 %654
      %v656 = vsel %vm567, %v652, -inf
      %657 = vmax.xlane.f32.xlu0 %v656
      %v658 = vpop.xlane.xlu0 %657
      %v659 = vsub.f32 %v651, %v655
      %v660 = vsub.f32 %v652, %v658
      %v661 = vmul.f32 %v659, 1.442695
      %v662 = vpow.pop %v661
      %v663 = vmul.f32 %v660, 1.442695
      %v664 = vpow.pop %v663
      %v665 = vsel %vm567, %v662, 0.0
      %666 = vadd.xlane.f32.xlu0 %v665
      %v667 = vpop.xlane.xlu0 %666
      %v668 = vsel %vm567, %v664, 0.0
      %669 = vadd.xlane.f32.xlu0 %v668
      %v670 = vpop.xlane.xlu0 %669
      %v671 = vrcp.pop %v667
      %v672 = vmul.f32 %v662, %v671
      %v673 = vrcp.pop %v670
      %v674 = vmul.f32 %v664, %v673
      %v676 = vsel %vm567, %v672, 0
      %v679 = vsel %vm567, %v674, 0
      %681 = vmatprep.subr.mxu0 0.0
      %682 = vmatpush1.msra.mxu0 %v553
      %683 = vmatprep.subr.mxu0 0.0
      %684 = vmatpush1.msra.mxu0 %v559
      %685 = vmatprep.subr.mxu0 0.0
      %686 = vmatpush1.msra.mxu0 0.0
      %687 = vmatprep.subr.mxu0 0.0
      %688 = vmatpush1.msra.mxu0 0.0
      %689 = vmatprep.subr.mxu0 0.0
      %690 = vmatpush1.msra.mxu0 0.0
      %691 = vmatprep.subr.mxu0 0.0
      %692 = vmatpush1.msra.mxu0 0.0
      %693 = vmatprep.subr.mxu0 0.0
      %694 = vmatpush1.msra.mxu0 0.0
      %695 = vmatprep.subr.mxu0 0.0
      %696 = vmatpush1.msra.mxu0 0.0
      %697 = vmatprep.subr.mxu0 0.0
      %698 = vmatpush1.msra.mxu0 0.0
      %699 = vmatprep.subr.mxu0 0.0
      %700 = vmatpush1.msra.mxu0 0.0
      %701 = vmatprep.subr.mxu0 0.0
      %702 = vmatpush1.msra.mxu0 0.0
      %703 = vmatprep.subr.mxu0 0.0
      %704 = vmatpush1.msra.mxu0 0.0
      %705 = vmatprep.subr.mxu0 0.0
      %706 = vmatpush1.msra.mxu0 0.0
      %707 = vmatprep.subr.mxu0 0.0
      %708 = vmatpush1.msra.mxu0 0.0
      %709 = vmatprep.subr.mxu0 0.0
      %710 = vmatpush1.msra.mxu0 0.0
      %711 = vmatprep.subr.mxu0 0.0
      %712 = vmatpush1.msra.mxu0 0.0
      %713 = vmatprep.subr.mxu0 0.0
      %714 = vmatpush1.msra.mxu0 0.0
      %715 = vmatprep.subr.mxu0 0.0
      %716 = vmatpush1.msra.mxu0 0.0
      %717 = vmatprep.subr.mxu0 0.0
      %718 = vmatpush1.msra.mxu0 0.0
      %719 = vmatprep.subr.mxu0 0.0
      %720 = vmatpush1.msra.mxu0 0.0
      %721 = vmatprep.subr.mxu0 0.0
      %722 = vmatpush1.msra.mxu0 0.0
      %723 = vmatprep.subr.mxu0 0.0
      %724 = vmatpush1.msra.mxu0 0.0
      %725 = vmatprep.subr.mxu0 0.0
      %726 = vmatpush1.msra.mxu0 0.0
      %727 = vmatprep.subr.mxu0 0.0
      %728 = vmatpush1.msra.mxu0 0.0
      %729 = vmatprep.subr.mxu0 0.0
      %730 = vmatpush1.msra.mxu0 0.0
      %731 = vmatprep.subr.mxu0 0.0
      %732 = vmatpush1.msra.mxu0 0.0
      %733 = vmatprep.subr.mxu0 0.0
      %734 = vmatpush1.msra.mxu0 0.0
      %735 = vmatprep.subr.mxu0 0.0
      %736 = vmatpush1.msra.mxu0 0.0
      %737 = vmatprep.subr.mxu0 0.0
      %738 = vmatpush1.msra.mxu0 0.0
      %739 = vmatprep.subr.mxu0 0.0
      %740 = vmatpush1.msra.mxu0 0.0
      %741 = vmatprep.subr.mxu0 0.0
      %742 = vmatpush1.msra.mxu0 0.0
      %743 = vmatprep.subr.mxu0 0.0
      %744 = vmatpush1.msra.mxu0 0.0
      %745 = vmatprep.mubr.f32.mxu0 0.0
      %746 = vmatmul.mubr.f32.gmra.mrb[0].mxu0 %v676
      %v747 = vpop.f32.mrb[0].mxu0
      %v748 = vadd.f32 0.0, %v747
      %v749 = vpop.f32.mrb[0].mxu0
      %750 = vmatprep.mubr.f32.mxu0 0.0
      %751 = vmatmul.mubr.f32.gmra.mrb[0].mxu0 %v679
      %v752 = vpop.f32.mrb[0].mxu0
      %v753 = vadd.f32 0.0, %v752
      %v754 = vpop.f32.mrb[0].mxu0
      %755 = vdwg.mxu0
      %756 = vrot.lane.b32.xlu0 %v551, 112
      %v757 = vpop.permute.xlu0 %756
      %758 = vrot.lane.b32.xlu0 %v557, 112
      %v759 = vpop.permute.xlu0 %758
      %760 = vrot.lane.b32.xlu0 %v551, 48
      %v761 = vpop.permute.xlu0 %760
      %762 = vrot.lane.b32.xlu0 %v557, 48
      %v763 = vpop.permute.xlu0 %762
      %v764 = vsel %vm567, %v757, 0
      %v766 = vsel %vm567, %v759, 0
      %v768 = vsel %vm567, %v761, 0
      %v770 = vsel %vm567, %v763, 0
      %772 = vmatprep.subr.mxu0 0.0
      %773 = vmatpush1.xpose.msra.mxu0 %v768
      %774 = vmatprep.subr.mxu0 0.0
      %775 = vmatpush1.xpose.msra.mxu0 %v770
      %776 = vmatprep.subr.mxu0 0.0
      %777 = vmatpush1.xpose.msra.mxu0 0.0
      %778 = vmatprep.subr.mxu0 0.0
      %779 = vmatpush1.xpose.msra.mxu0 0.0
      %780 = vmatprep.subr.mxu0 0.0
      %781 = vmatpush1.xpose.msra.mxu0 0.0
      %782 = vmatprep.subr.mxu0 0.0
      %783 = vmatpush1.xpose.msra.mxu0 0.0
      %784 = vmatprep.subr.mxu0 0.0
      %785 = vmatpush1.xpose.msra.mxu0 0.0
      %786 = vmatprep.subr.mxu0 0.0
      %787 = vmatpush1.xpose.msra.mxu0 0.0
      %788 = vmatprep.subr.mxu0 0.0
      %789 = vmatpush1.xpose.msra.mxu0 0.0
      %790 = vmatprep.subr.mxu0 0.0
      %791 = vmatpush1.xpose.msra.mxu0 0.0
      %792 = vmatprep.subr.mxu0 0.0
      %793 = vmatpush1.xpose.msra.mxu0 0.0
      %794 = vmatprep.subr.mxu0 0.0
      %795 = vmatpush1.xpose.msra.mxu0 0.0
      %796 = vmatprep.subr.mxu0 0.0
      %797 = vmatpush1.xpose.msra.mxu0 0.0
      %798 = vmatprep.subr.mxu0 0.0
      %799 = vmatpush1.xpose.msra.mxu0 0.0
      %800 = vmatprep.subr.mxu0 0.0
      %801 = vmatpush1.xpose.msra.mxu0 0.0
      %802 = vmatprep.subr.mxu0 0.0
      %803 = vmatpush1.xpose.msra.mxu0 0.0
      %804 = vmatprep.subr.mxu0 0.0
      %805 = vmatpush1.xpose.msra.mxu0 0.0
      %806 = vmatprep.subr.mxu0 0.0
      %807 = vmatpush1.xpose.msra.mxu0 0.0
      %808 = vmatprep.subr.mxu0 0.0
      %809 = vmatpush1.xpose.msra.mxu0 0.0
      %810 = vmatprep.subr.mxu0 0.0
      %811 = vmatpush1.xpose.msra.mxu0 0.0
      %812 = vmatprep.subr.mxu0 0.0
      %813 = vmatpush1.xpose.msra.mxu0 0.0
      %814 = vmatprep.subr.mxu0 0.0
      %815 = vmatpush1.xpose.msra.mxu0 0.0
      %816 = vmatprep.subr.mxu0 0.0
      %817 = vmatpush1.xpose.msra.mxu0 0.0
      %818 = vmatprep.subr.mxu0 0.0
      %819 = vmatpush1.xpose.msra.mxu0 0.0
      %820 = vmatprep.subr.mxu0 0.0
      %821 = vmatpush1.xpose.msra.mxu0 0.0
      %822 = vmatprep.subr.mxu0 0.0
      %823 = vmatpush1.xpose.msra.mxu0 0.0
      %824 = vmatprep.subr.mxu0 0.0
      %825 = vmatpush1.xpose.msra.mxu0 0.0
      %826 = vmatprep.subr.mxu0 0.0
      %827 = vmatpush1.xpose.msra.mxu0 0.0
      %828 = vmatprep.subr.mxu0 0.0
      %829 = vmatpush1.xpose.msra.mxu0 0.0
      %830 = vmatprep.subr.mxu0 0.0
      %831 = vmatpush1.xpose.msra.mxu0 0.0
      %832 = vmatprep.subr.mxu0 0.0
      %833 = vmatpush1.xpose.msra.mxu0 0.0
      %834 = vmatprep.subr.mxu0 0.0
      %835 = vmatpush1.xpose.msra.mxu0 0.0
      %836 = vmatprep.mubr.f32.mxu0 0.0
      %837 = vmatmul.mubr.f32.gmra.mrb[0].mxu0 %v764
      %v838 = vpop.f32.mrb[0].mxu0
      %v839 = vadd.f32 0.0, %v838
      %v840 = vpop.f32.mrb[0].mxu0
      %841 = vmatprep.mubr.f32.mxu0 0.0
      %842 = vmatmul.mubr.f32.gmra.mrb[0].mxu0 %v766
      %v843 = vpop.f32.mrb[0].mxu0
      %v844 = vadd.f32 0.0, %v843
      %v845 = vpop.f32.mrb[0].mxu0
      %846 = vdwg.mxu0
      %v847 = vmul.f32 %v839, 0.25
      %v848 = vmul.f32 %v844, 0.25
      %v849 = vsel %vm567, %v847, -inf
      %850 = vmax.xlane.f32.xlu0 %v849
      %v851 = vpop.xlane.xlu0 %850
      %v852 = vsel %vm567, %v848, -inf
      %853 = vmax.xlane.f32.xlu0 %v852
      %v854 = vpop.xlane.xlu0 %853
      %v855 = vsub.f32 %v847, %v851
      %v856 = vsub.f32 %v848, %v854
      %v857 = vmul.f32 %v855, 1.442695
      %v858 = vpow.pop %v857
      %v859 = vmul.f32 %v856, 1.442695
      %v860 = vpow.pop %v859
      %v861 = vsel %vm567, %v858, 0.0
      %862 = vadd.xlane.f32.xlu0 %v861
      %v863 = vpop.xlane.xlu0 %862
      %v864 = vsel %vm567, %v860, 0.0
      %865 = vadd.xlane.f32.xlu0 %v864
      %v866 = vpop.xlane.xlu0 %865
      %v867 = vrcp.pop %v863
      %v868 = vmul.f32 %v858, %v867
      %v869 = vrcp.pop %v866
      %v870 = vmul.f32 %v860, %v869
      %873 = vrot.lane.b32.xlu0 %v553, 112
      %v874 = vpop.permute.xlu0 %873
      %875 = vrot.lane.b32.xlu0 %v559, 112
      %v876 = vpop.permute.xlu0 %875
      %v880 = vsel %vm567, %v868, 0
      %v883 = vsel %vm567, %v870, 0
      %885 = vmatprep.subr.mxu0 0.0
      %886 = vmatpush1.msra.mxu0 %v874
      %887 = vmatprep.subr.mxu0 0.0
      %888 = vmatpush1.msra.mxu0 %v876
      %889 = vmatprep.subr.mxu0 0.0
      %890 = vmatpush1.msra.mxu0 0.0
      %891 = vmatprep.subr.mxu0 0.0
      %892 = vmatpush1.msra.mxu0 0.0
      %893 = vmatprep.subr.mxu0 0.0
      %894 = vmatpush1.msra.mxu0 0.0
      %895 = vmatprep.subr.mxu0 0.0
      %896 = vmatpush1.msra.mxu0 0.0
      %897 = vmatprep.subr.mxu0 0.0
      %898 = vmatpush1.msra.mxu0 0.0
      %899 = vmatprep.subr.mxu0 0.0
      %900 = vmatpush1.msra.mxu0 0.0
      %901 = vmatprep.subr.mxu0 0.0
      %902 = vmatpush1.msra.mxu0 0.0
      %903 = vmatprep.subr.mxu0 0.0
      %904 = vmatpush1.msra.mxu0 0.0
      %905 = vmatprep.subr.mxu0 0.0
      %906 = vmatpush1.msra.mxu0 0.0
      %907 = vmatprep.subr.mxu0 0.0
      %908 = vmatpush1.msra.mxu0 0.0
      %909 = vmatprep.subr.mxu0 0.0
      %910 = vmatpush1.msra.mxu0 0.0
      %911 = vmatprep.subr.mxu0 0.0
      %912 = vmatpush1.msra.mxu0 0.0
      %913 = vmatprep.subr.mxu0 0.0
      %914 = vmatpush1.msra.mxu0 0.0
      %915 = vmatprep.subr.mxu0 0.0
      %916 = vmatpush1.msra.mxu0 0.0
      %917 = vmatprep.subr.mxu0 0.0
      %918 = vmatpush1.msra.mxu0 0.0
      %919 = vmatprep.subr.mxu0 0.0
      %920 = vmatpush1.msra.mxu0 0.0
      %921 = vmatprep.subr.mxu0 0.0
      %922 = vmatpush1.msra.mxu0 0.0
      %923 = vmatprep.subr.mxu0 0.0
      %924 = vmatpush1.msra.mxu0 0.0
      %925 = vmatprep.subr.mxu0 0.0
      %926 = vmatpush1.msra.mxu0 0.0
      %927 = vmatprep.subr.mxu0 0.0
      %928 = vmatpush1.msra.mxu0 0.0
      %929 = vmatprep.subr.mxu0 0.0
      %930 = vmatpush1.msra.mxu0 0.0
      %931 = vmatprep.subr.mxu0 0.0
      %932 = vmatpush1.msra.mxu0 0.0
      %933 = vmatprep.subr.mxu0 0.0
      %934 = vmatpush1.msra.mxu0 0.0
      %935 = vmatprep.subr.mxu0 0.0
      %936 = vmatpush1.msra.mxu0 0.0
      %937 = vmatprep.subr.mxu0 0.0
      %938 = vmatpush1.msra.mxu0 0.0
      %939 = vmatprep.subr.mxu0 0.0
      %940 = vmatpush1.msra.mxu0 0.0
      %941 = vmatprep.subr.mxu0 0.0
      %942 = vmatpush1.msra.mxu0 0.0
      %943 = vmatprep.subr.mxu0 0.0
      %944 = vmatpush1.msra.mxu0 0.0
      %945 = vmatprep.subr.mxu0 0.0
      %946 = vmatpush1.msra.mxu0 0.0
      %947 = vmatprep.subr.mxu0 0.0
      %948 = vmatpush1.msra.mxu0 0.0
      %949 = vmatprep.mubr.f32.mxu0 0.0
      %950 = vmatmul.mubr.f32.gmra.mrb[0].mxu0 %v880
      %v951 = vpop.f32.mrb[0].mxu0
      %v952 = vadd.f32 0.0, %v951
      %v953 = vpop.f32.mrb[0].mxu0
      %954 = vmatprep.mubr.f32.mxu0 0.0
      %955 = vmatmul.mubr.f32.gmra.mrb[0].mxu0 %v883
      %v956 = vpop.f32.mrb[0].mxu0
      %v957 = vadd.f32 0.0, %v956
      %v958 = vpop.f32.mrb[0].mxu0
      %959 = vdwg.mxu0
      %960 = vrot.lane.b32.xlu0 %v551, 96
      %v961 = vpop.permute.xlu0 %960
      %962 = vrot.lane.b32.xlu0 %v557, 96
      %v963 = vpop.permute.xlu0 %962
      %964 = vrot.lane.b32.xlu0 %v551, 32
      %v965 = vpop.permute.xlu0 %964
      %966 = vrot.lane.b32.xlu0 %v557, 32
      %v967 = vpop.permute.xlu0 %966
      %v968 = vsel %vm567, %v961, 0
      %v970 = vsel %vm567, %v963, 0
      %v972 = vsel %vm567, %v965, 0
      %v974 = vsel %vm567, %v967, 0
      %976 = vmatprep.subr.mxu0 0.0
      %977 = vmatpush1.xpose.msra.mxu0 %v972
      %978 = vmatprep.subr.mxu0 0.0
      %979 = vmatpush1.xpose.msra.mxu0 %v974
      %980 = vmatprep.subr.mxu0 0.0
      %981 = vmatpush1.xpose.msra.mxu0 0.0
      %982 = vmatprep.subr.mxu0 0.0
      %983 = vmatpush1.xpose.msra.mxu0 0.0
      %984 = vmatprep.subr.mxu0 0.0
      %985 = vmatpush1.xpose.msra.mxu0 0.0
      %986 = vmatprep.subr.mxu0 0.0
      %987 = vmatpush1.xpose.msra.mxu0 0.0
      %988 = vmatprep.subr.mxu0 0.0
      %989 = vmatpush1.xpose.msra.mxu0 0.0
      %990 = vmatprep.subr.mxu0 0.0
      %991 = vmatpush1.xpose.msra.mxu0 0.0
      %992 = vmatprep.subr.mxu0 0.0
      %993 = vmatpush1.xpose.msra.mxu0 0.0
      %994 = vmatprep.subr.mxu0 0.0
      %995 = vmatpush1.xpose.msra.mxu0 0.0
      %996 = vmatprep.subr.mxu0 0.0
      %997 = vmatpush1.xpose.msra.mxu0 0.0
      %998 = vmatprep.subr.mxu0 0.0
      %999 = vmatpush1.xpose.msra.mxu0 0.0
      %1000 = vmatprep.subr.mxu0 0.0
      %1001 = vmatpush1.xpose.msra.mxu0 0.0
      %1002 = vmatprep.subr.mxu0 0.0
      %1003 = vmatpush1.xpose.msra.mxu0 0.0
      %1004 = vmatprep.subr.mxu0 0.0
      %1005 = vmatpush1.xpose.msra.mxu0 0.0
      %1006 = vmatprep.subr.mxu0 0.0
      %1007 = vmatpush1.xpose.msra.mxu0 0.0
      %1008 = vmatprep.subr.mxu0 0.0
      %1009 = vmatpush1.xpose.msra.mxu0 0.0
      %1010 = vmatprep.subr.mxu0 0.0
      %1011 = vmatpush1.xpose.msra.mxu0 0.0
      %1012 = vmatprep.subr.mxu0 0.0
      %1013 = vmatpush1.xpose.msra.mxu0 0.0
      %1014 = vmatprep.subr.mxu0 0.0
      %1015 = vmatpush1.xpose.msra.mxu0 0.0
      %1016 = vmatprep.subr.mxu0 0.0
      %1017 = vmatpush1.xpose.msra.mxu0 0.0
      %1018 = vmatprep.subr.mxu0 0.0
      %1019 = vmatpush1.xpose.msra.mxu0 0.0
      %1020 = vmatprep.subr.mxu0 0.0
      %1021 = vmatpush1.xpose.msra.mxu0 0.0
      %1022 = vmatprep.subr.mxu0 0.0
      %1023 = vmatpush1.xpose.msra.mxu0 0.0
      %1024 = vmatprep.subr.mxu0 0.0
      %1025 = vmatpush1.xpose.msra.mxu0 0.0
      %1026 = vmatprep.subr.mxu0 0.0
      %1027 = vmatpush1.xpose.msra.mxu0 0.0
      %1028 = vmatprep.subr.mxu0 0.0
      %1029 = vmatpush1.xpose.msra.mxu0 0.0
      %1030 = vmatprep.subr.mxu0 0.0
      %1031 = vmatpush1.xpose.msra.mxu0 0.0
      %1032 = vmatprep.subr.mxu0 0.0
      %1033 = vmatpush1.xpose.msra.mxu0 0.0
      %1034 = vmatprep.subr.mxu0 0.0
      %1035 = vmatpush1.xpose.msra.mxu0 0.0
      %1036 = vmatprep.subr.mxu0 0.0
      %1037 = vmatpush1.xpose.msra.mxu0 0.0
      %1038 = vmatprep.subr.mxu0 0.0
      %1039 = vmatpush1.xpose.msra.mxu0 0.0
      %1040 = vmatprep.mubr.f32.mxu0 0.0
      %1041 = vmatmul.mubr.f32.gmra.mrb[0].mxu0 %v968
      %v1042 = vpop.f32.mrb[0].mxu0
      %v1043 = vadd.f32 0.0, %v1042
      %v1044 = vpop.f32.mrb[0].mxu0
      %1045 = vmatprep.mubr.f32.mxu0 0.0
      %1046 = vmatmul.mubr.f32.gmra.mrb[0].mxu0 %v970
      %v1047 = vpop.f32.mrb[0].mxu0
      %v1048 = vadd.f32 0.0, %v1047
      %v1049 = vpop.f32.mrb[0].mxu0
      %1050 = vdwg.mxu0
      %v1051 = vmul.f32 %v1043, 0.25
      %v1052 = vmul.f32 %v1048, 0.25
      %v1053 = vsel %vm567, %v1051, -inf
      %1054 = vmax.xlane.f32.xlu0 %v1053
      %v1055 = vpop.xlane.xlu0 %1054
      %v1056 = vsel %vm567, %v1052, -inf
      %1057 = vmax.xlane.f32.xlu0 %v1056
      %v1058 = vpop.xlane.xlu0 %1057
      %v1059 = vsub.f32 %v1051, %v1055
      %v1060 = vsub.f32 %v1052, %v1058
      %v1061 = vmul.f32 %v1059, 1.442695
      %v1062 = vpow.pop %v1061
      %v1063 = vmul.f32 %v1060, 1.442695
      %v1064 = vpow.pop %v1063
      %v1065 = vsel %vm567, %v1062, 0.0
      %1066 = vadd.xlane.f32.xlu0 %v1065
      %v1067 = vpop.xlane.xlu0 %1066
      %v1068 = vsel %vm567, %v1064, 0.0
      %1069 = vadd.xlane.f32.xlu0 %v1068
      %v1070 = vpop.xlane.xlu0 %1069
      %v1071 = vrcp.pop %v1067
      %v1072 = vmul.f32 %v1062, %v1071
      %v1073 = vrcp.pop %v1070
      %v1074 = vmul.f32 %v1064, %v1073
      %1075 = vrot.lane.b32.xlu0 %v553, 96
      %v1076 = vpop.permute.xlu0 %1075
      %1077 = vrot.lane.b32.xlu0 %v559, 96
      %v1078 = vpop.permute.xlu0 %1077
      %v1082 = vsel %vm567, %v1072, 0
      %v1085 = vsel %vm567, %v1074, 0
      %1087 = vmatprep.subr.mxu0 0.0
      %1088 = vmatpush1.msra.mxu0 %v1076
      %1089 = vmatprep.subr.mxu0 0.0
      %1090 = vmatpush1.msra.mxu0 %v1078
      %1091 = vmatprep.subr.mxu0 0.0
      %1092 = vmatpush1.msra.mxu0 0.0
      %1093 = vmatprep.subr.mxu0 0.0
      %1094 = vmatpush1.msra.mxu0 0.0
      %1095 = vmatprep.subr.mxu0 0.0
      %1096 = vmatpush1.msra.mxu0 0.0
      %1097 = vmatprep.subr.mxu0 0.0
      %1098 = vmatpush1.msra.mxu0 0.0
      %1099 = vmatprep.subr.mxu0 0.0
      %1100 = vmatpush1.msra.mxu0 0.0
      %1101 = vmatprep.subr.mxu0 0.0
      %1102 = vmatpush1.msra.mxu0 0.0
      %1103 = vmatprep.subr.mxu0 0.0
      %1104 = vmatpush1.msra.mxu0 0.0
      %1105 = vmatprep.subr.mxu0 0.0
      %1106 = vmatpush1.msra.mxu0 0.0
      %1107 = vmatprep.subr.mxu0 0.0
      %1108 = vmatpush1.msra.mxu0 0.0
      %1109 = vmatprep.subr.mxu0 0.0
      %1110 = vmatpush1.msra.mxu0 0.0
      %1111 = vmatprep.subr.mxu0 0.0
      %1112 = vmatpush1.msra.mxu0 0.0
      %1113 = vmatprep.subr.mxu0 0.0
      %1114 = vmatpush1.msra.mxu0 0.0
      %1115 = vmatprep.subr.mxu0 0.0
      %1116 = vmatpush1.msra.mxu0 0.0
      %1117 = vmatprep.subr.mxu0 0.0
      %1118 = vmatpush1.msra.mxu0 0.0
      %1119 = vmatprep.subr.mxu0 0.0
      %1120 = vmatpush1.msra.mxu0 0.0
      %1121 = vmatprep.subr.mxu0 0.0
      %1122 = vmatpush1.msra.mxu0 0.0
      %1123 = vmatprep.subr.mxu0 0.0
      %1124 = vmatpush1.msra.mxu0 0.0
      %1125 = vmatprep.subr.mxu0 0.0
      %1126 = vmatpush1.msra.mxu0 0.0
      %1127 = vmatprep.subr.mxu0 0.0
      %1128 = vmatpush1.msra.mxu0 0.0
      %1129 = vmatprep.subr.mxu0 0.0
      %1130 = vmatpush1.msra.mxu0 0.0
      %1131 = vmatprep.subr.mxu0 0.0
      %1132 = vmatpush1.msra.mxu0 0.0
      %1133 = vmatprep.subr.mxu0 0.0
      %1134 = vmatpush1.msra.mxu0 0.0
      %1135 = vmatprep.subr.mxu0 0.0
      %1136 = vmatpush1.msra.mxu0 0.0
      %1137 = vmatprep.subr.mxu0 0.0
      %1138 = vmatpush1.msra.mxu0 0.0
      %1139 = vmatprep.subr.mxu0 0.0
      %1140 = vmatpush1.msra.mxu0 0.0
      %1141 = vmatprep.subr.mxu0 0.0
      %1142 = vmatpush1.msra.mxu0 0.0
      %1143 = vmatprep.subr.mxu0 0.0
      %1144 = vmatpush1.msra.mxu0 0.0
      %1145 = vmatprep.subr.mxu0 0.0
      %1146 = vmatpush1.msra.mxu0 0.0
      %1147 = vmatprep.subr.mxu0 0.0
      %1148 = vmatpush1.msra.mxu0 0.0
      %1149 = vmatprep.subr.mxu0 0.0
      %1150 = vmatpush1.msra.mxu0 0.0
      %1151 = vmatprep.mubr.f32.mxu0 0.0
      %1152 = vmatmul.mubr.f32.gmra.mrb[0].mxu0 %v1082
      %v1153 = vpop.f32.mrb[0].mxu0
      %v1154 = vadd.f32 0.0, %v1153
      %v1155 = vpop.f32.mrb[0].mxu0
      %1156 = vmatprep.mubr.f32.mxu0 0.0
      %1157 = vmatmul.mubr.f32.gmra.mrb[0].mxu0 %v1085
      %v1158 = vpop.f32.mrb[0].mxu0
      %v1159 = vadd.f32 0.0, %v1158
      %v1160 = vpop.f32.mrb[0].mxu0
      %1161 = vdwg.mxu0
      %1162 = vrot.lane.b32.xlu0 %v551, 80
      %v1163 = vpop.permute.xlu0 %1162
      %1164 = vrot.lane.b32.xlu0 %v557, 80
      %v1165 = vpop.permute.xlu0 %1164
      %1166 = vrot.lane.b32.xlu0 %v551, 16
      %v1167 = vpop.permute.xlu0 %1166
      %1168 = vrot.lane.b32.xlu0 %v557, 16
      %v1169 = vpop.permute.xlu0 %1168
      %v1170 = vsel %vm567, %v1163, 0
      %v1172 = vsel %vm567, %v1165, 0
      %v1174 = vsel %vm567, %v1167, 0
      %v1176 = vsel %vm567, %v1169, 0
      %1178 = vmatprep.subr.mxu0 0.0
      %1179 = vmatpush1.xpose.msra.mxu0 %v1174
      %1180 = vmatprep.subr.mxu0 0.0
      %1181 = vmatpush1.xpose.msra.mxu0 %v1176
      %1182 = vmatprep.subr.mxu0 0.0
      %1183 = vmatpush1.xpose.msra.mxu0 0.0
      %1184 = vmatprep.subr.mxu0 0.0
      %1185 = vmatpush1.xpose.msra.mxu0 0.0
      %1186 = vmatprep.subr.mxu0 0.0
      %1187 = vmatpush1.xpose.msra.mxu0 0.0
      %1188 = vmatprep.subr.mxu0 0.0
      %1189 = vmatpush1.xpose.msra.mxu0 0.0
      %1190 = vmatprep.subr.mxu0 0.0
      %1191 = vmatpush1.xpose.msra.mxu0 0.0
      %1192 = vmatprep.subr.mxu0 0.0
      %1193 = vmatpush1.xpose.msra.mxu0 0.0
      %1194 = vmatprep.subr.mxu0 0.0
      %1195 = vmatpush1.xpose.msra.mxu0 0.0
      %1196 = vmatprep.subr.mxu0 0.0
      %1197 = vmatpush1.xpose.msra.mxu0 0.0
      %1198 = vmatprep.subr.mxu0 0.0
      %1199 = vmatpush1.xpose.msra.mxu0 0.0
      %1200 = vmatprep.subr.mxu0 0.0
      %1201 = vmatpush1.xpose.msra.mxu0 0.0
      %1202 = vmatprep.subr.mxu0 0.0
      %1203 = vmatpush1.xpose.msra.mxu0 0.0
      %1204 = vmatprep.subr.mxu0 0.0
      %1205 = vmatpush1.xpose.msra.mxu0 0.0
      %1206 = vmatprep.subr.mxu0 0.0
      %1207 = vmatpush1.xpose.msra.mxu0 0.0
      %1208 = vmatprep.subr.mxu0 0.0
      %1209 = vmatpush1.xpose.msra.mxu0 0.0
      %1210 = vmatprep.subr.mxu0 0.0
      %1211 = vmatpush1.xpose.msra.mxu0 0.0
      %1212 = vmatprep.subr.mxu0 0.0
      %1213 = vmatpush1.xpose.msra.mxu0 0.0
      %1214 = vmatprep.subr.mxu0 0.0
      %1215 = vmatpush1.xpose.msra.mxu0 0.0
      %1216 = vmatprep.subr.mxu0 0.0
      %1217 = vmatpush1.xpose.msra.mxu0 0.0
      %1218 = vmatprep.subr.mxu0 0.0
      %1219 = vmatpush1.xpose.msra.mxu0 0.0
      %1220 = vmatprep.subr.mxu0 0.0
      %1221 = vmatpush1.xpose.msra.mxu0 0.0
      %1222 = vmatprep.subr.mxu0 0.0
      %1223 = vmatpush1.xpose.msra.mxu0 0.0
      %1224 = vmatprep.subr.mxu0 0.0
      %1225 = vmatpush1.xpose.msra.mxu0 0.0
      %1226 = vmatprep.subr.mxu0 0.0
      %1227 = vmatpush1.xpose.msra.mxu0 0.0
      %1228 = vmatprep.subr.mxu0 0.0
      %1229 = vmatpush1.xpose.msra.mxu0 0.0
      %1230 = vmatprep.subr.mxu0 0.0
      %1231 = vmatpush1.xpose.msra.mxu0 0.0
      %1232 = vmatprep.subr.mxu0 0.0
      %1233 = vmatpush1.xpose.msra.mxu0 0.0
      %1234 = vmatprep.subr.mxu0 0.0
      %1235 = vmatpush1.xpose.msra.mxu0 0.0
      %1236 = vmatprep.subr.mxu0 0.0
      %1237 = vmatpush1.xpose.msra.mxu0 0.0
      %1238 = vmatprep.subr.mxu0 0.0
      %1239 = vmatpush1.xpose.msra.mxu0 0.0
      %1240 = vmatprep.subr.mxu0 0.0
      %1241 = vmatpush1.xpose.msra.mxu0 0.0
      %1242 = vmatprep.mubr.f32.mxu0 0.0
      %1243 = vmatmul.mubr.f32.gmra.mrb[0].mxu0 %v1170
      %v1244 = vpop.f32.mrb[0].mxu0
      %v1245 = vadd.f32 0.0, %v1244
      %v1246 = vpop.f32.mrb[0].mxu0
      %1247 = vmatprep.mubr.f32.mxu0 0.0
      %1248 = vmatmul.mubr.f32.gmra.mrb[0].mxu0 %v1172
      %v1249 = vpop.f32.mrb[0].mxu0
      %v1250 = vadd.f32 0.0, %v1249
      %v1251 = vpop.f32.mrb[0].mxu0
      %1252 = vdwg.mxu0
      %v1253 = vmul.f32 %v1245, 0.25
      %v1254 = vmul.f32 %v1250, 0.25
      %v1255 = vsel %vm567, %v1253, -inf
      %1256 = vmax.xlane.f32.xlu0 %v1255
      %v1257 = vpop.xlane.xlu0 %1256
      %v1258 = vsel %vm567, %v1254, -inf
      %1259 = vmax.xlane.f32.xlu0 %v1258
      %v1260 = vpop.xlane.xlu0 %1259
      %v1261 = vsub.f32 %v1253, %v1257
      %v1262 = vsub.f32 %v1254, %v1260
      %v1263 = vmul.f32 %v1261, 1.442695
      %v1264 = vpow.pop %v1263
      %v1265 = vmul.f32 %v1262, 1.442695
      %v1266 = vpow.pop %v1265
      %v1267 = vsel %vm567, %v1264, 0.0
      %1268 = vadd.xlane.f32.xlu0 %v1267
      %v1269 = vpop.xlane.xlu0 %1268
      %v1270 = vsel %vm567, %v1266, 0.0
      %1271 = vadd.xlane.f32.xlu0 %v1270
      %v1272 = vpop.xlane.xlu0 %1271
      %v1273 = vrcp.pop %v1269
      %v1274 = vmul.f32 %v1264, %v1273
      %v1275 = vrcp.pop %v1272
      %v1276 = vmul.f32 %v1266, %v1275
      %1277 = vrot.lane.b32.xlu0 %v553, 80
      %v1278 = vpop.permute.xlu0 %1277
      %1279 = vrot.lane.b32.xlu0 %v559, 80
      %v1280 = vpop.permute.xlu0 %1279
      %v1284 = vsel %vm567, %v1274, 0
      %v1287 = vsel %vm567, %v1276, 0
      %1289 = vmatprep.subr.mxu0 0.0
      %1290 = vmatpush1.msra.mxu0 %v1278
      %1291 = vmatprep.subr.mxu0 0.0
      %1292 = vmatpush1.msra.mxu0 %v1280
      %1293 = vmatprep.subr.mxu0 0.0
      %1294 = vmatpush1.msra.mxu0 0.0
      %1295 = vmatprep.subr.mxu0 0.0
      %1296 = vmatpush1.msra.mxu0 0.0
      %1297 = vmatprep.subr.mxu0 0.0
      %1298 = vmatpush1.msra.mxu0 0.0
      %1299 = vmatprep.subr.mxu0 0.0
      %1300 = vmatpush1.msra.mxu0 0.0
      %1301 = vmatprep.subr.mxu0 0.0
      %1302 = vmatpush1.msra.mxu0 0.0
      %1303 = vmatprep.subr.mxu0 0.0
      %1304 = vmatpush1.msra.mxu0 0.0
      %1305 = vmatprep.subr.mxu0 0.0
      %1306 = vmatpush1.msra.mxu0 0.0
      %1307 = vmatprep.subr.mxu0 0.0
      %1308 = vmatpush1.msra.mxu0 0.0
      %1309 = vmatprep.subr.mxu0 0.0
      %1310 = vmatpush1.msra.mxu0 0.0
      %1311 = vmatprep.subr.mxu0 0.0
      %1312 = vmatpush1.msra.mxu0 0.0
      %1313 = vmatprep.subr.mxu0 0.0
      %1314 = vmatpush1.msra.mxu0 0.0
      %1315 = vmatprep.subr.mxu0 0.0
      %1316 = vmatpush1.msra.mxu0 0.0
      %1317 = vmatprep.subr.mxu0 0.0
      %1318 = vmatpush1.msra.mxu0 0.0
      %1319 = vmatprep.subr.mxu0 0.0
      %1320 = vmatpush1.msra.mxu0 0.0
      %1321 = vmatprep.subr.mxu0 0.0
      %1322 = vmatpush1.msra.mxu0 0.0
      %1323 = vmatprep.subr.mxu0 0.0
      %1324 = vmatpush1.msra.mxu0 0.0
      %1325 = vmatprep.subr.mxu0 0.0
      %1326 = vmatpush1.msra.mxu0 0.0
      %1327 = vmatprep.subr.mxu0 0.0
      %1328 = vmatpush1.msra.mxu0 0.0
      %1329 = vmatprep.subr.mxu0 0.0
      %1330 = vmatpush1.msra.mxu0 0.0
      %1331 = vmatprep.subr.mxu0 0.0
      %1332 = vmatpush1.msra.mxu0 0.0
      %1333 = vmatprep.subr.mxu0 0.0
      %1334 = vmatpush1.msra.mxu0 0.0
      %1335 = vmatprep.subr.mxu0 0.0
      %1336 = vmatpush1.msra.mxu0 0.0
      %1337 = vmatprep.subr.mxu0 0.0
      %1338 = vmatpush1.msra.mxu0 0.0
      %1339 = vmatprep.subr.mxu0 0.0
      %1340 = vmatpush1.msra.mxu0 0.0
      %1341 = vmatprep.subr.mxu0 0.0
      %1342 = vmatpush1.msra.mxu0 0.0
      %1343 = vmatprep.subr.mxu0 0.0
      %1344 = vmatpush1.msra.mxu0 0.0
      %1345 = vmatprep.subr.mxu0 0.0
      %1346 = vmatpush1.msra.mxu0 0.0
      %1347 = vmatprep.subr.mxu0 0.0
      %1348 = vmatpush1.msra.mxu0 0.0
      %1349 = vmatprep.subr.mxu0 0.0
      %1350 = vmatpush1.msra.mxu0 0.0
      %1351 = vmatprep.subr.mxu0 0.0
      %1352 = vmatpush1.msra.mxu0 0.0
      %1353 = vmatprep.mubr.f32.mxu0 0.0
      %1354 = vmatmul.mubr.f32.gmra.mrb[0].mxu0 %v1284
      %v1355 = vpop.f32.mrb[0].mxu0
      %v1356 = vadd.f32 0.0, %v1355
      %v1357 = vpop.f32.mrb[0].mxu0
      %1358 = vmatprep.mubr.f32.mxu0 0.0
      %1359 = vmatmul.mubr.f32.gmra.mrb[0].mxu0 %v1287
      %v1360 = vpop.f32.mrb[0].mxu0
      %v1361 = vadd.f32 0.0, %v1360
      %v1362 = vpop.f32.mrb[0].mxu0
      %1363 = vdwg.mxu0
      %1366 = vrot.lane.b32.xlu0 %v952, 16
      %v1367 = vpop.permute.xlu0 %1366
      %1368 = vrot.lane.b32.xlu0 %v957, 16
      %v1369 = vpop.permute.xlu0 %1368
      %1374 = vrot.lane.b32.xlu0 %v1154, 32
      %v1375 = vpop.permute.xlu0 %1374
      %1376 = vrot.lane.b32.xlu0 %v1159, 32
      %v1377 = vpop.permute.xlu0 %1376
      %1382 = vrot.lane.b32.xlu0 %v1356, 48
      %v1383 = vpop.permute.xlu0 %1382
      %1384 = vrot.lane.b32.xlu0 %v1361, 48
      %v1385 = vpop.permute.xlu0 %1384
      %v1388 = vsel %vm567, %v748, %v1367
      %v1389 = vsel %vm567, %v753, %v1369
      %vm1390 = vcmask 261120
      %v1391 = vsel %vm1390, %v1388, %v1375
      %v1392 = vsel %vm1390, %v1389, %v1377
      %vm1393 = vcmask 392192
      %v1394 = vsel %vm1393, %v1391, %v1383
      %v1395 = vsel %vm1393, %v1392, %v1385
      %v1396 = vld [vmem:[%s4] sm:$0xff]
      %v1397 = vld [vmem:[%s4 + $0x8] sm:$0xff]
      %v1398 = vld [vmem:[%s4 + $0x10] sm:$0xff]
      %v1399 = vld [vmem:[%s4 + $0x18] sm:$0xff]
      %v1400 = vld [vmem:[%s4 + $0x20] sm:$0xff]
      %v1401 = vld [vmem:[%s4 + $0x28] sm:$0xff]
      %v1402 = vld [vmem:[%s4 + $0x30] sm:$0xff]
      %v1403 = vld [vmem:[%s4 + $0x38] sm:$0xff]
      %v1405 = vsel %vm418, %v1394, 0
      %v1408 = vsel %vm418, %v1395, 0
      %1410 = vmatprep.subr.mxu0 0.0
      %1411 = vmatpush1.msra.mxu0 %v1396
      %1412 = vmatprep.subr.mxu0 0.0
      %1413 = vmatpush1.msra.mxu0 %v1397
      %1414 = vmatprep.subr.mxu0 0.0
      %1415 = vmatpush1.msra.mxu0 %v1398
      %1416 = vmatprep.subr.mxu0 0.0
      %1417 = vmatpush1.msra.mxu0 %v1399
      %1418 = vmatprep.subr.mxu0 0.0
      %1419 = vmatpush1.msra.mxu0 %v1400
      %1420 = vmatprep.subr.mxu0 0.0
      %1421 = vmatpush1.msra.mxu0 %v1401
      %1422 = vmatprep.subr.mxu0 0.0
      %1423 = vmatpush1.msra.mxu0 %v1402
      %1424 = vmatprep.subr.mxu0 0.0
      %1425 = vmatpush1.msra.mxu0 %v1403
      %1426 = vmatprep.subr.mxu0 0.0
      %1427 = vmatpush1.msra.mxu0 0.0
      %1428 = vmatprep.subr.mxu0 0.0
      %1429 = vmatpush1.msra.mxu0 0.0
      %1430 = vmatprep.subr.mxu0 0.0
      %1431 = vmatpush1.msra.mxu0 0.0
      %1432 = vmatprep.subr.mxu0 0.0
      %1433 = vmatpush1.msra.mxu0 0.0
      %1434 = vmatprep.subr.mxu0 0.0
      %1435 = vmatpush1.msra.mxu0 0.0
      %1436 = vmatprep.subr.mxu0 0.0
      %1437 = vmatpush1.msra.mxu0 0.0
      %1438 = vmatprep.subr.mxu0 0.0
      %1439 = vmatpush1.msra.mxu0 0.0
      %1440 = vmatprep.subr.mxu0 0.0
      %1441 = vmatpush1.msra.mxu0 0.0
      %1442 = vmatprep.subr.mxu0 0.0
      %1443 = vmatpush1.msra.mxu0 0.0
      %1444 = vmatprep.subr.mxu0 0.0
      %1445 = vmatpush1.msra.mxu0 0.0
      %1446 = vmatprep.subr.mxu0 0.0
      %1447 = vmatpush1.msra.mxu0 0.0
      %1448 = vmatprep.subr.mxu0 0.0
      %1449 = vmatpush1.msra.mxu0 0.0
      %1450 = vmatprep.subr.mxu0 0.0
      %1451 = vmatpush1.msra.mxu0 0.0
      %1452 = vmatprep.subr.mxu0 0.0
      %1453 = vmatpush1.msra.mxu0 0.0
      %1454 = vmatprep.subr.mxu0 0.0
      %1455 = vmatpush1.msra.mxu0 0.0
      %1456 = vmatprep.subr.mxu0 0.0
      %1457 = vmatpush1.msra.mxu0 0.0
      %1458 = vmatprep.subr.mxu0 0.0
      %1459 = vmatpush1.msra.mxu0 0.0
      %1460 = vmatprep.subr.mxu0 0.0
      %1461 = vmatpush1.msra.mxu0 0.0
      %1462 = vmatprep.subr.mxu0 0.0
      %1463 = vmatpush1.msra.mxu0 0.0
      %1464 = vmatprep.subr.mxu0 0.0
      %1465 = vmatpush1.msra.mxu0 0.0
      %1466 = vmatprep.subr.mxu0 0.0
      %1467 = vmatpush1.msra.mxu0 0.0
      %1468 = vmatprep.subr.mxu0 0.0
      %1469 = vmatpush1.msra.mxu0 0.0
      %1470 = vmatprep.subr.mxu0 0.0
      %1471 = vmatpush1.msra.mxu0 0.0
      %1472 = vmatprep.subr.mxu0 0.0
      %1473 = vmatpush1.msra.mxu0 0.0
      %1474 = vmatprep.mubr.f32.mxu0 0.0
      %1475 = vmatmul.mubr.f32.gmra.mrb[0].mxu0 %v1405
      %v1476 = vpop.f32.mrb[0].mxu0
      %v1477 = vadd.f32 0.0, %v1476
      %v1478 = vpop.f32.mrb[0].mxu0
      %1479 = vmatprep.mubr.f32.mxu0 0.0
      %1480 = vmatmul.mubr.f32.gmra.mrb[0].mxu0 %v1408
      %v1481 = vpop.f32.mrb[0].mxu0
      %v1482 = vadd.f32 0.0, %v1481
      %v1483 = vpop.f32.mrb[0].mxu0
      %1484 = vdwg.mxu0
      %v1485 = vadd.f32 %v414, %v1477
      %v1486 = vadd.f32 %v415, %v1482
      %v1487 = vld [vmem:[%s5] sm:$0x1]
      %v1489 = vlaneseq
      %v1490 = vshrl.u32 %v1489, 7
      %v1491 = vsub.s32 0, %v1490
      %v1492 = vrot.slane %v1487, %v1491
      %v1494 = vadd.f32 %v1485, %v1492
      %v1495 = vadd.f32 %v1486, %v1492
      %v1496 = vld [vmem:[%s6] sm:$0x1]
      %v1497 = vld [vmem:[%s7] sm:$0x1]
      %v1498 = vsel %vm418, %v1494, 0.0
      %1499 = vadd.xlane.f32.xlu0 %v1498
      %v1500 = vpop.xlane.xlu0 %1499
      %v1501 = vsel %vm418, %v1495, 0.0
      %1502 = vadd.xlane.f32.xlu0 %v1501
      %v1503 = vpop.xlane.xlu0 %1502
      %v1504 = vmul.f32 %v1500, %v425
      %v1505 = vmul.f32 %v1503, %v425
      %v1506 = vsub.f32 %v1494, %v1504
      %v1507 = vsub.f32 %v1495, %v1505
      %v1508 = vmul.f32 %v1506, %v1506
      %v1509 = vmul.f32 %v1507, %v1507
      %v1510 = vsel %vm418, %v1508, 0.0
      %1511 = vadd.xlane.f32.xlu0 %v1510
      %v1512 = vpop.xlane.xlu0 %1511
      %v1513 = vsel %vm418, %v1509, 0.0
      %1514 = vadd.xlane.f32.xlu0 %v1513
      %v1515 = vpop.xlane.xlu0 %1514
      %v1516 = vmul.f32 %v1512, %v425
      %v1517 = vmul.f32 %v1515, %v425
      %v1518 = vadd.f32 %v1516, 1e-05
      %v1519 = vadd.f32 %v1517, 1e-05
      %v1520 = vrsqrt.pop %v1518
      %v1521 = vrsqrt.pop %v1519
      %v1522 = vmul.f32 %v1506, %v1520
      %v1523 = vmul.f32 %v1507, %v1521
      %v1525 = vlaneseq
      %v1526 = vshrl.u32 %v1525, 7
      %v1527 = vsub.s32 0, %v1526
      %v1528 = vrot.slane %v1496, %v1527
      %v1530 = vmul.f32 %v1522, %v1528
      %v1531 = vmul.f32 %v1523, %v1528
      %v1533 = vlaneseq
      %v1534 = vshrl.u32 %v1533, 7
      %v1535 = vsub.s32 0, %v1534
      %v1536 = vrot.slane %v1497, %v1535
      %v1538 = vadd.f32 %v1530, %v1536
      %v1539 = vadd.f32 %v1531, %v1536
      %v1540 = vld [vmem:[%s8] sm:$0xff]
      %v1541 = vld [vmem:[%s8 + $0x8] sm:$0xff]
      %v1542 = vld [vmem:[%s8 + $0x10] sm:$0xff]
      %v1543 = vld [vmem:[%s8 + $0x18] sm:$0xff]
      %v1544 = vld [vmem:[%s8 + $0x20] sm:$0xff]
      %v1545 = vld [vmem:[%s8 + $0x28] sm:$0xff]
      %v1546 = vld [vmem:[%s8 + $0x30] sm:$0xff]
      %v1547 = vld [vmem:[%s8 + $0x38] sm:$0xff]
      %v1548 = vld [vmem:[%s9] sm:$0x1]
      %v1550 = vlaneseq
      %v1551 = vshrl.u32 %v1550, 7
      %v1552 = vsub.s32 0, %v1551
      %v1553 = vrot.slane %v1548, %v1552
      %v1556 = vsel %vm418, %v1538, 0
      %v1559 = vsel %vm418, %v1539, 0
      %1561 = vmatprep.subr.mxu0 0.0
      %1562 = vmatpush1.msra.mxu0 %v1540
      %1563 = vmatprep.subr.mxu0 0.0
      %1564 = vmatpush1.msra.mxu0 %v1541
      %1565 = vmatprep.subr.mxu0 0.0
      %1566 = vmatpush1.msra.mxu0 %v1542
      %1567 = vmatprep.subr.mxu0 0.0
      %1568 = vmatpush1.msra.mxu0 %v1543
      %1569 = vmatprep.subr.mxu0 0.0
      %1570 = vmatpush1.msra.mxu0 %v1544
      %1571 = vmatprep.subr.mxu0 0.0
      %1572 = vmatpush1.msra.mxu0 %v1545
      %1573 = vmatprep.subr.mxu0 0.0
      %1574 = vmatpush1.msra.mxu0 %v1546
      %1575 = vmatprep.subr.mxu0 0.0
      %1576 = vmatpush1.msra.mxu0 %v1547
      %1577 = vmatprep.subr.mxu0 0.0
      %1578 = vmatpush1.msra.mxu0 0.0
      %1579 = vmatprep.subr.mxu0 0.0
      %1580 = vmatpush1.msra.mxu0 0.0
      %1581 = vmatprep.subr.mxu0 0.0
      %1582 = vmatpush1.msra.mxu0 0.0
      %1583 = vmatprep.subr.mxu0 0.0
      %1584 = vmatpush1.msra.mxu0 0.0
      %1585 = vmatprep.subr.mxu0 0.0
      %1586 = vmatpush1.msra.mxu0 0.0
      %1587 = vmatprep.subr.mxu0 0.0
      %1588 = vmatpush1.msra.mxu0 0.0
      %1589 = vmatprep.subr.mxu0 0.0
      %1590 = vmatpush1.msra.mxu0 0.0
      %1591 = vmatprep.subr.mxu0 0.0
      %1592 = vmatpush1.msra.mxu0 0.0
      %1593 = vmatprep.subr.mxu0 0.0
      %1594 = vmatpush1.msra.mxu0 0.0
      %1595 = vmatprep.subr.mxu0 0.0
      %1596 = vmatpush1.msra.mxu0 0.0
      %1597 = vmatprep.subr.mxu0 0.0
      %1598 = vmatpush1.msra.mxu0 0.0
      %1599 = vmatprep.subr.mxu0 0.0
      %1600 = vmatpush1.msra.mxu0 0.0
      %1601 = vmatprep.subr.mxu0 0.0
      %1602 = vmatpush1.msra.mxu0 0.0
      %1603 = vmatprep.subr.mxu0 0.0
      %1604 = vmatpush1.msra.mxu0 0.0
      %1605 = vmatprep.subr.mxu0 0.0
      %1606 = vmatpush1.msra.mxu0 0.0
      %1607 = vmatprep.subr.mxu0 0.0
      %1608 = vmatpush1.msra.mxu0 0.0
      %1609 = vmatprep.subr.mxu0 0.0
      %1610 = vmatpush1.msra.mxu0 0.0
      %1611 = vmatprep.subr.mxu0 0.0
      %1612 = vmatpush1.msra.mxu0 0.0
      %1613 = vmatprep.subr.mxu0 0.0
      %1614 = vmatpush1.msra.mxu0 0.0
      %1615 = vmatprep.subr.mxu0 0.0
      %1616 = vmatpush1.msra.mxu0 0.0
      %1617 = vmatprep.subr.mxu0 0.0
      %1618 = vmatpush1.msra.mxu0 0.0
      %1619 = vmatprep.subr.mxu0 0.0
      %1620 = vmatpush1.msra.mxu0 0.0
      %1621 = vmatprep.subr.mxu0 0.0
      %1622 = vmatpush1.msra.mxu0 0.0
      %1623 = vmatprep.subr.mxu0 0.0
      %1624 = vmatpush1.msra.mxu0 0.0
      %1625 = vmatprep.mubr.f32.mxu0 0.0
      %1626 = vmatmul.mubr.f32.gmra.mrb[0].mxu0 %v1556
      %v1627 = vpop.f32.mrb[0].mxu0
      %v1628 = vadd.f32 %v1553, %v1627
      %v1629 = vpop.f32.mrb[0].mxu0
      %1630 = vmatprep.mubr.f32.mxu0 0.0
      %1631 = vmatmul.mubr.f32.gmra.mrb[0].mxu0 %v1559
      %v1632 = vpop.f32.mrb[0].mxu0
      %v1633 = vadd.f32 %v1553, %v1632
      %v1634 = vpop.f32.mrb[0].mxu0
      %1635 = vdwg.mxu0
      %v1636 = vmul.f32 %v1628, %v1628
      %v1637 = vmul.f32 %v1633, %v1633
      %v1638 = vmul.f32 %v1628, %v1636
      %v1639 = vmul.f32 %v1633, %v1637
      %v1640 = vmul.f32 %v1638, 0.044715
      %v1641 = vmul.f32 %v1639, 0.044715
      %v1642 = vadd.f32 %v1628, %v1640
      %v1643 = vadd.f32 %v1633, %v1641
      %v1644 = vmul.f32 %v1642, 0.7978846
      %v1645 = vmul.f32 %v1643, 0.7978846
      %v1646 = vtanh.pop %v1644
      %v1647 = vtanh.pop %v1645
      %v1648 = vadd.f32 %v1646, 1.0
      %v1649 = vadd.f32 %v1647, 1.0
      %v1650 = vmul.f32 %v1648, 0.5
      %v1651 = vmul.f32 %v1649, 0.5
      %v1652 = vmul.f32 %v1628, %v1650
      %v1653 = vmul.f32 %v1633, %v1651
      %v1654 = vld [vmem:[%s10] sm:$0xff]
      %v1655 = vld [vmem:[%s10 + $0x8] sm:$0xff]
      %v1656 = vld [vmem:[%s10 + $0x10] sm:$0xff]
      %v1657 = vld [vmem:[%s10 + $0x18] sm:$0xff]
      %v1658 = vld [vmem:[%s10 + $0x20] sm:$0xff]
      %v1659 = vld [vmem:[%s10 + $0x28] sm:$0xff]
      %v1660 = vld [vmem:[%s10 + $0x30] sm:$0xff]
      %v1661 = vld [vmem:[%s10 + $0x38] sm:$0xff]
      %v1662 = vld [vmem:[%s11] sm:$0x1]
      %v1664 = vlaneseq
      %v1665 = vshrl.u32 %v1664, 7
      %v1666 = vsub.s32 0, %v1665
      %v1667 = vrot.slane %v1662, %v1666
      %v1670 = vsel %vm418, %v1652, 0
      %v1673 = vsel %vm418, %v1653, 0
      %1675 = vmatprep.subr.mxu0 0.0
      %1676 = vmatpush1.msra.mxu0 %v1654
      %1677 = vmatprep.subr.mxu0 0.0
      %1678 = vmatpush1.msra.mxu0 %v1655
      %1679 = vmatprep.subr.mxu0 0.0
      %1680 = vmatpush1.msra.mxu0 %v1656
      %1681 = vmatprep.subr.mxu0 0.0
      %1682 = vmatpush1.msra.mxu0 %v1657
      %1683 = vmatprep.subr.mxu0 0.0
      %1684 = vmatpush1.msra.mxu0 %v1658
      %1685 = vmatprep.subr.mxu0 0.0
      %1686 = vmatpush1.msra.mxu0 %v1659
      %1687 = vmatprep.subr.mxu0 0.0
      %1688 = vmatpush1.msra.mxu0 %v1660
      %1689 = vmatprep.subr.mxu0 0.0
      %1690 = vmatpush1.msra.mxu0 %v1661
      %1691 = vmatprep.subr.mxu0 0.0
      %1692 = vmatpush1.msra.mxu0 0.0
      %1693 = vmatprep.subr.mxu0 0.0
      %1694 = vmatpush1.msra.mxu0 0.0
      %1695 = vmatprep.subr.mxu0 0.0
      %1696 = vmatpush1.msra.mxu0 0.0
      %1697 = vmatprep.subr.mxu0 0.0
      %1698 = vmatpush1.msra.mxu0 0.0
      %1699 = vmatprep.subr.mxu0 0.0
      %1700 = vmatpush1.msra.mxu0 0.0
      %1701 = vmatprep.subr.mxu0 0.0
      %1702 = vmatpush1.msra.mxu0 0.0
      %1703 = vmatprep.subr.mxu0 0.0
      %1704 = vmatpush1.msra.mxu0 0.0
      %1705 = vmatprep.subr.mxu0 0.0
      %1706 = vmatpush1.msra.mxu0 0.0
      %1707 = vmatprep.subr.mxu0 0.0
      %1708 = vmatpush1.msra.mxu0 0.0
      %1709 = vmatprep.subr.mxu0 0.0
      %1710 = vmatpush1.msra.mxu0 0.0
      %1711 = vmatprep.subr.mxu0 0.0
      %1712 = vmatpush1.msra.mxu0 0.0
      %1713 = vmatprep.subr.mxu0 0.0
      %1714 = vmatpush1.msra.mxu0 0.0
      %1715 = vmatprep.subr.mxu0 0.0
      %1716 = vmatpush1.msra.mxu0 0.0
      %1717 = vmatprep.subr.mxu0 0.0
      %1718 = vmatpush1.msra.mxu0 0.0
      %1719 = vmatprep.subr.mxu0 0.0
      %1720 = vmatpush1.msra.mxu0 0.0
      %1721 = vmatprep.subr.mxu0 0.0
      %1722 = vmatpush1.msra.mxu0 0.0
      %1723 = vmatprep.subr.mxu0 0.0
      %1724 = vmatpush1.msra.mxu0 0.0
      %1725 = vmatprep.subr.mxu0 0.0
      %1726 = vmatpush1.msra.mxu0 0.0
      %1727 = vmatprep.subr.mxu0 0.0
      %1728 = vmatpush1.msra.mxu0 0.0
      %1729 = vmatprep.subr.mxu0 0.0
      %1730 = vmatpush1.msra.mxu0 0.0
      %1731 = vmatprep.subr.mxu0 0.0
      %1732 = vmatpush1.msra.mxu0 0.0
      %1733 = vmatprep.subr.mxu0 0.0
      %1734 = vmatpush1.msra.mxu0 0.0
      %1735 = vmatprep.subr.mxu0 0.0
      %1736 = vmatpush1.msra.mxu0 0.0
      %1737 = vmatprep.subr.mxu0 0.0
      %1738 = vmatpush1.msra.mxu0 0.0
      %1739 = vmatprep.mubr.f32.mxu0 0.0
      %1740 = vmatmul.mubr.f32.gmra.mrb[0].mxu0 %v1670
      %v1741 = vpop.f32.mrb[0].mxu0
      %v1742 = vadd.f32 %v1667, %v1741
      %v1743 = vpop.f32.mrb[0].mxu0
      %1744 = vmatprep.mubr.f32.mxu0 0.0
      %1745 = vmatmul.mubr.f32.gmra.mrb[0].mxu0 %v1673
      %v1746 = vpop.f32.mrb[0].mxu0
      %v1747 = vadd.f32 %v1667, %v1746
      %v1748 = vpop.f32.mrb[0].mxu0
      %1749 = vdwg.mxu0
      %v1750 = vadd.f32 %v1494, %v1742
      %v1751 = vadd.f32 %v1495, %v1747
      %1752 = vst.msk [vmem:[%s413] sm:$0xff] %vm418, %v1750
      %1753 = vst.msk [vmem:[%s413 + $0x8] sm:$0xff] %vm418, %v1751
      %p1754 = scmp.lt.s32.totalorder %s23, 1
      %s1755 = scalar_select %p1754, %s23, 1
      %s1756 = smul.addr %s1755, 2
      %s1757 = smul.addr %s1756, 8
      %s1758 = scalar_lea.vmem %s12, %s1757
      // Predicated region
      $region69: #{bin_model_forward.15} parent=67 // pred_check
        %p1759 = pneg %p298
      $region70: #{bin_model_forward.15} parent=67 // pred_check_branch
        %1761 = sbr.rel (%p1759) target = $region72
      $region71: #{bin_model_forward.15} parent=67 // pred_region
        _
      $region72: #{bin_model_forward.15} parent=67 // pred_fallthru
        _
    $region68: #{bin_model_forward.15} parent=5 // pred_fallthru
      _
    %p1762 = scmp.le.s32.totalorder 2, %s18
    // Predicated region
    $region73: #{bin_model_forward.15} parent=5 // pred_check
      %p1763 = pneg %p1762
    $region74: #{bin_model_forward.15} parent=5 // pred_check_branch
      %1765 = sbr.rel (%p1763) target = $region76
    $region75: #{bin_model_forward.15} parent=5 // pred_region
      %s1766 = ssub.s32 %s18, 2
      // Predicated region
      $region77: #{bin_model_forward.15} parent=75 // pred_check
        %p1767 = pneg %p304
      $region78: #{bin_model_forward.15} parent=75 // pred_check_branch
        %1769 = sbr.rel (%p1767) target = $region80
      $region79: #{bin_model_forward.15} parent=75 // pred_region
        %p1770 = scmp.lt.s32.totalorder %s24, 1
        %s1771 = scalar_select %p1770, %s24, 1
        %s1772 = smul.addr %s1771, 2
        %s1773 = smul.addr %s1772, 8
        %s1774 = scalar_lea.vmem %s12, %s1773
      $region80: #{bin_model_forward.15} parent=75 // pred_fallthru
        _
    $region76: #{bin_model_forward.15} parent=5 // pred_fallthru
      _
  $region6: #{bin_model_forward.15} parent=0 // loop_footer
    %s22 = sadd.s32 1, %s18
  $region7: #{bin_model_forward.15} parent=0 // loop_footer_branch
    %17 = sbr.rel target = $region3
  $region8: #{bin_model_forward.15} parent=0 // loop_exit
    _

// kernel: bin_model_forward.17
$region0: #{bin_model_forward.17}
  #allocation0 [shape = 'u32[]', space=smem, size = 0x4, offset = 0x4, fixed_abs, tag = 'smem constant byte address 0x4 - core index']
  #allocation1 [shape = 'u32[144,128]{1,0:T(1,128)}', space=vmem, size = 0x12000, scoped, tag = 'internal scratch']
  %s0 = inlined_call_operand.vmem [shape: f32[2,16,64], index: 0, kind: input, shape index: {}]
  %s1 = inlined_call_operand.vmem [shape: f32[64,48], index: 1, kind: input, shape index: {}]
  %s2 = inlined_call_operand.vmem [shape: f32[1,48], index: 2, kind: input, shape index: {}]
  %s3 = inlined_call_operand.vmem [shape: f32[2,16,48], index: 3, kind: input, shape index: {}]
  %s4 = inlined_call_operand.hbm [shape: f32[2,16,48], index: 4, kind: output, shape index: {0}]
  %s5 = inlined_call_operand.hbm [shape: f32[1,1], index: 5, kind: output, shape index: {1}]
  %6 = xla_tuple %s4, %s5
  %s7 = sld [smem:[#allocation0]]
  $region61: #{bin_model_forward.17} parent=0
    _
  %s9 = ssub.s32 1, %s7
  %s10 = scalar_select 0, %s9, %s7
  $region1: #{bin_model_forward.17} parent=0
    #allocation2 [shape = 'u8[16384]{0}', space=vmem, size = 0x4000, scoped, tag = 'output window, operand 0']
    #allocation3 [shape = 's32[2]{0}', space=sflag, size = 0x8, scoped, tag = 'scoped memory for bin_model_forward.17']
    #allocation4 [shape = 'u8[512]{0}', space=vmem, size = 0x400, scoped, tag = 'output window, operand 1, single buffered']
    #allocation5 [shape = 's32[1]{0}', space=sflag, size = 0x4, scoped, tag = 'scoped memory for bin_model_forward.17']
    %11 = vsyncpa [#allocation3], 0
    %s12 = scalar_lea.sflag [#allocation3], 1
    %13 = vsyncpa %s12, 0
    %14 = vsyncpa [#allocation5], 0
    loop: start=0, step=1, limit=4
    $region2: #{bin_model_forward.17} parent=1 // loop_pre_header
      _
    $region3: #{bin_model_forward.17} parent=1 // loop_header
      %s16 = sphi 0, %s20
      %p17 = scmp.ge.s32.totalorder %s16, 4
      %s26 = sphi 0, %s28
      %s29 = sphi 0, %s26
      %s30 = sphi 0, %s29
      %s46 = sphi 0, %s30
      %s50 = sphi 0, %s50
      %s52 = sphi 0, %s50
      %s53 = sphi 0, %s52
      %s67 = sphi 0, %s53
      %s71 = sphi 0, %s71
      %s73 = sphi 0, %s71
      %s74 = sphi 0, %s73
      %s88 = sphi 0, %s74
      %s94 = sphi 0, %s96
      %s97 = sphi 0, %s94
      %s98 = sphi 0, %s97
      %s114 = sphi 0, %s98
      %s120 = sphi 0, %s122
      %s123 = sphi 0, %s120
      %s124 = sphi 0, %s123
      %s140 = sphi 0, %s124
      %s144 = sphi 0, %s144
      %s146 = sphi 0, %s144
      %s147 = sphi 0, %s146
      %s161 = sphi 0, %s147
    $region4: #{bin_model_forward.17} parent=1 // loop_header_branch
      %19 = sbr.rel (%p17) target = $region8
    $region5: #{bin_model_forward.17} parent=1 // loop_body
      %s21 = ssub.s32 %s16, 1
      %s22 = ssub.s32 %s16, 2
      %s23 = sadd.s32 %s16, 1
      %s24 = ssub.s32 %s16, %s23
      %p25 = scmp.eq.s32.totalorder %s24, 0
      %s27 = sadd.s32 %s26, 1
      %s28 = scalar_select %p25, %s26, %s27
      %p31 = pneg %p25
      %p32 = scmp.eq.s32.totalorder %s16, 1
      %p33 = por %p31, %p32
      %p34 = scmp.ne.s32.totalorder %s26, %s29
      %p35 = scmp.eq.s32.totalorder %s16, 0
      %p36 = por %p34, %p35
      %p37 = scmp.ne.s32.totalorder %s26, %s29
      %p38 = scmp.eq.s32.totalorder %s21, 1
      %p39 = por %p37, %p38
      %p40 = scmp.ne.s32.totalorder %s29, %s30
      %p41 = scmp.eq.s32.totalorder %s21, 0
      %p42 = por %p40, %p41
      %p43 = scmp.ne.s32.totalorder %s29, %s30
      %p44 = scmp.eq.s32.totalorder %s22, 1
      %p45 = por %p43, %p44
      %p47 = scmp.ne.s32.totalorder %s30, %s46
      %p48 = scmp.eq.s32.totalorder %s22, 0
      %p49 = por %p47, %p48
      %s51 = sadd.s32 %s50, 1
      %p54 = scmp.eq.s32.totalorder %s16, 1
      %p55 = scmp.ne.s32.totalorder %s50, %s52
      %p56 = scmp.eq.s32.totalorder %s16, 0
      %p57 = por %p55, %p56
      %p58 = scmp.ne.s32.totalorder %s50, %s52
      %p59 = scmp.eq.s32.totalorder %s21, 1
      %p60 = por %p58, %p59
      %p61 = scmp.ne.s32.totalorder %s52, %s53
      %p62 = scmp.eq.s32.totalorder %s21, 0
      %p63 = por %p61, %p62
      %p64 = scmp.ne.s32.totalorder %s52, %s53
      %p65 = scmp.eq.s32.totalorder %s22, 1
      %p66 = por %p64, %p65
      %p68 = scmp.ne.s32.totalorder %s53, %s67
      %p69 = scmp.eq.s32.totalorder %s22, 0
      %p70 = por %p68, %p69
      %s72 = sadd.s32 %s71, 1
      %p75 = scmp.eq.s32.totalorder %s16, 1
      %p76 = scmp.ne.s32.totalorder %s71, %s73
      %p77 = scmp.eq.s32.totalorder %s16, 0
      %p78 = por %p76, %p77
      %p79 = scmp.ne.s32.totalorder %s71, %s73
      %p80 = scmp.eq.s32.totalorder %s21, 1
      %p81 = por %p79, %p80
      %p82 = scmp.ne.s32.totalorder %s73, %s74
      %p83 = scmp.eq.s32.totalorder %s21, 0
      %p84 = por %p82, %p83
      %p85 = scmp.ne.s32.totalorder %s73, %s74
      %p86 = scmp.eq.s32.totalorder %s22, 1
      %p87 = por %p85, %p86
      %p89 = scmp.ne.s32.totalorder %s74, %s88
      %p90 = scmp.eq.s32.totalorder %s22, 0
      %p91 = por %p89, %p90
      %s92 = ssub.s32 %s16, %s23
      %p93 = scmp.eq.s32.totalorder %s92, 0
      %s95 = sadd.s32 %s94, 1
      %s96 = scalar_select %p93, %s94, %s95
      %p99 = pneg %p93
      %p100 = scmp.eq.s32.totalorder %s16, 1
      %p101 = por %p99, %p100
      %p102 = scmp.ne.s32.totalorder %s94, %s97
      %p103 = scmp.eq.s32.totalorder %s16, 0
      %p104 = por %p102, %p103
      %p105 = scmp.ne.s32.totalorder %s94, %s97
      %p106 = scmp.eq.s32.totalorder %s21, 1
      %p107 = por %p105, %p106
      %p108 = scmp.ne.s32.totalorder %s97, %s98
      %p109 = scmp.eq.s32.totalorder %s21, 0
      %p110 = por %p108, %p109
      %p111 = scmp.ne.s32.totalorder %s97, %s98
      %p112 = scmp.eq.s32.totalorder %s22, 1
      %p113 = por %p111, %p112
      %p115 = scmp.ne.s32.totalorder %s98, %s114
      %p116 = scmp.eq.s32.totalorder %s22, 0
      %p117 = por %p115, %p116
      %s118 = ssub.s32 %s16, %s23
      %p119 = scmp.eq.s32.totalorder %s118, 0
      %s121 = sadd.s32 %s120, 1
      %s122 = scalar_select %p119, %s120, %s121
      %p125 = pneg %p119
      %p126 = scmp.eq.s32.totalorder %s16, 1
      %p127 = por %p125, %p126
      %p128 = scmp.ne.s32.totalorder %s120, %s123
      %p129 = scmp.eq.s32.totalorder %s16, 0
      %p130 = por %p128, %p129
      %p131 = scmp.ne.s32.totalorder %s120, %s123
      %p132 = scmp.eq.s32.totalorder %s21, 1
      %p133 = por %p131, %p132
      %p134 = scmp.ne.s32.totalorder %s123, %s124
      %p135 = scmp.eq.s32.totalorder %s21, 0
      %p136 = por %p134, %p135
      %p137 = scmp.ne.s32.totalorder %s123, %s124
      %p138 = scmp.eq.s32.totalorder %s22, 1
      %p139 = por %p137, %p138
      %p141 = scmp.ne.s32.totalorder %s124, %s140
      %p142 = scmp.eq.s32.totalorder %s22, 0
      %p143 = por %p141, %p142
      %s145 = sadd.s32 %s144, 1
      %p148 = scmp.eq.s32.totalorder %s16, 1
      %p149 = scmp.ne.s32.totalorder %s144, %s146
      %p150 = scmp.eq.s32.totalorder %s16, 0
      %p151 = por %p149, %p150
      %p152 = scmp.ne.s32.totalorder %s144, %s146
      %p153 = scmp.eq.s32.totalorder %s21, 1
      %p154 = por %p152, %p153
      %p155 = scmp.ne.s32.totalorder %s146, %s147
      %p156 = scmp.eq.s32.totalorder %s21, 0
      %p157 = por %p155, %p156
      %p158 = scmp.ne.s32.totalorder %s146, %s147
      %p159 = scmp.eq.s32.totalorder %s22, 1
      %p160 = por %p158, %p159
      %p162 = scmp.ne.s32.totalorder %s147, %s161
      %p163 = scmp.eq.s32.totalorder %s22, 0
      %p164 = por %p162, %p163
      %p165 = scmp.le.s32.totalorder 1, %s16
      %p166 = scmp.lt.s32.totalorder %s16, 3
      %p167 = pnand %p165, %p166
      %p168 = pneg %p167
      // Predicated region
      $region9: #{bin_model_forward.17} parent=5 // pred_check
        _
      $region10: #{bin_model_forward.17} parent=5 // pred_check_branch
        %170 = sbr.rel (%p167) target = $region12
      $region11: #{bin_model_forward.17} parent=5 // pred_region
        %s171 = ssub.s32 %s16, 1
        // Predicated region
        $region13: #{bin_model_forward.17} parent=11 // pred_check
          %p172 = pneg %p63
        $region14: #{bin_model_forward.17} parent=11 // pred_check_branch
          %174 = sbr.rel (%p172) target = $region16
        $region15: #{bin_model_forward.17} parent=11 // pred_region
          _
        $region16: #{bin_model_forward.17} parent=11 // pred_fallthru
          _
        // Predicated region
        $region17: #{bin_model_forward.17} parent=11 // pred_check
          %p175 = pneg %p84
        $region18: #{bin_model_forward.17} parent=11 // pred_check_branch
          %177 = sbr.rel (%p175) target = $region20
        $region19: #{bin_model_forward.17} parent=11 // pred_region
          _
        $region20: #{bin_model_forward.17} parent=11 // pred_fallthru
          _
      $region12: #{bin_model_forward.17} parent=5 // pred_fallthru
        _
      %p178 = scmp.lt.s32.totalorder %s16, 2
      // Predicated region
      $region21: #{bin_model_forward.17} parent=5 // pred_check
        %p179 = pneg %p178
      $region22: #{bin_model_forward.17} parent=5 // pred_check_branch
        %181 = sbr.rel (%p179) target = $region24
      $region23: #{bin_model_forward.17} parent=5 // pred_region
        // Predicated region
        $region25: #{bin_model_forward.17} parent=23 // pred_check
          %p182 = pneg %p36
        $region26: #{bin_model_forward.17} parent=23 // pred_check_branch
          %184 = sbr.rel (%p182) target = $region28
        $region27: #{bin_model_forward.17} parent=23 // pred_region
          %p185 = scmp.lt.s32.totalorder %s16, 1
          %s186 = scalar_select %p185, %s16, 1
          %s187 = smul.addr %s186, 2
          %s188 = smul.addr %s187, 8
          %s189 = scalar_lea.vmem %s0, %s188
        $region28: #{bin_model_forward.17} parent=23 // pred_fallthru
          _
        // Predicated region
        $region29: #{bin_model_forward.17} parent=23 // pred_check
          %p190 = pneg %p104
        $region30: #{bin_model_forward.17} parent=23 // pred_check_branch
          %192 = sbr.rel (%p190) target = $region32
        $region31: #{bin_model_forward.17} parent=23 // pred_region
          %p193 = scmp.lt.s32.totalorder %s16, 1
          %s194 = scalar_select %p193, %s16, 1
          %s195 = smul.addr %s194, 2
          %s196 = smul.addr %s195, 8
          %s197 = scalar_lea.vmem %s3, %s196
        $region32: #{bin_model_forward.17} parent=23 // pred_fallthru
          _
      $region24: #{bin_model_forward.17} parent=5 // pred_fallthru
        _
      %p198 = scmp.le.s32.totalorder 1, %s16
      %p199 = scmp.lt.s32.totalorder %s16, 3
      %p200 = pnand %p198, %p199
      %p201 = pneg %p200
      // Predicated region
      $region33: #{bin_model_forward.17} parent=5 // pred_check
        _
      $region34: #{bin_model_forward.17} parent=5 // pred_check_branch
        %203 = sbr.rel (%p200) target = $region36
      $region35: #{bin_model_forward.17} parent=5 // pred_region
        %s204 = ssub.s32 %s16, 1
        %p205 = scmp.lt.s32.totalorder %s21, 1
        %s206 = scalar_select %p205, %s21, 1
        %s207 = smul.addr %s206, 2
        %s208 = smul.addr %s207, 8
        %s209 = scalar_lea.vmem %s0, %s208
        %p210 = pneg %p42
        %p211 = pneg %p39
        %p212 = pneg %p63
        %p213 = pneg %p60
        %p214 = pneg %p84
        %p215 = pneg %p81
        %p216 = scmp.lt.s32.totalorder %s21, 1
        %s217 = scalar_select %p216, %s21, 1
        %s218 = smul.addr %s217, 2
        %s219 = smul.addr %s218, 8
        %s220 = scalar_lea.vmem %s3, %s219
        %p221 = pneg %p110
        %p222 = pneg %p107
        %p223 = pneg %p136
        %p224 = pneg %p133
        %s225 = sand.u32 %s123, 1
        %s226 = scalar_lea.sflag [#allocation3], %s225
        %s227 = sand.u32 %s123, 1
        %s228 = smul.addr %s227, 16
        %s229 = scalar_lea.vmem [#allocation2], %s228
        %p230 = pneg %p157
        %p231 = pneg %p154
        %p232 = scmp.lt.s32.totalorder %s21, 1
        %s233 = scalar_select %p232, %s21, 1
        %s234 = smul.addr %s233, 2
        %s235 = smul.addr %s234, 8
        %s236 = scalar_lea.vmem %s0, %s235
        %p237 = scmp.lt.s32.totalorder %s21, 1
        %s238 = scalar_select %p237, %s21, 1
        %s239 = smul.addr %s238, 2
        %s240 = smul.addr %s239, 8
        %s241 = scalar_lea.vmem %s3, %s240
        %v242 = vld [vmem:[%s236] sm:$0xff]
        %v243 = vld [vmem:[%s236 + $0x8] sm:$0xff]
        %v244 = vld [vmem:[%s1] sm:$0xff]
        %v245 = vld [vmem:[%s1 + $0x8] sm:$0xff]
        %v246 = vld [vmem:[%s1 + $0x10] sm:$0xff]
        %v247 = vld [vmem:[%s1 + $0x18] sm:$0xff]
        %v248 = vld [vmem:[%s1 + $0x20] sm:$0xff]
        %v249 = vld [vmem:[%s1 + $0x28] sm:$0xff]
        %v250 = vld [vmem:[%s1 + $0x30] sm:$0xff]
        %v251 = vld [vmem:[%s1 + $0x38] sm:$0xff]
        %v252 = vld [vmem:[%s2] sm:$0x1]
        %v254 = vlaneseq
        %v255 = vshrl.u32 %v254, 7
        %v256 = vsub.s32 0, %v255
        %v257 = vrot.slane %v252, %v256
        %vm259 = vcmask 523264
        %v261 = vsel %vm259, %v242, 0
        %v264 = vsel %vm259, %v243, 0
        %266 = vmatprep.subr.mxu0 0.0
        %267 = vmatpush1.msra.mxu0 %v244
        %268 = vmatprep.subr.mxu0 0.0
        %269 = vmatpush1.msra.mxu0 %v245
        %270 = vmatprep.subr.mxu0 0.0
        %271 = vmatpush1.msra.mxu0 %v246
        %272 = vmatprep.subr.mxu0 0.0
        %273 = vmatpush1.msra.mxu0 %v247
        %274 = vmatprep.subr.mxu0 0.0
        %275 = vmatpush1.msra.mxu0 %v248
        %276 = vmatprep.subr.mxu0 0.0
        %277 = vmatpush1.msra.mxu0 %v249
        %278 = vmatprep.subr.mxu0 0.0
        %279 = vmatpush1.msra.mxu0 %v250
        %280 = vmatprep.subr.mxu0 0.0
        %281 = vmatpush1.msra.mxu0 %v251
        %282 = vmatprep.subr.mxu0 0.0
        %283 = vmatpush1.msra.mxu0 0.0
        %284 = vmatprep.subr.mxu0 0.0
        %285 = vmatpush1.msra.mxu0 0.0
        %286 = vmatprep.subr.mxu0 0.0
        %287 = vmatpush1.msra.mxu0 0.0
        %288 = vmatprep.subr.mxu0 0.0
        %289 = vmatpush1.msra.mxu0 0.0
        %290 = vmatprep.subr.mxu0 0.0
        %291 = vmatpush1.msra.mxu0 0.0
        %292 = vmatprep.subr.mxu0 0.0
        %293 = vmatpush1.msra.mxu0 0.0
        %294 = vmatprep.subr.mxu0 0.0
        %295 = vmatpush1.msra.mxu0 0.0
        %296 = vmatprep.subr.mxu0 0.0
        %297 = vmatpush1.msra.mxu0 0.0
        %298 = vmatprep.subr.mxu0 0.0
        %299 = vmatpush1.msra.mxu0 0.0
        %300 = vmatprep.subr.mxu0 0.0
        %301 = vmatpush1.msra.mxu0 0.0
        %302 = vmatprep.subr.mxu0 0.0
        %303 = vmatpush1.msra.mxu0 0.0
        %304 = vmatprep.subr.mxu0 0.0
        %305 = vmatpush1.msra.mxu0 0.0
        %306 = vmatprep.subr.mxu0 0.0
        %307 = vmatpush1.msra.mxu0 0.0
        %308 = vmatprep.subr.mxu0 0.0
        %309 = vmatpush1.msra.mxu0 0.0
        %310 = vmatprep.subr.mxu0 0.0
        %311 = vmatpush1.msra.mxu0 0.0
        %312 = vmatprep.subr.mxu0 0.0
        %313 = vmatpush1.msra.mxu0 0.0
        %314 = vmatprep.subr.mxu0 0.0
        %315 = vmatpush1.msra.mxu0 0.0
        %316 = vmatprep.subr.mxu0 0.0
        %317 = vmatpush1.msra.mxu0 0.0
        %318 = vmatprep.subr.mxu0 0.0
        %319 = vmatpush1.msra.mxu0 0.0
        %320 = vmatprep.subr.mxu0 0.0
        %321 = vmatpush1.msra.mxu0 0.0
        %322 = vmatprep.subr.mxu0 0.0
        %323 = vmatpush1.msra.mxu0 0.0
        %324 = vmatprep.subr.mxu0 0.0
        %325 = vmatpush1.msra.mxu0 0.0
        %326 = vmatprep.subr.mxu0 0.0
        %327 = vmatpush1.msra.mxu0 0.0
        %328 = vmatprep.subr.mxu0 0.0
        %329 = vmatpush1.msra.mxu0 0.0
        %330 = vmatprep.mubr.f32.mxu0 0.0
        %331 = vmatmul.mubr.f32.gmra.mrb[0].mxu0 %v261
        %v332 = vpop.f32.mrb[0].mxu0
        %v333 = vadd.f32 %v257, %v332
        %v334 = vpop.f32.mrb[0].mxu0
        %335 = vmatprep.mubr.f32.mxu0 0.0
        %336 = vmatmul.mubr.f32.gmra.mrb[0].mxu0 %v264
        %v337 = vpop.f32.mrb[0].mxu0
        %v338 = vadd.f32 %v257, %v337
        %v339 = vpop.f32.mrb[0].mxu0
        %340 = vdwg.mxu0
        %vm341 = vcmask 392192
        %342 = vst.msk [vmem:[%s229] sm:$0xff] %vm341, %v333
        %343 = vst.msk [vmem:[%s229 + $0x8] sm:$0xff] %vm341, %v338
        %v344 = vld [vmem:[%s241] sm:$0xff]
        %v345 = vld [vmem:[%s241 + $0x8] sm:$0xff]
        %v346 = vsub.f32 %v333, %v344
        %v347 = vsub.f32 %v338, %v345
        %p348 = scmp.eq.s32.totalorder %s21, 0
        // Predicated region
        $region37: #{bin_model_forward.17} parent=35 // pred_check
          %p349 = pneg %p348
        $region38: #{bin_model_forward.17} parent=35 // pred_check_branch
          %351 = sbr.rel (%p349) target = $region40
        $region39: #{bin_model_forward.17} parent=35 // pred_region
          %vm352 = vcmask 0
          %353 = vst.msk [vmem:[#allocation4] sm:$0x1] %vm352, 0.0
        $region40: #{bin_model_forward.17} parent=35 // pred_fallthru
          _
        %v354 = vld [vmem:[#allocation4] sm:$0x1]
        %v355 = vmul.f32 %v346, %v346
        %v356 = vmul.f32 %v347, %v347
        %v357 = vsel %vm341, %v355, 0.0
        %v358 = vsel %vm341, %v356, 0.0
        %v359 = vadd.f32 %v357, %v358
        %360 = vadd.xlane.f32.xlu0 %v359
        %v361 = vpop.xlane.xlu0 %360
        %v362 = vrot.slane %v361, 4
        %v363 = vadd.f32 %v361, %v362
        %v364 = vrot.slane %v363, 2
        %v365 = vadd.f32 %v363, %v364
        %v366 = vrot.slane %v365, 1
        %v367 = vadd.f32 %v365, %v366
        %s368 = vtos %v367
        %v369 = vstv %s368
        %v370 = vadd.f32 %v354, %v369
        %vm371 = vcmask 0
        %372 = vst.msk [vmem:[#allocation4] sm:$0x1] %vm371, %v370
        %s373 = sand.u32 %s123, 1
        %s374 = scalar_lea.sflag [#allocation3], %s373
        %s375 = sand.u32 %s123, 1
        %s376 = smul.addr %s375, 16
        %s377 = scalar_lea.vmem [#allocation2], %s376
        // Predicated region
        $region41: #{bin_model_forward.17} parent=35 // pred_check
          %p378 = pneg %p133
        $region42: #{bin_model_forward.17} parent=35 // pred_check_branch
          %380 = sbr.rel (%p378) target = $region44
        $region43: #{bin_model_forward.17} parent=35 // pred_region
          %s382 = ssub.s32 256, 256
          %383 = vsyncadd %s374, %s382
          %s384 = smul.addr %s21, 2
          %s385 = smul.addr %s384, 128
          %s386 = scalar_lea.hbm %s4, %s385
          %s387 = sshll.u32 %s377, 4
          %s388 = int_to_ptr.vmem [resolvable:$true] %s387
          %393 = dma.vmem_to_hbm [thread:$0]  %s388, 256, %s386, %s374, 128, 128, 8
        $region44: #{bin_model_forward.17} parent=35 // pred_fallthru
          _
        // Predicated region
        $region45: #{bin_model_forward.17} parent=35 // pred_check
          %p394 = pneg %p154
        $region46: #{bin_model_forward.17} parent=35 // pred_check_branch
          %396 = sbr.rel (%p394) target = $region48
        $region47: #{bin_model_forward.17} parent=35 // pred_region
          %s398 = ssub.s32 16, 16
          %399 = vsyncadd [#allocation5], %s398
          %s401 = sshll.u32 [#allocation4], 4
          %s402 = int_to_ptr.vmem [resolvable:$true] %s401
          %404 = dma.vmem_to_hbm [thread:$0]  %s402, 16, %s5, [#allocation5]
        $region48: #{bin_model_forward.17} parent=35 // pred_fallthru
          _
        // Predicated region
        $region49: #{bin_model_forward.17} parent=35 // pred_check
          %p405 = pneg %p154
        $region50: #{bin_model_forward.17} parent=35 // pred_check_branch
          %407 = sbr.rel (%p405) target = $region52
        $region51: #{bin_model_forward.17} parent=35 // pred_region
          %408 = dma.done [#allocation5], 16
        $region52: #{bin_model_forward.17} parent=35 // pred_fallthru
          _
      $region36: #{bin_model_forward.17} parent=5 // pred_fallthru
        _
      %p409 = scmp.le.s32.totalorder 2, %s16
      // Predicated region
      $region53: #{bin_model_forward.17} parent=5 // pred_check
        %p410 = pneg %p409
      $region54: #{bin_model_forward.17} parent=5 // pred_check_branch
        %412 = sbr.rel (%p410) target = $region56
      $region55: #{bin_model_forward.17} parent=5 // pred_region
        %s413 = ssub.s32 %s16, 2
        // Predicated region
        $region57: #{bin_model_forward.17} parent=55 // pred_check
          %p414 = pneg %p139
        $region58: #{bin_model_forward.17} parent=55 // pred_check_branch
          %416 = sbr.rel (%p414) target = $region60
        $region59: #{bin_model_forward.17} parent=55 // pred_region
          %s417 = sand.u32 %s124, 1
          %s418 = scalar_lea.sflag [#allocation3], %s417
          %s419 = sand.u32 %s124, 1
          %s420 = smul.addr %s419, 16
          %s421 = scalar_lea.vmem [#allocation2], %s420
          %422 = dma.done %s418, 256
        $region60: #{bin_model_forward.17} parent=55 // pred_fallthru
          _
      $region56: #{bin_model_forward.17} parent=5 // pred_fallthru
        _
    $region6: #{bin_model_forward.17} parent=1 // loop_footer
      %s20 = sadd.s32 1, %s16
    $region7: #{bin_model_forward.17} parent=1 // loop_footer_branch
      %15 = sbr.rel target = $region3
    $region8: #{bin_model_forward.17} parent=1 // loop_exit
      _
    %423 = vsyncpa [#allocation3], 1
    %s424 = scalar_lea.sflag [#allocation3], 1
    %425 = vsyncpa %s424, 1
    %426 = vsyncpa [#allocation5], 1

</llo_original>
